<compile_context>
chip_gen: v7x
topology: tpu7x:2x2x1
jax: 0.10.0
libtpu: 0.0.40
codegen_flags: <defaults>
</compile_context>

<pallas_src>
import jax
import jax.numpy as jnp
from jax.experimental import pallas as pl
from jax.experimental.pallas import tpu as pltpu

# Small stand-in for the original VOCAB_SIZE = 2880 (HIDDEN_SIZE == VOCAB_SIZE,
# same structure, lane-aligned).
VOCAB_SIZE = 128
HIDDEN_SIZE = VOCAB_SIZE
T_BLK = 16          # decoding time steps fused per grid iteration


# ----------------------------- Pallas kernel -------------------------------

def decoder_kernel(gx1_ref, gx2_ref, state0_ref,
                   w1_hh_ref, w2_bot_ref, w2_hh_ref,
                   out_ref,
                   state_s):
    """One grid step == T_BLK decoding time steps; runs both LSTM cells."""
    H = HIDDEN_SIZE
    V = VOCAB_SIZE

    # Load the initial hidden / cell states on the first grid step only.
    @pl.when(pl.program_id(0) == 0)
    def _():
        state_s[...] = state0_ref[...]

    # Hoisted, once-per-grid-step ref loads (not re-traced per unrolled step).
    gx1 = gx1_ref[...]          # (1, 4H) f32: pad_token @ W1_ih + b1 (const in t)
    gx2 = gx2_ref[...]          # (T_BLK, 4V) f32: input_word @ W2_top + b2
    w1 = w1_hh_ref[...]         # (H, 4H) bf16
    w2b = w2_bot_ref[...]       # (H, 4V) bf16
    w2h = w2_hh_ref[...]        # (V, 4V) bf16

    st = state_s[...]           # (4, V) f32, persists across grid blocks
    h1, c1 = st[0:1, :], st[1:2, :]
    h2, c2 = st[2:3, :], st[3:4, :]

    # ---- Phase 1: LSTM1 serial recurrence (states carried in vregs) --------
    h1_rows = []
    for _ in range(T_BLK):
        g1 = gx1 + jnp.dot(h1.astype(jnp.bfloat16), w1,
                           preferred_element_type=jnp.float32)        # (1, 4H)
        i1 = jax.nn.sigmoid(g1[:, 0:H])
        f1 = jax.nn.sigmoid(g1[:, H:2 * H])
        n1 = jnp.tanh(g1[:, 2 * H:3 * H])
        o1 = jax.nn.sigmoid(g1[:, 3 * H:4 * H])
        c1 = f1 * c1 + i1 * n1
        h1 = o1 * jnp.tanh(c1)
        h1_rows.append(h1)
    h1_blk = jnp.concatenate(h1_rows, axis=0)                         # (T_BLK, H)

    # ---- Phase 2: batched, non-recurrent h1 · W2_bot over the whole block --
    g2_blk = gx2 + jnp.dot(h1_blk.astype(jnp.bfloat16), w2b,
                           preferred_element_type=jnp.float32)        # (T_BLK, 4V)

    # ---- Phase 3: LSTM2 serial recurrence (only the h2·W2_hh GEMV/step) ----
    h2_rows = []
    for i in range(T_BLK):
        g2 = g2_blk[i:i + 1, :] + jnp.dot(h2.astype(jnp.bfloat16), w2h,
                                          preferred_element_type=jnp.float32)
        i2 = jax.nn.sigmoid(g2[:, 0:V])
        f2 = jax.nn.sigmoid(g2[:, V:2 * V])
        n2 = jnp.tanh(g2[:, 2 * V:3 * V])
        o2 = jax.nn.sigmoid(g2[:, 3 * V:4 * V])
        c2 = f2 * c2 + i2 * n2
        h2 = o2 * jnp.tanh(c2)
        h2_rows.append(h2)

    # Single lane/sublane-dense slab store for the whole block.
    out_ref[...] = jnp.concatenate(h2_rows, axis=0)                   # (T_BLK, V)

    # Flush the recurrent state once per grid block (not per time step).
    state_s[...] = jnp.concatenate([h1, c1, h2, c2], axis=0)


# ------------------------------- wrappers ------------------------------------

def prepare_decoder_params(params):
    """One-time weight prep (transpose, bf16 cast, bias fusion, W2_ih split)."""
    V = VOCAB_SIZE
    return dict(
        w1_ih_t=params["w1_ih"].T,                                # (V, 4H) f32
        w1_hh_t=params["w1_hh"].T.astype(jnp.bfloat16),           # (H, 4H) bf16
        b1=(params["b1_ih"] + params["b1_hh"])[None, :],          # (1, 4H) f32
        w2_top_t=params["w2_ih"][:, :V].T,                        # (V, 4V) f32
        w2_bot_t=params["w2_ih"][:, V:].T.astype(jnp.bfloat16),   # (H, 4V) bf16
        w2_hh_t=params["w2_hh"].T.astype(jnp.bfloat16),           # (V, 4V) bf16
        b2=(params["b2_ih"] + params["b2_hh"])[None, :],          # (1, 4V) f32
    )


def decoder_forward(input_word, hidden1, cell1, hidden2, cell2, pad_token, prep):
    S, B, V = input_word.shape
    assert B == 1, "batch must be 1 (implied by the original forward's unsqueeze)"
    assert V == VOCAB_SIZE
    H = HIDDEN_SIZE
    f32 = jnp.float32

    # Last encoder step of each state, stacked into one small (4, V) input
    # (H == V for this module).
    state0 = jnp.concatenate(
        [hidden1[:, -1, :], cell1[:, -1, :], hidden2[:, -1, :], cell2[:, -1, :]],
        axis=0).astype(f32)                                          # (4, V)

    # Algebraic hoists out of the recurrence (done by XLA on the MXU):
    #  * LSTM1 input term is constant over t (pad_token is repeated).
    #  * input_word-dependent half of LSTM2's W_ih has no recurrence: one
    #    dense (S,V)x(V,4V) matmul instead of S separate M=1 GEMVs.
    gx1 = (pad_token.reshape(1, V).astype(f32) @ prep["w1_ih_t"]
           + prep["b1"]).astype(f32)                                 # (1, 4H)
    gx2 = (input_word.reshape(S, V).astype(f32) @ prep["w2_top_t"]
           + prep["b2"]).astype(f32)                                 # (S, 4V)

    n_blk = pl.cdiv(S, T_BLK)
    s_pad = n_blk * T_BLK
    if s_pad != S:
        gx2 = jnp.pad(gx2, ((0, s_pad - S), (0, 0)))

    def fixed(shape):
        return pl.BlockSpec(shape, lambda t: (0, 0))

    grid_spec = pltpu.PrefetchScalarGridSpec(
        num_scalar_prefetch=0,
        grid=(n_blk,),
        in_specs=[
            fixed((1, 4 * H)),                               # gx1 (const)
            pl.BlockSpec((T_BLK, 4 * V), lambda t: (t, 0)),  # gx2[t-block]
            fixed((4, V)),                                   # stacked init states
            fixed((H, 4 * H)),                               # W1_hh^T (bf16)
            fixed((H, 4 * V)),                               # W2_ih^T bottom (bf16)
            fixed((V, 4 * V)),                               # W2_hh^T (bf16)
        ],
        out_specs=pl.BlockSpec((T_BLK, V), lambda t: (t, 0)),
        scratch_shapes=[
            pltpu.VMEM((4, V), f32),   # stacked h1/c1/h2/c2 recurrent state
        ],
    )

    out = pl.pallas_call(
        decoder_kernel,
        out_shape=jax.ShapeDtypeStruct((s_pad, V), f32),
        grid_spec=grid_spec,
        compiler_params=pltpu.CompilerParams(
            dimension_semantics=("arbitrary",),   # recurrence -> sequential
            vmem_limit_bytes=32 * 1024 * 1024,    # tiny here; size to resident
                                                  # weights at real V=2880
        ),
    )(gx1, gx2, state0,
      prep["w1_hh_t"], prep["w2_bot_t"], prep["w2_hh_t"])

    return out[:S].reshape(S, B, V)


decoder_forward_jit = jax.jit(decoder_forward)


# ------------------------- deterministic parameters -------------------------

def init_params(key):
    """Shapes match nn.LSTM(V, H) and nn.LSTM(2H, V); PyTorch-style U(-k, k)."""
    H, V = HIDDEN_SIZE, VOCAB_SIZE
    k1 = 1.0 / float(H) ** 0.5
    k2 = 1.0 / float(V) ** 0.5
    ks = jax.random.split(key, 8)
    u = lambda k, shape, lim: jax.random.uniform(k, shape, jnp.float32, -lim, lim)
    return dict(
        w1_ih=u(ks[0], (4 * H, V), k1),      # weight_ih_l0 of lstm1
        w1_hh=u(ks[1], (4 * H, H), k1),
        b1_ih=u(ks[2], (4 * H,), k1),
        b1_hh=u(ks[3], (4 * H,), k1),
        w2_ih=u(ks[4], (4 * V, V + H), k2),  # weight_ih_l0 of lstm2
        w2_hh=u(ks[5], (4 * V, V), k2),
        b2_ih=u(ks[6], (4 * V,), k2),
        b2_hh=u(ks[7], (4 * V,), k2),
    )


# --------------------------- pure-JAX reference ------------------------------

def _lstm_ref(xs, h0, c0, w_ih, w_hh, b_ih, b_hh):
    H = h0.shape[-1]
    def step(carry, x):
        h, c = carry
        g = x @ w_ih.T + h @ w_hh.T + b_ih + b_hh
        i = jax.nn.sigmoid(g[:, :H]); f = jax.nn.sigmoid(g[:, H:2 * H])
        n = jnp.tanh(g[:, 2 * H:3 * H]); o = jax.nn.sigmoid(g[:, 3 * H:])
        c = f * c + i * n
        h = o * jnp.tanh(c)
        return (h, c), h
    _, hs = jax.lax.scan(step, (h0, c0), xs)
    return hs


def decoder_ref(input_word, hidden1, cell1, hidden2, cell2, pad_token, params):
    S = input_word.shape[0]
    pad_rep = jnp.broadcast_to(pad_token, (S,) + pad_token.shape[1:])
    mid = _lstm_ref(pad_rep, hidden1[:, -1, :], cell1[:, -1, :],
                    params["w1_ih"], params["w1_hh"],
                    params["b1_ih"], params["b1_hh"])
    new_mid = jnp.concatenate([input_word, mid], axis=2)
    return _lstm_ref(new_mid, hidden2[:, -1, :], cell2[:, -1, :],
                     params["w2_ih"], params["w2_hh"],
                     params["b2_ih"], params["b2_hh"])


# --------------------------------- main --------------------------------------

if __name__ == "__main__":
    V, H = VOCAB_SIZE, HIDDEN_SIZE
    S = 32         # decoding sequence length (2 fused blocks of T_BLK=16)
    B = 1          # batch (must be 1 for this module's forward)
    T = 3          # encoder time steps stored in hidden*/cell*

    key = jax.random.PRNGKey(0)
    kp, k1, k2, k3, k4, k5, k6 = jax.random.split(key, 7)

    params = init_params(kp)
    prep = prepare_decoder_params(params)        # one-time weight prep

    input_word = jax.random.normal(k1, (S, B, V), jnp.float32)
    hidden1 = jax.random.normal(k2, (1, T, H), jnp.float32)
    cell1 = jax.random.normal(k3, (1, T, H), jnp.float32)
    hidden2 = jax.random.normal(k4, (1, T, V), jnp.float32)
    cell2 = jax.random.normal(k5, (1, T, V), jnp.float32)
    pad_token = jax.random.normal(k6, (1, B, V), jnp.float32)

    out = decoder_forward_jit(input_word, hidden1, cell1, hidden2, cell2,
                              pad_token, prep)
    out = jax.block_until_ready(out)

    ref = decoder_ref(input_word, hidden1, cell1, hidden2, cell2,
                      pad_token, params)
    assert out.shape == (S, B, V), out.shape
    # bf16 recurrent weights (f32 accumulation) vs. the pure-f32 reference;
    # tolerance accounts for drift through the 32-step recurrence.
    assert jnp.allclose(out, ref, atol=4e-2, rtol=4e-2), "mismatch vs reference"

    print("KERNEL_OK")
</pallas_src>

<mosaic_0001>
module attributes {stable_mosaic.version = 11 : i64} {
  func.func @decoder_kernel(%arg0: i32, %arg1: memref<1x512xf32, #tpu.memory_space<vmem>>, %arg2: memref<16x512xf32, #tpu.memory_space<vmem>>, %arg3: memref<4x128xf32, #tpu.memory_space<vmem>>, %arg4: memref<128x512xbf16, #tpu.memory_space<vmem>>, %arg5: memref<128x512xbf16, #tpu.memory_space<vmem>>, %arg6: memref<128x512xbf16, #tpu.memory_space<vmem>>, %arg7: memref<16x128xf32, #tpu.memory_space<vmem>>, %arg8: memref<4x128xf32, #tpu.memory_space<vmem>>) attributes {dimension_semantics = [#tpu.dimension_semantics<arbitrary>], iteration_bounds = array<i64: 2>, scalar_prefetch = 0 : i64, scratch_operands = 1 : i64, tpu.core_type = #tpu.core_type<tc>, window_params = [{pipeline_mode = #tpu.pipeline_mode<synchronous>, transform_indices = @transform_0, window_bounds = array<i64: 1, 512>}, {transform_indices = @transform_1, window_bounds = array<i64: 16, 512>}, {pipeline_mode = #tpu.pipeline_mode<synchronous>, transform_indices = @transform_2, window_bounds = array<i64: 4, 128>}, {pipeline_mode = #tpu.pipeline_mode<synchronous>, transform_indices = @transform_3, window_bounds = array<i64: 128, 512>}, {pipeline_mode = #tpu.pipeline_mode<synchronous>, transform_indices = @transform_4, window_bounds = array<i64: 128, 512>}, {pipeline_mode = #tpu.pipeline_mode<synchronous>, transform_indices = @transform_5, window_bounds = array<i64: 128, 512>}, {transform_indices = @transform_6, window_bounds = array<i64: 16, 128>}]} {
    %c0_i32 = arith.constant 0 : i32
    %0 = arith.cmpi eq, %arg0, %c0_i32 : i32
    %1 = arith.extui %0 : i1 to i32
    %c0_i32_0 = arith.constant 0 : i32
    %2 = arith.cmpi ne, %1, %c0_i32_0 : i32
    scf.if %2 {
      %c0_144 = arith.constant 0 : index
      %c0_145 = arith.constant 0 : index
      %933 = vector.load %arg3[%c0_144, %c0_145] : memref<4x128xf32, #tpu.memory_space<vmem>>, vector<4x128xf32>
      %c0_146 = arith.constant 0 : index
      %c0_147 = arith.constant 0 : index
      %934 = vector.load %arg8[%c0_146, %c0_147] : memref<4x128xf32, #tpu.memory_space<vmem>>, vector<4x128xf32>
      tpu.vector_store %arg8[%c0_146, %c0_147], %933 {strides = array<i32>} : memref<4x128xf32, #tpu.memory_space<vmem>>, vector<4x128xf32>,
    } else {
    }
    %c0 = arith.constant 0 : index
    %c0_1 = arith.constant 0 : index
    %3 = vector.load %arg1[%c0, %c0_1] : memref<1x512xf32, #tpu.memory_space<vmem>>, vector<1x512xf32>
    %c0_2 = arith.constant 0 : index
    %c0_3 = arith.constant 0 : index
    %4 = vector.load %arg2[%c0_2, %c0_3] : memref<16x512xf32, #tpu.memory_space<vmem>>, vector<16x512xf32>
    %c0_4 = arith.constant 0 : index
    %c0_5 = arith.constant 0 : index
    %5 = vector.load %arg4[%c0_4, %c0_5] : memref<128x512xbf16, #tpu.memory_space<vmem>>, vector<128x512xbf16>
    %c0_6 = arith.constant 0 : index
    %c0_7 = arith.constant 0 : index
    %6 = vector.load %arg5[%c0_6, %c0_7] : memref<128x512xbf16, #tpu.memory_space<vmem>>, vector<128x512xbf16>
    %c0_8 = arith.constant 0 : index
    %c0_9 = arith.constant 0 : index
    %7 = vector.load %arg6[%c0_8, %c0_9] : memref<128x512xbf16, #tpu.memory_space<vmem>>, vector<128x512xbf16>
    %c0_10 = arith.constant 0 : index
    %c0_11 = arith.constant 0 : index
    %8 = vector.load %arg8[%c0_10, %c0_11] : memref<4x128xf32, #tpu.memory_space<vmem>>, vector<4x128xf32>
    %9 = vector.extract_strided_slice %8 {offsets = [0, 0], sizes = [1, 128], strides = [1, 1]} : vector<4x128xf32> to vector<1x128xf32>
    %10 = vector.extract_strided_slice %8 {offsets = [1, 0], sizes = [1, 128], strides = [1, 1]} : vector<4x128xf32> to vector<1x128xf32>
    %11 = vector.extract_strided_slice %8 {offsets = [2, 0], sizes = [1, 128], strides = [1, 1]} : vector<4x128xf32> to vector<1x128xf32>
    %12 = vector.extract_strided_slice %8 {offsets = [3, 0], sizes = [1, 128], strides = [1, 1]} : vector<4x128xf32> to vector<1x128xf32>
    %13 = arith.truncf %9 : vector<1x128xf32> to vector<1x128xbf16>
    %cst = arith.constant dense<0.000000e+00> : vector<1x512xf32>
    %14 = tpu.matmul %13, %5, %cst {dimension_numbers = #tpu.dot_dimension_numbers<[1], [0], [0], [1], [0, 0, 1, 1], [], []>} : vector<1x128xbf16>, vector<128x512xbf16>, vector<1x512xf32> -> vector<1x512xf32>
    %15 = arith.addf %3, %14 : vector<1x512xf32>
    %16 = vector.extract_strided_slice %15 {offsets = [0, 0], sizes = [1, 128], strides = [1, 1]} : vector<1x512xf32> to vector<1x128xf32>
    %17 = arith.negf %16 : vector<1x128xf32>
    %18 = math.exp %17 : vector<1x128xf32>
    %cst_12 = arith.constant 1.000000e+00 : f32
    %19 = vector.broadcast %cst_12 : f32 to vector<1x128xf32>
    %20 = arith.addf %19, %18 : vector<1x128xf32>
    %21 = arith.divf %19, %20 : vector<1x128xf32>
    %22 = vector.extract_strided_slice %15 {offsets = [0, 128], sizes = [1, 128], strides = [1, 1]} : vector<1x512xf32> to vector<1x128xf32>
    %23 = arith.negf %22 : vector<1x128xf32>
    %24 = math.exp %23 : vector<1x128xf32>
    %cst_13 = arith.constant 1.000000e+00 : f32
    %25 = vector.broadcast %cst_13 : f32 to vector<1x128xf32>
    %26 = arith.addf %25, %24 : vector<1x128xf32>
    %27 = arith.divf %25, %26 : vector<1x128xf32>
    %28 = vector.extract_strided_slice %15 {offsets = [0, 256], sizes = [1, 128], strides = [1, 1]} : vector<1x512xf32> to vector<1x128xf32>
    %29 = math.tanh %28 : vector<1x128xf32>
    %30 = vector.extract_strided_slice %15 {offsets = [0, 384], sizes = [1, 128], strides = [1, 1]} : vector<1x512xf32> to vector<1x128xf32>
    %31 = arith.negf %30 : vector<1x128xf32>
    %32 = math.exp %31 : vector<1x128xf32>
    %cst_14 = arith.constant 1.000000e+00 : f32
    %33 = vector.broadcast %cst_14 : f32 to vector<1x128xf32>
    %34 = arith.addf %33, %32 : vector<1x128xf32>
    %35 = arith.divf %33, %34 : vector<1x128xf32>
    %36 = arith.mulf %27, %10 : vector<1x128xf32>
    %37 = arith.mulf %21, %29 : vector<1x128xf32>
    %38 = arith.addf %36, %37 : vector<1x128xf32>
    %39 = math.tanh %38 : vector<1x128xf32>
    %40 = arith.mulf %35, %39 : vector<1x128xf32>
    %41 = arith.truncf %40 : vector<1x128xf32> to vector<1x128xbf16>
    %cst_15 = arith.constant dense<0.000000e+00> : vector<1x512xf32>
    %42 = tpu.matmul %41, %5, %cst_15 {dimension_numbers = #tpu.dot_dimension_numbers<[1], [0], [0], [1], [0, 0, 1, 1], [], []>} : vector<1x128xbf16>, vector<128x512xbf16>, vector<1x512xf32> -> vector<1x512xf32>
    %43 = arith.addf %3, %42 : vector<1x512xf32>
    %44 = vector.extract_strided_slice %43 {offsets = [0, 0], sizes = [1, 128], strides = [1, 1]} : vector<1x512xf32> to vector<1x128xf32>
    %45 = arith.negf %44 : vector<1x128xf32>
    %46 = math.exp %45 : vector<1x128xf32>
    %cst_16 = arith.constant 1.000000e+00 : f32
    %47 = vector.broadcast %cst_16 : f32 to vector<1x128xf32>
    %48 = arith.addf %47, %46 : vector<1x128xf32>
    %49 = arith.divf %47, %48 : vector<1x128xf32>
    %50 = vector.extract_strided_slice %43 {offsets = [0, 128], sizes = [1, 128], strides = [1, 1]} : vector<1x512xf32> to vector<1x128xf32>
    %51 = arith.negf %50 : vector<1x128xf32>
    %52 = math.exp %51 : vector<1x128xf32>
    %cst_17 = arith.constant 1.000000e+00 : f32
    %53 = vector.broadcast %cst_17 : f32 to vector<1x128xf32>
    %54 = arith.addf %53, %52 : vector<1x128xf32>
    %55 = arith.divf %53, %54 : vector<1x128xf32>
    %56 = vector.extract_strided_slice %43 {offsets = [0, 256], sizes = [1, 128], strides = [1, 1]} : vector<1x512xf32> to vector<1x128xf32>
    %57 = math.tanh %56 : vector<1x128xf32>
    %58 = vector.extract_strided_slice %43 {offsets = [0, 384], sizes = [1, 128], strides = [1, 1]} : vector<1x512xf32> to vector<1x128xf32>
    %59 = arith.negf %58 : vector<1x128xf32>
    %60 = math.exp %59 : vector<1x128xf32>
    %cst_18 = arith.constant 1.000000e+00 : f32
    %61 = vector.broadcast %cst_18 : f32 to vector<1x128xf32>
    %62 = arith.addf %61, %60 : vector<1x128xf32>
    %63 = arith.divf %61, %62 : vector<1x128xf32>
    %64 = arith.mulf %55, %38 : vector<1x128xf32>
    %65 = arith.mulf %49, %57 : vector<1x128xf32>
    %66 = arith.addf %64, %65 : vector<1x128xf32>
    %67 = math.tanh %66 : vector<1x128xf32>
    %68 = arith.mulf %63, %67 : vector<1x128xf32>
    %69 = arith.truncf %68 : vector<1x128xf32> to vector<1x128xbf16>
    %cst_19 = arith.constant dense<0.000000e+00> : vector<1x512xf32>
    %70 = tpu.matmul %69, %5, %cst_19 {dimension_numbers = #tpu.dot_dimension_numbers<[1], [0], [0], [1], [0, 0, 1, 1], [], []>} : vector<1x128xbf16>, vector<128x512xbf16>, vector<1x512xf32> -> vector<1x512xf32>
    %71 = arith.addf %3, %70 : vector<1x512xf32>
    %72 = vector.extract_strided_slice %71 {offsets = [0, 0], sizes = [1, 128], strides = [1, 1]} : vector<1x512xf32> to vector<1x128xf32>
    %73 = arith.negf %72 : vector<1x128xf32>
    %74 = math.exp %73 : vector<1x128xf32>
    %cst_20 = arith.constant 1.000000e+00 : f32
    %75 = vector.broadcast %cst_20 : f32 to vector<1x128xf32>
    %76 = arith.addf %75, %74 : vector<1x128xf32>
    %77 = arith.divf %75, %76 : vector<1x128xf32>
    %78 = vector.extract_strided_slice %71 {offsets = [0, 128], sizes = [1, 128], strides = [1, 1]} : vector<1x512xf32> to vector<1x128xf32>
    %79 = arith.negf %78 : vector<1x128xf32>
    %80 = math.exp %79 : vector<1x128xf32>
    %cst_21 = arith.constant 1.000000e+00 : f32
    %81 = vector.broadcast %cst_21 : f32 to vector<1x128xf32>
    %82 = arith.addf %81, %80 : vector<1x128xf32>
    %83 = arith.divf %81, %82 : vector<1x128xf32>
    %84 = vector.extract_strided_slice %71 {offsets = [0, 256], sizes = [1, 128], strides = [1, 1]} : vector<1x512xf32> to vector<1x128xf32>
    %85 = math.tanh %84 : vector<1x128xf32>
    %86 = vector.extract_strided_slice %71 {offsets = [0, 384], sizes = [1, 128], strides = [1, 1]} : vector<1x512xf32> to vector<1x128xf32>
    %87 = arith.negf %86 : vector<1x128xf32>
    %88 = math.exp %87 : vector<1x128xf32>
    %cst_22 = arith.constant 1.000000e+00 : f32
    %89 = vector.broadcast %cst_22 : f32 to vector<1x128xf32>
    %90 = arith.addf %89, %88 : vector<1x128xf32>
    %91 = arith.divf %89, %90 : vector<1x128xf32>
    %92 = arith.mulf %83, %66 : vector<1x128xf32>
    %93 = arith.mulf %77, %85 : vector<1x128xf32>
    %94 = arith.addf %92, %93 : vector<1x128xf32>
    %95 = math.tanh %94 : vector<1x128xf32>
    %96 = arith.mulf %91, %95 : vector<1x128xf32>
    %97 = arith.truncf %96 : vector<1x128xf32> to vector<1x128xbf16>
    %cst_23 = arith.constant dense<0.000000e+00> : vector<1x512xf32>
    %98 = tpu.matmul %97, %5, %cst_23 {dimension_numbers = #tpu.dot_dimension_numbers<[1], [0], [0], [1], [0, 0, 1, 1], [], []>} : vector<1x128xbf16>, vector<128x512xbf16>, vector<1x512xf32> -> vector<1x512xf32>
    %99 = arith.addf %3, %98 : vector<1x512xf32>
    %100 = vector.extract_strided_slice %99 {offsets = [0, 0], sizes = [1, 128], strides = [1, 1]} : vector<1x512xf32> to vector<1x128xf32>
    %101 = arith.negf %100 : vector<1x128xf32>
    %102 = math.exp %101 : vector<1x128xf32>
    %cst_24 = arith.constant 1.000000e+00 : f32
    %103 = vector.broadcast %cst_24 : f32 to vector<1x128xf32>
    %104 = arith.addf %103, %102 : vector<1x128xf32>
    %105 = arith.divf %103, %104 : vector<1x128xf32>
    %106 = vector.extract_strided_slice %99 {offsets = [0, 128], sizes = [1, 128], strides = [1, 1]} : vector<1x512xf32> to vector<1x128xf32>
    %107 = arith.negf %106 : vector<1x128xf32>
    %108 = math.exp %107 : vector<1x128xf32>
    %cst_25 = arith.constant 1.000000e+00 : f32
    %109 = vector.broadcast %cst_25 : f32 to vector<1x128xf32>
    %110 = arith.addf %109, %108 : vector<1x128xf32>
    %111 = arith.divf %109, %110 : vector<1x128xf32>
    %112 = vector.extract_strided_slice %99 {offsets = [0, 256], sizes = [1, 128], strides = [1, 1]} : vector<1x512xf32> to vector<1x128xf32>
    %113 = math.tanh %112 : vector<1x128xf32>
    %114 = vector.extract_strided_slice %99 {offsets = [0, 384], sizes = [1, 128], strides = [1, 1]} : vector<1x512xf32> to vector<1x128xf32>
    %115 = arith.negf %114 : vector<1x128xf32>
    %116 = math.exp %115 : vector<1x128xf32>
    %cst_26 = arith.constant 1.000000e+00 : f32
    %117 = vector.broadcast %cst_26 : f32 to vector<1x128xf32>
    %118 = arith.addf %117, %116 : vector<1x128xf32>
    %119 = arith.divf %117, %118 : vector<1x128xf32>
    %120 = arith.mulf %111, %94 : vector<1x128xf32>
    %121 = arith.mulf %105, %113 : vector<1x128xf32>
    %122 = arith.addf %120, %121 : vector<1x128xf32>
    %123 = math.tanh %122 : vector<1x128xf32>
    %124 = arith.mulf %119, %123 : vector<1x128xf32>
    %125 = arith.truncf %124 : vector<1x128xf32> to vector<1x128xbf16>
    %cst_27 = arith.constant dense<0.000000e+00> : vector<1x512xf32>
    %126 = tpu.matmul %125, %5, %cst_27 {dimension_numbers = #tpu.dot_dimension_numbers<[1], [0], [0], [1], [0, 0, 1, 1], [], []>} : vector<1x128xbf16>, vector<128x512xbf16>, vector<1x512xf32> -> vector<1x512xf32>
    %127 = arith.addf %3, %126 : vector<1x512xf32>
    %128 = vector.extract_strided_slice %127 {offsets = [0, 0], sizes = [1, 128], strides = [1, 1]} : vector<1x512xf32> to vector<1x128xf32>
    %129 = arith.negf %128 : vector<1x128xf32>
    %130 = math.exp %129 : vector<1x128xf32>
    %cst_28 = arith.constant 1.000000e+00 : f32
    %131 = vector.broadcast %cst_28 : f32 to vector<1x128xf32>
    %132 = arith.addf %131, %130 : vector<1x128xf32>
    %133 = arith.divf %131, %132 : vector<1x128xf32>
    %134 = vector.extract_strided_slice %127 {offsets = [0, 128], sizes = [1, 128], strides = [1, 1]} : vector<1x512xf32> to vector<1x128xf32>
    %135 = arith.negf %134 : vector<1x128xf32>
    %136 = math.exp %135 : vector<1x128xf32>
    %cst_29 = arith.constant 1.000000e+00 : f32
    %137 = vector.broadcast %cst_29 : f32 to vector<1x128xf32>
    %138 = arith.addf %137, %136 : vector<1x128xf32>
    %139 = arith.divf %137, %138 : vector<1x128xf32>
    %140 = vector.extract_strided_slice %127 {offsets = [0, 256], sizes = [1, 128], strides = [1, 1]} : vector<1x512xf32> to vector<1x128xf32>
    %141 = math.tanh %140 : vector<1x128xf32>
    %142 = vector.extract_strided_slice %127 {offsets = [0, 384], sizes = [1, 128], strides = [1, 1]} : vector<1x512xf32> to vector<1x128xf32>
    %143 = arith.negf %142 : vector<1x128xf32>
    %144 = math.exp %143 : vector<1x128xf32>
    %cst_30 = arith.constant 1.000000e+00 : f32
    %145 = vector.broadcast %cst_30 : f32 to vector<1x128xf32>
    %146 = arith.addf %145, %144 : vector<1x128xf32>
    %147 = arith.divf %145, %146 : vector<1x128xf32>
    %148 = arith.mulf %139, %122 : vector<1x128xf32>
    %149 = arith.mulf %133, %141 : vector<1x128xf32>
    %150 = arith.addf %148, %149 : vector<1x128xf32>
    %151 = math.tanh %150 : vector<1x128xf32>
    %152 = arith.mulf %147, %151 : vector<1x128xf32>
    %153 = arith.truncf %152 : vector<1x128xf32> to vector<1x128xbf16>
    %cst_31 = arith.constant dense<0.000000e+00> : vector<1x512xf32>
    %154 = tpu.matmul %153, %5, %cst_31 {dimension_numbers = #tpu.dot_dimension_numbers<[1], [0], [0], [1], [0, 0, 1, 1], [], []>} : vector<1x128xbf16>, vector<128x512xbf16>, vector<1x512xf32> -> vector<1x512xf32>
    %155 = arith.addf %3, %154 : vector<1x512xf32>
    %156 = vector.extract_strided_slice %155 {offsets = [0, 0], sizes = [1, 128], strides = [1, 1]} : vector<1x512xf32> to vector<1x128xf32>
    %157 = arith.negf %156 : vector<1x128xf32>
    %158 = math.exp %157 : vector<1x128xf32>
    %cst_32 = arith.constant 1.000000e+00 : f32
    %159 = vector.broadcast %cst_32 : f32 to vector<1x128xf32>
    %160 = arith.addf %159, %158 : vector<1x128xf32>
    %161 = arith.divf %159, %160 : vector<1x128xf32>
    %162 = vector.extract_strided_slice %155 {offsets = [0, 128], sizes = [1, 128], strides = [1, 1]} : vector<1x512xf32> to vector<1x128xf32>
    %163 = arith.negf %162 : vector<1x128xf32>
    %164 = math.exp %163 : vector<1x128xf32>
    %cst_33 = arith.constant 1.000000e+00 : f32
    %165 = vector.broadcast %cst_33 : f32 to vector<1x128xf32>
    %166 = arith.addf %165, %164 : vector<1x128xf32>
    %167 = arith.divf %165, %166 : vector<1x128xf32>
    %168 = vector.extract_strided_slice %155 {offsets = [0, 256], sizes = [1, 128], strides = [1, 1]} : vector<1x512xf32> to vector<1x128xf32>
    %169 = math.tanh %168 : vector<1x128xf32>
    %170 = vector.extract_strided_slice %155 {offsets = [0, 384], sizes = [1, 128], strides = [1, 1]} : vector<1x512xf32> to vector<1x128xf32>
    %171 = arith.negf %170 : vector<1x128xf32>
    %172 = math.exp %171 : vector<1x128xf32>
    %cst_34 = arith.constant 1.000000e+00 : f32
    %173 = vector.broadcast %cst_34 : f32 to vector<1x128xf32>
    %174 = arith.addf %173, %172 : vector<1x128xf32>
    %175 = arith.divf %173, %174 : vector<1x128xf32>
    %176 = arith.mulf %167, %150 : vector<1x128xf32>
    %177 = arith.mulf %161, %169 : vector<1x128xf32>
    %178 = arith.addf %176, %177 : vector<1x128xf32>
    %179 = math.tanh %178 : vector<1x128xf32>
    %180 = arith.mulf %175, %179 : vector<1x128xf32>
    %181 = arith.truncf %180 : vector<1x128xf32> to vector<1x128xbf16>
    %cst_35 = arith.constant dense<0.000000e+00> : vector<1x512xf32>
    %182 = tpu.matmul %181, %5, %cst_35 {dimension_numbers = #tpu.dot_dimension_numbers<[1], [0], [0], [1], [0, 0, 1, 1], [], []>} : vector<1x128xbf16>, vector<128x512xbf16>, vector<1x512xf32> -> vector<1x512xf32>
    %183 = arith.addf %3, %182 : vector<1x512xf32>
    %184 = vector.extract_strided_slice %183 {offsets = [0, 0], sizes = [1, 128], strides = [1, 1]} : vector<1x512xf32> to vector<1x128xf32>
    %185 = arith.negf %184 : vector<1x128xf32>
    %186 = math.exp %185 : vector<1x128xf32>
    %cst_36 = arith.constant 1.000000e+00 : f32
    %187 = vector.broadcast %cst_36 : f32 to vector<1x128xf32>
    %188 = arith.addf %187, %186 : vector<1x128xf32>
    %189 = arith.divf %187, %188 : vector<1x128xf32>
    %190 = vector.extract_strided_slice %183 {offsets = [0, 128], sizes = [1, 128], strides = [1, 1]} : vector<1x512xf32> to vector<1x128xf32>
    %191 = arith.negf %190 : vector<1x128xf32>
    %192 = math.exp %191 : vector<1x128xf32>
    %cst_37 = arith.constant 1.000000e+00 : f32
    %193 = vector.broadcast %cst_37 : f32 to vector<1x128xf32>
    %194 = arith.addf %193, %192 : vector<1x128xf32>
    %195 = arith.divf %193, %194 : vector<1x128xf32>
    %196 = vector.extract_strided_slice %183 {offsets = [0, 256], sizes = [1, 128], strides = [1, 1]} : vector<1x512xf32> to vector<1x128xf32>
    %197 = math.tanh %196 : vector<1x128xf32>
    %198 = vector.extract_strided_slice %183 {offsets = [0, 384], sizes = [1, 128], strides = [1, 1]} : vector<1x512xf32> to vector<1x128xf32>
    %199 = arith.negf %198 : vector<1x128xf32>
    %200 = math.exp %199 : vector<1x128xf32>
    %cst_38 = arith.constant 1.000000e+00 : f32
    %201 = vector.broadcast %cst_38 : f32 to vector<1x128xf32>
    %202 = arith.addf %201, %200 : vector<1x128xf32>
    %203 = arith.divf %201, %202 : vector<1x128xf32>
    %204 = arith.mulf %195, %178 : vector<1x128xf32>
    %205 = arith.mulf %189, %197 : vector<1x128xf32>
    %206 = arith.addf %204, %205 : vector<1x128xf32>
    %207 = math.tanh %206 : vector<1x128xf32>
    %208 = arith.mulf %203, %207 : vector<1x128xf32>
    %209 = arith.truncf %208 : vector<1x128xf32> to vector<1x128xbf16>
    %cst_39 = arith.constant dense<0.000000e+00> : vector<1x512xf32>
    %210 = tpu.matmul %209, %5, %cst_39 {dimension_numbers = #tpu.dot_dimension_numbers<[1], [0], [0], [1], [0, 0, 1, 1], [], []>} : vector<1x128xbf16>, vector<128x512xbf16>, vector<1x512xf32> -> vector<1x512xf32>
    %211 = arith.addf %3, %210 : vector<1x512xf32>
    %212 = vector.extract_strided_slice %211 {offsets = [0, 0], sizes = [1, 128], strides = [1, 1]} : vector<1x512xf32> to vector<1x128xf32>
    %213 = arith.negf %212 : vector<1x128xf32>
    %214 = math.exp %213 : vector<1x128xf32>
    %cst_40 = arith.constant 1.000000e+00 : f32
    %215 = vector.broadcast %cst_40 : f32 to vector<1x128xf32>
    %216 = arith.addf %215, %214 : vector<1x128xf32>
    %217 = arith.divf %215, %216 : vector<1x128xf32>
    %218 = vector.extract_strided_slice %211 {offsets = [0, 128], sizes = [1, 128], strides = [1, 1]} : vector<1x512xf32> to vector<1x128xf32>
    %219 = arith.negf %218 : vector<1x128xf32>
    %220 = math.exp %219 : vector<1x128xf32>
    %cst_41 = arith.constant 1.000000e+00 : f32
    %221 = vector.broadcast %cst_41 : f32 to vector<1x128xf32>
    %222 = arith.addf %221, %220 : vector<1x128xf32>
    %223 = arith.divf %221, %222 : vector<1x128xf32>
    %224 = vector.extract_strided_slice %211 {offsets = [0, 256], sizes = [1, 128], strides = [1, 1]} : vector<1x512xf32> to vector<1x128xf32>
    %225 = math.tanh %224 : vector<1x128xf32>
    %226 = vector.extract_strided_slice %211 {offsets = [0, 384], sizes = [1, 128], strides = [1, 1]} : vector<1x512xf32> to vector<1x128xf32>
    %227 = arith.negf %226 : vector<1x128xf32>
    %228 = math.exp %227 : vector<1x128xf32>
    %cst_42 = arith.constant 1.000000e+00 : f32
    %229 = vector.broadcast %cst_42 : f32 to vector<1x128xf32>
    %230 = arith.addf %229, %228 : vector<1x128xf32>
    %231 = arith.divf %229, %230 : vector<1x128xf32>
    %232 = arith.mulf %223, %206 : vector<1x128xf32>
    %233 = arith.mulf %217, %225 : vector<1x128xf32>
    %234 = arith.addf %232, %233 : vector<1x128xf32>
    %235 = math.tanh %234 : vector<1x128xf32>
    %236 = arith.mulf %231, %235 : vector<1x128xf32>
    %237 = arith.truncf %236 : vector<1x128xf32> to vector<1x128xbf16>
    %cst_43 = arith.constant dense<0.000000e+00> : vector<1x512xf32>
    %238 = tpu.matmul %237, %5, %cst_43 {dimension_numbers = #tpu.dot_dimension_numbers<[1], [0], [0], [1], [0, 0, 1, 1], [], []>} : vector<1x128xbf16>, vector<128x512xbf16>, vector<1x512xf32> -> vector<1x512xf32>
    %239 = arith.addf %3, %238 : vector<1x512xf32>
    %240 = vector.extract_strided_slice %239 {offsets = [0, 0], sizes = [1, 128], strides = [1, 1]} : vector<1x512xf32> to vector<1x128xf32>
    %241 = arith.negf %240 : vector<1x128xf32>
    %242 = math.exp %241 : vector<1x128xf32>
    %cst_44 = arith.constant 1.000000e+00 : f32
    %243 = vector.broadcast %cst_44 : f32 to vector<1x128xf32>
    %244 = arith.addf %243, %242 : vector<1x128xf32>
    %245 = arith.divf %243, %244 : vector<1x128xf32>
    %246 = vector.extract_strided_slice %239 {offsets = [0, 128], sizes = [1, 128], strides = [1, 1]} : vector<1x512xf32> to vector<1x128xf32>
    %247 = arith.negf %246 : vector<1x128xf32>
    %248 = math.exp %247 : vector<1x128xf32>
    %cst_45 = arith.constant 1.000000e+00 : f32
    %249 = vector.broadcast %cst_45 : f32 to vector<1x128xf32>
    %250 = arith.addf %249, %248 : vector<1x128xf32>
    %251 = arith.divf %249, %250 : vector<1x128xf32>
    %252 = vector.extract_strided_slice %239 {offsets = [0, 256], sizes = [1, 128], strides = [1, 1]} : vector<1x512xf32> to vector<1x128xf32>
    %253 = math.tanh %252 : vector<1x128xf32>
    %254 = vector.extract_strided_slice %239 {offsets = [0, 384], sizes = [1, 128], strides = [1, 1]} : vector<1x512xf32> to vector<1x128xf32>
    %255 = arith.negf %254 : vector<1x128xf32>
    %256 = math.exp %255 : vector<1x128xf32>
    %cst_46 = arith.constant 1.000000e+00 : f32
    %257 = vector.broadcast %cst_46 : f32 to vector<1x128xf32>
    %258 = arith.addf %257, %256 : vector<1x128xf32>
    %259 = arith.divf %257, %258 : vector<1x128xf32>
    %260 = arith.mulf %251, %234 : vector<1x128xf32>
    %261 = arith.mulf %245, %253 : vector<1x128xf32>
    %262 = arith.addf %260, %261 : vector<1x128xf32>
    %263 = math.tanh %262 : vector<1x128xf32>
    %264 = arith.mulf %259, %263 : vector<1x128xf32>
    %265 = arith.truncf %264 : vector<1x128xf32> to vector<1x128xbf16>
    %cst_47 = arith.constant dense<0.000000e+00> : vector<1x512xf32>
    %266 = tpu.matmul %265, %5, %cst_47 {dimension_numbers = #tpu.dot_dimension_numbers<[1], [0], [0], [1], [0, 0, 1, 1], [], []>} : vector<1x128xbf16>, vector<128x512xbf16>, vector<1x512xf32> -> vector<1x512xf32>
    %267 = arith.addf %3, %266 : vector<1x512xf32>
    %268 = vector.extract_strided_slice %267 {offsets = [0, 0], sizes = [1, 128], strides = [1, 1]} : vector<1x512xf32> to vector<1x128xf32>
    %269 = arith.negf %268 : vector<1x128xf32>
    %270 = math.exp %269 : vector<1x128xf32>
    %cst_48 = arith.constant 1.000000e+00 : f32
    %271 = vector.broadcast %cst_48 : f32 to vector<1x128xf32>
    %272 = arith.addf %271, %270 : vector<1x128xf32>
    %273 = arith.divf %271, %272 : vector<1x128xf32>
    %274 = vector.extract_strided_slice %267 {offsets = [0, 128], sizes = [1, 128], strides = [1, 1]} : vector<1x512xf32> to vector<1x128xf32>
    %275 = arith.negf %274 : vector<1x128xf32>
    %276 = math.exp %275 : vector<1x128xf32>
    %cst_49 = arith.constant 1.000000e+00 : f32
    %277 = vector.broadcast %cst_49 : f32 to vector<1x128xf32>
    %278 = arith.addf %277, %276 : vector<1x128xf32>
    %279 = arith.divf %277, %278 : vector<1x128xf32>
    %280 = vector.extract_strided_slice %267 {offsets = [0, 256], sizes = [1, 128], strides = [1, 1]} : vector<1x512xf32> to vector<1x128xf32>
    %281 = math.tanh %280 : vector<1x128xf32>
    %282 = vector.extract_strided_slice %267 {offsets = [0, 384], sizes = [1, 128], strides = [1, 1]} : vector<1x512xf32> to vector<1x128xf32>
    %283 = arith.negf %282 : vector<1x128xf32>
    %284 = math.exp %283 : vector<1x128xf32>
    %cst_50 = arith.constant 1.000000e+00 : f32
    %285 = vector.broadcast %cst_50 : f32 to vector<1x128xf32>
    %286 = arith.addf %285, %284 : vector<1x128xf32>
    %287 = arith.divf %285, %286 : vector<1x128xf32>
    %288 = arith.mulf %279, %262 : vector<1x128xf32>
    %289 = arith.mulf %273, %281 : vector<1x128xf32>
    %290 = arith.addf %288, %289 : vector<1x128xf32>
    %291 = math.tanh %290 : vector<1x128xf32>
    %292 = arith.mulf %287, %291 : vector<1x128xf32>
    %293 = arith.truncf %292 : vector<1x128xf32> to vector<1x128xbf16>
    %cst_51 = arith.constant dense<0.000000e+00> : vector<1x512xf32>
    %294 = tpu.matmul %293, %5, %cst_51 {dimension_numbers = #tpu.dot_dimension_numbers<[1], [0], [0], [1], [0, 0, 1, 1], [], []>} : vector<1x128xbf16>, vector<128x512xbf16>, vector<1x512xf32> -> vector<1x512xf32>
    %295 = arith.addf %3, %294 : vector<1x512xf32>
    %296 = vector.extract_strided_slice %295 {offsets = [0, 0], sizes = [1, 128], strides = [1, 1]} : vector<1x512xf32> to vector<1x128xf32>
    %297 = arith.negf %296 : vector<1x128xf32>
    %298 = math.exp %297 : vector<1x128xf32>
    %cst_52 = arith.constant 1.000000e+00 : f32
    %299 = vector.broadcast %cst_52 : f32 to vector<1x128xf32>
    %300 = arith.addf %299, %298 : vector<1x128xf32>
    %301 = arith.divf %299, %300 : vector<1x128xf32>
    %302 = vector.extract_strided_slice %295 {offsets = [0, 128], sizes = [1, 128], strides = [1, 1]} : vector<1x512xf32> to vector<1x128xf32>
    %303 = arith.negf %302 : vector<1x128xf32>
    %304 = math.exp %303 : vector<1x128xf32>
    %cst_53 = arith.constant 1.000000e+00 : f32
    %305 = vector.broadcast %cst_53 : f32 to vector<1x128xf32>
    %306 = arith.addf %305, %304 : vector<1x128xf32>
    %307 = arith.divf %305, %306 : vector<1x128xf32>
    %308 = vector.extract_strided_slice %295 {offsets = [0, 256], sizes = [1, 128], strides = [1, 1]} : vector<1x512xf32> to vector<1x128xf32>
    %309 = math.tanh %308 : vector<1x128xf32>
    %310 = vector.extract_strided_slice %295 {offsets = [0, 384], sizes = [1, 128], strides = [1, 1]} : vector<1x512xf32> to vector<1x128xf32>
    %311 = arith.negf %310 : vector<1x128xf32>
    %312 = math.exp %311 : vector<1x128xf32>
    %cst_54 = arith.constant 1.000000e+00 : f32
    %313 = vector.broadcast %cst_54 : f32 to vector<1x128xf32>
    %314 = arith.addf %313, %312 : vector<1x128xf32>
    %315 = arith.divf %313, %314 : vector<1x128xf32>
    %316 = arith.mulf %307, %290 : vector<1x128xf32>
    %317 = arith.mulf %301, %309 : vector<1x128xf32>
    %318 = arith.addf %316, %317 : vector<1x128xf32>
    %319 = math.tanh %318 : vector<1x128xf32>
    %320 = arith.mulf %315, %319 : vector<1x128xf32>
    %321 = arith.truncf %320 : vector<1x128xf32> to vector<1x128xbf16>
    %cst_55 = arith.constant dense<0.000000e+00> : vector<1x512xf32>
    %322 = tpu.matmul %321, %5, %cst_55 {dimension_numbers = #tpu.dot_dimension_numbers<[1], [0], [0], [1], [0, 0, 1, 1], [], []>} : vector<1x128xbf16>, vector<128x512xbf16>, vector<1x512xf32> -> vector<1x512xf32>
    %323 = arith.addf %3, %322 : vector<1x512xf32>
    %324 = vector.extract_strided_slice %323 {offsets = [0, 0], sizes = [1, 128], strides = [1, 1]} : vector<1x512xf32> to vector<1x128xf32>
    %325 = arith.negf %324 : vector<1x128xf32>
    %326 = math.exp %325 : vector<1x128xf32>
    %cst_56 = arith.constant 1.000000e+00 : f32
    %327 = vector.broadcast %cst_56 : f32 to vector<1x128xf32>
    %328 = arith.addf %327, %326 : vector<1x128xf32>
    %329 = arith.divf %327, %328 : vector<1x128xf32>
    %330 = vector.extract_strided_slice %323 {offsets = [0, 128], sizes = [1, 128], strides = [1, 1]} : vector<1x512xf32> to vector<1x128xf32>
    %331 = arith.negf %330 : vector<1x128xf32>
    %332 = math.exp %331 : vector<1x128xf32>
    %cst_57 = arith.constant 1.000000e+00 : f32
    %333 = vector.broadcast %cst_57 : f32 to vector<1x128xf32>
    %334 = arith.addf %333, %332 : vector<1x128xf32>
    %335 = arith.divf %333, %334 : vector<1x128xf32>
    %336 = vector.extract_strided_slice %323 {offsets = [0, 256], sizes = [1, 128], strides = [1, 1]} : vector<1x512xf32> to vector<1x128xf32>
    %337 = math.tanh %336 : vector<1x128xf32>
    %338 = vector.extract_strided_slice %323 {offsets = [0, 384], sizes = [1, 128], strides = [1, 1]} : vector<1x512xf32> to vector<1x128xf32>
    %339 = arith.negf %338 : vector<1x128xf32>
    %340 = math.exp %339 : vector<1x128xf32>
    %cst_58 = arith.constant 1.000000e+00 : f32
    %341 = vector.broadcast %cst_58 : f32 to vector<1x128xf32>
    %342 = arith.addf %341, %340 : vector<1x128xf32>
    %343 = arith.divf %341, %342 : vector<1x128xf32>
    %344 = arith.mulf %335, %318 : vector<1x128xf32>
    %345 = arith.mulf %329, %337 : vector<1x128xf32>
    %346 = arith.addf %344, %345 : vector<1x128xf32>
    %347 = math.tanh %346 : vector<1x128xf32>
    %348 = arith.mulf %343, %347 : vector<1x128xf32>
    %349 = arith.truncf %348 : vector<1x128xf32> to vector<1x128xbf16>
    %cst_59 = arith.constant dense<0.000000e+00> : vector<1x512xf32>
    %350 = tpu.matmul %349, %5, %cst_59 {dimension_numbers = #tpu.dot_dimension_numbers<[1], [0], [0], [1], [0, 0, 1, 1], [], []>} : vector<1x128xbf16>, vector<128x512xbf16>, vector<1x512xf32> -> vector<1x512xf32>
    %351 = arith.addf %3, %350 : vector<1x512xf32>
    %352 = vector.extract_strided_slice %351 {offsets = [0, 0], sizes = [1, 128], strides = [1, 1]} : vector<1x512xf32> to vector<1x128xf32>
    %353 = arith.negf %352 : vector<1x128xf32>
    %354 = math.exp %353 : vector<1x128xf32>
    %cst_60 = arith.constant 1.000000e+00 : f32
    %355 = vector.broadcast %cst_60 : f32 to vector<1x128xf32>
    %356 = arith.addf %355, %354 : vector<1x128xf32>
    %357 = arith.divf %355, %356 : vector<1x128xf32>
    %358 = vector.extract_strided_slice %351 {offsets = [0, 128], sizes = [1, 128], strides = [1, 1]} : vector<1x512xf32> to vector<1x128xf32>
    %359 = arith.negf %358 : vector<1x128xf32>
    %360 = math.exp %359 : vector<1x128xf32>
    %cst_61 = arith.constant 1.000000e+00 : f32
    %361 = vector.broadcast %cst_61 : f32 to vector<1x128xf32>
    %362 = arith.addf %361, %360 : vector<1x128xf32>
    %363 = arith.divf %361, %362 : vector<1x128xf32>
    %364 = vector.extract_strided_slice %351 {offsets = [0, 256], sizes = [1, 128], strides = [1, 1]} : vector<1x512xf32> to vector<1x128xf32>
    %365 = math.tanh %364 : vector<1x128xf32>
    %366 = vector.extract_strided_slice %351 {offsets = [0, 384], sizes = [1, 128], strides = [1, 1]} : vector<1x512xf32> to vector<1x128xf32>
    %367 = arith.negf %366 : vector<1x128xf32>
    %368 = math.exp %367 : vector<1x128xf32>
    %cst_62 = arith.constant 1.000000e+00 : f32
    %369 = vector.broadcast %cst_62 : f32 to vector<1x128xf32>
    %370 = arith.addf %369, %368 : vector<1x128xf32>
    %371 = arith.divf %369, %370 : vector<1x128xf32>
    %372 = arith.mulf %363, %346 : vector<1x128xf32>
    %373 = arith.mulf %357, %365 : vector<1x128xf32>
    %374 = arith.addf %372, %373 : vector<1x128xf32>
    %375 = math.tanh %374 : vector<1x128xf32>
    %376 = arith.mulf %371, %375 : vector<1x128xf32>
    %377 = arith.truncf %376 : vector<1x128xf32> to vector<1x128xbf16>
    %cst_63 = arith.constant dense<0.000000e+00> : vector<1x512xf32>
    %378 = tpu.matmul %377, %5, %cst_63 {dimension_numbers = #tpu.dot_dimension_numbers<[1], [0], [0], [1], [0, 0, 1, 1], [], []>} : vector<1x128xbf16>, vector<128x512xbf16>, vector<1x512xf32> -> vector<1x512xf32>
    %379 = arith.addf %3, %378 : vector<1x512xf32>
    %380 = vector.extract_strided_slice %379 {offsets = [0, 0], sizes = [1, 128], strides = [1, 1]} : vector<1x512xf32> to vector<1x128xf32>
    %381 = arith.negf %380 : vector<1x128xf32>
    %382 = math.exp %381 : vector<1x128xf32>
    %cst_64 = arith.constant 1.000000e+00 : f32
    %383 = vector.broadcast %cst_64 : f32 to vector<1x128xf32>
    %384 = arith.addf %383, %382 : vector<1x128xf32>
    %385 = arith.divf %383, %384 : vector<1x128xf32>
    %386 = vector.extract_strided_slice %379 {offsets = [0, 128], sizes = [1, 128], strides = [1, 1]} : vector<1x512xf32> to vector<1x128xf32>
    %387 = arith.negf %386 : vector<1x128xf32>
    %388 = math.exp %387 : vector<1x128xf32>
    %cst_65 = arith.constant 1.000000e+00 : f32
    %389 = vector.broadcast %cst_65 : f32 to vector<1x128xf32>
    %390 = arith.addf %389, %388 : vector<1x128xf32>
    %391 = arith.divf %389, %390 : vector<1x128xf32>
    %392 = vector.extract_strided_slice %379 {offsets = [0, 256], sizes = [1, 128], strides = [1, 1]} : vector<1x512xf32> to vector<1x128xf32>
    %393 = math.tanh %392 : vector<1x128xf32>
    %394 = vector.extract_strided_slice %379 {offsets = [0, 384], sizes = [1, 128], strides = [1, 1]} : vector<1x512xf32> to vector<1x128xf32>
    %395 = arith.negf %394 : vector<1x128xf32>
    %396 = math.exp %395 : vector<1x128xf32>
    %cst_66 = arith.constant 1.000000e+00 : f32
    %397 = vector.broadcast %cst_66 : f32 to vector<1x128xf32>
    %398 = arith.addf %397, %396 : vector<1x128xf32>
    %399 = arith.divf %397, %398 : vector<1x128xf32>
    %400 = arith.mulf %391, %374 : vector<1x128xf32>
    %401 = arith.mulf %385, %393 : vector<1x128xf32>
    %402 = arith.addf %400, %401 : vector<1x128xf32>
    %403 = math.tanh %402 : vector<1x128xf32>
    %404 = arith.mulf %399, %403 : vector<1x128xf32>
    %405 = arith.truncf %404 : vector<1x128xf32> to vector<1x128xbf16>
    %cst_67 = arith.constant dense<0.000000e+00> : vector<1x512xf32>
    %406 = tpu.matmul %405, %5, %cst_67 {dimension_numbers = #tpu.dot_dimension_numbers<[1], [0], [0], [1], [0, 0, 1, 1], [], []>} : vector<1x128xbf16>, vector<128x512xbf16>, vector<1x512xf32> -> vector<1x512xf32>
    %407 = arith.addf %3, %406 : vector<1x512xf32>
    %408 = vector.extract_strided_slice %407 {offsets = [0, 0], sizes = [1, 128], strides = [1, 1]} : vector<1x512xf32> to vector<1x128xf32>
    %409 = arith.negf %408 : vector<1x128xf32>
    %410 = math.exp %409 : vector<1x128xf32>
    %cst_68 = arith.constant 1.000000e+00 : f32
    %411 = vector.broadcast %cst_68 : f32 to vector<1x128xf32>
    %412 = arith.addf %411, %410 : vector<1x128xf32>
    %413 = arith.divf %411, %412 : vector<1x128xf32>
    %414 = vector.extract_strided_slice %407 {offsets = [0, 128], sizes = [1, 128], strides = [1, 1]} : vector<1x512xf32> to vector<1x128xf32>
    %415 = arith.negf %414 : vector<1x128xf32>
    %416 = math.exp %415 : vector<1x128xf32>
    %cst_69 = arith.constant 1.000000e+00 : f32
    %417 = vector.broadcast %cst_69 : f32 to vector<1x128xf32>
    %418 = arith.addf %417, %416 : vector<1x128xf32>
    %419 = arith.divf %417, %418 : vector<1x128xf32>
    %420 = vector.extract_strided_slice %407 {offsets = [0, 256], sizes = [1, 128], strides = [1, 1]} : vector<1x512xf32> to vector<1x128xf32>
    %421 = math.tanh %420 : vector<1x128xf32>
    %422 = vector.extract_strided_slice %407 {offsets = [0, 384], sizes = [1, 128], strides = [1, 1]} : vector<1x512xf32> to vector<1x128xf32>
    %423 = arith.negf %422 : vector<1x128xf32>
    %424 = math.exp %423 : vector<1x128xf32>
    %cst_70 = arith.constant 1.000000e+00 : f32
    %425 = vector.broadcast %cst_70 : f32 to vector<1x128xf32>
    %426 = arith.addf %425, %424 : vector<1x128xf32>
    %427 = arith.divf %425, %426 : vector<1x128xf32>
    %428 = arith.mulf %419, %402 : vector<1x128xf32>
    %429 = arith.mulf %413, %421 : vector<1x128xf32>
    %430 = arith.addf %428, %429 : vector<1x128xf32>
    %431 = math.tanh %430 : vector<1x128xf32>
    %432 = arith.mulf %427, %431 : vector<1x128xf32>
    %433 = arith.truncf %432 : vector<1x128xf32> to vector<1x128xbf16>
    %cst_71 = arith.constant dense<0.000000e+00> : vector<1x512xf32>
    %434 = tpu.matmul %433, %5, %cst_71 {dimension_numbers = #tpu.dot_dimension_numbers<[1], [0], [0], [1], [0, 0, 1, 1], [], []>} : vector<1x128xbf16>, vector<128x512xbf16>, vector<1x512xf32> -> vector<1x512xf32>
    %435 = arith.addf %3, %434 : vector<1x512xf32>
    %436 = vector.extract_strided_slice %435 {offsets = [0, 0], sizes = [1, 128], strides = [1, 1]} : vector<1x512xf32> to vector<1x128xf32>
    %437 = arith.negf %436 : vector<1x128xf32>
    %438 = math.exp %437 : vector<1x128xf32>
    %cst_72 = arith.constant 1.000000e+00 : f32
    %439 = vector.broadcast %cst_72 : f32 to vector<1x128xf32>
    %440 = arith.addf %439, %438 : vector<1x128xf32>
    %441 = arith.divf %439, %440 : vector<1x128xf32>
    %442 = vector.extract_strided_slice %435 {offsets = [0, 128], sizes = [1, 128], strides = [1, 1]} : vector<1x512xf32> to vector<1x128xf32>
    %443 = arith.negf %442 : vector<1x128xf32>
    %444 = math.exp %443 : vector<1x128xf32>
    %cst_73 = arith.constant 1.000000e+00 : f32
    %445 = vector.broadcast %cst_73 : f32 to vector<1x128xf32>
    %446 = arith.addf %445, %444 : vector<1x128xf32>
    %447 = arith.divf %445, %446 : vector<1x128xf32>
    %448 = vector.extract_strided_slice %435 {offsets = [0, 256], sizes = [1, 128], strides = [1, 1]} : vector<1x512xf32> to vector<1x128xf32>
    %449 = math.tanh %448 : vector<1x128xf32>
    %450 = vector.extract_strided_slice %435 {offsets = [0, 384], sizes = [1, 128], strides = [1, 1]} : vector<1x512xf32> to vector<1x128xf32>
    %451 = arith.negf %450 : vector<1x128xf32>
    %452 = math.exp %451 : vector<1x128xf32>
    %cst_74 = arith.constant 1.000000e+00 : f32
    %453 = vector.broadcast %cst_74 : f32 to vector<1x128xf32>
    %454 = arith.addf %453, %452 : vector<1x128xf32>
    %455 = arith.divf %453, %454 : vector<1x128xf32>
    %456 = arith.mulf %447, %430 : vector<1x128xf32>
    %457 = arith.mulf %441, %449 : vector<1x128xf32>
    %458 = arith.addf %456, %457 : vector<1x128xf32>
    %459 = math.tanh %458 : vector<1x128xf32>
    %460 = arith.mulf %455, %459 : vector<1x128xf32>
    %461 = tpu.concatenate %40, %68, %96, %124, %152, %180, %208, %236, %264, %292, %320, %348, %376, %404, %432, %460 in 0 : vector<1x128xf32>, vector<1x128xf32>, vector<1x128xf32>, vector<1x128xf32>, vector<1x128xf32>, vector<1x128xf32>, vector<1x128xf32>, vector<1x128xf32>, vector<1x128xf32>, vector<1x128xf32>, vector<1x128xf32>, vector<1x128xf32>, vector<1x128xf32>, vector<1x128xf32>, vector<1x128xf32>, vector<1x128xf32> -> vector<16x128xf32>
    %462 = arith.truncf %461 : vector<16x128xf32> to vector<16x128xbf16>
    %cst_75 = arith.constant dense<0.000000e+00> : vector<16x512xf32>
    %463 = tpu.matmul %462, %6, %cst_75 {dimension_numbers = #tpu.dot_dimension_numbers<[1], [0], [0], [1], [0, 0, 1, 1], [], []>} : vector<16x128xbf16>, vector<128x512xbf16>, vector<16x512xf32> -> vector<16x512xf32>
    %464 = arith.addf %4, %463 : vector<16x512xf32>
    %465 = vector.extract_strided_slice %464 {offsets = [0, 0], sizes = [1, 512], strides = [1, 1]} : vector<16x512xf32> to vector<1x512xf32>
    %466 = arith.truncf %11 : vector<1x128xf32> to vector<1x128xbf16>
    %cst_76 = arith.constant dense<0.000000e+00> : vector<1x512xf32>
    %467 = tpu.matmul %466, %7, %cst_76 {dimension_numbers = #tpu.dot_dimension_numbers<[1], [0], [0], [1], [0, 0, 1, 1], [], []>} : vector<1x128xbf16>, vector<128x512xbf16>, vector<1x512xf32> -> vector<1x512xf32>
    %468 = arith.addf %465, %467 : vector<1x512xf32>
    %469 = vector.extract_strided_slice %468 {offsets = [0, 0], sizes = [1, 128], strides = [1, 1]} : vector<1x512xf32> to vector<1x128xf32>
    %470 = arith.negf %469 : vector<1x128xf32>
    %471 = math.exp %470 : vector<1x128xf32>
    %cst_77 = arith.constant 1.000000e+00 : f32
    %472 = vector.broadcast %cst_77 : f32 to vector<1x128xf32>
    %473 = arith.addf %472, %471 : vector<1x128xf32>
    %474 = arith.divf %472, %473 : vector<1x128xf32>
    %475 = vector.extract_strided_slice %468 {offsets = [0, 128], sizes = [1, 128], strides = [1, 1]} : vector<1x512xf32> to vector<1x128xf32>
    %476 = arith.negf %475 : vector<1x128xf32>
    %477 = math.exp %476 : vector<1x128xf32>
    %cst_78 = arith.constant 1.000000e+00 : f32
    %478 = vector.broadcast %cst_78 : f32 to vector<1x128xf32>
    %479 = arith.addf %478, %477 : vector<1x128xf32>
    %480 = arith.divf %478, %479 : vector<1x128xf32>
    %481 = vector.extract_strided_slice %468 {offsets = [0, 256], sizes = [1, 128], strides = [1, 1]} : vector<1x512xf32> to vector<1x128xf32>
    %482 = math.tanh %481 : vector<1x128xf32>
    %483 = vector.extract_strided_slice %468 {offsets = [0, 384], sizes = [1, 128], strides = [1, 1]} : vector<1x512xf32> to vector<1x128xf32>
    %484 = arith.negf %483 : vector<1x128xf32>
    %485 = math.exp %484 : vector<1x128xf32>
    %cst_79 = arith.constant 1.000000e+00 : f32
    %486 = vector.broadcast %cst_79 : f32 to vector<1x128xf32>
    %487 = arith.addf %486, %485 : vector<1x128xf32>
    %488 = arith.divf %486, %487 : vector<1x128xf32>
    %489 = arith.mulf %480, %12 : vector<1x128xf32>
    %490 = arith.mulf %474, %482 : vector<1x128xf32>
    %491 = arith.addf %489, %490 : vector<1x128xf32>
    %492 = math.tanh %491 : vector<1x128xf32>
    %493 = arith.mulf %488, %492 : vector<1x128xf32>
    %494 = vector.extract_strided_slice %464 {offsets = [1, 0], sizes = [1, 512], strides = [1, 1]} : vector<16x512xf32> to vector<1x512xf32>
    %495 = arith.truncf %493 : vector<1x128xf32> to vector<1x128xbf16>
    %cst_80 = arith.constant dense<0.000000e+00> : vector<1x512xf32>
    %496 = tpu.matmul %495, %7, %cst_80 {dimension_numbers = #tpu.dot_dimension_numbers<[1], [0], [0], [1], [0, 0, 1, 1], [], []>} : vector<1x128xbf16>, vector<128x512xbf16>, vector<1x512xf32> -> vector<1x512xf32>
    %497 = arith.addf %494, %496 : vector<1x512xf32>
    %498 = vector.extract_strided_slice %497 {offsets = [0, 0], sizes = [1, 128], strides = [1, 1]} : vector<1x512xf32> to vector<1x128xf32>
    %499 = arith.negf %498 : vector<1x128xf32>
    %500 = math.exp %499 : vector<1x128xf32>
    %cst_81 = arith.constant 1.000000e+00 : f32
    %501 = vector.broadcast %cst_81 : f32 to vector<1x128xf32>
    %502 = arith.addf %501, %500 : vector<1x128xf32>
    %503 = arith.divf %501, %502 : vector<1x128xf32>
    %504 = vector.extract_strided_slice %497 {offsets = [0, 128], sizes = [1, 128], strides = [1, 1]} : vector<1x512xf32> to vector<1x128xf32>
    %505 = arith.negf %504 : vector<1x128xf32>
    %506 = math.exp %505 : vector<1x128xf32>
    %cst_82 = arith.constant 1.000000e+00 : f32
    %507 = vector.broadcast %cst_82 : f32 to vector<1x128xf32>
    %508 = arith.addf %507, %506 : vector<1x128xf32>
    %509 = arith.divf %507, %508 : vector<1x128xf32>
    %510 = vector.extract_strided_slice %497 {offsets = [0, 256], sizes = [1, 128], strides = [1, 1]} : vector<1x512xf32> to vector<1x128xf32>
    %511 = math.tanh %510 : vector<1x128xf32>
    %512 = vector.extract_strided_slice %497 {offsets = [0, 384], sizes = [1, 128], strides = [1, 1]} : vector<1x512xf32> to vector<1x128xf32>
    %513 = arith.negf %512 : vector<1x128xf32>
    %514 = math.exp %513 : vector<1x128xf32>
    %cst_83 = arith.constant 1.000000e+00 : f32
    %515 = vector.broadcast %cst_83 : f32 to vector<1x128xf32>
    %516 = arith.addf %515, %514 : vector<1x128xf32>
    %517 = arith.divf %515, %516 : vector<1x128xf32>
    %518 = arith.mulf %509, %491 : vector<1x128xf32>
    %519 = arith.mulf %503, %511 : vector<1x128xf32>
    %520 = arith.addf %518, %519 : vector<1x128xf32>
    %521 = math.tanh %520 : vector<1x128xf32>
    %522 = arith.mulf %517, %521 : vector<1x128xf32>
    %523 = vector.extract_strided_slice %464 {offsets = [2, 0], sizes = [1, 512], strides = [1, 1]} : vector<16x512xf32> to vector<1x512xf32>
    %524 = arith.truncf %522 : vector<1x128xf32> to vector<1x128xbf16>
    %cst_84 = arith.constant dense<0.000000e+00> : vector<1x512xf32>
    %525 = tpu.matmul %524, %7, %cst_84 {dimension_numbers = #tpu.dot_dimension_numbers<[1], [0], [0], [1], [0, 0, 1, 1], [], []>} : vector<1x128xbf16>, vector<128x512xbf16>, vector<1x512xf32> -> vector<1x512xf32>
    %526 = arith.addf %523, %525 : vector<1x512xf32>
    %527 = vector.extract_strided_slice %526 {offsets = [0, 0], sizes = [1, 128], strides = [1, 1]} : vector<1x512xf32> to vector<1x128xf32>
    %528 = arith.negf %527 : vector<1x128xf32>
    %529 = math.exp %528 : vector<1x128xf32>
    %cst_85 = arith.constant 1.000000e+00 : f32
    %530 = vector.broadcast %cst_85 : f32 to vector<1x128xf32>
    %531 = arith.addf %530, %529 : vector<1x128xf32>
    %532 = arith.divf %530, %531 : vector<1x128xf32>
    %533 = vector.extract_strided_slice %526 {offsets = [0, 128], sizes = [1, 128], strides = [1, 1]} : vector<1x512xf32> to vector<1x128xf32>
    %534 = arith.negf %533 : vector<1x128xf32>
    %535 = math.exp %534 : vector<1x128xf32>
    %cst_86 = arith.constant 1.000000e+00 : f32
    %536 = vector.broadcast %cst_86 : f32 to vector<1x128xf32>
    %537 = arith.addf %536, %535 : vector<1x128xf32>
    %538 = arith.divf %536, %537 : vector<1x128xf32>
    %539 = vector.extract_strided_slice %526 {offsets = [0, 256], sizes = [1, 128], strides = [1, 1]} : vector<1x512xf32> to vector<1x128xf32>
    %540 = math.tanh %539 : vector<1x128xf32>
    %541 = vector.extract_strided_slice %526 {offsets = [0, 384], sizes = [1, 128], strides = [1, 1]} : vector<1x512xf32> to vector<1x128xf32>
    %542 = arith.negf %541 : vector<1x128xf32>
    %543 = math.exp %542 : vector<1x128xf32>
    %cst_87 = arith.constant 1.000000e+00 : f32
    %544 = vector.broadcast %cst_87 : f32 to vector<1x128xf32>
    %545 = arith.addf %544, %543 : vector<1x128xf32>
    %546 = arith.divf %544, %545 : vector<1x128xf32>
    %547 = arith.mulf %538, %520 : vector<1x128xf32>
    %548 = arith.mulf %532, %540 : vector<1x128xf32>
    %549 = arith.addf %547, %548 : vector<1x128xf32>
    %550 = math.tanh %549 : vector<1x128xf32>
    %551 = arith.mulf %546, %550 : vector<1x128xf32>
    %552 = vector.extract_strided_slice %464 {offsets = [3, 0], sizes = [1, 512], strides = [1, 1]} : vector<16x512xf32> to vector<1x512xf32>
    %553 = arith.truncf %551 : vector<1x128xf32> to vector<1x128xbf16>
    %cst_88 = arith.constant dense<0.000000e+00> : vector<1x512xf32>
    %554 = tpu.matmul %553, %7, %cst_88 {dimension_numbers = #tpu.dot_dimension_numbers<[1], [0], [0], [1], [0, 0, 1, 1], [], []>} : vector<1x128xbf16>, vector<128x512xbf16>, vector<1x512xf32> -> vector<1x512xf32>
    %555 = arith.addf %552, %554 : vector<1x512xf32>
    %556 = vector.extract_strided_slice %555 {offsets = [0, 0], sizes = [1, 128], strides = [1, 1]} : vector<1x512xf32> to vector<1x128xf32>
    %557 = arith.negf %556 : vector<1x128xf32>
    %558 = math.exp %557 : vector<1x128xf32>
    %cst_89 = arith.constant 1.000000e+00 : f32
    %559 = vector.broadcast %cst_89 : f32 to vector<1x128xf32>
    %560 = arith.addf %559, %558 : vector<1x128xf32>
    %561 = arith.divf %559, %560 : vector<1x128xf32>
    %562 = vector.extract_strided_slice %555 {offsets = [0, 128], sizes = [1, 128], strides = [1, 1]} : vector<1x512xf32> to vector<1x128xf32>
    %563 = arith.negf %562 : vector<1x128xf32>
    %564 = math.exp %563 : vector<1x128xf32>
    %cst_90 = arith.constant 1.000000e+00 : f32
    %565 = vector.broadcast %cst_90 : f32 to vector<1x128xf32>
    %566 = arith.addf %565, %564 : vector<1x128xf32>
    %567 = arith.divf %565, %566 : vector<1x128xf32>
    %568 = vector.extract_strided_slice %555 {offsets = [0, 256], sizes = [1, 128], strides = [1, 1]} : vector<1x512xf32> to vector<1x128xf32>
    %569 = math.tanh %568 : vector<1x128xf32>
    %570 = vector.extract_strided_slice %555 {offsets = [0, 384], sizes = [1, 128], strides = [1, 1]} : vector<1x512xf32> to vector<1x128xf32>
    %571 = arith.negf %570 : vector<1x128xf32>
    %572 = math.exp %571 : vector<1x128xf32>
    %cst_91 = arith.constant 1.000000e+00 : f32
    %573 = vector.broadcast %cst_91 : f32 to vector<1x128xf32>
    %574 = arith.addf %573, %572 : vector<1x128xf32>
    %575 = arith.divf %573, %574 : vector<1x128xf32>
    %576 = arith.mulf %567, %549 : vector<1x128xf32>
    %577 = arith.mulf %561, %569 : vector<1x128xf32>
    %578 = arith.addf %576, %577 : vector<1x128xf32>
    %579 = math.tanh %578 : vector<1x128xf32>
    %580 = arith.mulf %575, %579 : vector<1x128xf32>
    %581 = vector.extract_strided_slice %464 {offsets = [4, 0], sizes = [1, 512], strides = [1, 1]} : vector<16x512xf32> to vector<1x512xf32>
    %582 = arith.truncf %580 : vector<1x128xf32> to vector<1x128xbf16>
    %cst_92 = arith.constant dense<0.000000e+00> : vector<1x512xf32>
    %583 = tpu.matmul %582, %7, %cst_92 {dimension_numbers = #tpu.dot_dimension_numbers<[1], [0], [0], [1], [0, 0, 1, 1], [], []>} : vector<1x128xbf16>, vector<128x512xbf16>, vector<1x512xf32> -> vector<1x512xf32>
    %584 = arith.addf %581, %583 : vector<1x512xf32>
    %585 = vector.extract_strided_slice %584 {offsets = [0, 0], sizes = [1, 128], strides = [1, 1]} : vector<1x512xf32> to vector<1x128xf32>
    %586 = arith.negf %585 : vector<1x128xf32>
    %587 = math.exp %586 : vector<1x128xf32>
    %cst_93 = arith.constant 1.000000e+00 : f32
    %588 = vector.broadcast %cst_93 : f32 to vector<1x128xf32>
    %589 = arith.addf %588, %587 : vector<1x128xf32>
    %590 = arith.divf %588, %589 : vector<1x128xf32>
    %591 = vector.extract_strided_slice %584 {offsets = [0, 128], sizes = [1, 128], strides = [1, 1]} : vector<1x512xf32> to vector<1x128xf32>
    %592 = arith.negf %591 : vector<1x128xf32>
    %593 = math.exp %592 : vector<1x128xf32>
    %cst_94 = arith.constant 1.000000e+00 : f32
    %594 = vector.broadcast %cst_94 : f32 to vector<1x128xf32>
    %595 = arith.addf %594, %593 : vector<1x128xf32>
    %596 = arith.divf %594, %595 : vector<1x128xf32>
    %597 = vector.extract_strided_slice %584 {offsets = [0, 256], sizes = [1, 128], strides = [1, 1]} : vector<1x512xf32> to vector<1x128xf32>
    %598 = math.tanh %597 : vector<1x128xf32>
    %599 = vector.extract_strided_slice %584 {offsets = [0, 384], sizes = [1, 128], strides = [1, 1]} : vector<1x512xf32> to vector<1x128xf32>
    %600 = arith.negf %599 : vector<1x128xf32>
    %601 = math.exp %600 : vector<1x128xf32>
    %cst_95 = arith.constant 1.000000e+00 : f32
    %602 = vector.broadcast %cst_95 : f32 to vector<1x128xf32>
    %603 = arith.addf %602, %601 : vector<1x128xf32>
    %604 = arith.divf %602, %603 : vector<1x128xf32>
    %605 = arith.mulf %596, %578 : vector<1x128xf32>
    %606 = arith.mulf %590, %598 : vector<1x128xf32>
    %607 = arith.addf %605, %606 : vector<1x128xf32>
    %608 = math.tanh %607 : vector<1x128xf32>
    %609 = arith.mulf %604, %608 : vector<1x128xf32>
    %610 = vector.extract_strided_slice %464 {offsets = [5, 0], sizes = [1, 512], strides = [1, 1]} : vector<16x512xf32> to vector<1x512xf32>
    %611 = arith.truncf %609 : vector<1x128xf32> to vector<1x128xbf16>
    %cst_96 = arith.constant dense<0.000000e+00> : vector<1x512xf32>
    %612 = tpu.matmul %611, %7, %cst_96 {dimension_numbers = #tpu.dot_dimension_numbers<[1], [0], [0], [1], [0, 0, 1, 1], [], []>} : vector<1x128xbf16>, vector<128x512xbf16>, vector<1x512xf32> -> vector<1x512xf32>
    %613 = arith.addf %610, %612 : vector<1x512xf32>
    %614 = vector.extract_strided_slice %613 {offsets = [0, 0], sizes = [1, 128], strides = [1, 1]} : vector<1x512xf32> to vector<1x128xf32>
    %615 = arith.negf %614 : vector<1x128xf32>
    %616 = math.exp %615 : vector<1x128xf32>
    %cst_97 = arith.constant 1.000000e+00 : f32
    %617 = vector.broadcast %cst_97 : f32 to vector<1x128xf32>
    %618 = arith.addf %617, %616 : vector<1x128xf32>
    %619 = arith.divf %617, %618 : vector<1x128xf32>
    %620 = vector.extract_strided_slice %613 {offsets = [0, 128], sizes = [1, 128], strides = [1, 1]} : vector<1x512xf32> to vector<1x128xf32>
    %621 = arith.negf %620 : vector<1x128xf32>
    %622 = math.exp %621 : vector<1x128xf32>
    %cst_98 = arith.constant 1.000000e+00 : f32
    %623 = vector.broadcast %cst_98 : f32 to vector<1x128xf32>
    %624 = arith.addf %623, %622 : vector<1x128xf32>
    %625 = arith.divf %623, %624 : vector<1x128xf32>
    %626 = vector.extract_strided_slice %613 {offsets = [0, 256], sizes = [1, 128], strides = [1, 1]} : vector<1x512xf32> to vector<1x128xf32>
    %627 = math.tanh %626 : vector<1x128xf32>
    %628 = vector.extract_strided_slice %613 {offsets = [0, 384], sizes = [1, 128], strides = [1, 1]} : vector<1x512xf32> to vector<1x128xf32>
    %629 = arith.negf %628 : vector<1x128xf32>
    %630 = math.exp %629 : vector<1x128xf32>
    %cst_99 = arith.constant 1.000000e+00 : f32
    %631 = vector.broadcast %cst_99 : f32 to vector<1x128xf32>
    %632 = arith.addf %631, %630 : vector<1x128xf32>
    %633 = arith.divf %631, %632 : vector<1x128xf32>
    %634 = arith.mulf %625, %607 : vector<1x128xf32>
    %635 = arith.mulf %619, %627 : vector<1x128xf32>
    %636 = arith.addf %634, %635 : vector<1x128xf32>
    %637 = math.tanh %636 : vector<1x128xf32>
    %638 = arith.mulf %633, %637 : vector<1x128xf32>
    %639 = vector.extract_strided_slice %464 {offsets = [6, 0], sizes = [1, 512], strides = [1, 1]} : vector<16x512xf32> to vector<1x512xf32>
    %640 = arith.truncf %638 : vector<1x128xf32> to vector<1x128xbf16>
    %cst_100 = arith.constant dense<0.000000e+00> : vector<1x512xf32>
    %641 = tpu.matmul %640, %7, %cst_100 {dimension_numbers = #tpu.dot_dimension_numbers<[1], [0], [0], [1], [0, 0, 1, 1], [], []>} : vector<1x128xbf16>, vector<128x512xbf16>, vector<1x512xf32> -> vector<1x512xf32>
    %642 = arith.addf %639, %641 : vector<1x512xf32>
    %643 = vector.extract_strided_slice %642 {offsets = [0, 0], sizes = [1, 128], strides = [1, 1]} : vector<1x512xf32> to vector<1x128xf32>
    %644 = arith.negf %643 : vector<1x128xf32>
    %645 = math.exp %644 : vector<1x128xf32>
    %cst_101 = arith.constant 1.000000e+00 : f32
    %646 = vector.broadcast %cst_101 : f32 to vector<1x128xf32>
    %647 = arith.addf %646, %645 : vector<1x128xf32>
    %648 = arith.divf %646, %647 : vector<1x128xf32>
    %649 = vector.extract_strided_slice %642 {offsets = [0, 128], sizes = [1, 128], strides = [1, 1]} : vector<1x512xf32> to vector<1x128xf32>
    %650 = arith.negf %649 : vector<1x128xf32>
    %651 = math.exp %650 : vector<1x128xf32>
    %cst_102 = arith.constant 1.000000e+00 : f32
    %652 = vector.broadcast %cst_102 : f32 to vector<1x128xf32>
    %653 = arith.addf %652, %651 : vector<1x128xf32>
    %654 = arith.divf %652, %653 : vector<1x128xf32>
    %655 = vector.extract_strided_slice %642 {offsets = [0, 256], sizes = [1, 128], strides = [1, 1]} : vector<1x512xf32> to vector<1x128xf32>
    %656 = math.tanh %655 : vector<1x128xf32>
    %657 = vector.extract_strided_slice %642 {offsets = [0, 384], sizes = [1, 128], strides = [1, 1]} : vector<1x512xf32> to vector<1x128xf32>
    %658 = arith.negf %657 : vector<1x128xf32>
    %659 = math.exp %658 : vector<1x128xf32>
    %cst_103 = arith.constant 1.000000e+00 : f32
    %660 = vector.broadcast %cst_103 : f32 to vector<1x128xf32>
    %661 = arith.addf %660, %659 : vector<1x128xf32>
    %662 = arith.divf %660, %661 : vector<1x128xf32>
    %663 = arith.mulf %654, %636 : vector<1x128xf32>
    %664 = arith.mulf %648, %656 : vector<1x128xf32>
    %665 = arith.addf %663, %664 : vector<1x128xf32>
    %666 = math.tanh %665 : vector<1x128xf32>
    %667 = arith.mulf %662, %666 : vector<1x128xf32>
    %668 = vector.extract_strided_slice %464 {offsets = [7, 0], sizes = [1, 512], strides = [1, 1]} : vector<16x512xf32> to vector<1x512xf32>
    %669 = arith.truncf %667 : vector<1x128xf32> to vector<1x128xbf16>
    %cst_104 = arith.constant dense<0.000000e+00> : vector<1x512xf32>
    %670 = tpu.matmul %669, %7, %cst_104 {dimension_numbers = #tpu.dot_dimension_numbers<[1], [0], [0], [1], [0, 0, 1, 1], [], []>} : vector<1x128xbf16>, vector<128x512xbf16>, vector<1x512xf32> -> vector<1x512xf32>
    %671 = arith.addf %668, %670 : vector<1x512xf32>
    %672 = vector.extract_strided_slice %671 {offsets = [0, 0], sizes = [1, 128], strides = [1, 1]} : vector<1x512xf32> to vector<1x128xf32>
    %673 = arith.negf %672 : vector<1x128xf32>
    %674 = math.exp %673 : vector<1x128xf32>
    %cst_105 = arith.constant 1.000000e+00 : f32
    %675 = vector.broadcast %cst_105 : f32 to vector<1x128xf32>
    %676 = arith.addf %675, %674 : vector<1x128xf32>
    %677 = arith.divf %675, %676 : vector<1x128xf32>
    %678 = vector.extract_strided_slice %671 {offsets = [0, 128], sizes = [1, 128], strides = [1, 1]} : vector<1x512xf32> to vector<1x128xf32>
    %679 = arith.negf %678 : vector<1x128xf32>
    %680 = math.exp %679 : vector<1x128xf32>
    %cst_106 = arith.constant 1.000000e+00 : f32
    %681 = vector.broadcast %cst_106 : f32 to vector<1x128xf32>
    %682 = arith.addf %681, %680 : vector<1x128xf32>
    %683 = arith.divf %681, %682 : vector<1x128xf32>
    %684 = vector.extract_strided_slice %671 {offsets = [0, 256], sizes = [1, 128], strides = [1, 1]} : vector<1x512xf32> to vector<1x128xf32>
    %685 = math.tanh %684 : vector<1x128xf32>
    %686 = vector.extract_strided_slice %671 {offsets = [0, 384], sizes = [1, 128], strides = [1, 1]} : vector<1x512xf32> to vector<1x128xf32>
    %687 = arith.negf %686 : vector<1x128xf32>
    %688 = math.exp %687 : vector<1x128xf32>
    %cst_107 = arith.constant 1.000000e+00 : f32
    %689 = vector.broadcast %cst_107 : f32 to vector<1x128xf32>
    %690 = arith.addf %689, %688 : vector<1x128xf32>
    %691 = arith.divf %689, %690 : vector<1x128xf32>
    %692 = arith.mulf %683, %665 : vector<1x128xf32>
    %693 = arith.mulf %677, %685 : vector<1x128xf32>
    %694 = arith.addf %692, %693 : vector<1x128xf32>
    %695 = math.tanh %694 : vector<1x128xf32>
    %696 = arith.mulf %691, %695 : vector<1x128xf32>
    %697 = vector.extract_strided_slice %464 {offsets = [8, 0], sizes = [1, 512], strides = [1, 1]} : vector<16x512xf32> to vector<1x512xf32>
    %698 = arith.truncf %696 : vector<1x128xf32> to vector<1x128xbf16>
    %cst_108 = arith.constant dense<0.000000e+00> : vector<1x512xf32>
    %699 = tpu.matmul %698, %7, %cst_108 {dimension_numbers = #tpu.dot_dimension_numbers<[1], [0], [0], [1], [0, 0, 1, 1], [], []>} : vector<1x128xbf16>, vector<128x512xbf16>, vector<1x512xf32> -> vector<1x512xf32>
    %700 = arith.addf %697, %699 : vector<1x512xf32>
    %701 = vector.extract_strided_slice %700 {offsets = [0, 0], sizes = [1, 128], strides = [1, 1]} : vector<1x512xf32> to vector<1x128xf32>
    %702 = arith.negf %701 : vector<1x128xf32>
    %703 = math.exp %702 : vector<1x128xf32>
    %cst_109 = arith.constant 1.000000e+00 : f32
    %704 = vector.broadcast %cst_109 : f32 to vector<1x128xf32>
    %705 = arith.addf %704, %703 : vector<1x128xf32>
    %706 = arith.divf %704, %705 : vector<1x128xf32>
    %707 = vector.extract_strided_slice %700 {offsets = [0, 128], sizes = [1, 128], strides = [1, 1]} : vector<1x512xf32> to vector<1x128xf32>
    %708 = arith.negf %707 : vector<1x128xf32>
    %709 = math.exp %708 : vector<1x128xf32>
    %cst_110 = arith.constant 1.000000e+00 : f32
    %710 = vector.broadcast %cst_110 : f32 to vector<1x128xf32>
    %711 = arith.addf %710, %709 : vector<1x128xf32>
    %712 = arith.divf %710, %711 : vector<1x128xf32>
    %713 = vector.extract_strided_slice %700 {offsets = [0, 256], sizes = [1, 128], strides = [1, 1]} : vector<1x512xf32> to vector<1x128xf32>
    %714 = math.tanh %713 : vector<1x128xf32>
    %715 = vector.extract_strided_slice %700 {offsets = [0, 384], sizes = [1, 128], strides = [1, 1]} : vector<1x512xf32> to vector<1x128xf32>
    %716 = arith.negf %715 : vector<1x128xf32>
    %717 = math.exp %716 : vector<1x128xf32>
    %cst_111 = arith.constant 1.000000e+00 : f32
    %718 = vector.broadcast %cst_111 : f32 to vector<1x128xf32>
    %719 = arith.addf %718, %717 : vector<1x128xf32>
    %720 = arith.divf %718, %719 : vector<1x128xf32>
    %721 = arith.mulf %712, %694 : vector<1x128xf32>
    %722 = arith.mulf %706, %714 : vector<1x128xf32>
    %723 = arith.addf %721, %722 : vector<1x128xf32>
    %724 = math.tanh %723 : vector<1x128xf32>
    %725 = arith.mulf %720, %724 : vector<1x128xf32>
    %726 = vector.extract_strided_slice %464 {offsets = [9, 0], sizes = [1, 512], strides = [1, 1]} : vector<16x512xf32> to vector<1x512xf32>
    %727 = arith.truncf %725 : vector<1x128xf32> to vector<1x128xbf16>
    %cst_112 = arith.constant dense<0.000000e+00> : vector<1x512xf32>
    %728 = tpu.matmul %727, %7, %cst_112 {dimension_numbers = #tpu.dot_dimension_numbers<[1], [0], [0], [1], [0, 0, 1, 1], [], []>} : vector<1x128xbf16>, vector<128x512xbf16>, vector<1x512xf32> -> vector<1x512xf32>
    %729 = arith.addf %726, %728 : vector<1x512xf32>
    %730 = vector.extract_strided_slice %729 {offsets = [0, 0], sizes = [1, 128], strides = [1, 1]} : vector<1x512xf32> to vector<1x128xf32>
    %731 = arith.negf %730 : vector<1x128xf32>
    %732 = math.exp %731 : vector<1x128xf32>
    %cst_113 = arith.constant 1.000000e+00 : f32
    %733 = vector.broadcast %cst_113 : f32 to vector<1x128xf32>
    %734 = arith.addf %733, %732 : vector<1x128xf32>
    %735 = arith.divf %733, %734 : vector<1x128xf32>
    %736 = vector.extract_strided_slice %729 {offsets = [0, 128], sizes = [1, 128], strides = [1, 1]} : vector<1x512xf32> to vector<1x128xf32>
    %737 = arith.negf %736 : vector<1x128xf32>
    %738 = math.exp %737 : vector<1x128xf32>
    %cst_114 = arith.constant 1.000000e+00 : f32
    %739 = vector.broadcast %cst_114 : f32 to vector<1x128xf32>
    %740 = arith.addf %739, %738 : vector<1x128xf32>
    %741 = arith.divf %739, %740 : vector<1x128xf32>
    %742 = vector.extract_strided_slice %729 {offsets = [0, 256], sizes = [1, 128], strides = [1, 1]} : vector<1x512xf32> to vector<1x128xf32>
    %743 = math.tanh %742 : vector<1x128xf32>
    %744 = vector.extract_strided_slice %729 {offsets = [0, 384], sizes = [1, 128], strides = [1, 1]} : vector<1x512xf32> to vector<1x128xf32>
    %745 = arith.negf %744 : vector<1x128xf32>
    %746 = math.exp %745 : vector<1x128xf32>
    %cst_115 = arith.constant 1.000000e+00 : f32
    %747 = vector.broadcast %cst_115 : f32 to vector<1x128xf32>
    %748 = arith.addf %747, %746 : vector<1x128xf32>
    %749 = arith.divf %747, %748 : vector<1x128xf32>
    %750 = arith.mulf %741, %723 : vector<1x128xf32>
    %751 = arith.mulf %735, %743 : vector<1x128xf32>
    %752 = arith.addf %750, %751 : vector<1x128xf32>
    %753 = math.tanh %752 : vector<1x128xf32>
    %754 = arith.mulf %749, %753 : vector<1x128xf32>
    %755 = vector.extract_strided_slice %464 {offsets = [10, 0], sizes = [1, 512], strides = [1, 1]} : vector<16x512xf32> to vector<1x512xf32>
    %756 = arith.truncf %754 : vector<1x128xf32> to vector<1x128xbf16>
    %cst_116 = arith.constant dense<0.000000e+00> : vector<1x512xf32>
    %757 = tpu.matmul %756, %7, %cst_116 {dimension_numbers = #tpu.dot_dimension_numbers<[1], [0], [0], [1], [0, 0, 1, 1], [], []>} : vector<1x128xbf16>, vector<128x512xbf16>, vector<1x512xf32> -> vector<1x512xf32>
    %758 = arith.addf %755, %757 : vector<1x512xf32>
    %759 = vector.extract_strided_slice %758 {offsets = [0, 0], sizes = [1, 128], strides = [1, 1]} : vector<1x512xf32> to vector<1x128xf32>
    %760 = arith.negf %759 : vector<1x128xf32>
    %761 = math.exp %760 : vector<1x128xf32>
    %cst_117 = arith.constant 1.000000e+00 : f32
    %762 = vector.broadcast %cst_117 : f32 to vector<1x128xf32>
    %763 = arith.addf %762, %761 : vector<1x128xf32>
    %764 = arith.divf %762, %763 : vector<1x128xf32>
    %765 = vector.extract_strided_slice %758 {offsets = [0, 128], sizes = [1, 128], strides = [1, 1]} : vector<1x512xf32> to vector<1x128xf32>
    %766 = arith.negf %765 : vector<1x128xf32>
    %767 = math.exp %766 : vector<1x128xf32>
    %cst_118 = arith.constant 1.000000e+00 : f32
    %768 = vector.broadcast %cst_118 : f32 to vector<1x128xf32>
    %769 = arith.addf %768, %767 : vector<1x128xf32>
    %770 = arith.divf %768, %769 : vector<1x128xf32>
    %771 = vector.extract_strided_slice %758 {offsets = [0, 256], sizes = [1, 128], strides = [1, 1]} : vector<1x512xf32> to vector<1x128xf32>
    %772 = math.tanh %771 : vector<1x128xf32>
    %773 = vector.extract_strided_slice %758 {offsets = [0, 384], sizes = [1, 128], strides = [1, 1]} : vector<1x512xf32> to vector<1x128xf32>
    %774 = arith.negf %773 : vector<1x128xf32>
    %775 = math.exp %774 : vector<1x128xf32>
    %cst_119 = arith.constant 1.000000e+00 : f32
    %776 = vector.broadcast %cst_119 : f32 to vector<1x128xf32>
    %777 = arith.addf %776, %775 : vector<1x128xf32>
    %778 = arith.divf %776, %777 : vector<1x128xf32>
    %779 = arith.mulf %770, %752 : vector<1x128xf32>
    %780 = arith.mulf %764, %772 : vector<1x128xf32>
    %781 = arith.addf %779, %780 : vector<1x128xf32>
    %782 = math.tanh %781 : vector<1x128xf32>
    %783 = arith.mulf %778, %782 : vector<1x128xf32>
    %784 = vector.extract_strided_slice %464 {offsets = [11, 0], sizes = [1, 512], strides = [1, 1]} : vector<16x512xf32> to vector<1x512xf32>
    %785 = arith.truncf %783 : vector<1x128xf32> to vector<1x128xbf16>
    %cst_120 = arith.constant dense<0.000000e+00> : vector<1x512xf32>
    %786 = tpu.matmul %785, %7, %cst_120 {dimension_numbers = #tpu.dot_dimension_numbers<[1], [0], [0], [1], [0, 0, 1, 1], [], []>} : vector<1x128xbf16>, vector<128x512xbf16>, vector<1x512xf32> -> vector<1x512xf32>
    %787 = arith.addf %784, %786 : vector<1x512xf32>
    %788 = vector.extract_strided_slice %787 {offsets = [0, 0], sizes = [1, 128], strides = [1, 1]} : vector<1x512xf32> to vector<1x128xf32>
    %789 = arith.negf %788 : vector<1x128xf32>
    %790 = math.exp %789 : vector<1x128xf32>
    %cst_121 = arith.constant 1.000000e+00 : f32
    %791 = vector.broadcast %cst_121 : f32 to vector<1x128xf32>
    %792 = arith.addf %791, %790 : vector<1x128xf32>
    %793 = arith.divf %791, %792 : vector<1x128xf32>
    %794 = vector.extract_strided_slice %787 {offsets = [0, 128], sizes = [1, 128], strides = [1, 1]} : vector<1x512xf32> to vector<1x128xf32>
    %795 = arith.negf %794 : vector<1x128xf32>
    %796 = math.exp %795 : vector<1x128xf32>
    %cst_122 = arith.constant 1.000000e+00 : f32
    %797 = vector.broadcast %cst_122 : f32 to vector<1x128xf32>
    %798 = arith.addf %797, %796 : vector<1x128xf32>
    %799 = arith.divf %797, %798 : vector<1x128xf32>
    %800 = vector.extract_strided_slice %787 {offsets = [0, 256], sizes = [1, 128], strides = [1, 1]} : vector<1x512xf32> to vector<1x128xf32>
    %801 = math.tanh %800 : vector<1x128xf32>
    %802 = vector.extract_strided_slice %787 {offsets = [0, 384], sizes = [1, 128], strides = [1, 1]} : vector<1x512xf32> to vector<1x128xf32>
    %803 = arith.negf %802 : vector<1x128xf32>
    %804 = math.exp %803 : vector<1x128xf32>
    %cst_123 = arith.constant 1.000000e+00 : f32
    %805 = vector.broadcast %cst_123 : f32 to vector<1x128xf32>
    %806 = arith.addf %805, %804 : vector<1x128xf32>
    %807 = arith.divf %805, %806 : vector<1x128xf32>
    %808 = arith.mulf %799, %781 : vector<1x128xf32>
    %809 = arith.mulf %793, %801 : vector<1x128xf32>
    %810 = arith.addf %808, %809 : vector<1x128xf32>
    %811 = math.tanh %810 : vector<1x128xf32>
    %812 = arith.mulf %807, %811 : vector<1x128xf32>
    %813 = vector.extract_strided_slice %464 {offsets = [12, 0], sizes = [1, 512], strides = [1, 1]} : vector<16x512xf32> to vector<1x512xf32>
    %814 = arith.truncf %812 : vector<1x128xf32> to vector<1x128xbf16>
    %cst_124 = arith.constant dense<0.000000e+00> : vector<1x512xf32>
    %815 = tpu.matmul %814, %7, %cst_124 {dimension_numbers = #tpu.dot_dimension_numbers<[1], [0], [0], [1], [0, 0, 1, 1], [], []>} : vector<1x128xbf16>, vector<128x512xbf16>, vector<1x512xf32> -> vector<1x512xf32>
    %816 = arith.addf %813, %815 : vector<1x512xf32>
    %817 = vector.extract_strided_slice %816 {offsets = [0, 0], sizes = [1, 128], strides = [1, 1]} : vector<1x512xf32> to vector<1x128xf32>
    %818 = arith.negf %817 : vector<1x128xf32>
    %819 = math.exp %818 : vector<1x128xf32>
    %cst_125 = arith.constant 1.000000e+00 : f32
    %820 = vector.broadcast %cst_125 : f32 to vector<1x128xf32>
    %821 = arith.addf %820, %819 : vector<1x128xf32>
    %822 = arith.divf %820, %821 : vector<1x128xf32>
    %823 = vector.extract_strided_slice %816 {offsets = [0, 128], sizes = [1, 128], strides = [1, 1]} : vector<1x512xf32> to vector<1x128xf32>
    %824 = arith.negf %823 : vector<1x128xf32>
    %825 = math.exp %824 : vector<1x128xf32>
    %cst_126 = arith.constant 1.000000e+00 : f32
    %826 = vector.broadcast %cst_126 : f32 to vector<1x128xf32>
    %827 = arith.addf %826, %825 : vector<1x128xf32>
    %828 = arith.divf %826, %827 : vector<1x128xf32>
    %829 = vector.extract_strided_slice %816 {offsets = [0, 256], sizes = [1, 128], strides = [1, 1]} : vector<1x512xf32> to vector<1x128xf32>
    %830 = math.tanh %829 : vector<1x128xf32>
    %831 = vector.extract_strided_slice %816 {offsets = [0, 384], sizes = [1, 128], strides = [1, 1]} : vector<1x512xf32> to vector<1x128xf32>
    %832 = arith.negf %831 : vector<1x128xf32>
    %833 = math.exp %832 : vector<1x128xf32>
    %cst_127 = arith.constant 1.000000e+00 : f32
    %834 = vector.broadcast %cst_127 : f32 to vector<1x128xf32>
    %835 = arith.addf %834, %833 : vector<1x128xf32>
    %836 = arith.divf %834, %835 : vector<1x128xf32>
    %837 = arith.mulf %828, %810 : vector<1x128xf32>
    %838 = arith.mulf %822, %830 : vector<1x128xf32>
    %839 = arith.addf %837, %838 : vector<1x128xf32>
    %840 = math.tanh %839 : vector<1x128xf32>
    %841 = arith.mulf %836, %840 : vector<1x128xf32>
    %842 = vector.extract_strided_slice %464 {offsets = [13, 0], sizes = [1, 512], strides = [1, 1]} : vector<16x512xf32> to vector<1x512xf32>
    %843 = arith.truncf %841 : vector<1x128xf32> to vector<1x128xbf16>
    %cst_128 = arith.constant dense<0.000000e+00> : vector<1x512xf32>
    %844 = tpu.matmul %843, %7, %cst_128 {dimension_numbers = #tpu.dot_dimension_numbers<[1], [0], [0], [1], [0, 0, 1, 1], [], []>} : vector<1x128xbf16>, vector<128x512xbf16>, vector<1x512xf32> -> vector<1x512xf32>
    %845 = arith.addf %842, %844 : vector<1x512xf32>
    %846 = vector.extract_strided_slice %845 {offsets = [0, 0], sizes = [1, 128], strides = [1, 1]} : vector<1x512xf32> to vector<1x128xf32>
    %847 = arith.negf %846 : vector<1x128xf32>
    %848 = math.exp %847 : vector<1x128xf32>
    %cst_129 = arith.constant 1.000000e+00 : f32
    %849 = vector.broadcast %cst_129 : f32 to vector<1x128xf32>
    %850 = arith.addf %849, %848 : vector<1x128xf32>
    %851 = arith.divf %849, %850 : vector<1x128xf32>
    %852 = vector.extract_strided_slice %845 {offsets = [0, 128], sizes = [1, 128], strides = [1, 1]} : vector<1x512xf32> to vector<1x128xf32>
    %853 = arith.negf %852 : vector<1x128xf32>
    %854 = math.exp %853 : vector<1x128xf32>
    %cst_130 = arith.constant 1.000000e+00 : f32
    %855 = vector.broadcast %cst_130 : f32 to vector<1x128xf32>
    %856 = arith.addf %855, %854 : vector<1x128xf32>
    %857 = arith.divf %855, %856 : vector<1x128xf32>
    %858 = vector.extract_strided_slice %845 {offsets = [0, 256], sizes = [1, 128], strides = [1, 1]} : vector<1x512xf32> to vector<1x128xf32>
    %859 = math.tanh %858 : vector<1x128xf32>
    %860 = vector.extract_strided_slice %845 {offsets = [0, 384], sizes = [1, 128], strides = [1, 1]} : vector<1x512xf32> to vector<1x128xf32>
    %861 = arith.negf %860 : vector<1x128xf32>
    %862 = math.exp %861 : vector<1x128xf32>
    %cst_131 = arith.constant 1.000000e+00 : f32
    %863 = vector.broadcast %cst_131 : f32 to vector<1x128xf32>
    %864 = arith.addf %863, %862 : vector<1x128xf32>
    %865 = arith.divf %863, %864 : vector<1x128xf32>
    %866 = arith.mulf %857, %839 : vector<1x128xf32>
    %867 = arith.mulf %851, %859 : vector<1x128xf32>
    %868 = arith.addf %866, %867 : vector<1x128xf32>
    %869 = math.tanh %868 : vector<1x128xf32>
    %870 = arith.mulf %865, %869 : vector<1x128xf32>
    %871 = vector.extract_strided_slice %464 {offsets = [14, 0], sizes = [1, 512], strides = [1, 1]} : vector<16x512xf32> to vector<1x512xf32>
    %872 = arith.truncf %870 : vector<1x128xf32> to vector<1x128xbf16>
    %cst_132 = arith.constant dense<0.000000e+00> : vector<1x512xf32>
    %873 = tpu.matmul %872, %7, %cst_132 {dimension_numbers = #tpu.dot_dimension_numbers<[1], [0], [0], [1], [0, 0, 1, 1], [], []>} : vector<1x128xbf16>, vector<128x512xbf16>, vector<1x512xf32> -> vector<1x512xf32>
    %874 = arith.addf %871, %873 : vector<1x512xf32>
    %875 = vector.extract_strided_slice %874 {offsets = [0, 0], sizes = [1, 128], strides = [1, 1]} : vector<1x512xf32> to vector<1x128xf32>
    %876 = arith.negf %875 : vector<1x128xf32>
    %877 = math.exp %876 : vector<1x128xf32>
    %cst_133 = arith.constant 1.000000e+00 : f32
    %878 = vector.broadcast %cst_133 : f32 to vector<1x128xf32>
    %879 = arith.addf %878, %877 : vector<1x128xf32>
    %880 = arith.divf %878, %879 : vector<1x128xf32>
    %881 = vector.extract_strided_slice %874 {offsets = [0, 128], sizes = [1, 128], strides = [1, 1]} : vector<1x512xf32> to vector<1x128xf32>
    %882 = arith.negf %881 : vector<1x128xf32>
    %883 = math.exp %882 : vector<1x128xf32>
    %cst_134 = arith.constant 1.000000e+00 : f32
    %884 = vector.broadcast %cst_134 : f32 to vector<1x128xf32>
    %885 = arith.addf %884, %883 : vector<1x128xf32>
    %886 = arith.divf %884, %885 : vector<1x128xf32>
    %887 = vector.extract_strided_slice %874 {offsets = [0, 256], sizes = [1, 128], strides = [1, 1]} : vector<1x512xf32> to vector<1x128xf32>
    %888 = math.tanh %887 : vector<1x128xf32>
    %889 = vector.extract_strided_slice %874 {offsets = [0, 384], sizes = [1, 128], strides = [1, 1]} : vector<1x512xf32> to vector<1x128xf32>
    %890 = arith.negf %889 : vector<1x128xf32>
    %891 = math.exp %890 : vector<1x128xf32>
    %cst_135 = arith.constant 1.000000e+00 : f32
    %892 = vector.broadcast %cst_135 : f32 to vector<1x128xf32>
    %893 = arith.addf %892, %891 : vector<1x128xf32>
    %894 = arith.divf %892, %893 : vector<1x128xf32>
    %895 = arith.mulf %886, %868 : vector<1x128xf32>
    %896 = arith.mulf %880, %888 : vector<1x128xf32>
    %897 = arith.addf %895, %896 : vector<1x128xf32>
    %898 = math.tanh %897 : vector<1x128xf32>
    %899 = arith.mulf %894, %898 : vector<1x128xf32>
    %900 = vector.extract_strided_slice %464 {offsets = [15, 0], sizes = [1, 512], strides = [1, 1]} : vector<16x512xf32> to vector<1x512xf32>
    %901 = arith.truncf %899 : vector<1x128xf32> to vector<1x128xbf16>
    %cst_136 = arith.constant dense<0.000000e+00> : vector<1x512xf32>
    %902 = tpu.matmul %901, %7, %cst_136 {dimension_numbers = #tpu.dot_dimension_numbers<[1], [0], [0], [1], [0, 0, 1, 1], [], []>} : vector<1x128xbf16>, vector<128x512xbf16>, vector<1x512xf32> -> vector<1x512xf32>
    %903 = arith.addf %900, %902 : vector<1x512xf32>
    %904 = vector.extract_strided_slice %903 {offsets = [0, 0], sizes = [1, 128], strides = [1, 1]} : vector<1x512xf32> to vector<1x128xf32>
    %905 = arith.negf %904 : vector<1x128xf32>
    %906 = math.exp %905 : vector<1x128xf32>
    %cst_137 = arith.constant 1.000000e+00 : f32
    %907 = vector.broadcast %cst_137 : f32 to vector<1x128xf32>
    %908 = arith.addf %907, %906 : vector<1x128xf32>
    %909 = arith.divf %907, %908 : vector<1x128xf32>
    %910 = vector.extract_strided_slice %903 {offsets = [0, 128], sizes = [1, 128], strides = [1, 1]} : vector<1x512xf32> to vector<1x128xf32>
    %911 = arith.negf %910 : vector<1x128xf32>
    %912 = math.exp %911 : vector<1x128xf32>
    %cst_138 = arith.constant 1.000000e+00 : f32
    %913 = vector.broadcast %cst_138 : f32 to vector<1x128xf32>
    %914 = arith.addf %913, %912 : vector<1x128xf32>
    %915 = arith.divf %913, %914 : vector<1x128xf32>
    %916 = vector.extract_strided_slice %903 {offsets = [0, 256], sizes = [1, 128], strides = [1, 1]} : vector<1x512xf32> to vector<1x128xf32>
    %917 = math.tanh %916 : vector<1x128xf32>
    %918 = vector.extract_strided_slice %903 {offsets = [0, 384], sizes = [1, 128], strides = [1, 1]} : vector<1x512xf32> to vector<1x128xf32>
    %919 = arith.negf %918 : vector<1x128xf32>
    %920 = math.exp %919 : vector<1x128xf32>
    %cst_139 = arith.constant 1.000000e+00 : f32
    %921 = vector.broadcast %cst_139 : f32 to vector<1x128xf32>
    %922 = arith.addf %921, %920 : vector<1x128xf32>
    %923 = arith.divf %921, %922 : vector<1x128xf32>
    %924 = arith.mulf %915, %897 : vector<1x128xf32>
    %925 = arith.mulf %909, %917 : vector<1x128xf32>
    %926 = arith.addf %924, %925 : vector<1x128xf32>
    %927 = math.tanh %926 : vector<1x128xf32>
    %928 = arith.mulf %923, %927 : vector<1x128xf32>
    %929 = tpu.concatenate %493, %522, %551, %580, %609, %638, %667, %696, %725, %754, %783, %812, %841, %870, %899, %928 in 0 : vector<1x128xf32>, vector<1x128xf32>, vector<1x128xf32>, vector<1x128xf32>, vector<1x128xf32>, vector<1x128xf32>, vector<1x128xf32>, vector<1x128xf32>, vector<1x128xf32>, vector<1x128xf32>, vector<1x128xf32>, vector<1x128xf32>, vector<1x128xf32>, vector<1x128xf32>, vector<1x128xf32>, vector<1x128xf32> -> vector<16x128xf32>
    %c0_140 = arith.constant 0 : index
    %c0_141 = arith.constant 0 : index
    %930 = vector.load %arg7[%c0_140, %c0_141] : memref<16x128xf32, #tpu.memory_space<vmem>>, vector<16x128xf32>
    tpu.vector_store %arg7[%c0_140, %c0_141], %929 {strides = array<i32>} : memref<16x128xf32, #tpu.memory_space<vmem>>, vector<16x128xf32>,
    %931 = tpu.concatenate %460, %458, %928, %926 in 0 : vector<1x128xf32>, vector<1x128xf32>, vector<1x128xf32>, vector<1x128xf32> -> vector<4x128xf32>
    %c0_142 = arith.constant 0 : index
    %c0_143 = arith.constant 0 : index
    %932 = vector.load %arg8[%c0_142, %c0_143] : memref<4x128xf32, #tpu.memory_space<vmem>>, vector<4x128xf32>
    tpu.vector_store %arg8[%c0_142, %c0_143], %931 {strides = array<i32>} : memref<4x128xf32, #tpu.memory_space<vmem>>, vector<4x128xf32>,
    return
  }
  func.func @transform_0(%arg0: i32) -> (i32, i32) {
    %c0_i32 = arith.constant 0 : i32
    %c0_i32_0 = arith.constant 0 : i32
    %c0_i32_1 = arith.constant 0 : i32
    return %c0_i32, %c0_i32_0 : i32, i32
  }
  func.func @transform_1(%arg0: i32) -> (i32, i32) {
    %c0_i32 = arith.constant 0 : i32
    %c0_i32_0 = arith.constant 0 : i32
    return %arg0, %c0_i32 : i32, i32
  }
  func.func @transform_2(%arg0: i32) -> (i32, i32) {
    %c0_i32 = arith.constant 0 : i32
    %c0_i32_0 = arith.constant 0 : i32
    %c0_i32_1 = arith.constant 0 : i32
    return %c0_i32, %c0_i32_0 : i32, i32
  }
  func.func @transform_3(%arg0: i32) -> (i32, i32) {
    %c0_i32 = arith.constant 0 : i32
    %c0_i32_0 = arith.constant 0 : i32
    %c0_i32_1 = arith.constant 0 : i32
    return %c0_i32, %c0_i32_0 : i32, i32
  }
  func.func @transform_4(%arg0: i32) -> (i32, i32) {
    %c0_i32 = arith.constant 0 : i32
    %c0_i32_0 = arith.constant 0 : i32
    %c0_i32_1 = arith.constant 0 : i32
    return %c0_i32, %c0_i32_0 : i32, i32
  }
  func.func @transform_5(%arg0: i32) -> (i32, i32) {
    %c0_i32 = arith.constant 0 : i32
    %c0_i32_0 = arith.constant 0 : i32
    %c0_i32_1 = arith.constant 0 : i32
    return %c0_i32, %c0_i32_0 : i32, i32
  }
  func.func @transform_6(%arg0: i32) -> (i32, i32) {
    %c0_i32 = arith.constant 0 : i32
    %c0_i32_0 = arith.constant 0 : i32
    return %arg0, %c0_i32 : i32, i32
  }
}

</mosaic_0001>

<llo_original>
// kernel: decoder_forward.1
$region0: #{decoder_forward.1}
  #allocation0 [shape = 'u32[]', space=smem, size = 0x4, offset = 0x4, fixed_abs, tag = 'smem constant byte address 0x4 - core index']
  #allocation1 [shape = 'u32[144,128]{1,0:T(1,128)}', space=vmem, size = 0x12000, scoped, tag = 'internal scratch']
  #allocation2 [shape = 'f32[4,128]{1,0:T(4,128)}', space=vmem, size = 0x800, scoped, tag = 'scratch operand']
  %s0 = inlined_call_operand.vmem [shape: f32[1,512], index: 0, kind: input, shape index: {}]
  %s1 = inlined_call_operand.vmem [shape: f32[32,512], index: 1, kind: input, shape index: {}]
  %s2 = inlined_call_operand.vmem [shape: f32[4,128], index: 2, kind: input, shape index: {}]
  %s3 = inlined_call_operand.vmem [shape: bf16[128,512], index: 3, kind: input, shape index: {}]
  %s4 = inlined_call_operand.vmem [shape: bf16[128,512], index: 4, kind: input, shape index: {}]
  %s5 = inlined_call_operand.vmem [shape: bf16[128,512], index: 5, kind: input, shape index: {}]
  %s6 = inlined_call_operand.hbm [shape: f32[32,128], index: 6, kind: output, shape index: {}]
  %s7 = sld [smem:[#allocation0]]
  $region61: #{decoder_forward.1} parent=0
    _
  %s9 = ssub.s32 1, %s7
  %s10 = scalar_select 0, %s9, %s7
  $region1: #{decoder_forward.1} parent=0
    #allocation3 [shape = 'u8[16384]{0}', space=vmem, size = 0x4000, scoped, tag = 'output window, operand 0']
    #allocation4 [shape = 's32[2]{0}', space=sflag, size = 0x8, scoped, tag = 'scoped memory for decoder_forward.1']
    %11 = vsyncpa [#allocation4], 0
    %s12 = scalar_lea.sflag [#allocation4], 1
    %13 = vsyncpa %s12, 0
    loop: start=0, step=1, limit=4
    $region2: #{decoder_forward.1} parent=1 // loop_pre_header
      _
    $region3: #{decoder_forward.1} parent=1 // loop_header
      %s15 = sphi 0, %s19
      %p16 = scmp.ge.s32.totalorder %s15, 4
      %s23 = sphi 0, %s23
      %s25 = sphi 0, %s23
      %s26 = sphi 0, %s25
      %s40 = sphi 0, %s26
      %s46 = sphi 0, %s48
      %s49 = sphi 0, %s46
      %s50 = sphi 0, %s49
      %s66 = sphi 0, %s50
      %s70 = sphi 0, %s70
      %s72 = sphi 0, %s70
      %s73 = sphi 0, %s72
      %s87 = sphi 0, %s73
      %s91 = sphi 0, %s91
      %s93 = sphi 0, %s91
      %s94 = sphi 0, %s93
      %s108 = sphi 0, %s94
      %s112 = sphi 0, %s112
      %s114 = sphi 0, %s112
      %s115 = sphi 0, %s114
      %s129 = sphi 0, %s115
      %s133 = sphi 0, %s133
      %s135 = sphi 0, %s133
      %s136 = sphi 0, %s135
      %s150 = sphi 0, %s136
      %s156 = sphi 0, %s158
      %s159 = sphi 0, %s156
      %s160 = sphi 0, %s159
      %s176 = sphi 0, %s160
    $region4: #{decoder_forward.1} parent=1 // loop_header_branch
      %18 = sbr.rel (%p16) target = $region8
    $region5: #{decoder_forward.1} parent=1 // loop_body
      %s20 = ssub.s32 %s15, 1
      %s21 = ssub.s32 %s15, 2
      %s22 = sadd.s32 %s15, 1
      %s24 = sadd.s32 %s23, 1
      %p27 = scmp.eq.s32.totalorder %s15, 1
      %p28 = scmp.ne.s32.totalorder %s23, %s25
      %p29 = scmp.eq.s32.totalorder %s15, 0
      %p30 = por %p28, %p29
      %p31 = scmp.ne.s32.totalorder %s23, %s25
      %p32 = scmp.eq.s32.totalorder %s20, 1
      %p33 = por %p31, %p32
      %p34 = scmp.ne.s32.totalorder %s25, %s26
      %p35 = scmp.eq.s32.totalorder %s20, 0
      %p36 = por %p34, %p35
      %p37 = scmp.ne.s32.totalorder %s25, %s26
      %p38 = scmp.eq.s32.totalorder %s21, 1
      %p39 = por %p37, %p38
      %p41 = scmp.ne.s32.totalorder %s26, %s40
      %p42 = scmp.eq.s32.totalorder %s21, 0
      %p43 = por %p41, %p42
      %s44 = ssub.s32 %s15, %s22
      %p45 = scmp.eq.s32.totalorder %s44, 0
      %s47 = sadd.s32 %s46, 1
      %s48 = scalar_select %p45, %s46, %s47
      %p51 = pneg %p45
      %p52 = scmp.eq.s32.totalorder %s15, 1
      %p53 = por %p51, %p52
      %p54 = scmp.ne.s32.totalorder %s46, %s49
      %p55 = scmp.eq.s32.totalorder %s15, 0
      %p56 = por %p54, %p55
      %p57 = scmp.ne.s32.totalorder %s46, %s49
      %p58 = scmp.eq.s32.totalorder %s20, 1
      %p59 = por %p57, %p58
      %p60 = scmp.ne.s32.totalorder %s49, %s50
      %p61 = scmp.eq.s32.totalorder %s20, 0
      %p62 = por %p60, %p61
      %p63 = scmp.ne.s32.totalorder %s49, %s50
      %p64 = scmp.eq.s32.totalorder %s21, 1
      %p65 = por %p63, %p64
      %p67 = scmp.ne.s32.totalorder %s50, %s66
      %p68 = scmp.eq.s32.totalorder %s21, 0
      %p69 = por %p67, %p68
      %s71 = sadd.s32 %s70, 1
      %p74 = scmp.eq.s32.totalorder %s15, 1
      %p75 = scmp.ne.s32.totalorder %s70, %s72
      %p76 = scmp.eq.s32.totalorder %s15, 0
      %p77 = por %p75, %p76
      %p78 = scmp.ne.s32.totalorder %s70, %s72
      %p79 = scmp.eq.s32.totalorder %s20, 1
      %p80 = por %p78, %p79
      %p81 = scmp.ne.s32.totalorder %s72, %s73
      %p82 = scmp.eq.s32.totalorder %s20, 0
      %p83 = por %p81, %p82
      %p84 = scmp.ne.s32.totalorder %s72, %s73
      %p85 = scmp.eq.s32.totalorder %s21, 1
      %p86 = por %p84, %p85
      %p88 = scmp.ne.s32.totalorder %s73, %s87
      %p89 = scmp.eq.s32.totalorder %s21, 0
      %p90 = por %p88, %p89
      %s92 = sadd.s32 %s91, 1
      %p95 = scmp.eq.s32.totalorder %s15, 1
      %p96 = scmp.ne.s32.totalorder %s91, %s93
      %p97 = scmp.eq.s32.totalorder %s15, 0
      %p98 = por %p96, %p97
      %p99 = scmp.ne.s32.totalorder %s91, %s93
      %p100 = scmp.eq.s32.totalorder %s20, 1
      %p101 = por %p99, %p100
      %p102 = scmp.ne.s32.totalorder %s93, %s94
      %p103 = scmp.eq.s32.totalorder %s20, 0
      %p104 = por %p102, %p103
      %p105 = scmp.ne.s32.totalorder %s93, %s94
      %p106 = scmp.eq.s32.totalorder %s21, 1
      %p107 = por %p105, %p106
      %p109 = scmp.ne.s32.totalorder %s94, %s108
      %p110 = scmp.eq.s32.totalorder %s21, 0
      %p111 = por %p109, %p110
      %s113 = sadd.s32 %s112, 1
      %p116 = scmp.eq.s32.totalorder %s15, 1
      %p117 = scmp.ne.s32.totalorder %s112, %s114
      %p118 = scmp.eq.s32.totalorder %s15, 0
      %p119 = por %p117, %p118
      %p120 = scmp.ne.s32.totalorder %s112, %s114
      %p121 = scmp.eq.s32.totalorder %s20, 1
      %p122 = por %p120, %p121
      %p123 = scmp.ne.s32.totalorder %s114, %s115
      %p124 = scmp.eq.s32.totalorder %s20, 0
      %p125 = por %p123, %p124
      %p126 = scmp.ne.s32.totalorder %s114, %s115
      %p127 = scmp.eq.s32.totalorder %s21, 1
      %p128 = por %p126, %p127
      %p130 = scmp.ne.s32.totalorder %s115, %s129
      %p131 = scmp.eq.s32.totalorder %s21, 0
      %p132 = por %p130, %p131
      %s134 = sadd.s32 %s133, 1
      %p137 = scmp.eq.s32.totalorder %s15, 1
      %p138 = scmp.ne.s32.totalorder %s133, %s135
      %p139 = scmp.eq.s32.totalorder %s15, 0
      %p140 = por %p138, %p139
      %p141 = scmp.ne.s32.totalorder %s133, %s135
      %p142 = scmp.eq.s32.totalorder %s20, 1
      %p143 = por %p141, %p142
      %p144 = scmp.ne.s32.totalorder %s135, %s136
      %p145 = scmp.eq.s32.totalorder %s20, 0
      %p146 = por %p144, %p145
      %p147 = scmp.ne.s32.totalorder %s135, %s136
      %p148 = scmp.eq.s32.totalorder %s21, 1
      %p149 = por %p147, %p148
      %p151 = scmp.ne.s32.totalorder %s136, %s150
      %p152 = scmp.eq.s32.totalorder %s21, 0
      %p153 = por %p151, %p152
      %s154 = ssub.s32 %s15, %s22
      %p155 = scmp.eq.s32.totalorder %s154, 0
      %s157 = sadd.s32 %s156, 1
      %s158 = scalar_select %p155, %s156, %s157
      %p161 = pneg %p155
      %p162 = scmp.eq.s32.totalorder %s15, 1
      %p163 = por %p161, %p162
      %p164 = scmp.ne.s32.totalorder %s156, %s159
      %p165 = scmp.eq.s32.totalorder %s15, 0
      %p166 = por %p164, %p165
      %p167 = scmp.ne.s32.totalorder %s156, %s159
      %p168 = scmp.eq.s32.totalorder %s20, 1
      %p169 = por %p167, %p168
      %p170 = scmp.ne.s32.totalorder %s159, %s160
      %p171 = scmp.eq.s32.totalorder %s20, 0
      %p172 = por %p170, %p171
      %p173 = scmp.ne.s32.totalorder %s159, %s160
      %p174 = scmp.eq.s32.totalorder %s21, 1
      %p175 = por %p173, %p174
      %p177 = scmp.ne.s32.totalorder %s160, %s176
      %p178 = scmp.eq.s32.totalorder %s21, 0
      %p179 = por %p177, %p178
      %p180 = scmp.le.s32.totalorder 1, %s15
      %p181 = scmp.lt.s32.totalorder %s15, 3
      %p182 = pnand %p180, %p181
      %p183 = pneg %p182
      // Predicated region
      $region9: #{decoder_forward.1} parent=5 // pred_check
        _
      $region10: #{decoder_forward.1} parent=5 // pred_check_branch
        %185 = sbr.rel (%p182) target = $region12
      $region11: #{decoder_forward.1} parent=5 // pred_region
        %s186 = ssub.s32 %s15, 1
        // Predicated region
        $region13: #{decoder_forward.1} parent=11 // pred_check
          %p187 = pneg %p36
        $region14: #{decoder_forward.1} parent=11 // pred_check_branch
          %189 = sbr.rel (%p187) target = $region16
        $region15: #{decoder_forward.1} parent=11 // pred_region
          _
        $region16: #{decoder_forward.1} parent=11 // pred_fallthru
          _
        // Predicated region
        $region17: #{decoder_forward.1} parent=11 // pred_check
          %p190 = pneg %p83
        $region18: #{decoder_forward.1} parent=11 // pred_check_branch
          %192 = sbr.rel (%p190) target = $region20
        $region19: #{decoder_forward.1} parent=11 // pred_region
          _
        $region20: #{decoder_forward.1} parent=11 // pred_fallthru
          _
        // Predicated region
        $region21: #{decoder_forward.1} parent=11 // pred_check
          %p193 = pneg %p104
        $region22: #{decoder_forward.1} parent=11 // pred_check_branch
          %195 = sbr.rel (%p193) target = $region24
        $region23: #{decoder_forward.1} parent=11 // pred_region
          _
        $region24: #{decoder_forward.1} parent=11 // pred_fallthru
          _
        // Predicated region
        $region25: #{decoder_forward.1} parent=11 // pred_check
          %p196 = pneg %p125
        $region26: #{decoder_forward.1} parent=11 // pred_check_branch
          %198 = sbr.rel (%p196) target = $region28
        $region27: #{decoder_forward.1} parent=11 // pred_region
          _
        $region28: #{decoder_forward.1} parent=11 // pred_fallthru
          _
        // Predicated region
        $region29: #{decoder_forward.1} parent=11 // pred_check
          %p199 = pneg %p146
        $region30: #{decoder_forward.1} parent=11 // pred_check_branch
          %201 = sbr.rel (%p199) target = $region32
        $region31: #{decoder_forward.1} parent=11 // pred_region
          _
        $region32: #{decoder_forward.1} parent=11 // pred_fallthru
          _
      $region12: #{decoder_forward.1} parent=5 // pred_fallthru
        _
      %p202 = scmp.lt.s32.totalorder %s15, 2
      // Predicated region
      $region33: #{decoder_forward.1} parent=5 // pred_check
        %p203 = pneg %p202
      $region34: #{decoder_forward.1} parent=5 // pred_check_branch
        %205 = sbr.rel (%p203) target = $region36
      $region35: #{decoder_forward.1} parent=5 // pred_region
        // Predicated region
        $region37: #{decoder_forward.1} parent=35 // pred_check
          %p206 = pneg %p56
        $region38: #{decoder_forward.1} parent=35 // pred_check_branch
          %208 = sbr.rel (%p206) target = $region40
        $region39: #{decoder_forward.1} parent=35 // pred_region
          %s209 = smul.u32 2, %s15
          %p210 = scmp.lt.s32.totalorder %s209, 3
          %s211 = scalar_select %p210, %s209, 3
          %s212 = smul.addr %s211, 4
          %s213 = smul.addr %s212, 8
          %s214 = scalar_lea.vmem %s1, %s213
          %s215 = smul.u32 2, %s15
        $region40: #{decoder_forward.1} parent=35 // pred_fallthru
          _
      $region36: #{decoder_forward.1} parent=5 // pred_fallthru
        _
      %p216 = scmp.le.s32.totalorder 1, %s15
      %p217 = scmp.lt.s32.totalorder %s15, 3
      %p218 = pnand %p216, %p217
      %p219 = pneg %p218
      // Predicated region
      $region41: #{decoder_forward.1} parent=5 // pred_check
        _
      $region42: #{decoder_forward.1} parent=5 // pred_check_branch
        %221 = sbr.rel (%p218) target = $region44
      $region43: #{decoder_forward.1} parent=5 // pred_region
        %s222 = ssub.s32 %s15, 1
        %p223 = pneg %p36
        %p224 = pneg %p33
        %s225 = smul.u32 2, %s20
        %p226 = scmp.lt.s32.totalorder %s225, 3
        %s227 = scalar_select %p226, %s225, 3
        %s228 = smul.addr %s227, 4
        %s229 = smul.addr %s228, 8
        %s230 = scalar_lea.vmem %s1, %s229
        %p231 = pneg %p62
        %p232 = pneg %p59
        %p233 = pneg %p83
        %p234 = pneg %p80
        %p235 = pneg %p104
        %p236 = pneg %p101
        %p237 = pneg %p125
        %p238 = pneg %p122
        %p239 = pneg %p146
        %p240 = pneg %p143
        %p241 = pneg %p172
        %p242 = pneg %p169
        %s243 = sand.u32 %s159, 1
        %s244 = scalar_lea.sflag [#allocation4], %s243
        %s245 = sand.u32 %s159, 1
        %s246 = smul.addr %s245, 16
        %s247 = scalar_lea.vmem [#allocation3], %s246
        %s248 = smul.u32 2, %s20
        %p249 = scmp.lt.s32.totalorder %s248, 3
        %s250 = scalar_select %p249, %s248, 3
        %s251 = smul.addr %s250, 4
        %s252 = smul.addr %s251, 8
        %s253 = scalar_lea.vmem %s1, %s252
        %s254 = smul.u32 2, %s20
        %s255 = smul.u32 2, %s20
        %p257 = scmp.eq.s32.totalorder %s20, 0
        // Predicated region
        $region45: #{decoder_forward.1} parent=43 // pred_check
          %p258 = pneg %p257
        $region46: #{decoder_forward.1} parent=43 // pred_check_branch
          %260 = sbr.rel (%p258) target = $region48
        $region47: #{decoder_forward.1} parent=43 // pred_region
          %v261 = vld [vmem:[%s2] sm:$0xf]
          %262 = vst [vmem:[#allocation2] sm:$0xf] %v261
        $region48: #{decoder_forward.1} parent=43 // pred_fallthru
          _
        %v263 = vld [vmem:[%s0] sm:$0xf]
        %v264 = vld [vmem:[%s253] sm:$0xff]
        %v265 = vld [vmem:[%s253 + $0x8] sm:$0xff]
        %v266 = vld [vmem:[%s253 + $0x10] sm:$0xff]
        %v267 = vld [vmem:[%s253 + $0x18] sm:$0xff]
        %v268 = vld [vmem:[%s253 + $0x20] sm:$0xff]
        %v269 = vld [vmem:[%s253 + $0x28] sm:$0xff]
        %v270 = vld [vmem:[%s253 + $0x30] sm:$0xff]
        %v271 = vld [vmem:[%s253 + $0x38] sm:$0xff]
        %v272 = vld [vmem:[%s3] sm:$0xff]
        %v273 = vld [vmem:[%s3 + $0x8] sm:$0xff]
        %v274 = vld [vmem:[%s3 + $0x10] sm:$0xff]
        %v275 = vld [vmem:[%s3 + $0x18] sm:$0xff]
        %v276 = vld [vmem:[%s3 + $0x20] sm:$0xff]
        %v277 = vld [vmem:[%s3 + $0x28] sm:$0xff]
        %v278 = vld [vmem:[%s3 + $0x30] sm:$0xff]
        %v279 = vld [vmem:[%s3 + $0x38] sm:$0xff]
        %v280 = vld [vmem:[%s3 + $0x40] sm:$0xff]
        %v281 = vld [vmem:[%s3 + $0x48] sm:$0xff]
        %v282 = vld [vmem:[%s3 + $0x50] sm:$0xff]
        %v283 = vld [vmem:[%s3 + $0x58] sm:$0xff]
        %v284 = vld [vmem:[%s3 + $0x60] sm:$0xff]
        %v285 = vld [vmem:[%s3 + $0x68] sm:$0xff]
        %v286 = vld [vmem:[%s3 + $0x70] sm:$0xff]
        %v287 = vld [vmem:[%s3 + $0x78] sm:$0xff]
        %v288 = vld [vmem:[%s3 + $0x80] sm:$0xff]
        %v289 = vld [vmem:[%s3 + $0x88] sm:$0xff]
        %v290 = vld [vmem:[%s3 + $0x90] sm:$0xff]
        %v291 = vld [vmem:[%s3 + $0x98] sm:$0xff]
        %v292 = vld [vmem:[%s3 + $0xa0] sm:$0xff]
        %v293 = vld [vmem:[%s3 + $0xa8] sm:$0xff]
        %v294 = vld [vmem:[%s3 + $0xb0] sm:$0xff]
        %v295 = vld [vmem:[%s3 + $0xb8] sm:$0xff]
        %v296 = vld [vmem:[%s3 + $0xc0] sm:$0xff]
        %v297 = vld [vmem:[%s3 + $0xc8] sm:$0xff]
        %v298 = vld [vmem:[%s3 + $0xd0] sm:$0xff]
        %v299 = vld [vmem:[%s3 + $0xd8] sm:$0xff]
        %v300 = vld [vmem:[%s3 + $0xe0] sm:$0xff]
        %v301 = vld [vmem:[%s3 + $0xe8] sm:$0xff]
        %v302 = vld [vmem:[%s3 + $0xf0] sm:$0xff]
        %v303 = vld [vmem:[%s3 + $0xf8] sm:$0xff]
        %v304 = vld [vmem:[%s4] sm:$0xff]
        %v305 = vld [vmem:[%s4 + $0x8] sm:$0xff]
        %v306 = vld [vmem:[%s4 + $0x10] sm:$0xff]
        %v307 = vld [vmem:[%s4 + $0x18] sm:$0xff]
        %v308 = vld [vmem:[%s4 + $0x20] sm:$0xff]
        %v309 = vld [vmem:[%s4 + $0x28] sm:$0xff]
        %v310 = vld [vmem:[%s4 + $0x30] sm:$0xff]
        %v311 = vld [vmem:[%s4 + $0x38] sm:$0xff]
        %v312 = vld [vmem:[%s4 + $0x40] sm:$0xff]
        %v313 = vld [vmem:[%s4 + $0x48] sm:$0xff]
        %v314 = vld [vmem:[%s4 + $0x50] sm:$0xff]
        %v315 = vld [vmem:[%s4 + $0x58] sm:$0xff]
        %v316 = vld [vmem:[%s4 + $0x60] sm:$0xff]
        %v317 = vld [vmem:[%s4 + $0x68] sm:$0xff]
        %v318 = vld [vmem:[%s4 + $0x70] sm:$0xff]
        %v319 = vld [vmem:[%s4 + $0x78] sm:$0xff]
        %v320 = vld [vmem:[%s4 + $0x80] sm:$0xff]
        %v321 = vld [vmem:[%s4 + $0x88] sm:$0xff]
        %v322 = vld [vmem:[%s4 + $0x90] sm:$0xff]
        %v323 = vld [vmem:[%s4 + $0x98] sm:$0xff]
        %v324 = vld [vmem:[%s4 + $0xa0] sm:$0xff]
        %v325 = vld [vmem:[%s4 + $0xa8] sm:$0xff]
        %v326 = vld [vmem:[%s4 + $0xb0] sm:$0xff]
        %v327 = vld [vmem:[%s4 + $0xb8] sm:$0xff]
        %v328 = vld [vmem:[%s4 + $0xc0] sm:$0xff]
        %v329 = vld [vmem:[%s4 + $0xc8] sm:$0xff]
        %v330 = vld [vmem:[%s4 + $0xd0] sm:$0xff]
        %v331 = vld [vmem:[%s4 + $0xd8] sm:$0xff]
        %v332 = vld [vmem:[%s4 + $0xe0] sm:$0xff]
        %v333 = vld [vmem:[%s4 + $0xe8] sm:$0xff]
        %v334 = vld [vmem:[%s4 + $0xf0] sm:$0xff]
        %v335 = vld [vmem:[%s4 + $0xf8] sm:$0xff]
        %v336 = vld [vmem:[%s5] sm:$0xff]
        %v337 = vld [vmem:[%s5 + $0x8] sm:$0xff]
        %v338 = vld [vmem:[%s5 + $0x10] sm:$0xff]
        %v339 = vld [vmem:[%s5 + $0x18] sm:$0xff]
        %v340 = vld [vmem:[%s5 + $0x20] sm:$0xff]
        %v341 = vld [vmem:[%s5 + $0x28] sm:$0xff]
        %v342 = vld [vmem:[%s5 + $0x30] sm:$0xff]
        %v343 = vld [vmem:[%s5 + $0x38] sm:$0xff]
        %v344 = vld [vmem:[%s5 + $0x40] sm:$0xff]
        %v345 = vld [vmem:[%s5 + $0x48] sm:$0xff]
        %v346 = vld [vmem:[%s5 + $0x50] sm:$0xff]
        %v347 = vld [vmem:[%s5 + $0x58] sm:$0xff]
        %v348 = vld [vmem:[%s5 + $0x60] sm:$0xff]
        %v349 = vld [vmem:[%s5 + $0x68] sm:$0xff]
        %v350 = vld [vmem:[%s5 + $0x70] sm:$0xff]
        %v351 = vld [vmem:[%s5 + $0x78] sm:$0xff]
        %v352 = vld [vmem:[%s5 + $0x80] sm:$0xff]
        %v353 = vld [vmem:[%s5 + $0x88] sm:$0xff]
        %v354 = vld [vmem:[%s5 + $0x90] sm:$0xff]
        %v355 = vld [vmem:[%s5 + $0x98] sm:$0xff]
        %v356 = vld [vmem:[%s5 + $0xa0] sm:$0xff]
        %v357 = vld [vmem:[%s5 + $0xa8] sm:$0xff]
        %v358 = vld [vmem:[%s5 + $0xb0] sm:$0xff]
        %v359 = vld [vmem:[%s5 + $0xb8] sm:$0xff]
        %v360 = vld [vmem:[%s5 + $0xc0] sm:$0xff]
        %v361 = vld [vmem:[%s5 + $0xc8] sm:$0xff]
        %v362 = vld [vmem:[%s5 + $0xd0] sm:$0xff]
        %v363 = vld [vmem:[%s5 + $0xd8] sm:$0xff]
        %v364 = vld [vmem:[%s5 + $0xe0] sm:$0xff]
        %v365 = vld [vmem:[%s5 + $0xe8] sm:$0xff]
        %v366 = vld [vmem:[%s5 + $0xf0] sm:$0xff]
        %v367 = vld [vmem:[%s5 + $0xf8] sm:$0xff]
        %v368 = vld [vmem:[#allocation2] sm:$0xf]
        %v369 = vpack.c.bf16 %v368, %v368
        %v402 = vunpack.c.l.b16 %v272
        %v403 = vunpack.c.h.b16 %v272
        %v404 = vunpack.c.l.b16 %v273
        %v405 = vunpack.c.h.b16 %v273
        %v406 = vunpack.c.l.b16 %v274
        %v407 = vunpack.c.h.b16 %v274
        %v408 = vunpack.c.l.b16 %v275
        %v409 = vunpack.c.h.b16 %v275
        %v410 = vunpack.c.l.b16 %v276
        %v411 = vunpack.c.h.b16 %v276
        %v412 = vunpack.c.l.b16 %v277
        %v413 = vunpack.c.h.b16 %v277
        %v414 = vunpack.c.l.b16 %v278
        %v415 = vunpack.c.h.b16 %v278
        %v416 = vunpack.c.l.b16 %v279
        %v417 = vunpack.c.h.b16 %v279
        %v418 = vunpack.c.l.b16 %v280
        %v419 = vunpack.c.h.b16 %v280
        %v420 = vunpack.c.l.b16 %v281
        %v421 = vunpack.c.h.b16 %v281
        %v422 = vunpack.c.l.b16 %v282
        %v423 = vunpack.c.h.b16 %v282
        %v424 = vunpack.c.l.b16 %v283
        %v425 = vunpack.c.h.b16 %v283
        %v426 = vunpack.c.l.b16 %v284
        %v427 = vunpack.c.h.b16 %v284
        %v428 = vunpack.c.l.b16 %v285
        %v429 = vunpack.c.h.b16 %v285
        %v430 = vunpack.c.l.b16 %v286
        %v431 = vunpack.c.h.b16 %v286
        %v432 = vunpack.c.l.b16 %v287
        %v433 = vunpack.c.h.b16 %v287
        %v434 = vunpack.c.l.b16 %v288
        %v435 = vunpack.c.h.b16 %v288
        %v436 = vunpack.c.l.b16 %v289
        %v437 = vunpack.c.h.b16 %v289
        %v438 = vunpack.c.l.b16 %v290
        %v439 = vunpack.c.h.b16 %v290
        %v440 = vunpack.c.l.b16 %v291
        %v441 = vunpack.c.h.b16 %v291
        %v442 = vunpack.c.l.b16 %v292
        %v443 = vunpack.c.h.b16 %v292
        %v444 = vunpack.c.l.b16 %v293
        %v445 = vunpack.c.h.b16 %v293
        %v446 = vunpack.c.l.b16 %v294
        %v447 = vunpack.c.h.b16 %v294
        %v448 = vunpack.c.l.b16 %v295
        %v449 = vunpack.c.h.b16 %v295
        %v450 = vunpack.c.l.b16 %v296
        %v451 = vunpack.c.h.b16 %v296
        %v452 = vunpack.c.l.b16 %v297
        %v453 = vunpack.c.h.b16 %v297
        %v454 = vunpack.c.l.b16 %v298
        %v455 = vunpack.c.h.b16 %v298
        %v456 = vunpack.c.l.b16 %v299
        %v457 = vunpack.c.h.b16 %v299
        %v458 = vunpack.c.l.b16 %v300
        %v459 = vunpack.c.h.b16 %v300
        %v460 = vunpack.c.l.b16 %v301
        %v461 = vunpack.c.h.b16 %v301
        %v462 = vunpack.c.l.b16 %v302
        %v463 = vunpack.c.h.b16 %v302
        %v464 = vunpack.c.l.b16 %v303
        %v465 = vunpack.c.h.b16 %v303
        %v466 = vpack.c.b16 %v406, %v402
        %v467 = vpack.c.b16 %v407, %v403
        %v468 = vpack.c.b16 %v408, %v404
        %v469 = vpack.c.b16 %v409, %v405
        %v470 = vpack.c.b16 %v414, %v410
        %v471 = vpack.c.b16 %v415, %v411
        %v472 = vpack.c.b16 %v416, %v412
        %v473 = vpack.c.b16 %v417, %v413
        %v474 = vpack.c.b16 %v422, %v418
        %v475 = vpack.c.b16 %v423, %v419
        %v476 = vpack.c.b16 %v424, %v420
        %v477 = vpack.c.b16 %v425, %v421
        %v478 = vpack.c.b16 %v430, %v426
        %v479 = vpack.c.b16 %v431, %v427
        %v480 = vpack.c.b16 %v432, %v428
        %v481 = vpack.c.b16 %v433, %v429
        %v482 = vpack.c.b16 %v438, %v434
        %v483 = vpack.c.b16 %v439, %v435
        %v484 = vpack.c.b16 %v440, %v436
        %v485 = vpack.c.b16 %v441, %v437
        %v486 = vpack.c.b16 %v446, %v442
        %v487 = vpack.c.b16 %v447, %v443
        %v488 = vpack.c.b16 %v448, %v444
        %v489 = vpack.c.b16 %v449, %v445
        %v490 = vpack.c.b16 %v454, %v450
        %v491 = vpack.c.b16 %v455, %v451
        %v492 = vpack.c.b16 %v456, %v452
        %v493 = vpack.c.b16 %v457, %v453
        %v494 = vpack.c.b16 %v462, %v458
        %v495 = vpack.c.b16 %v463, %v459
        %v496 = vpack.c.b16 %v464, %v460
        %v497 = vpack.c.b16 %v465, %v461
        %530 = vmatprep.subr.bf16.mxu0 %v467
        %531 = vmatpush1.bf16.msra.mxu0 %v466
        %532 = vmatprep.subr.bf16.mxu0 %v471
        %533 = vmatpush1.bf16.msra.mxu0 %v470
        %534 = vmatprep.subr.bf16.mxu0 %v475
        %535 = vmatpush1.bf16.msra.mxu0 %v474
        %536 = vmatprep.subr.bf16.mxu0 %v479
        %537 = vmatpush1.bf16.msra.mxu0 %v478
        %538 = vmatprep.subr.bf16.mxu0 %v483
        %539 = vmatpush1.bf16.msra.mxu0 %v482
        %540 = vmatprep.subr.bf16.mxu0 %v487
        %541 = vmatpush1.bf16.msra.mxu0 %v486
        %542 = vmatprep.subr.bf16.mxu0 %v491
        %543 = vmatpush1.bf16.msra.mxu0 %v490
        %544 = vmatprep.subr.bf16.mxu0 %v495
        %545 = vmatpush1.bf16.msra.mxu0 %v494
        %546 = vmatprep.subr.bf16.mxu0 0
        %547 = vmatpush1.bf16.msra.mxu0 0
        %548 = vmatprep.subr.bf16.mxu0 0
        %549 = vmatpush1.bf16.msra.mxu0 0
        %550 = vmatprep.subr.bf16.mxu0 0
        %551 = vmatpush1.bf16.msra.mxu0 0
        %552 = vmatprep.subr.bf16.mxu0 0
        %553 = vmatpush1.bf16.msra.mxu0 0
        %554 = vmatprep.subr.bf16.mxu0 0
        %555 = vmatpush1.bf16.msra.mxu0 0
        %556 = vmatprep.subr.bf16.mxu0 0
        %557 = vmatpush1.bf16.msra.mxu0 0
        %558 = vmatprep.subr.bf16.mxu0 0
        %559 = vmatpush1.bf16.msra.mxu0 0
        %560 = vmatprep.subr.bf16.mxu0 0
        %561 = vmatpush1.bf16.msra.mxu0 0
        %562 = vmatprep.mubr.bf16.mxu0 0
        %563 = vmatmul.mubr.bf16.gmra.mrb[0].mxu0 %v369
        %v564 = vpop.f32.mrb[0].mxu0
        %v565 = vadd.f32 0.0, %v564
        %v566 = vpop.f32.mrb[0].mxu0
        %v567 = vadd.f32 0.0, %v566
        %v568 = vpop.f32.mrb[0].mxu0
        %v569 = vpop.f32.mrb[0].mxu0
        %570 = vdwg.mxu0
        %571 = vmatprep.subr.bf16.mxu0 %v469
        %572 = vmatpush1.bf16.msra.mxu0 %v468
        %573 = vmatprep.subr.bf16.mxu0 %v473
        %574 = vmatpush1.bf16.msra.mxu0 %v472
        %575 = vmatprep.subr.bf16.mxu0 %v477
        %576 = vmatpush1.bf16.msra.mxu0 %v476
        %577 = vmatprep.subr.bf16.mxu0 %v481
        %578 = vmatpush1.bf16.msra.mxu0 %v480
        %579 = vmatprep.subr.bf16.mxu0 %v485
        %580 = vmatpush1.bf16.msra.mxu0 %v484
        %581 = vmatprep.subr.bf16.mxu0 %v489
        %582 = vmatpush1.bf16.msra.mxu0 %v488
        %583 = vmatprep.subr.bf16.mxu0 %v493
        %584 = vmatpush1.bf16.msra.mxu0 %v492
        %585 = vmatprep.subr.bf16.mxu0 %v497
        %586 = vmatpush1.bf16.msra.mxu0 %v496
        %587 = vmatprep.subr.bf16.mxu0 0
        %588 = vmatpush1.bf16.msra.mxu0 0
        %589 = vmatprep.subr.bf16.mxu0 0
        %590 = vmatpush1.bf16.msra.mxu0 0
        %591 = vmatprep.subr.bf16.mxu0 0
        %592 = vmatpush1.bf16.msra.mxu0 0
        %593 = vmatprep.subr.bf16.mxu0 0
        %594 = vmatpush1.bf16.msra.mxu0 0
        %595 = vmatprep.subr.bf16.mxu0 0
        %596 = vmatpush1.bf16.msra.mxu0 0
        %597 = vmatprep.subr.bf16.mxu0 0
        %598 = vmatpush1.bf16.msra.mxu0 0
        %599 = vmatprep.subr.bf16.mxu0 0
        %600 = vmatpush1.bf16.msra.mxu0 0
        %601 = vmatprep.subr.bf16.mxu0 0
        %602 = vmatpush1.bf16.msra.mxu0 0
        %603 = vmatprep.mubr.bf16.mxu0 0
        %604 = vmatmul.mubr.bf16.gmra.mrb[0].mxu0 %v369
        %v605 = vpop.f32.mrb[0].mxu0
        %v606 = vadd.f32 0.0, %v605
        %v607 = vpop.f32.mrb[0].mxu0
        %v608 = vadd.f32 0.0, %v607
        %v609 = vpop.f32.mrb[0].mxu0
        %v610 = vpop.f32.mrb[0].mxu0
        %611 = vdwg.mxu0
        %v616 = vcombine.low %v565, %v567
        %v617 = vcombine.low %v606, %v608
        %v619 = vunpack.c.l.s4 1966171168
        %v620 = vunpack.c.0.s8 %v619
        %v621 = vlaneseq
        %v622 = vshrl.u32 %v621, 7
        %v623 = vsub.s32 %v620, %v622
        %v624 = vrot.slane %v616, %v623
        %v626 = vunpack.c.l.s4 1966171168
        %v627 = vunpack.c.0.s8 %v626
        %v628 = vlaneseq
        %v629 = vshrl.u32 %v628, 7
        %v630 = vsub.s32 %v627, %v629
        %v631 = vrot.slane %v617, %v630
        %v632 = vcombine.low %v624, %v631
        %v634 = vunpack.c.l.s4 1966171168
        %v635 = vunpack.c.0.s8 %v634
        %v636 = vlaneseq
        %v637 = vshrl.u32 %v636, 7
        %v638 = vsub.s32 %v635, %v637
        %v639 = vrot.slane %v632, %v638
        %v641 = vadd.f32 %v263, %v639
        %v642 = vxor.u32 %v641, 2147483648
        %v643 = vmul.f32 %v642, 1.442695
        %v644 = vpow.pop %v643
        %v645 = vadd.f32 %v644, 1.0
        %v646 = vrcp.pop %v645
        %v647 = vmul.f32 1.0, %v646
        %v649 = vrot.slane %v641, 1
        %v651 = vxor.u32 %v649, 2147483648
        %v652 = vmul.f32 %v651, 1.442695
        %v653 = vpow.pop %v652
        %v654 = vadd.f32 %v653, 1.0
        %v655 = vrcp.pop %v654
        %v656 = vmul.f32 1.0, %v655
        %v657 = vrot.slane %v641, 2
        %v659 = vtanh.pop %v657
        %v660 = vrot.slane %v641, 3
        %v662 = vxor.u32 %v660, 2147483648
        %v663 = vmul.f32 %v662, 1.442695
        %v664 = vpow.pop %v663
        %v665 = vadd.f32 %v664, 1.0
        %v666 = vrcp.pop %v665
        %v667 = vmul.f32 1.0, %v666
        %v670 = vunpack.c.l.s4 1966171168
        %v671 = vunpack.c.0.s8 %v670
        %v672 = vlaneseq
        %v673 = vshrl.u32 %v672, 7
        %v674 = vsub.s32 %v671, %v673
        %v675 = vrot.slane %v368, %v674
        %v676 = vcombine.high %v675, %v675
        %v678 = vunpack.c.l.s4 1966171168
        %v679 = vunpack.c.0.s8 %v678
        %v680 = vlaneseq
        %v681 = vshrl.u32 %v680, 7
        %v682 = vsub.s32 %v679, %v681
        %v683 = vrot.slane %v676, %v682
        %v685 = vmul.f32 %v656, %v683
        %v686 = vmul.f32 %v647, %v659
        %v687 = vadd.f32 %v685, %v686
        %v688 = vtanh.pop %v687
        %v689 = vmul.f32 %v667, %v688
        %v690 = vpack.c.bf16 %v689, %v689
        %691 = vmatprep.subr.bf16.mxu0 %v467
        %692 = vmatpush1.bf16.msra.mxu0 %v466
        %693 = vmatprep.subr.bf16.mxu0 %v471
        %694 = vmatpush1.bf16.msra.mxu0 %v470
        %695 = vmatprep.subr.bf16.mxu0 %v475
        %696 = vmatpush1.bf16.msra.mxu0 %v474
        %697 = vmatprep.subr.bf16.mxu0 %v479
        %698 = vmatpush1.bf16.msra.mxu0 %v478
        %699 = vmatprep.subr.bf16.mxu0 %v483
        %700 = vmatpush1.bf16.msra.mxu0 %v482
        %701 = vmatprep.subr.bf16.mxu0 %v487
        %702 = vmatpush1.bf16.msra.mxu0 %v486
        %703 = vmatprep.subr.bf16.mxu0 %v491
        %704 = vmatpush1.bf16.msra.mxu0 %v490
        %705 = vmatprep.subr.bf16.mxu0 %v495
        %706 = vmatpush1.bf16.msra.mxu0 %v494
        %707 = vmatprep.subr.bf16.mxu0 0
        %708 = vmatpush1.bf16.msra.mxu0 0
        %709 = vmatprep.subr.bf16.mxu0 0
        %710 = vmatpush1.bf16.msra.mxu0 0
        %711 = vmatprep.subr.bf16.mxu0 0
        %712 = vmatpush1.bf16.msra.mxu0 0
        %713 = vmatprep.subr.bf16.mxu0 0
        %714 = vmatpush1.bf16.msra.mxu0 0
        %715 = vmatprep.subr.bf16.mxu0 0
        %716 = vmatpush1.bf16.msra.mxu0 0
        %717 = vmatprep.subr.bf16.mxu0 0
        %718 = vmatpush1.bf16.msra.mxu0 0
        %719 = vmatprep.subr.bf16.mxu0 0
        %720 = vmatpush1.bf16.msra.mxu0 0
        %721 = vmatprep.subr.bf16.mxu0 0
        %722 = vmatpush1.bf16.msra.mxu0 0
        %723 = vmatprep.mubr.bf16.mxu0 0
        %724 = vmatmul.mubr.bf16.gmra.mrb[0].mxu0 %v690
        %v725 = vpop.f32.mrb[0].mxu0
        %v726 = vadd.f32 0.0, %v725
        %v727 = vpop.f32.mrb[0].mxu0
        %v728 = vadd.f32 0.0, %v727
        %v729 = vpop.f32.mrb[0].mxu0
        %v730 = vpop.f32.mrb[0].mxu0
        %731 = vdwg.mxu0
        %732 = vmatprep.subr.bf16.mxu0 %v469
        %733 = vmatpush1.bf16.msra.mxu0 %v468
        %734 = vmatprep.subr.bf16.mxu0 %v473
        %735 = vmatpush1.bf16.msra.mxu0 %v472
        %736 = vmatprep.subr.bf16.mxu0 %v477
        %737 = vmatpush1.bf16.msra.mxu0 %v476
        %738 = vmatprep.subr.bf16.mxu0 %v481
        %739 = vmatpush1.bf16.msra.mxu0 %v480
        %740 = vmatprep.subr.bf16.mxu0 %v485
        %741 = vmatpush1.bf16.msra.mxu0 %v484
        %742 = vmatprep.subr.bf16.mxu0 %v489
        %743 = vmatpush1.bf16.msra.mxu0 %v488
        %744 = vmatprep.subr.bf16.mxu0 %v493
        %745 = vmatpush1.bf16.msra.mxu0 %v492
        %746 = vmatprep.subr.bf16.mxu0 %v497
        %747 = vmatpush1.bf16.msra.mxu0 %v496
        %748 = vmatprep.subr.bf16.mxu0 0
        %749 = vmatpush1.bf16.msra.mxu0 0
        %750 = vmatprep.subr.bf16.mxu0 0
        %751 = vmatpush1.bf16.msra.mxu0 0
        %752 = vmatprep.subr.bf16.mxu0 0
        %753 = vmatpush1.bf16.msra.mxu0 0
        %754 = vmatprep.subr.bf16.mxu0 0
        %755 = vmatpush1.bf16.msra.mxu0 0
        %756 = vmatprep.subr.bf16.mxu0 0
        %757 = vmatpush1.bf16.msra.mxu0 0
        %758 = vmatprep.subr.bf16.mxu0 0
        %759 = vmatpush1.bf16.msra.mxu0 0
        %760 = vmatprep.subr.bf16.mxu0 0
        %761 = vmatpush1.bf16.msra.mxu0 0
        %762 = vmatprep.subr.bf16.mxu0 0
        %763 = vmatpush1.bf16.msra.mxu0 0
        %764 = vmatprep.mubr.bf16.mxu0 0
        %765 = vmatmul.mubr.bf16.gmra.mrb[0].mxu0 %v690
        %v766 = vpop.f32.mrb[0].mxu0
        %v767 = vadd.f32 0.0, %v766
        %v768 = vpop.f32.mrb[0].mxu0
        %v769 = vadd.f32 0.0, %v768
        %v770 = vpop.f32.mrb[0].mxu0
        %v771 = vpop.f32.mrb[0].mxu0
        %772 = vdwg.mxu0
        %v777 = vcombine.low %v726, %v728
        %v778 = vcombine.low %v767, %v769
        %v780 = vunpack.c.l.s4 1966171168
        %v781 = vunpack.c.0.s8 %v780
        %v782 = vlaneseq
        %v783 = vshrl.u32 %v782, 7
        %v784 = vsub.s32 %v781, %v783
        %v785 = vrot.slane %v777, %v784
        %v787 = vunpack.c.l.s4 1966171168
        %v788 = vunpack.c.0.s8 %v787
        %v789 = vlaneseq
        %v790 = vshrl.u32 %v789, 7
        %v791 = vsub.s32 %v788, %v790
        %v792 = vrot.slane %v778, %v791
        %v793 = vcombine.low %v785, %v792
        %v795 = vunpack.c.l.s4 1966171168
        %v796 = vunpack.c.0.s8 %v795
        %v797 = vlaneseq
        %v798 = vshrl.u32 %v797, 7
        %v799 = vsub.s32 %v796, %v798
        %v800 = vrot.slane %v793, %v799
        %v802 = vadd.f32 %v263, %v800
        %v803 = vxor.u32 %v802, 2147483648
        %v804 = vmul.f32 %v803, 1.442695
        %v805 = vpow.pop %v804
        %v806 = vadd.f32 %v805, 1.0
        %v807 = vrcp.pop %v806
        %v808 = vmul.f32 1.0, %v807
        %v810 = vrot.slane %v802, 1
        %v812 = vxor.u32 %v810, 2147483648
        %v813 = vmul.f32 %v812, 1.442695
        %v814 = vpow.pop %v813
        %v815 = vadd.f32 %v814, 1.0
        %v816 = vrcp.pop %v815
        %v817 = vmul.f32 1.0, %v816
        %v818 = vrot.slane %v802, 2
        %v820 = vtanh.pop %v818
        %v821 = vrot.slane %v802, 3
        %v823 = vxor.u32 %v821, 2147483648
        %v824 = vmul.f32 %v823, 1.442695
        %v825 = vpow.pop %v824
        %v826 = vadd.f32 %v825, 1.0
        %v827 = vrcp.pop %v826
        %v828 = vmul.f32 1.0, %v827
        %v829 = vmul.f32 %v817, %v687
        %v830 = vmul.f32 %v808, %v820
        %v831 = vadd.f32 %v829, %v830
        %v832 = vtanh.pop %v831
        %v833 = vmul.f32 %v828, %v832
        %v834 = vpack.c.bf16 %v833, %v833
        %835 = vmatprep.subr.bf16.mxu0 %v467
        %836 = vmatpush1.bf16.msra.mxu0 %v466
        %837 = vmatprep.subr.bf16.mxu0 %v471
        %838 = vmatpush1.bf16.msra.mxu0 %v470
        %839 = vmatprep.subr.bf16.mxu0 %v475
        %840 = vmatpush1.bf16.msra.mxu0 %v474
        %841 = vmatprep.subr.bf16.mxu0 %v479
        %842 = vmatpush1.bf16.msra.mxu0 %v478
        %843 = vmatprep.subr.bf16.mxu0 %v483
        %844 = vmatpush1.bf16.msra.mxu0 %v482
        %845 = vmatprep.subr.bf16.mxu0 %v487
        %846 = vmatpush1.bf16.msra.mxu0 %v486
        %847 = vmatprep.subr.bf16.mxu0 %v491
        %848 = vmatpush1.bf16.msra.mxu0 %v490
        %849 = vmatprep.subr.bf16.mxu0 %v495
        %850 = vmatpush1.bf16.msra.mxu0 %v494
        %851 = vmatprep.subr.bf16.mxu0 0
        %852 = vmatpush1.bf16.msra.mxu0 0
        %853 = vmatprep.subr.bf16.mxu0 0
        %854 = vmatpush1.bf16.msra.mxu0 0
        %855 = vmatprep.subr.bf16.mxu0 0
        %856 = vmatpush1.bf16.msra.mxu0 0
        %857 = vmatprep.subr.bf16.mxu0 0
        %858 = vmatpush1.bf16.msra.mxu0 0
        %859 = vmatprep.subr.bf16.mxu0 0
        %860 = vmatpush1.bf16.msra.mxu0 0
        %861 = vmatprep.subr.bf16.mxu0 0
        %862 = vmatpush1.bf16.msra.mxu0 0
        %863 = vmatprep.subr.bf16.mxu0 0
        %864 = vmatpush1.bf16.msra.mxu0 0
        %865 = vmatprep.subr.bf16.mxu0 0
        %866 = vmatpush1.bf16.msra.mxu0 0
        %867 = vmatprep.mubr.bf16.mxu0 0
        %868 = vmatmul.mubr.bf16.gmra.mrb[0].mxu0 %v834
        %v869 = vpop.f32.mrb[0].mxu0
        %v870 = vadd.f32 0.0, %v869
        %v871 = vpop.f32.mrb[0].mxu0
        %v872 = vadd.f32 0.0, %v871
        %v873 = vpop.f32.mrb[0].mxu0
        %v874 = vpop.f32.mrb[0].mxu0
        %875 = vdwg.mxu0
        %876 = vmatprep.subr.bf16.mxu0 %v469
        %877 = vmatpush1.bf16.msra.mxu0 %v468
        %878 = vmatprep.subr.bf16.mxu0 %v473
        %879 = vmatpush1.bf16.msra.mxu0 %v472
        %880 = vmatprep.subr.bf16.mxu0 %v477
        %881 = vmatpush1.bf16.msra.mxu0 %v476
        %882 = vmatprep.subr.bf16.mxu0 %v481
        %883 = vmatpush1.bf16.msra.mxu0 %v480
        %884 = vmatprep.subr.bf16.mxu0 %v485
        %885 = vmatpush1.bf16.msra.mxu0 %v484
        %886 = vmatprep.subr.bf16.mxu0 %v489
        %887 = vmatpush1.bf16.msra.mxu0 %v488
        %888 = vmatprep.subr.bf16.mxu0 %v493
        %889 = vmatpush1.bf16.msra.mxu0 %v492
        %890 = vmatprep.subr.bf16.mxu0 %v497
        %891 = vmatpush1.bf16.msra.mxu0 %v496
        %892 = vmatprep.subr.bf16.mxu0 0
        %893 = vmatpush1.bf16.msra.mxu0 0
        %894 = vmatprep.subr.bf16.mxu0 0
        %895 = vmatpush1.bf16.msra.mxu0 0
        %896 = vmatprep.subr.bf16.mxu0 0
        %897 = vmatpush1.bf16.msra.mxu0 0
        %898 = vmatprep.subr.bf16.mxu0 0
        %899 = vmatpush1.bf16.msra.mxu0 0
        %900 = vmatprep.subr.bf16.mxu0 0
        %901 = vmatpush1.bf16.msra.mxu0 0
        %902 = vmatprep.subr.bf16.mxu0 0
        %903 = vmatpush1.bf16.msra.mxu0 0
        %904 = vmatprep.subr.bf16.mxu0 0
        %905 = vmatpush1.bf16.msra.mxu0 0
        %906 = vmatprep.subr.bf16.mxu0 0
        %907 = vmatpush1.bf16.msra.mxu0 0
        %908 = vmatprep.mubr.bf16.mxu0 0
        %909 = vmatmul.mubr.bf16.gmra.mrb[0].mxu0 %v834
        %v910 = vpop.f32.mrb[0].mxu0
        %v911 = vadd.f32 0.0, %v910
        %v912 = vpop.f32.mrb[0].mxu0
        %v913 = vadd.f32 0.0, %v912
        %v914 = vpop.f32.mrb[0].mxu0
        %v915 = vpop.f32.mrb[0].mxu0
        %916 = vdwg.mxu0
        %v921 = vcombine.low %v870, %v872
        %v922 = vcombine.low %v911, %v913
        %v924 = vunpack.c.l.s4 1966171168
        %v925 = vunpack.c.0.s8 %v924
        %v926 = vlaneseq
        %v927 = vshrl.u32 %v926, 7
        %v928 = vsub.s32 %v925, %v927
        %v929 = vrot.slane %v921, %v928
        %v931 = vunpack.c.l.s4 1966171168
        %v932 = vunpack.c.0.s8 %v931
        %v933 = vlaneseq
        %v934 = vshrl.u32 %v933, 7
        %v935 = vsub.s32 %v932, %v934
        %v936 = vrot.slane %v922, %v935
        %v937 = vcombine.low %v929, %v936
        %v939 = vunpack.c.l.s4 1966171168
        %v940 = vunpack.c.0.s8 %v939
        %v941 = vlaneseq
        %v942 = vshrl.u32 %v941, 7
        %v943 = vsub.s32 %v940, %v942
        %v944 = vrot.slane %v937, %v943
        %v946 = vadd.f32 %v263, %v944
        %v947 = vxor.u32 %v946, 2147483648
        %v948 = vmul.f32 %v947, 1.442695
        %v949 = vpow.pop %v948
        %v950 = vadd.f32 %v949, 1.0
        %v951 = vrcp.pop %v950
        %v952 = vmul.f32 1.0, %v951
        %v954 = vrot.slane %v946, 1
        %v956 = vxor.u32 %v954, 2147483648
        %v957 = vmul.f32 %v956, 1.442695
        %v958 = vpow.pop %v957
        %v959 = vadd.f32 %v958, 1.0
        %v960 = vrcp.pop %v959
        %v961 = vmul.f32 1.0, %v960
        %v962 = vrot.slane %v946, 2
        %v964 = vtanh.pop %v962
        %v965 = vrot.slane %v946, 3
        %v967 = vxor.u32 %v965, 2147483648
        %v968 = vmul.f32 %v967, 1.442695
        %v969 = vpow.pop %v968
        %v970 = vadd.f32 %v969, 1.0
        %v971 = vrcp.pop %v970
        %v972 = vmul.f32 1.0, %v971
        %v973 = vmul.f32 %v961, %v831
        %v974 = vmul.f32 %v952, %v964
        %v975 = vadd.f32 %v973, %v974
        %v976 = vtanh.pop %v975
        %v977 = vmul.f32 %v972, %v976
        %v978 = vpack.c.bf16 %v977, %v977
        %979 = vmatprep.subr.bf16.mxu0 %v467
        %980 = vmatpush1.bf16.msra.mxu0 %v466
        %981 = vmatprep.subr.bf16.mxu0 %v471
        %982 = vmatpush1.bf16.msra.mxu0 %v470
        %983 = vmatprep.subr.bf16.mxu0 %v475
        %984 = vmatpush1.bf16.msra.mxu0 %v474
        %985 = vmatprep.subr.bf16.mxu0 %v479
        %986 = vmatpush1.bf16.msra.mxu0 %v478
        %987 = vmatprep.subr.bf16.mxu0 %v483
        %988 = vmatpush1.bf16.msra.mxu0 %v482
        %989 = vmatprep.subr.bf16.mxu0 %v487
        %990 = vmatpush1.bf16.msra.mxu0 %v486
        %991 = vmatprep.subr.bf16.mxu0 %v491
        %992 = vmatpush1.bf16.msra.mxu0 %v490
        %993 = vmatprep.subr.bf16.mxu0 %v495
        %994 = vmatpush1.bf16.msra.mxu0 %v494
        %995 = vmatprep.subr.bf16.mxu0 0
        %996 = vmatpush1.bf16.msra.mxu0 0
        %997 = vmatprep.subr.bf16.mxu0 0
        %998 = vmatpush1.bf16.msra.mxu0 0
        %999 = vmatprep.subr.bf16.mxu0 0
        %1000 = vmatpush1.bf16.msra.mxu0 0
        %1001 = vmatprep.subr.bf16.mxu0 0
        %1002 = vmatpush1.bf16.msra.mxu0 0
        %1003 = vmatprep.subr.bf16.mxu0 0
        %1004 = vmatpush1.bf16.msra.mxu0 0
        %1005 = vmatprep.subr.bf16.mxu0 0
        %1006 = vmatpush1.bf16.msra.mxu0 0
        %1007 = vmatprep.subr.bf16.mxu0 0
        %1008 = vmatpush1.bf16.msra.mxu0 0
        %1009 = vmatprep.subr.bf16.mxu0 0
        %1010 = vmatpush1.bf16.msra.mxu0 0
        %1011 = vmatprep.mubr.bf16.mxu0 0
        %1012 = vmatmul.mubr.bf16.gmra.mrb[0].mxu0 %v978
        %v1013 = vpop.f32.mrb[0].mxu0
        %v1014 = vadd.f32 0.0, %v1013
        %v1015 = vpop.f32.mrb[0].mxu0
        %v1016 = vadd.f32 0.0, %v1015
        %v1017 = vpop.f32.mrb[0].mxu0
        %v1018 = vpop.f32.mrb[0].mxu0
        %1019 = vdwg.mxu0
        %1020 = vmatprep.subr.bf16.mxu0 %v469
        %1021 = vmatpush1.bf16.msra.mxu0 %v468
        %1022 = vmatprep.subr.bf16.mxu0 %v473
        %1023 = vmatpush1.bf16.msra.mxu0 %v472
        %1024 = vmatprep.subr.bf16.mxu0 %v477
        %1025 = vmatpush1.bf16.msra.mxu0 %v476
        %1026 = vmatprep.subr.bf16.mxu0 %v481
        %1027 = vmatpush1.bf16.msra.mxu0 %v480
        %1028 = vmatprep.subr.bf16.mxu0 %v485
        %1029 = vmatpush1.bf16.msra.mxu0 %v484
        %1030 = vmatprep.subr.bf16.mxu0 %v489
        %1031 = vmatpush1.bf16.msra.mxu0 %v488
        %1032 = vmatprep.subr.bf16.mxu0 %v493
        %1033 = vmatpush1.bf16.msra.mxu0 %v492
        %1034 = vmatprep.subr.bf16.mxu0 %v497
        %1035 = vmatpush1.bf16.msra.mxu0 %v496
        %1036 = vmatprep.subr.bf16.mxu0 0
        %1037 = vmatpush1.bf16.msra.mxu0 0
        %1038 = vmatprep.subr.bf16.mxu0 0
        %1039 = vmatpush1.bf16.msra.mxu0 0
        %1040 = vmatprep.subr.bf16.mxu0 0
        %1041 = vmatpush1.bf16.msra.mxu0 0
        %1042 = vmatprep.subr.bf16.mxu0 0
        %1043 = vmatpush1.bf16.msra.mxu0 0
        %1044 = vmatprep.subr.bf16.mxu0 0
        %1045 = vmatpush1.bf16.msra.mxu0 0
        %1046 = vmatprep.subr.bf16.mxu0 0
        %1047 = vmatpush1.bf16.msra.mxu0 0
        %1048 = vmatprep.subr.bf16.mxu0 0
        %1049 = vmatpush1.bf16.msra.mxu0 0
        %1050 = vmatprep.subr.bf16.mxu0 0
        %1051 = vmatpush1.bf16.msra.mxu0 0
        %1052 = vmatprep.mubr.bf16.mxu0 0
        %1053 = vmatmul.mubr.bf16.gmra.mrb[0].mxu0 %v978
        %v1054 = vpop.f32.mrb[0].mxu0
        %v1055 = vadd.f32 0.0, %v1054
        %v1056 = vpop.f32.mrb[0].mxu0
        %v1057 = vadd.f32 0.0, %v1056
        %v1058 = vpop.f32.mrb[0].mxu0
        %v1059 = vpop.f32.mrb[0].mxu0
        %1060 = vdwg.mxu0
        %v1065 = vcombine.low %v1014, %v1016
        %v1066 = vcombine.low %v1055, %v1057
        %v1068 = vunpack.c.l.s4 1966171168
        %v1069 = vunpack.c.0.s8 %v1068
        %v1070 = vlaneseq
        %v1071 = vshrl.u32 %v1070, 7
        %v1072 = vsub.s32 %v1069, %v1071
        %v1073 = vrot.slane %v1065, %v1072
        %v1075 = vunpack.c.l.s4 1966171168
        %v1076 = vunpack.c.0.s8 %v1075
        %v1077 = vlaneseq
        %v1078 = vshrl.u32 %v1077, 7
        %v1079 = vsub.s32 %v1076, %v1078
        %v1080 = vrot.slane %v1066, %v1079
        %v1081 = vcombine.low %v1073, %v1080
        %v1083 = vunpack.c.l.s4 1966171168
        %v1084 = vunpack.c.0.s8 %v1083
        %v1085 = vlaneseq
        %v1086 = vshrl.u32 %v1085, 7
        %v1087 = vsub.s32 %v1084, %v1086
        %v1088 = vrot.slane %v1081, %v1087
        %v1090 = vadd.f32 %v263, %v1088
        %v1091 = vxor.u32 %v1090, 2147483648
        %v1092 = vmul.f32 %v1091, 1.442695
        %v1093 = vpow.pop %v1092
        %v1094 = vadd.f32 %v1093, 1.0
        %v1095 = vrcp.pop %v1094
        %v1096 = vmul.f32 1.0, %v1095
        %v1098 = vrot.slane %v1090, 1
        %v1100 = vxor.u32 %v1098, 2147483648
        %v1101 = vmul.f32 %v1100, 1.442695
        %v1102 = vpow.pop %v1101
        %v1103 = vadd.f32 %v1102, 1.0
        %v1104 = vrcp.pop %v1103
        %v1105 = vmul.f32 1.0, %v1104
        %v1106 = vrot.slane %v1090, 2
        %v1108 = vtanh.pop %v1106
        %v1109 = vrot.slane %v1090, 3
        %v1111 = vxor.u32 %v1109, 2147483648
        %v1112 = vmul.f32 %v1111, 1.442695
        %v1113 = vpow.pop %v1112
        %v1114 = vadd.f32 %v1113, 1.0
        %v1115 = vrcp.pop %v1114
        %v1116 = vmul.f32 1.0, %v1115
        %v1117 = vmul.f32 %v1105, %v975
        %v1118 = vmul.f32 %v1096, %v1108
        %v1119 = vadd.f32 %v1117, %v1118
        %v1120 = vtanh.pop %v1119
        %v1121 = vmul.f32 %v1116, %v1120
        %v1122 = vpack.c.bf16 %v1121, %v1121
        %1123 = vmatprep.subr.bf16.mxu0 %v467
        %1124 = vmatpush1.bf16.msra.mxu0 %v466
        %1125 = vmatprep.subr.bf16.mxu0 %v471
        %1126 = vmatpush1.bf16.msra.mxu0 %v470
        %1127 = vmatprep.subr.bf16.mxu0 %v475
        %1128 = vmatpush1.bf16.msra.mxu0 %v474
        %1129 = vmatprep.subr.bf16.mxu0 %v479
        %1130 = vmatpush1.bf16.msra.mxu0 %v478
        %1131 = vmatprep.subr.bf16.mxu0 %v483
        %1132 = vmatpush1.bf16.msra.mxu0 %v482
        %1133 = vmatprep.subr.bf16.mxu0 %v487
        %1134 = vmatpush1.bf16.msra.mxu0 %v486
        %1135 = vmatprep.subr.bf16.mxu0 %v491
        %1136 = vmatpush1.bf16.msra.mxu0 %v490
        %1137 = vmatprep.subr.bf16.mxu0 %v495
        %1138 = vmatpush1.bf16.msra.mxu0 %v494
        %1139 = vmatprep.subr.bf16.mxu0 0
        %1140 = vmatpush1.bf16.msra.mxu0 0
        %1141 = vmatprep.subr.bf16.mxu0 0
        %1142 = vmatpush1.bf16.msra.mxu0 0
        %1143 = vmatprep.subr.bf16.mxu0 0
        %1144 = vmatpush1.bf16.msra.mxu0 0
        %1145 = vmatprep.subr.bf16.mxu0 0
        %1146 = vmatpush1.bf16.msra.mxu0 0
        %1147 = vmatprep.subr.bf16.mxu0 0
        %1148 = vmatpush1.bf16.msra.mxu0 0
        %1149 = vmatprep.subr.bf16.mxu0 0
        %1150 = vmatpush1.bf16.msra.mxu0 0
        %1151 = vmatprep.subr.bf16.mxu0 0
        %1152 = vmatpush1.bf16.msra.mxu0 0
        %1153 = vmatprep.subr.bf16.mxu0 0
        %1154 = vmatpush1.bf16.msra.mxu0 0
        %1155 = vmatprep.mubr.bf16.mxu0 0
        %1156 = vmatmul.mubr.bf16.gmra.mrb[0].mxu0 %v1122
        %v1157 = vpop.f32.mrb[0].mxu0
        %v1158 = vadd.f32 0.0, %v1157
        %v1159 = vpop.f32.mrb[0].mxu0
        %v1160 = vadd.f32 0.0, %v1159
        %v1161 = vpop.f32.mrb[0].mxu0
        %v1162 = vpop.f32.mrb[0].mxu0
        %1163 = vdwg.mxu0
        %1164 = vmatprep.subr.bf16.mxu0 %v469
        %1165 = vmatpush1.bf16.msra.mxu0 %v468
        %1166 = vmatprep.subr.bf16.mxu0 %v473
        %1167 = vmatpush1.bf16.msra.mxu0 %v472
        %1168 = vmatprep.subr.bf16.mxu0 %v477
        %1169 = vmatpush1.bf16.msra.mxu0 %v476
        %1170 = vmatprep.subr.bf16.mxu0 %v481
        %1171 = vmatpush1.bf16.msra.mxu0 %v480
        %1172 = vmatprep.subr.bf16.mxu0 %v485
        %1173 = vmatpush1.bf16.msra.mxu0 %v484
        %1174 = vmatprep.subr.bf16.mxu0 %v489
        %1175 = vmatpush1.bf16.msra.mxu0 %v488
        %1176 = vmatprep.subr.bf16.mxu0 %v493
        %1177 = vmatpush1.bf16.msra.mxu0 %v492
        %1178 = vmatprep.subr.bf16.mxu0 %v497
        %1179 = vmatpush1.bf16.msra.mxu0 %v496
        %1180 = vmatprep.subr.bf16.mxu0 0
        %1181 = vmatpush1.bf16.msra.mxu0 0
        %1182 = vmatprep.subr.bf16.mxu0 0
        %1183 = vmatpush1.bf16.msra.mxu0 0
        %1184 = vmatprep.subr.bf16.mxu0 0
        %1185 = vmatpush1.bf16.msra.mxu0 0
        %1186 = vmatprep.subr.bf16.mxu0 0
        %1187 = vmatpush1.bf16.msra.mxu0 0
        %1188 = vmatprep.subr.bf16.mxu0 0
        %1189 = vmatpush1.bf16.msra.mxu0 0
        %1190 = vmatprep.subr.bf16.mxu0 0
        %1191 = vmatpush1.bf16.msra.mxu0 0
        %1192 = vmatprep.subr.bf16.mxu0 0
        %1193 = vmatpush1.bf16.msra.mxu0 0
        %1194 = vmatprep.subr.bf16.mxu0 0
        %1195 = vmatpush1.bf16.msra.mxu0 0
        %1196 = vmatprep.mubr.bf16.mxu0 0
        %1197 = vmatmul.mubr.bf16.gmra.mrb[0].mxu0 %v1122
        %v1198 = vpop.f32.mrb[0].mxu0
        %v1199 = vadd.f32 0.0, %v1198
        %v1200 = vpop.f32.mrb[0].mxu0
        %v1201 = vadd.f32 0.0, %v1200
        %v1202 = vpop.f32.mrb[0].mxu0
        %v1203 = vpop.f32.mrb[0].mxu0
        %1204 = vdwg.mxu0
        %v1209 = vcombine.low %v1158, %v1160
        %v1210 = vcombine.low %v1199, %v1201
        %v1212 = vunpack.c.l.s4 1966171168
        %v1213 = vunpack.c.0.s8 %v1212
        %v1214 = vlaneseq
        %v1215 = vshrl.u32 %v1214, 7
        %v1216 = vsub.s32 %v1213, %v1215
        %v1217 = vrot.slane %v1209, %v1216
        %v1219 = vunpack.c.l.s4 1966171168
        %v1220 = vunpack.c.0.s8 %v1219
        %v1221 = vlaneseq
        %v1222 = vshrl.u32 %v1221, 7
        %v1223 = vsub.s32 %v1220, %v1222
        %v1224 = vrot.slane %v1210, %v1223
        %v1225 = vcombine.low %v1217, %v1224
        %v1227 = vunpack.c.l.s4 1966171168
        %v1228 = vunpack.c.0.s8 %v1227
        %v1229 = vlaneseq
        %v1230 = vshrl.u32 %v1229, 7
        %v1231 = vsub.s32 %v1228, %v1230
        %v1232 = vrot.slane %v1225, %v1231
        %v1234 = vadd.f32 %v263, %v1232
        %v1235 = vxor.u32 %v1234, 2147483648
        %v1236 = vmul.f32 %v1235, 1.442695
        %v1237 = vpow.pop %v1236
        %v1238 = vadd.f32 %v1237, 1.0
        %v1239 = vrcp.pop %v1238
        %v1240 = vmul.f32 1.0, %v1239
        %v1242 = vrot.slane %v1234, 1
        %v1244 = vxor.u32 %v1242, 2147483648
        %v1245 = vmul.f32 %v1244, 1.442695
        %v1246 = vpow.pop %v1245
        %v1247 = vadd.f32 %v1246, 1.0
        %v1248 = vrcp.pop %v1247
        %v1249 = vmul.f32 1.0, %v1248
        %v1250 = vrot.slane %v1234, 2
        %v1252 = vtanh.pop %v1250
        %v1253 = vrot.slane %v1234, 3
        %v1255 = vxor.u32 %v1253, 2147483648
        %v1256 = vmul.f32 %v1255, 1.442695
        %v1257 = vpow.pop %v1256
        %v1258 = vadd.f32 %v1257, 1.0
        %v1259 = vrcp.pop %v1258
        %v1260 = vmul.f32 1.0, %v1259
        %v1261 = vmul.f32 %v1249, %v1119
        %v1262 = vmul.f32 %v1240, %v1252
        %v1263 = vadd.f32 %v1261, %v1262
        %v1264 = vtanh.pop %v1263
        %v1265 = vmul.f32 %v1260, %v1264
        %v1266 = vpack.c.bf16 %v1265, %v1265
        %1267 = vmatprep.subr.bf16.mxu0 %v467
        %1268 = vmatpush1.bf16.msra.mxu0 %v466
        %1269 = vmatprep.subr.bf16.mxu0 %v471
        %1270 = vmatpush1.bf16.msra.mxu0 %v470
        %1271 = vmatprep.subr.bf16.mxu0 %v475
        %1272 = vmatpush1.bf16.msra.mxu0 %v474
        %1273 = vmatprep.subr.bf16.mxu0 %v479
        %1274 = vmatpush1.bf16.msra.mxu0 %v478
        %1275 = vmatprep.subr.bf16.mxu0 %v483
        %1276 = vmatpush1.bf16.msra.mxu0 %v482
        %1277 = vmatprep.subr.bf16.mxu0 %v487
        %1278 = vmatpush1.bf16.msra.mxu0 %v486
        %1279 = vmatprep.subr.bf16.mxu0 %v491
        %1280 = vmatpush1.bf16.msra.mxu0 %v490
        %1281 = vmatprep.subr.bf16.mxu0 %v495
        %1282 = vmatpush1.bf16.msra.mxu0 %v494
        %1283 = vmatprep.subr.bf16.mxu0 0
        %1284 = vmatpush1.bf16.msra.mxu0 0
        %1285 = vmatprep.subr.bf16.mxu0 0
        %1286 = vmatpush1.bf16.msra.mxu0 0
        %1287 = vmatprep.subr.bf16.mxu0 0
        %1288 = vmatpush1.bf16.msra.mxu0 0
        %1289 = vmatprep.subr.bf16.mxu0 0
        %1290 = vmatpush1.bf16.msra.mxu0 0
        %1291 = vmatprep.subr.bf16.mxu0 0
        %1292 = vmatpush1.bf16.msra.mxu0 0
        %1293 = vmatprep.subr.bf16.mxu0 0
        %1294 = vmatpush1.bf16.msra.mxu0 0
        %1295 = vmatprep.subr.bf16.mxu0 0
        %1296 = vmatpush1.bf16.msra.mxu0 0
        %1297 = vmatprep.subr.bf16.mxu0 0
        %1298 = vmatpush1.bf16.msra.mxu0 0
        %1299 = vmatprep.mubr.bf16.mxu0 0
        %1300 = vmatmul.mubr.bf16.gmra.mrb[0].mxu0 %v1266
        %v1301 = vpop.f32.mrb[0].mxu0
        %v1302 = vadd.f32 0.0, %v1301
        %v1303 = vpop.f32.mrb[0].mxu0
        %v1304 = vadd.f32 0.0, %v1303
        %v1305 = vpop.f32.mrb[0].mxu0
        %v1306 = vpop.f32.mrb[0].mxu0
        %1307 = vdwg.mxu0
        %1308 = vmatprep.subr.bf16.mxu0 %v469
        %1309 = vmatpush1.bf16.msra.mxu0 %v468
        %1310 = vmatprep.subr.bf16.mxu0 %v473
        %1311 = vmatpush1.bf16.msra.mxu0 %v472
        %1312 = vmatprep.subr.bf16.mxu0 %v477
        %1313 = vmatpush1.bf16.msra.mxu0 %v476
        %1314 = vmatprep.subr.bf16.mxu0 %v481
        %1315 = vmatpush1.bf16.msra.mxu0 %v480
        %1316 = vmatprep.subr.bf16.mxu0 %v485
        %1317 = vmatpush1.bf16.msra.mxu0 %v484
        %1318 = vmatprep.subr.bf16.mxu0 %v489
        %1319 = vmatpush1.bf16.msra.mxu0 %v488
        %1320 = vmatprep.subr.bf16.mxu0 %v493
        %1321 = vmatpush1.bf16.msra.mxu0 %v492
        %1322 = vmatprep.subr.bf16.mxu0 %v497
        %1323 = vmatpush1.bf16.msra.mxu0 %v496
        %1324 = vmatprep.subr.bf16.mxu0 0
        %1325 = vmatpush1.bf16.msra.mxu0 0
        %1326 = vmatprep.subr.bf16.mxu0 0
        %1327 = vmatpush1.bf16.msra.mxu0 0
        %1328 = vmatprep.subr.bf16.mxu0 0
        %1329 = vmatpush1.bf16.msra.mxu0 0
        %1330 = vmatprep.subr.bf16.mxu0 0
        %1331 = vmatpush1.bf16.msra.mxu0 0
        %1332 = vmatprep.subr.bf16.mxu0 0
        %1333 = vmatpush1.bf16.msra.mxu0 0
        %1334 = vmatprep.subr.bf16.mxu0 0
        %1335 = vmatpush1.bf16.msra.mxu0 0
        %1336 = vmatprep.subr.bf16.mxu0 0
        %1337 = vmatpush1.bf16.msra.mxu0 0
        %1338 = vmatprep.subr.bf16.mxu0 0
        %1339 = vmatpush1.bf16.msra.mxu0 0
        %1340 = vmatprep.mubr.bf16.mxu0 0
        %1341 = vmatmul.mubr.bf16.gmra.mrb[0].mxu0 %v1266
        %v1342 = vpop.f32.mrb[0].mxu0
        %v1343 = vadd.f32 0.0, %v1342
        %v1344 = vpop.f32.mrb[0].mxu0
        %v1345 = vadd.f32 0.0, %v1344
        %v1346 = vpop.f32.mrb[0].mxu0
        %v1347 = vpop.f32.mrb[0].mxu0
        %1348 = vdwg.mxu0
        %v1353 = vcombine.low %v1302, %v1304
        %v1354 = vcombine.low %v1343, %v1345
        %v1356 = vunpack.c.l.s4 1966171168
        %v1357 = vunpack.c.0.s8 %v1356
        %v1358 = vlaneseq
        %v1359 = vshrl.u32 %v1358, 7
        %v1360 = vsub.s32 %v1357, %v1359
        %v1361 = vrot.slane %v1353, %v1360
        %v1363 = vunpack.c.l.s4 1966171168
        %v1364 = vunpack.c.0.s8 %v1363
        %v1365 = vlaneseq
        %v1366 = vshrl.u32 %v1365, 7
        %v1367 = vsub.s32 %v1364, %v1366
        %v1368 = vrot.slane %v1354, %v1367
        %v1369 = vcombine.low %v1361, %v1368
        %v1371 = vunpack.c.l.s4 1966171168
        %v1372 = vunpack.c.0.s8 %v1371
        %v1373 = vlaneseq
        %v1374 = vshrl.u32 %v1373, 7
        %v1375 = vsub.s32 %v1372, %v1374
        %v1376 = vrot.slane %v1369, %v1375
        %v1378 = vadd.f32 %v263, %v1376
        %v1379 = vxor.u32 %v1378, 2147483648
        %v1380 = vmul.f32 %v1379, 1.442695
        %v1381 = vpow.pop %v1380
        %v1382 = vadd.f32 %v1381, 1.0
        %v1383 = vrcp.pop %v1382
        %v1384 = vmul.f32 1.0, %v1383
        %v1386 = vrot.slane %v1378, 1
        %v1388 = vxor.u32 %v1386, 2147483648
        %v1389 = vmul.f32 %v1388, 1.442695
        %v1390 = vpow.pop %v1389
        %v1391 = vadd.f32 %v1390, 1.0
        %v1392 = vrcp.pop %v1391
        %v1393 = vmul.f32 1.0, %v1392
        %v1394 = vrot.slane %v1378, 2
        %v1396 = vtanh.pop %v1394
        %v1397 = vrot.slane %v1378, 3
        %v1399 = vxor.u32 %v1397, 2147483648
        %v1400 = vmul.f32 %v1399, 1.442695
        %v1401 = vpow.pop %v1400
        %v1402 = vadd.f32 %v1401, 1.0
        %v1403 = vrcp.pop %v1402
        %v1404 = vmul.f32 1.0, %v1403
        %v1405 = vmul.f32 %v1393, %v1263
        %v1406 = vmul.f32 %v1384, %v1396
        %v1407 = vadd.f32 %v1405, %v1406
        %v1408 = vtanh.pop %v1407
        %v1409 = vmul.f32 %v1404, %v1408
        %v1410 = vpack.c.bf16 %v1409, %v1409
        %1411 = vmatprep.subr.bf16.mxu0 %v467
        %1412 = vmatpush1.bf16.msra.mxu0 %v466
        %1413 = vmatprep.subr.bf16.mxu0 %v471
        %1414 = vmatpush1.bf16.msra.mxu0 %v470
        %1415 = vmatprep.subr.bf16.mxu0 %v475
        %1416 = vmatpush1.bf16.msra.mxu0 %v474
        %1417 = vmatprep.subr.bf16.mxu0 %v479
        %1418 = vmatpush1.bf16.msra.mxu0 %v478
        %1419 = vmatprep.subr.bf16.mxu0 %v483
        %1420 = vmatpush1.bf16.msra.mxu0 %v482
        %1421 = vmatprep.subr.bf16.mxu0 %v487
        %1422 = vmatpush1.bf16.msra.mxu0 %v486
        %1423 = vmatprep.subr.bf16.mxu0 %v491
        %1424 = vmatpush1.bf16.msra.mxu0 %v490
        %1425 = vmatprep.subr.bf16.mxu0 %v495
        %1426 = vmatpush1.bf16.msra.mxu0 %v494
        %1427 = vmatprep.subr.bf16.mxu0 0
        %1428 = vmatpush1.bf16.msra.mxu0 0
        %1429 = vmatprep.subr.bf16.mxu0 0
        %1430 = vmatpush1.bf16.msra.mxu0 0
        %1431 = vmatprep.subr.bf16.mxu0 0
        %1432 = vmatpush1.bf16.msra.mxu0 0
        %1433 = vmatprep.subr.bf16.mxu0 0
        %1434 = vmatpush1.bf16.msra.mxu0 0
        %1435 = vmatprep.subr.bf16.mxu0 0
        %1436 = vmatpush1.bf16.msra.mxu0 0
        %1437 = vmatprep.subr.bf16.mxu0 0
        %1438 = vmatpush1.bf16.msra.mxu0 0
        %1439 = vmatprep.subr.bf16.mxu0 0
        %1440 = vmatpush1.bf16.msra.mxu0 0
        %1441 = vmatprep.subr.bf16.mxu0 0
        %1442 = vmatpush1.bf16.msra.mxu0 0
        %1443 = vmatprep.mubr.bf16.mxu0 0
        %1444 = vmatmul.mubr.bf16.gmra.mrb[0].mxu0 %v1410
        %v1445 = vpop.f32.mrb[0].mxu0
        %v1446 = vadd.f32 0.0, %v1445
        %v1447 = vpop.f32.mrb[0].mxu0
        %v1448 = vadd.f32 0.0, %v1447
        %v1449 = vpop.f32.mrb[0].mxu0
        %v1450 = vpop.f32.mrb[0].mxu0
        %1451 = vdwg.mxu0
        %1452 = vmatprep.subr.bf16.mxu0 %v469
        %1453 = vmatpush1.bf16.msra.mxu0 %v468
        %1454 = vmatprep.subr.bf16.mxu0 %v473
        %1455 = vmatpush1.bf16.msra.mxu0 %v472
        %1456 = vmatprep.subr.bf16.mxu0 %v477
        %1457 = vmatpush1.bf16.msra.mxu0 %v476
        %1458 = vmatprep.subr.bf16.mxu0 %v481
        %1459 = vmatpush1.bf16.msra.mxu0 %v480
        %1460 = vmatprep.subr.bf16.mxu0 %v485
        %1461 = vmatpush1.bf16.msra.mxu0 %v484
        %1462 = vmatprep.subr.bf16.mxu0 %v489
        %1463 = vmatpush1.bf16.msra.mxu0 %v488
        %1464 = vmatprep.subr.bf16.mxu0 %v493
        %1465 = vmatpush1.bf16.msra.mxu0 %v492
        %1466 = vmatprep.subr.bf16.mxu0 %v497
        %1467 = vmatpush1.bf16.msra.mxu0 %v496
        %1468 = vmatprep.subr.bf16.mxu0 0
        %1469 = vmatpush1.bf16.msra.mxu0 0
        %1470 = vmatprep.subr.bf16.mxu0 0
        %1471 = vmatpush1.bf16.msra.mxu0 0
        %1472 = vmatprep.subr.bf16.mxu0 0
        %1473 = vmatpush1.bf16.msra.mxu0 0
        %1474 = vmatprep.subr.bf16.mxu0 0
        %1475 = vmatpush1.bf16.msra.mxu0 0
        %1476 = vmatprep.subr.bf16.mxu0 0
        %1477 = vmatpush1.bf16.msra.mxu0 0
        %1478 = vmatprep.subr.bf16.mxu0 0
        %1479 = vmatpush1.bf16.msra.mxu0 0
        %1480 = vmatprep.subr.bf16.mxu0 0
        %1481 = vmatpush1.bf16.msra.mxu0 0
        %1482 = vmatprep.subr.bf16.mxu0 0
        %1483 = vmatpush1.bf16.msra.mxu0 0
        %1484 = vmatprep.mubr.bf16.mxu0 0
        %1485 = vmatmul.mubr.bf16.gmra.mrb[0].mxu0 %v1410
        %v1486 = vpop.f32.mrb[0].mxu0
        %v1487 = vadd.f32 0.0, %v1486
        %v1488 = vpop.f32.mrb[0].mxu0
        %v1489 = vadd.f32 0.0, %v1488
        %v1490 = vpop.f32.mrb[0].mxu0
        %v1491 = vpop.f32.mrb[0].mxu0
        %1492 = vdwg.mxu0
        %v1497 = vcombine.low %v1446, %v1448
        %v1498 = vcombine.low %v1487, %v1489
        %v1500 = vunpack.c.l.s4 1966171168
        %v1501 = vunpack.c.0.s8 %v1500
        %v1502 = vlaneseq
        %v1503 = vshrl.u32 %v1502, 7
        %v1504 = vsub.s32 %v1501, %v1503
        %v1505 = vrot.slane %v1497, %v1504
        %v1507 = vunpack.c.l.s4 1966171168
        %v1508 = vunpack.c.0.s8 %v1507
        %v1509 = vlaneseq
        %v1510 = vshrl.u32 %v1509, 7
        %v1511 = vsub.s32 %v1508, %v1510
        %v1512 = vrot.slane %v1498, %v1511
        %v1513 = vcombine.low %v1505, %v1512
        %v1515 = vunpack.c.l.s4 1966171168
        %v1516 = vunpack.c.0.s8 %v1515
        %v1517 = vlaneseq
        %v1518 = vshrl.u32 %v1517, 7
        %v1519 = vsub.s32 %v1516, %v1518
        %v1520 = vrot.slane %v1513, %v1519
        %v1522 = vadd.f32 %v263, %v1520
        %v1523 = vxor.u32 %v1522, 2147483648
        %v1524 = vmul.f32 %v1523, 1.442695
        %v1525 = vpow.pop %v1524
        %v1526 = vadd.f32 %v1525, 1.0
        %v1527 = vrcp.pop %v1526
        %v1528 = vmul.f32 1.0, %v1527
        %v1530 = vrot.slane %v1522, 1
        %v1532 = vxor.u32 %v1530, 2147483648
        %v1533 = vmul.f32 %v1532, 1.442695
        %v1534 = vpow.pop %v1533
        %v1535 = vadd.f32 %v1534, 1.0
        %v1536 = vrcp.pop %v1535
        %v1537 = vmul.f32 1.0, %v1536
        %v1538 = vrot.slane %v1522, 2
        %v1540 = vtanh.pop %v1538
        %v1541 = vrot.slane %v1522, 3
        %v1543 = vxor.u32 %v1541, 2147483648
        %v1544 = vmul.f32 %v1543, 1.442695
        %v1545 = vpow.pop %v1544
        %v1546 = vadd.f32 %v1545, 1.0
        %v1547 = vrcp.pop %v1546
        %v1548 = vmul.f32 1.0, %v1547
        %v1549 = vmul.f32 %v1537, %v1407
        %v1550 = vmul.f32 %v1528, %v1540
        %v1551 = vadd.f32 %v1549, %v1550
        %v1552 = vtanh.pop %v1551
        %v1553 = vmul.f32 %v1548, %v1552
        %v1554 = vpack.c.bf16 %v1553, %v1553
        %1555 = vmatprep.subr.bf16.mxu0 %v467
        %1556 = vmatpush1.bf16.msra.mxu0 %v466
        %1557 = vmatprep.subr.bf16.mxu0 %v471
        %1558 = vmatpush1.bf16.msra.mxu0 %v470
        %1559 = vmatprep.subr.bf16.mxu0 %v475
        %1560 = vmatpush1.bf16.msra.mxu0 %v474
        %1561 = vmatprep.subr.bf16.mxu0 %v479
        %1562 = vmatpush1.bf16.msra.mxu0 %v478
        %1563 = vmatprep.subr.bf16.mxu0 %v483
        %1564 = vmatpush1.bf16.msra.mxu0 %v482
        %1565 = vmatprep.subr.bf16.mxu0 %v487
        %1566 = vmatpush1.bf16.msra.mxu0 %v486
        %1567 = vmatprep.subr.bf16.mxu0 %v491
        %1568 = vmatpush1.bf16.msra.mxu0 %v490
        %1569 = vmatprep.subr.bf16.mxu0 %v495
        %1570 = vmatpush1.bf16.msra.mxu0 %v494
        %1571 = vmatprep.subr.bf16.mxu0 0
        %1572 = vmatpush1.bf16.msra.mxu0 0
        %1573 = vmatprep.subr.bf16.mxu0 0
        %1574 = vmatpush1.bf16.msra.mxu0 0
        %1575 = vmatprep.subr.bf16.mxu0 0
        %1576 = vmatpush1.bf16.msra.mxu0 0
        %1577 = vmatprep.subr.bf16.mxu0 0
        %1578 = vmatpush1.bf16.msra.mxu0 0
        %1579 = vmatprep.subr.bf16.mxu0 0
        %1580 = vmatpush1.bf16.msra.mxu0 0
        %1581 = vmatprep.subr.bf16.mxu0 0
        %1582 = vmatpush1.bf16.msra.mxu0 0
        %1583 = vmatprep.subr.bf16.mxu0 0
        %1584 = vmatpush1.bf16.msra.mxu0 0
        %1585 = vmatprep.subr.bf16.mxu0 0
        %1586 = vmatpush1.bf16.msra.mxu0 0
        %1587 = vmatprep.mubr.bf16.mxu0 0
        %1588 = vmatmul.mubr.bf16.gmra.mrb[0].mxu0 %v1554
        %v1589 = vpop.f32.mrb[0].mxu0
        %v1590 = vadd.f32 0.0, %v1589
        %v1591 = vpop.f32.mrb[0].mxu0
        %v1592 = vadd.f32 0.0, %v1591
        %v1593 = vpop.f32.mrb[0].mxu0
        %v1594 = vpop.f32.mrb[0].mxu0
        %1595 = vdwg.mxu0
        %1596 = vmatprep.subr.bf16.mxu0 %v469
        %1597 = vmatpush1.bf16.msra.mxu0 %v468
        %1598 = vmatprep.subr.bf16.mxu0 %v473
        %1599 = vmatpush1.bf16.msra.mxu0 %v472
        %1600 = vmatprep.subr.bf16.mxu0 %v477
        %1601 = vmatpush1.bf16.msra.mxu0 %v476
        %1602 = vmatprep.subr.bf16.mxu0 %v481
        %1603 = vmatpush1.bf16.msra.mxu0 %v480
        %1604 = vmatprep.subr.bf16.mxu0 %v485
        %1605 = vmatpush1.bf16.msra.mxu0 %v484
        %1606 = vmatprep.subr.bf16.mxu0 %v489
        %1607 = vmatpush1.bf16.msra.mxu0 %v488
        %1608 = vmatprep.subr.bf16.mxu0 %v493
        %1609 = vmatpush1.bf16.msra.mxu0 %v492
        %1610 = vmatprep.subr.bf16.mxu0 %v497
        %1611 = vmatpush1.bf16.msra.mxu0 %v496
        %1612 = vmatprep.subr.bf16.mxu0 0
        %1613 = vmatpush1.bf16.msra.mxu0 0
        %1614 = vmatprep.subr.bf16.mxu0 0
        %1615 = vmatpush1.bf16.msra.mxu0 0
        %1616 = vmatprep.subr.bf16.mxu0 0
        %1617 = vmatpush1.bf16.msra.mxu0 0
        %1618 = vmatprep.subr.bf16.mxu0 0
        %1619 = vmatpush1.bf16.msra.mxu0 0
        %1620 = vmatprep.subr.bf16.mxu0 0
        %1621 = vmatpush1.bf16.msra.mxu0 0
        %1622 = vmatprep.subr.bf16.mxu0 0
        %1623 = vmatpush1.bf16.msra.mxu0 0
        %1624 = vmatprep.subr.bf16.mxu0 0
        %1625 = vmatpush1.bf16.msra.mxu0 0
        %1626 = vmatprep.subr.bf16.mxu0 0
        %1627 = vmatpush1.bf16.msra.mxu0 0
        %1628 = vmatprep.mubr.bf16.mxu0 0
        %1629 = vmatmul.mubr.bf16.gmra.mrb[0].mxu0 %v1554
        %v1630 = vpop.f32.mrb[0].mxu0
        %v1631 = vadd.f32 0.0, %v1630
        %v1632 = vpop.f32.mrb[0].mxu0
        %v1633 = vadd.f32 0.0, %v1632
        %v1634 = vpop.f32.mrb[0].mxu0
        %v1635 = vpop.f32.mrb[0].mxu0
        %1636 = vdwg.mxu0
        %v1641 = vcombine.low %v1590, %v1592
        %v1642 = vcombine.low %v1631, %v1633
        %v1644 = vunpack.c.l.s4 1966171168
        %v1645 = vunpack.c.0.s8 %v1644
        %v1646 = vlaneseq
        %v1647 = vshrl.u32 %v1646, 7
        %v1648 = vsub.s32 %v1645, %v1647
        %v1649 = vrot.slane %v1641, %v1648
        %v1651 = vunpack.c.l.s4 1966171168
        %v1652 = vunpack.c.0.s8 %v1651
        %v1653 = vlaneseq
        %v1654 = vshrl.u32 %v1653, 7
        %v1655 = vsub.s32 %v1652, %v1654
        %v1656 = vrot.slane %v1642, %v1655
        %v1657 = vcombine.low %v1649, %v1656
        %v1659 = vunpack.c.l.s4 1966171168
        %v1660 = vunpack.c.0.s8 %v1659
        %v1661 = vlaneseq
        %v1662 = vshrl.u32 %v1661, 7
        %v1663 = vsub.s32 %v1660, %v1662
        %v1664 = vrot.slane %v1657, %v1663
        %v1666 = vadd.f32 %v263, %v1664
        %v1667 = vxor.u32 %v1666, 2147483648
        %v1668 = vmul.f32 %v1667, 1.442695
        %v1669 = vpow.pop %v1668
        %v1670 = vadd.f32 %v1669, 1.0
        %v1671 = vrcp.pop %v1670
        %v1672 = vmul.f32 1.0, %v1671
        %v1674 = vrot.slane %v1666, 1
        %v1676 = vxor.u32 %v1674, 2147483648
        %v1677 = vmul.f32 %v1676, 1.442695
        %v1678 = vpow.pop %v1677
        %v1679 = vadd.f32 %v1678, 1.0
        %v1680 = vrcp.pop %v1679
        %v1681 = vmul.f32 1.0, %v1680
        %v1682 = vrot.slane %v1666, 2
        %v1684 = vtanh.pop %v1682
        %v1685 = vrot.slane %v1666, 3
        %v1687 = vxor.u32 %v1685, 2147483648
        %v1688 = vmul.f32 %v1687, 1.442695
        %v1689 = vpow.pop %v1688
        %v1690 = vadd.f32 %v1689, 1.0
        %v1691 = vrcp.pop %v1690
        %v1692 = vmul.f32 1.0, %v1691
        %v1693 = vmul.f32 %v1681, %v1551
        %v1694 = vmul.f32 %v1672, %v1684
        %v1695 = vadd.f32 %v1693, %v1694
        %v1696 = vtanh.pop %v1695
        %v1697 = vmul.f32 %v1692, %v1696
        %v1698 = vpack.c.bf16 %v1697, %v1697
        %1699 = vmatprep.subr.bf16.mxu0 %v467
        %1700 = vmatpush1.bf16.msra.mxu0 %v466
        %1701 = vmatprep.subr.bf16.mxu0 %v471
        %1702 = vmatpush1.bf16.msra.mxu0 %v470
        %1703 = vmatprep.subr.bf16.mxu0 %v475
        %1704 = vmatpush1.bf16.msra.mxu0 %v474
        %1705 = vmatprep.subr.bf16.mxu0 %v479
        %1706 = vmatpush1.bf16.msra.mxu0 %v478
        %1707 = vmatprep.subr.bf16.mxu0 %v483
        %1708 = vmatpush1.bf16.msra.mxu0 %v482
        %1709 = vmatprep.subr.bf16.mxu0 %v487
        %1710 = vmatpush1.bf16.msra.mxu0 %v486
        %1711 = vmatprep.subr.bf16.mxu0 %v491
        %1712 = vmatpush1.bf16.msra.mxu0 %v490
        %1713 = vmatprep.subr.bf16.mxu0 %v495
        %1714 = vmatpush1.bf16.msra.mxu0 %v494
        %1715 = vmatprep.subr.bf16.mxu0 0
        %1716 = vmatpush1.bf16.msra.mxu0 0
        %1717 = vmatprep.subr.bf16.mxu0 0
        %1718 = vmatpush1.bf16.msra.mxu0 0
        %1719 = vmatprep.subr.bf16.mxu0 0
        %1720 = vmatpush1.bf16.msra.mxu0 0
        %1721 = vmatprep.subr.bf16.mxu0 0
        %1722 = vmatpush1.bf16.msra.mxu0 0
        %1723 = vmatprep.subr.bf16.mxu0 0
        %1724 = vmatpush1.bf16.msra.mxu0 0
        %1725 = vmatprep.subr.bf16.mxu0 0
        %1726 = vmatpush1.bf16.msra.mxu0 0
        %1727 = vmatprep.subr.bf16.mxu0 0
        %1728 = vmatpush1.bf16.msra.mxu0 0
        %1729 = vmatprep.subr.bf16.mxu0 0
        %1730 = vmatpush1.bf16.msra.mxu0 0
        %1731 = vmatprep.mubr.bf16.mxu0 0
        %1732 = vmatmul.mubr.bf16.gmra.mrb[0].mxu0 %v1698
        %v1733 = vpop.f32.mrb[0].mxu0
        %v1734 = vadd.f32 0.0, %v1733
        %v1735 = vpop.f32.mrb[0].mxu0
        %v1736 = vadd.f32 0.0, %v1735
        %v1737 = vpop.f32.mrb[0].mxu0
        %v1738 = vpop.f32.mrb[0].mxu0
        %1739 = vdwg.mxu0
        %1740 = vmatprep.subr.bf16.mxu0 %v469
        %1741 = vmatpush1.bf16.msra.mxu0 %v468
        %1742 = vmatprep.subr.bf16.mxu0 %v473
        %1743 = vmatpush1.bf16.msra.mxu0 %v472
        %1744 = vmatprep.subr.bf16.mxu0 %v477
        %1745 = vmatpush1.bf16.msra.mxu0 %v476
        %1746 = vmatprep.subr.bf16.mxu0 %v481
        %1747 = vmatpush1.bf16.msra.mxu0 %v480
        %1748 = vmatprep.subr.bf16.mxu0 %v485
        %1749 = vmatpush1.bf16.msra.mxu0 %v484
        %1750 = vmatprep.subr.bf16.mxu0 %v489
        %1751 = vmatpush1.bf16.msra.mxu0 %v488
        %1752 = vmatprep.subr.bf16.mxu0 %v493
        %1753 = vmatpush1.bf16.msra.mxu0 %v492
        %1754 = vmatprep.subr.bf16.mxu0 %v497
        %1755 = vmatpush1.bf16.msra.mxu0 %v496
        %1756 = vmatprep.subr.bf16.mxu0 0
        %1757 = vmatpush1.bf16.msra.mxu0 0
        %1758 = vmatprep.subr.bf16.mxu0 0
        %1759 = vmatpush1.bf16.msra.mxu0 0
        %1760 = vmatprep.subr.bf16.mxu0 0
        %1761 = vmatpush1.bf16.msra.mxu0 0
        %1762 = vmatprep.subr.bf16.mxu0 0
        %1763 = vmatpush1.bf16.msra.mxu0 0
        %1764 = vmatprep.subr.bf16.mxu0 0
        %1765 = vmatpush1.bf16.msra.mxu0 0
        %1766 = vmatprep.subr.bf16.mxu0 0
        %1767 = vmatpush1.bf16.msra.mxu0 0
        %1768 = vmatprep.subr.bf16.mxu0 0
        %1769 = vmatpush1.bf16.msra.mxu0 0
        %1770 = vmatprep.subr.bf16.mxu0 0
        %1771 = vmatpush1.bf16.msra.mxu0 0
        %1772 = vmatprep.mubr.bf16.mxu0 0
        %1773 = vmatmul.mubr.bf16.gmra.mrb[0].mxu0 %v1698
        %v1774 = vpop.f32.mrb[0].mxu0
        %v1775 = vadd.f32 0.0, %v1774
        %v1776 = vpop.f32.mrb[0].mxu0
        %v1777 = vadd.f32 0.0, %v1776
        %v1778 = vpop.f32.mrb[0].mxu0
        %v1779 = vpop.f32.mrb[0].mxu0
        %1780 = vdwg.mxu0
        %v1785 = vcombine.low %v1734, %v1736
        %v1786 = vcombine.low %v1775, %v1777
        %v1788 = vunpack.c.l.s4 1966171168
        %v1789 = vunpack.c.0.s8 %v1788
        %v1790 = vlaneseq
        %v1791 = vshrl.u32 %v1790, 7
        %v1792 = vsub.s32 %v1789, %v1791
        %v1793 = vrot.slane %v1785, %v1792
        %v1795 = vunpack.c.l.s4 1966171168
        %v1796 = vunpack.c.0.s8 %v1795
        %v1797 = vlaneseq
        %v1798 = vshrl.u32 %v1797, 7
        %v1799 = vsub.s32 %v1796, %v1798
        %v1800 = vrot.slane %v1786, %v1799
        %v1801 = vcombine.low %v1793, %v1800
        %v1803 = vunpack.c.l.s4 1966171168
        %v1804 = vunpack.c.0.s8 %v1803
        %v1805 = vlaneseq
        %v1806 = vshrl.u32 %v1805, 7
        %v1807 = vsub.s32 %v1804, %v1806
        %v1808 = vrot.slane %v1801, %v1807
        %v1810 = vadd.f32 %v263, %v1808
        %v1811 = vxor.u32 %v1810, 2147483648
        %v1812 = vmul.f32 %v1811, 1.442695
        %v1813 = vpow.pop %v1812
        %v1814 = vadd.f32 %v1813, 1.0
        %v1815 = vrcp.pop %v1814
        %v1816 = vmul.f32 1.0, %v1815
        %v1818 = vrot.slane %v1810, 1
        %v1820 = vxor.u32 %v1818, 2147483648
        %v1821 = vmul.f32 %v1820, 1.442695
        %v1822 = vpow.pop %v1821
        %v1823 = vadd.f32 %v1822, 1.0
        %v1824 = vrcp.pop %v1823
        %v1825 = vmul.f32 1.0, %v1824
        %v1826 = vrot.slane %v1810, 2
        %v1828 = vtanh.pop %v1826
        %v1829 = vrot.slane %v1810, 3
        %v1831 = vxor.u32 %v1829, 2147483648
        %v1832 = vmul.f32 %v1831, 1.442695
        %v1833 = vpow.pop %v1832
        %v1834 = vadd.f32 %v1833, 1.0
        %v1835 = vrcp.pop %v1834
        %v1836 = vmul.f32 1.0, %v1835
        %v1837 = vmul.f32 %v1825, %v1695
        %v1838 = vmul.f32 %v1816, %v1828
        %v1839 = vadd.f32 %v1837, %v1838
        %v1840 = vtanh.pop %v1839
        %v1841 = vmul.f32 %v1836, %v1840
        %v1842 = vpack.c.bf16 %v1841, %v1841
        %1843 = vmatprep.subr.bf16.mxu0 %v467
        %1844 = vmatpush1.bf16.msra.mxu0 %v466
        %1845 = vmatprep.subr.bf16.mxu0 %v471
        %1846 = vmatpush1.bf16.msra.mxu0 %v470
        %1847 = vmatprep.subr.bf16.mxu0 %v475
        %1848 = vmatpush1.bf16.msra.mxu0 %v474
        %1849 = vmatprep.subr.bf16.mxu0 %v479
        %1850 = vmatpush1.bf16.msra.mxu0 %v478
        %1851 = vmatprep.subr.bf16.mxu0 %v483
        %1852 = vmatpush1.bf16.msra.mxu0 %v482
        %1853 = vmatprep.subr.bf16.mxu0 %v487
        %1854 = vmatpush1.bf16.msra.mxu0 %v486
        %1855 = vmatprep.subr.bf16.mxu0 %v491
        %1856 = vmatpush1.bf16.msra.mxu0 %v490
        %1857 = vmatprep.subr.bf16.mxu0 %v495
        %1858 = vmatpush1.bf16.msra.mxu0 %v494
        %1859 = vmatprep.subr.bf16.mxu0 0
        %1860 = vmatpush1.bf16.msra.mxu0 0
        %1861 = vmatprep.subr.bf16.mxu0 0
        %1862 = vmatpush1.bf16.msra.mxu0 0
        %1863 = vmatprep.subr.bf16.mxu0 0
        %1864 = vmatpush1.bf16.msra.mxu0 0
        %1865 = vmatprep.subr.bf16.mxu0 0
        %1866 = vmatpush1.bf16.msra.mxu0 0
        %1867 = vmatprep.subr.bf16.mxu0 0
        %1868 = vmatpush1.bf16.msra.mxu0 0
        %1869 = vmatprep.subr.bf16.mxu0 0
        %1870 = vmatpush1.bf16.msra.mxu0 0
        %1871 = vmatprep.subr.bf16.mxu0 0
        %1872 = vmatpush1.bf16.msra.mxu0 0
        %1873 = vmatprep.subr.bf16.mxu0 0
        %1874 = vmatpush1.bf16.msra.mxu0 0
        %1875 = vmatprep.mubr.bf16.mxu0 0
        %1876 = vmatmul.mubr.bf16.gmra.mrb[0].mxu0 %v1842
        %v1877 = vpop.f32.mrb[0].mxu0
        %v1878 = vadd.f32 0.0, %v1877
        %v1879 = vpop.f32.mrb[0].mxu0
        %v1880 = vadd.f32 0.0, %v1879
        %v1881 = vpop.f32.mrb[0].mxu0
        %v1882 = vpop.f32.mrb[0].mxu0
        %1883 = vdwg.mxu0
        %1884 = vmatprep.subr.bf16.mxu0 %v469
        %1885 = vmatpush1.bf16.msra.mxu0 %v468
        %1886 = vmatprep.subr.bf16.mxu0 %v473
        %1887 = vmatpush1.bf16.msra.mxu0 %v472
        %1888 = vmatprep.subr.bf16.mxu0 %v477
        %1889 = vmatpush1.bf16.msra.mxu0 %v476
        %1890 = vmatprep.subr.bf16.mxu0 %v481
        %1891 = vmatpush1.bf16.msra.mxu0 %v480
        %1892 = vmatprep.subr.bf16.mxu0 %v485
        %1893 = vmatpush1.bf16.msra.mxu0 %v484
        %1894 = vmatprep.subr.bf16.mxu0 %v489
        %1895 = vmatpush1.bf16.msra.mxu0 %v488
        %1896 = vmatprep.subr.bf16.mxu0 %v493
        %1897 = vmatpush1.bf16.msra.mxu0 %v492
        %1898 = vmatprep.subr.bf16.mxu0 %v497
        %1899 = vmatpush1.bf16.msra.mxu0 %v496
        %1900 = vmatprep.subr.bf16.mxu0 0
        %1901 = vmatpush1.bf16.msra.mxu0 0
        %1902 = vmatprep.subr.bf16.mxu0 0
        %1903 = vmatpush1.bf16.msra.mxu0 0
        %1904 = vmatprep.subr.bf16.mxu0 0
        %1905 = vmatpush1.bf16.msra.mxu0 0
        %1906 = vmatprep.subr.bf16.mxu0 0
        %1907 = vmatpush1.bf16.msra.mxu0 0
        %1908 = vmatprep.subr.bf16.mxu0 0
        %1909 = vmatpush1.bf16.msra.mxu0 0
        %1910 = vmatprep.subr.bf16.mxu0 0
        %1911 = vmatpush1.bf16.msra.mxu0 0
        %1912 = vmatprep.subr.bf16.mxu0 0
        %1913 = vmatpush1.bf16.msra.mxu0 0
        %1914 = vmatprep.subr.bf16.mxu0 0
        %1915 = vmatpush1.bf16.msra.mxu0 0
        %1916 = vmatprep.mubr.bf16.mxu0 0
        %1917 = vmatmul.mubr.bf16.gmra.mrb[0].mxu0 %v1842
        %v1918 = vpop.f32.mrb[0].mxu0
        %v1919 = vadd.f32 0.0, %v1918
        %v1920 = vpop.f32.mrb[0].mxu0
        %v1921 = vadd.f32 0.0, %v1920
        %v1922 = vpop.f32.mrb[0].mxu0
        %v1923 = vpop.f32.mrb[0].mxu0
        %1924 = vdwg.mxu0
        %v1929 = vcombine.low %v1878, %v1880
        %v1930 = vcombine.low %v1919, %v1921
        %v1932 = vunpack.c.l.s4 1966171168
        %v1933 = vunpack.c.0.s8 %v1932
        %v1934 = vlaneseq
        %v1935 = vshrl.u32 %v1934, 7
        %v1936 = vsub.s32 %v1933, %v1935
        %v1937 = vrot.slane %v1929, %v1936
        %v1939 = vunpack.c.l.s4 1966171168
        %v1940 = vunpack.c.0.s8 %v1939
        %v1941 = vlaneseq
        %v1942 = vshrl.u32 %v1941, 7
        %v1943 = vsub.s32 %v1940, %v1942
        %v1944 = vrot.slane %v1930, %v1943
        %v1945 = vcombine.low %v1937, %v1944
        %v1947 = vunpack.c.l.s4 1966171168
        %v1948 = vunpack.c.0.s8 %v1947
        %v1949 = vlaneseq
        %v1950 = vshrl.u32 %v1949, 7
        %v1951 = vsub.s32 %v1948, %v1950
        %v1952 = vrot.slane %v1945, %v1951
        %v1954 = vadd.f32 %v263, %v1952
        %v1955 = vxor.u32 %v1954, 2147483648
        %v1956 = vmul.f32 %v1955, 1.442695
        %v1957 = vpow.pop %v1956
        %v1958 = vadd.f32 %v1957, 1.0
        %v1959 = vrcp.pop %v1958
        %v1960 = vmul.f32 1.0, %v1959
        %v1962 = vrot.slane %v1954, 1
        %v1964 = vxor.u32 %v1962, 2147483648
        %v1965 = vmul.f32 %v1964, 1.442695
        %v1966 = vpow.pop %v1965
        %v1967 = vadd.f32 %v1966, 1.0
        %v1968 = vrcp.pop %v1967
        %v1969 = vmul.f32 1.0, %v1968
        %v1970 = vrot.slane %v1954, 2
        %v1972 = vtanh.pop %v1970
        %v1973 = vrot.slane %v1954, 3
        %v1975 = vxor.u32 %v1973, 2147483648
        %v1976 = vmul.f32 %v1975, 1.442695
        %v1977 = vpow.pop %v1976
        %v1978 = vadd.f32 %v1977, 1.0
        %v1979 = vrcp.pop %v1978
        %v1980 = vmul.f32 1.0, %v1979
        %v1981 = vmul.f32 %v1969, %v1839
        %v1982 = vmul.f32 %v1960, %v1972
        %v1983 = vadd.f32 %v1981, %v1982
        %v1984 = vtanh.pop %v1983
        %v1985 = vmul.f32 %v1980, %v1984
        %v1986 = vpack.c.bf16 %v1985, %v1985
        %1987 = vmatprep.subr.bf16.mxu0 %v467
        %1988 = vmatpush1.bf16.msra.mxu0 %v466
        %1989 = vmatprep.subr.bf16.mxu0 %v471
        %1990 = vmatpush1.bf16.msra.mxu0 %v470
        %1991 = vmatprep.subr.bf16.mxu0 %v475
        %1992 = vmatpush1.bf16.msra.mxu0 %v474
        %1993 = vmatprep.subr.bf16.mxu0 %v479
        %1994 = vmatpush1.bf16.msra.mxu0 %v478
        %1995 = vmatprep.subr.bf16.mxu0 %v483
        %1996 = vmatpush1.bf16.msra.mxu0 %v482
        %1997 = vmatprep.subr.bf16.mxu0 %v487
        %1998 = vmatpush1.bf16.msra.mxu0 %v486
        %1999 = vmatprep.subr.bf16.mxu0 %v491
        %2000 = vmatpush1.bf16.msra.mxu0 %v490
        %2001 = vmatprep.subr.bf16.mxu0 %v495
        %2002 = vmatpush1.bf16.msra.mxu0 %v494
        %2003 = vmatprep.subr.bf16.mxu0 0
        %2004 = vmatpush1.bf16.msra.mxu0 0
        %2005 = vmatprep.subr.bf16.mxu0 0
        %2006 = vmatpush1.bf16.msra.mxu0 0
        %2007 = vmatprep.subr.bf16.mxu0 0
        %2008 = vmatpush1.bf16.msra.mxu0 0
        %2009 = vmatprep.subr.bf16.mxu0 0
        %2010 = vmatpush1.bf16.msra.mxu0 0
        %2011 = vmatprep.subr.bf16.mxu0 0
        %2012 = vmatpush1.bf16.msra.mxu0 0
        %2013 = vmatprep.subr.bf16.mxu0 0
        %2014 = vmatpush1.bf16.msra.mxu0 0
        %2015 = vmatprep.subr.bf16.mxu0 0
        %2016 = vmatpush1.bf16.msra.mxu0 0
        %2017 = vmatprep.subr.bf16.mxu0 0
        %2018 = vmatpush1.bf16.msra.mxu0 0
        %2019 = vmatprep.mubr.bf16.mxu0 0
        %2020 = vmatmul.mubr.bf16.gmra.mrb[0].mxu0 %v1986
        %v2021 = vpop.f32.mrb[0].mxu0
        %v2022 = vadd.f32 0.0, %v2021
        %v2023 = vpop.f32.mrb[0].mxu0
        %v2024 = vadd.f32 0.0, %v2023
        %v2025 = vpop.f32.mrb[0].mxu0
        %v2026 = vpop.f32.mrb[0].mxu0
        %2027 = vdwg.mxu0
        %2028 = vmatprep.subr.bf16.mxu0 %v469
        %2029 = vmatpush1.bf16.msra.mxu0 %v468
        %2030 = vmatprep.subr.bf16.mxu0 %v473
        %2031 = vmatpush1.bf16.msra.mxu0 %v472
        %2032 = vmatprep.subr.bf16.mxu0 %v477
        %2033 = vmatpush1.bf16.msra.mxu0 %v476
        %2034 = vmatprep.subr.bf16.mxu0 %v481
        %2035 = vmatpush1.bf16.msra.mxu0 %v480
        %2036 = vmatprep.subr.bf16.mxu0 %v485
        %2037 = vmatpush1.bf16.msra.mxu0 %v484
        %2038 = vmatprep.subr.bf16.mxu0 %v489
        %2039 = vmatpush1.bf16.msra.mxu0 %v488
        %2040 = vmatprep.subr.bf16.mxu0 %v493
        %2041 = vmatpush1.bf16.msra.mxu0 %v492
        %2042 = vmatprep.subr.bf16.mxu0 %v497
        %2043 = vmatpush1.bf16.msra.mxu0 %v496
        %2044 = vmatprep.subr.bf16.mxu0 0
        %2045 = vmatpush1.bf16.msra.mxu0 0
        %2046 = vmatprep.subr.bf16.mxu0 0
        %2047 = vmatpush1.bf16.msra.mxu0 0
        %2048 = vmatprep.subr.bf16.mxu0 0
        %2049 = vmatpush1.bf16.msra.mxu0 0
        %2050 = vmatprep.subr.bf16.mxu0 0
        %2051 = vmatpush1.bf16.msra.mxu0 0
        %2052 = vmatprep.subr.bf16.mxu0 0
        %2053 = vmatpush1.bf16.msra.mxu0 0
        %2054 = vmatprep.subr.bf16.mxu0 0
        %2055 = vmatpush1.bf16.msra.mxu0 0
        %2056 = vmatprep.subr.bf16.mxu0 0
        %2057 = vmatpush1.bf16.msra.mxu0 0
        %2058 = vmatprep.subr.bf16.mxu0 0
        %2059 = vmatpush1.bf16.msra.mxu0 0
        %2060 = vmatprep.mubr.bf16.mxu0 0
        %2061 = vmatmul.mubr.bf16.gmra.mrb[0].mxu0 %v1986
        %v2062 = vpop.f32.mrb[0].mxu0
        %v2063 = vadd.f32 0.0, %v2062
        %v2064 = vpop.f32.mrb[0].mxu0
        %v2065 = vadd.f32 0.0, %v2064
        %v2066 = vpop.f32.mrb[0].mxu0
        %v2067 = vpop.f32.mrb[0].mxu0
        %2068 = vdwg.mxu0
        %v2073 = vcombine.low %v2022, %v2024
        %v2074 = vcombine.low %v2063, %v2065
        %v2076 = vunpack.c.l.s4 1966171168
        %v2077 = vunpack.c.0.s8 %v2076
        %v2078 = vlaneseq
        %v2079 = vshrl.u32 %v2078, 7
        %v2080 = vsub.s32 %v2077, %v2079
        %v2081 = vrot.slane %v2073, %v2080
        %v2083 = vunpack.c.l.s4 1966171168
        %v2084 = vunpack.c.0.s8 %v2083
        %v2085 = vlaneseq
        %v2086 = vshrl.u32 %v2085, 7
        %v2087 = vsub.s32 %v2084, %v2086
        %v2088 = vrot.slane %v2074, %v2087
        %v2089 = vcombine.low %v2081, %v2088
        %v2091 = vunpack.c.l.s4 1966171168
        %v2092 = vunpack.c.0.s8 %v2091
        %v2093 = vlaneseq
        %v2094 = vshrl.u32 %v2093, 7
        %v2095 = vsub.s32 %v2092, %v2094
        %v2096 = vrot.slane %v2089, %v2095
        %v2098 = vadd.f32 %v263, %v2096
        %v2099 = vxor.u32 %v2098, 2147483648
        %v2100 = vmul.f32 %v2099, 1.442695
        %v2101 = vpow.pop %v2100
        %v2102 = vadd.f32 %v2101, 1.0
        %v2103 = vrcp.pop %v2102
        %v2104 = vmul.f32 1.0, %v2103
        %v2106 = vrot.slane %v2098, 1
        %v2108 = vxor.u32 %v2106, 2147483648
        %v2109 = vmul.f32 %v2108, 1.442695
        %v2110 = vpow.pop %v2109
        %v2111 = vadd.f32 %v2110, 1.0
        %v2112 = vrcp.pop %v2111
        %v2113 = vmul.f32 1.0, %v2112
        %v2114 = vrot.slane %v2098, 2
        %v2116 = vtanh.pop %v2114
        %v2117 = vrot.slane %v2098, 3
        %v2119 = vxor.u32 %v2117, 2147483648
        %v2120 = vmul.f32 %v2119, 1.442695
        %v2121 = vpow.pop %v2120
        %v2122 = vadd.f32 %v2121, 1.0
        %v2123 = vrcp.pop %v2122
        %v2124 = vmul.f32 1.0, %v2123
        %v2125 = vmul.f32 %v2113, %v1983
        %v2126 = vmul.f32 %v2104, %v2116
        %v2127 = vadd.f32 %v2125, %v2126
        %v2128 = vtanh.pop %v2127
        %v2129 = vmul.f32 %v2124, %v2128
        %v2130 = vpack.c.bf16 %v2129, %v2129
        %2131 = vmatprep.subr.bf16.mxu0 %v467
        %2132 = vmatpush1.bf16.msra.mxu0 %v466
        %2133 = vmatprep.subr.bf16.mxu0 %v471
        %2134 = vmatpush1.bf16.msra.mxu0 %v470
        %2135 = vmatprep.subr.bf16.mxu0 %v475
        %2136 = vmatpush1.bf16.msra.mxu0 %v474
        %2137 = vmatprep.subr.bf16.mxu0 %v479
        %2138 = vmatpush1.bf16.msra.mxu0 %v478
        %2139 = vmatprep.subr.bf16.mxu0 %v483
        %2140 = vmatpush1.bf16.msra.mxu0 %v482
        %2141 = vmatprep.subr.bf16.mxu0 %v487
        %2142 = vmatpush1.bf16.msra.mxu0 %v486
        %2143 = vmatprep.subr.bf16.mxu0 %v491
        %2144 = vmatpush1.bf16.msra.mxu0 %v490
        %2145 = vmatprep.subr.bf16.mxu0 %v495
        %2146 = vmatpush1.bf16.msra.mxu0 %v494
        %2147 = vmatprep.subr.bf16.mxu0 0
        %2148 = vmatpush1.bf16.msra.mxu0 0
        %2149 = vmatprep.subr.bf16.mxu0 0
        %2150 = vmatpush1.bf16.msra.mxu0 0
        %2151 = vmatprep.subr.bf16.mxu0 0
        %2152 = vmatpush1.bf16.msra.mxu0 0
        %2153 = vmatprep.subr.bf16.mxu0 0
        %2154 = vmatpush1.bf16.msra.mxu0 0
        %2155 = vmatprep.subr.bf16.mxu0 0
        %2156 = vmatpush1.bf16.msra.mxu0 0
        %2157 = vmatprep.subr.bf16.mxu0 0
        %2158 = vmatpush1.bf16.msra.mxu0 0
        %2159 = vmatprep.subr.bf16.mxu0 0
        %2160 = vmatpush1.bf16.msra.mxu0 0
        %2161 = vmatprep.subr.bf16.mxu0 0
        %2162 = vmatpush1.bf16.msra.mxu0 0
        %2163 = vmatprep.mubr.bf16.mxu0 0
        %2164 = vmatmul.mubr.bf16.gmra.mrb[0].mxu0 %v2130
        %v2165 = vpop.f32.mrb[0].mxu0
        %v2166 = vadd.f32 0.0, %v2165
        %v2167 = vpop.f32.mrb[0].mxu0
        %v2168 = vadd.f32 0.0, %v2167
        %v2169 = vpop.f32.mrb[0].mxu0
        %v2170 = vpop.f32.mrb[0].mxu0
        %2171 = vdwg.mxu0
        %2172 = vmatprep.subr.bf16.mxu0 %v469
        %2173 = vmatpush1.bf16.msra.mxu0 %v468
        %2174 = vmatprep.subr.bf16.mxu0 %v473
        %2175 = vmatpush1.bf16.msra.mxu0 %v472
        %2176 = vmatprep.subr.bf16.mxu0 %v477
        %2177 = vmatpush1.bf16.msra.mxu0 %v476
        %2178 = vmatprep.subr.bf16.mxu0 %v481
        %2179 = vmatpush1.bf16.msra.mxu0 %v480
        %2180 = vmatprep.subr.bf16.mxu0 %v485
        %2181 = vmatpush1.bf16.msra.mxu0 %v484
        %2182 = vmatprep.subr.bf16.mxu0 %v489
        %2183 = vmatpush1.bf16.msra.mxu0 %v488
        %2184 = vmatprep.subr.bf16.mxu0 %v493
        %2185 = vmatpush1.bf16.msra.mxu0 %v492
        %2186 = vmatprep.subr.bf16.mxu0 %v497
        %2187 = vmatpush1.bf16.msra.mxu0 %v496
        %2188 = vmatprep.subr.bf16.mxu0 0
        %2189 = vmatpush1.bf16.msra.mxu0 0
        %2190 = vmatprep.subr.bf16.mxu0 0
        %2191 = vmatpush1.bf16.msra.mxu0 0
        %2192 = vmatprep.subr.bf16.mxu0 0
        %2193 = vmatpush1.bf16.msra.mxu0 0
        %2194 = vmatprep.subr.bf16.mxu0 0
        %2195 = vmatpush1.bf16.msra.mxu0 0
        %2196 = vmatprep.subr.bf16.mxu0 0
        %2197 = vmatpush1.bf16.msra.mxu0 0
        %2198 = vmatprep.subr.bf16.mxu0 0
        %2199 = vmatpush1.bf16.msra.mxu0 0
        %2200 = vmatprep.subr.bf16.mxu0 0
        %2201 = vmatpush1.bf16.msra.mxu0 0
        %2202 = vmatprep.subr.bf16.mxu0 0
        %2203 = vmatpush1.bf16.msra.mxu0 0
        %2204 = vmatprep.mubr.bf16.mxu0 0
        %2205 = vmatmul.mubr.bf16.gmra.mrb[0].mxu0 %v2130
        %v2206 = vpop.f32.mrb[0].mxu0
        %v2207 = vadd.f32 0.0, %v2206
        %v2208 = vpop.f32.mrb[0].mxu0
        %v2209 = vadd.f32 0.0, %v2208
        %v2210 = vpop.f32.mrb[0].mxu0
        %v2211 = vpop.f32.mrb[0].mxu0
        %2212 = vdwg.mxu0
        %v2217 = vcombine.low %v2166, %v2168
        %v2218 = vcombine.low %v2207, %v2209
        %v2220 = vunpack.c.l.s4 1966171168
        %v2221 = vunpack.c.0.s8 %v2220
        %v2222 = vlaneseq
        %v2223 = vshrl.u32 %v2222, 7
        %v2224 = vsub.s32 %v2221, %v2223
        %v2225 = vrot.slane %v2217, %v2224
        %v2227 = vunpack.c.l.s4 1966171168
        %v2228 = vunpack.c.0.s8 %v2227
        %v2229 = vlaneseq
        %v2230 = vshrl.u32 %v2229, 7
        %v2231 = vsub.s32 %v2228, %v2230
        %v2232 = vrot.slane %v2218, %v2231
        %v2233 = vcombine.low %v2225, %v2232
        %v2235 = vunpack.c.l.s4 1966171168
        %v2236 = vunpack.c.0.s8 %v2235
        %v2237 = vlaneseq
        %v2238 = vshrl.u32 %v2237, 7
        %v2239 = vsub.s32 %v2236, %v2238
        %v2240 = vrot.slane %v2233, %v2239
        %v2242 = vadd.f32 %v263, %v2240
        %v2243 = vxor.u32 %v2242, 2147483648
        %v2244 = vmul.f32 %v2243, 1.442695
        %v2245 = vpow.pop %v2244
        %v2246 = vadd.f32 %v2245, 1.0
        %v2247 = vrcp.pop %v2246
        %v2248 = vmul.f32 1.0, %v2247
        %v2250 = vrot.slane %v2242, 1
        %v2252 = vxor.u32 %v2250, 2147483648
        %v2253 = vmul.f32 %v2252, 1.442695
        %v2254 = vpow.pop %v2253
        %v2255 = vadd.f32 %v2254, 1.0
        %v2256 = vrcp.pop %v2255
        %v2257 = vmul.f32 1.0, %v2256
        %v2258 = vrot.slane %v2242, 2
        %v2260 = vtanh.pop %v2258
        %v2261 = vrot.slane %v2242, 3
        %v2263 = vxor.u32 %v2261, 2147483648
        %v2264 = vmul.f32 %v2263, 1.442695
        %v2265 = vpow.pop %v2264
        %v2266 = vadd.f32 %v2265, 1.0
        %v2267 = vrcp.pop %v2266
        %v2268 = vmul.f32 1.0, %v2267
        %v2269 = vmul.f32 %v2257, %v2127
        %v2270 = vmul.f32 %v2248, %v2260
        %v2271 = vadd.f32 %v2269, %v2270
        %v2272 = vtanh.pop %v2271
        %v2273 = vmul.f32 %v2268, %v2272
        %v2274 = vpack.c.bf16 %v2273, %v2273
        %2275 = vmatprep.subr.bf16.mxu0 %v467
        %2276 = vmatpush1.bf16.msra.mxu0 %v466
        %2277 = vmatprep.subr.bf16.mxu0 %v471
        %2278 = vmatpush1.bf16.msra.mxu0 %v470
        %2279 = vmatprep.subr.bf16.mxu0 %v475
        %2280 = vmatpush1.bf16.msra.mxu0 %v474
        %2281 = vmatprep.subr.bf16.mxu0 %v479
        %2282 = vmatpush1.bf16.msra.mxu0 %v478
        %2283 = vmatprep.subr.bf16.mxu0 %v483
        %2284 = vmatpush1.bf16.msra.mxu0 %v482
        %2285 = vmatprep.subr.bf16.mxu0 %v487
        %2286 = vmatpush1.bf16.msra.mxu0 %v486
        %2287 = vmatprep.subr.bf16.mxu0 %v491
        %2288 = vmatpush1.bf16.msra.mxu0 %v490
        %2289 = vmatprep.subr.bf16.mxu0 %v495
        %2290 = vmatpush1.bf16.msra.mxu0 %v494
        %2291 = vmatprep.subr.bf16.mxu0 0
        %2292 = vmatpush1.bf16.msra.mxu0 0
        %2293 = vmatprep.subr.bf16.mxu0 0
        %2294 = vmatpush1.bf16.msra.mxu0 0
        %2295 = vmatprep.subr.bf16.mxu0 0
        %2296 = vmatpush1.bf16.msra.mxu0 0
        %2297 = vmatprep.subr.bf16.mxu0 0
        %2298 = vmatpush1.bf16.msra.mxu0 0
        %2299 = vmatprep.subr.bf16.mxu0 0
        %2300 = vmatpush1.bf16.msra.mxu0 0
        %2301 = vmatprep.subr.bf16.mxu0 0
        %2302 = vmatpush1.bf16.msra.mxu0 0
        %2303 = vmatprep.subr.bf16.mxu0 0
        %2304 = vmatpush1.bf16.msra.mxu0 0
        %2305 = vmatprep.subr.bf16.mxu0 0
        %2306 = vmatpush1.bf16.msra.mxu0 0
        %2307 = vmatprep.mubr.bf16.mxu0 0
        %2308 = vmatmul.mubr.bf16.gmra.mrb[0].mxu0 %v2274
        %v2309 = vpop.f32.mrb[0].mxu0
        %v2310 = vadd.f32 0.0, %v2309
        %v2311 = vpop.f32.mrb[0].mxu0
        %v2312 = vadd.f32 0.0, %v2311
        %v2313 = vpop.f32.mrb[0].mxu0
        %v2314 = vpop.f32.mrb[0].mxu0
        %2315 = vdwg.mxu0
        %2316 = vmatprep.subr.bf16.mxu0 %v469
        %2317 = vmatpush1.bf16.msra.mxu0 %v468
        %2318 = vmatprep.subr.bf16.mxu0 %v473
        %2319 = vmatpush1.bf16.msra.mxu0 %v472
        %2320 = vmatprep.subr.bf16.mxu0 %v477
        %2321 = vmatpush1.bf16.msra.mxu0 %v476
        %2322 = vmatprep.subr.bf16.mxu0 %v481
        %2323 = vmatpush1.bf16.msra.mxu0 %v480
        %2324 = vmatprep.subr.bf16.mxu0 %v485
        %2325 = vmatpush1.bf16.msra.mxu0 %v484
        %2326 = vmatprep.subr.bf16.mxu0 %v489
        %2327 = vmatpush1.bf16.msra.mxu0 %v488
        %2328 = vmatprep.subr.bf16.mxu0 %v493
        %2329 = vmatpush1.bf16.msra.mxu0 %v492
        %2330 = vmatprep.subr.bf16.mxu0 %v497
        %2331 = vmatpush1.bf16.msra.mxu0 %v496
        %2332 = vmatprep.subr.bf16.mxu0 0
        %2333 = vmatpush1.bf16.msra.mxu0 0
        %2334 = vmatprep.subr.bf16.mxu0 0
        %2335 = vmatpush1.bf16.msra.mxu0 0
        %2336 = vmatprep.subr.bf16.mxu0 0
        %2337 = vmatpush1.bf16.msra.mxu0 0
        %2338 = vmatprep.subr.bf16.mxu0 0
        %2339 = vmatpush1.bf16.msra.mxu0 0
        %2340 = vmatprep.subr.bf16.mxu0 0
        %2341 = vmatpush1.bf16.msra.mxu0 0
        %2342 = vmatprep.subr.bf16.mxu0 0
        %2343 = vmatpush1.bf16.msra.mxu0 0
        %2344 = vmatprep.subr.bf16.mxu0 0
        %2345 = vmatpush1.bf16.msra.mxu0 0
        %2346 = vmatprep.subr.bf16.mxu0 0
        %2347 = vmatpush1.bf16.msra.mxu0 0
        %2348 = vmatprep.mubr.bf16.mxu0 0
        %2349 = vmatmul.mubr.bf16.gmra.mrb[0].mxu0 %v2274
        %v2350 = vpop.f32.mrb[0].mxu0
        %v2351 = vadd.f32 0.0, %v2350
        %v2352 = vpop.f32.mrb[0].mxu0
        %v2353 = vadd.f32 0.0, %v2352
        %v2354 = vpop.f32.mrb[0].mxu0
        %v2355 = vpop.f32.mrb[0].mxu0
        %2356 = vdwg.mxu0
        %v2361 = vcombine.low %v2310, %v2312
        %v2362 = vcombine.low %v2351, %v2353
        %v2364 = vunpack.c.l.s4 1966171168
        %v2365 = vunpack.c.0.s8 %v2364
        %v2366 = vlaneseq
        %v2367 = vshrl.u32 %v2366, 7
        %v2368 = vsub.s32 %v2365, %v2367
        %v2369 = vrot.slane %v2361, %v2368
        %v2371 = vunpack.c.l.s4 1966171168
        %v2372 = vunpack.c.0.s8 %v2371
        %v2373 = vlaneseq
        %v2374 = vshrl.u32 %v2373, 7
        %v2375 = vsub.s32 %v2372, %v2374
        %v2376 = vrot.slane %v2362, %v2375
        %v2377 = vcombine.low %v2369, %v2376
        %v2379 = vunpack.c.l.s4 1966171168
        %v2380 = vunpack.c.0.s8 %v2379
        %v2381 = vlaneseq
        %v2382 = vshrl.u32 %v2381, 7
        %v2383 = vsub.s32 %v2380, %v2382
        %v2384 = vrot.slane %v2377, %v2383
        %v2386 = vadd.f32 %v263, %v2384
        %v2387 = vxor.u32 %v2386, 2147483648
        %v2388 = vmul.f32 %v2387, 1.442695
        %v2389 = vpow.pop %v2388
        %v2390 = vadd.f32 %v2389, 1.0
        %v2391 = vrcp.pop %v2390
        %v2392 = vmul.f32 1.0, %v2391
        %v2394 = vrot.slane %v2386, 1
        %v2396 = vxor.u32 %v2394, 2147483648
        %v2397 = vmul.f32 %v2396, 1.442695
        %v2398 = vpow.pop %v2397
        %v2399 = vadd.f32 %v2398, 1.0
        %v2400 = vrcp.pop %v2399
        %v2401 = vmul.f32 1.0, %v2400
        %v2402 = vrot.slane %v2386, 2
        %v2404 = vtanh.pop %v2402
        %v2405 = vrot.slane %v2386, 3
        %v2407 = vxor.u32 %v2405, 2147483648
        %v2408 = vmul.f32 %v2407, 1.442695
        %v2409 = vpow.pop %v2408
        %v2410 = vadd.f32 %v2409, 1.0
        %v2411 = vrcp.pop %v2410
        %v2412 = vmul.f32 1.0, %v2411
        %v2413 = vmul.f32 %v2401, %v2271
        %v2414 = vmul.f32 %v2392, %v2404
        %v2415 = vadd.f32 %v2413, %v2414
        %v2416 = vtanh.pop %v2415
        %v2417 = vmul.f32 %v2412, %v2416
        %v2418 = vpack.c.bf16 %v2417, %v2417
        %2419 = vmatprep.subr.bf16.mxu0 %v467
        %2420 = vmatpush1.bf16.msra.mxu0 %v466
        %2421 = vmatprep.subr.bf16.mxu0 %v471
        %2422 = vmatpush1.bf16.msra.mxu0 %v470
        %2423 = vmatprep.subr.bf16.mxu0 %v475
        %2424 = vmatpush1.bf16.msra.mxu0 %v474
        %2425 = vmatprep.subr.bf16.mxu0 %v479
        %2426 = vmatpush1.bf16.msra.mxu0 %v478
        %2427 = vmatprep.subr.bf16.mxu0 %v483
        %2428 = vmatpush1.bf16.msra.mxu0 %v482
        %2429 = vmatprep.subr.bf16.mxu0 %v487
        %2430 = vmatpush1.bf16.msra.mxu0 %v486
        %2431 = vmatprep.subr.bf16.mxu0 %v491
        %2432 = vmatpush1.bf16.msra.mxu0 %v490
        %2433 = vmatprep.subr.bf16.mxu0 %v495
        %2434 = vmatpush1.bf16.msra.mxu0 %v494
        %2435 = vmatprep.subr.bf16.mxu0 0
        %2436 = vmatpush1.bf16.msra.mxu0 0
        %2437 = vmatprep.subr.bf16.mxu0 0
        %2438 = vmatpush1.bf16.msra.mxu0 0
        %2439 = vmatprep.subr.bf16.mxu0 0
        %2440 = vmatpush1.bf16.msra.mxu0 0
        %2441 = vmatprep.subr.bf16.mxu0 0
        %2442 = vmatpush1.bf16.msra.mxu0 0
        %2443 = vmatprep.subr.bf16.mxu0 0
        %2444 = vmatpush1.bf16.msra.mxu0 0
        %2445 = vmatprep.subr.bf16.mxu0 0
        %2446 = vmatpush1.bf16.msra.mxu0 0
        %2447 = vmatprep.subr.bf16.mxu0 0
        %2448 = vmatpush1.bf16.msra.mxu0 0
        %2449 = vmatprep.subr.bf16.mxu0 0
        %2450 = vmatpush1.bf16.msra.mxu0 0
        %2451 = vmatprep.mubr.bf16.mxu0 0
        %2452 = vmatmul.mubr.bf16.gmra.mrb[0].mxu0 %v2418
        %v2453 = vpop.f32.mrb[0].mxu0
        %v2454 = vadd.f32 0.0, %v2453
        %v2455 = vpop.f32.mrb[0].mxu0
        %v2456 = vadd.f32 0.0, %v2455
        %v2457 = vpop.f32.mrb[0].mxu0
        %v2458 = vpop.f32.mrb[0].mxu0
        %2459 = vdwg.mxu0
        %2460 = vmatprep.subr.bf16.mxu0 %v469
        %2461 = vmatpush1.bf16.msra.mxu0 %v468
        %2462 = vmatprep.subr.bf16.mxu0 %v473
        %2463 = vmatpush1.bf16.msra.mxu0 %v472
        %2464 = vmatprep.subr.bf16.mxu0 %v477
        %2465 = vmatpush1.bf16.msra.mxu0 %v476
        %2466 = vmatprep.subr.bf16.mxu0 %v481
        %2467 = vmatpush1.bf16.msra.mxu0 %v480
        %2468 = vmatprep.subr.bf16.mxu0 %v485
        %2469 = vmatpush1.bf16.msra.mxu0 %v484
        %2470 = vmatprep.subr.bf16.mxu0 %v489
        %2471 = vmatpush1.bf16.msra.mxu0 %v488
        %2472 = vmatprep.subr.bf16.mxu0 %v493
        %2473 = vmatpush1.bf16.msra.mxu0 %v492
        %2474 = vmatprep.subr.bf16.mxu0 %v497
        %2475 = vmatpush1.bf16.msra.mxu0 %v496
        %2476 = vmatprep.subr.bf16.mxu0 0
        %2477 = vmatpush1.bf16.msra.mxu0 0
        %2478 = vmatprep.subr.bf16.mxu0 0
        %2479 = vmatpush1.bf16.msra.mxu0 0
        %2480 = vmatprep.subr.bf16.mxu0 0
        %2481 = vmatpush1.bf16.msra.mxu0 0
        %2482 = vmatprep.subr.bf16.mxu0 0
        %2483 = vmatpush1.bf16.msra.mxu0 0
        %2484 = vmatprep.subr.bf16.mxu0 0
        %2485 = vmatpush1.bf16.msra.mxu0 0
        %2486 = vmatprep.subr.bf16.mxu0 0
        %2487 = vmatpush1.bf16.msra.mxu0 0
        %2488 = vmatprep.subr.bf16.mxu0 0
        %2489 = vmatpush1.bf16.msra.mxu0 0
        %2490 = vmatprep.subr.bf16.mxu0 0
        %2491 = vmatpush1.bf16.msra.mxu0 0
        %2492 = vmatprep.mubr.bf16.mxu0 0
        %2493 = vmatmul.mubr.bf16.gmra.mrb[0].mxu0 %v2418
        %v2494 = vpop.f32.mrb[0].mxu0
        %v2495 = vadd.f32 0.0, %v2494
        %v2496 = vpop.f32.mrb[0].mxu0
        %v2497 = vadd.f32 0.0, %v2496
        %v2498 = vpop.f32.mrb[0].mxu0
        %v2499 = vpop.f32.mrb[0].mxu0
        %2500 = vdwg.mxu0
        %v2505 = vcombine.low %v2454, %v2456
        %v2506 = vcombine.low %v2495, %v2497
        %v2508 = vunpack.c.l.s4 1966171168
        %v2509 = vunpack.c.0.s8 %v2508
        %v2510 = vlaneseq
        %v2511 = vshrl.u32 %v2510, 7
        %v2512 = vsub.s32 %v2509, %v2511
        %v2513 = vrot.slane %v2505, %v2512
        %v2515 = vunpack.c.l.s4 1966171168
        %v2516 = vunpack.c.0.s8 %v2515
        %v2517 = vlaneseq
        %v2518 = vshrl.u32 %v2517, 7
        %v2519 = vsub.s32 %v2516, %v2518
        %v2520 = vrot.slane %v2506, %v2519
        %v2521 = vcombine.low %v2513, %v2520
        %v2523 = vunpack.c.l.s4 1966171168
        %v2524 = vunpack.c.0.s8 %v2523
        %v2525 = vlaneseq
        %v2526 = vshrl.u32 %v2525, 7
        %v2527 = vsub.s32 %v2524, %v2526
        %v2528 = vrot.slane %v2521, %v2527
        %v2530 = vadd.f32 %v263, %v2528
        %v2531 = vxor.u32 %v2530, 2147483648
        %v2532 = vmul.f32 %v2531, 1.442695
        %v2533 = vpow.pop %v2532
        %v2534 = vadd.f32 %v2533, 1.0
        %v2535 = vrcp.pop %v2534
        %v2536 = vmul.f32 1.0, %v2535
        %v2538 = vrot.slane %v2530, 1
        %v2540 = vxor.u32 %v2538, 2147483648
        %v2541 = vmul.f32 %v2540, 1.442695
        %v2542 = vpow.pop %v2541
        %v2543 = vadd.f32 %v2542, 1.0
        %v2544 = vrcp.pop %v2543
        %v2545 = vmul.f32 1.0, %v2544
        %v2546 = vrot.slane %v2530, 2
        %v2548 = vtanh.pop %v2546
        %v2549 = vrot.slane %v2530, 3
        %v2551 = vxor.u32 %v2549, 2147483648
        %v2552 = vmul.f32 %v2551, 1.442695
        %v2553 = vpow.pop %v2552
        %v2554 = vadd.f32 %v2553, 1.0
        %v2555 = vrcp.pop %v2554
        %v2556 = vmul.f32 1.0, %v2555
        %v2557 = vmul.f32 %v2545, %v2415
        %v2558 = vmul.f32 %v2536, %v2548
        %v2559 = vadd.f32 %v2557, %v2558
        %v2560 = vtanh.pop %v2559
        %v2561 = vmul.f32 %v2556, %v2560
        %v2562 = vpack.c.bf16 %v2561, %v2561
        %2563 = vmatprep.subr.bf16.mxu0 %v467
        %2564 = vmatpush1.bf16.msra.mxu0 %v466
        %2565 = vmatprep.subr.bf16.mxu0 %v471
        %2566 = vmatpush1.bf16.msra.mxu0 %v470
        %2567 = vmatprep.subr.bf16.mxu0 %v475
        %2568 = vmatpush1.bf16.msra.mxu0 %v474
        %2569 = vmatprep.subr.bf16.mxu0 %v479
        %2570 = vmatpush1.bf16.msra.mxu0 %v478
        %2571 = vmatprep.subr.bf16.mxu0 %v483
        %2572 = vmatpush1.bf16.msra.mxu0 %v482
        %2573 = vmatprep.subr.bf16.mxu0 %v487
        %2574 = vmatpush1.bf16.msra.mxu0 %v486
        %2575 = vmatprep.subr.bf16.mxu0 %v491
        %2576 = vmatpush1.bf16.msra.mxu0 %v490
        %2577 = vmatprep.subr.bf16.mxu0 %v495
        %2578 = vmatpush1.bf16.msra.mxu0 %v494
        %2579 = vmatprep.subr.bf16.mxu0 0
        %2580 = vmatpush1.bf16.msra.mxu0 0
        %2581 = vmatprep.subr.bf16.mxu0 0
        %2582 = vmatpush1.bf16.msra.mxu0 0
        %2583 = vmatprep.subr.bf16.mxu0 0
        %2584 = vmatpush1.bf16.msra.mxu0 0
        %2585 = vmatprep.subr.bf16.mxu0 0
        %2586 = vmatpush1.bf16.msra.mxu0 0
        %2587 = vmatprep.subr.bf16.mxu0 0
        %2588 = vmatpush1.bf16.msra.mxu0 0
        %2589 = vmatprep.subr.bf16.mxu0 0
        %2590 = vmatpush1.bf16.msra.mxu0 0
        %2591 = vmatprep.subr.bf16.mxu0 0
        %2592 = vmatpush1.bf16.msra.mxu0 0
        %2593 = vmatprep.subr.bf16.mxu0 0
        %2594 = vmatpush1.bf16.msra.mxu0 0
        %2595 = vmatprep.mubr.bf16.mxu0 0
        %2596 = vmatmul.mubr.bf16.gmra.mrb[0].mxu0 %v2562
        %v2597 = vpop.f32.mrb[0].mxu0
        %v2598 = vadd.f32 0.0, %v2597
        %v2599 = vpop.f32.mrb[0].mxu0
        %v2600 = vadd.f32 0.0, %v2599
        %v2601 = vpop.f32.mrb[0].mxu0
        %v2602 = vpop.f32.mrb[0].mxu0
        %2603 = vdwg.mxu0
        %2604 = vmatprep.subr.bf16.mxu0 %v469
        %2605 = vmatpush1.bf16.msra.mxu0 %v468
        %2606 = vmatprep.subr.bf16.mxu0 %v473
        %2607 = vmatpush1.bf16.msra.mxu0 %v472
        %2608 = vmatprep.subr.bf16.mxu0 %v477
        %2609 = vmatpush1.bf16.msra.mxu0 %v476
        %2610 = vmatprep.subr.bf16.mxu0 %v481
        %2611 = vmatpush1.bf16.msra.mxu0 %v480
        %2612 = vmatprep.subr.bf16.mxu0 %v485
        %2613 = vmatpush1.bf16.msra.mxu0 %v484
        %2614 = vmatprep.subr.bf16.mxu0 %v489
        %2615 = vmatpush1.bf16.msra.mxu0 %v488
        %2616 = vmatprep.subr.bf16.mxu0 %v493
        %2617 = vmatpush1.bf16.msra.mxu0 %v492
        %2618 = vmatprep.subr.bf16.mxu0 %v497
        %2619 = vmatpush1.bf16.msra.mxu0 %v496
        %2620 = vmatprep.subr.bf16.mxu0 0
        %2621 = vmatpush1.bf16.msra.mxu0 0
        %2622 = vmatprep.subr.bf16.mxu0 0
        %2623 = vmatpush1.bf16.msra.mxu0 0
        %2624 = vmatprep.subr.bf16.mxu0 0
        %2625 = vmatpush1.bf16.msra.mxu0 0
        %2626 = vmatprep.subr.bf16.mxu0 0
        %2627 = vmatpush1.bf16.msra.mxu0 0
        %2628 = vmatprep.subr.bf16.mxu0 0
        %2629 = vmatpush1.bf16.msra.mxu0 0
        %2630 = vmatprep.subr.bf16.mxu0 0
        %2631 = vmatpush1.bf16.msra.mxu0 0
        %2632 = vmatprep.subr.bf16.mxu0 0
        %2633 = vmatpush1.bf16.msra.mxu0 0
        %2634 = vmatprep.subr.bf16.mxu0 0
        %2635 = vmatpush1.bf16.msra.mxu0 0
        %2636 = vmatprep.mubr.bf16.mxu0 0
        %2637 = vmatmul.mubr.bf16.gmra.mrb[0].mxu0 %v2562
        %v2638 = vpop.f32.mrb[0].mxu0
        %v2639 = vadd.f32 0.0, %v2638
        %v2640 = vpop.f32.mrb[0].mxu0
        %v2641 = vadd.f32 0.0, %v2640
        %v2642 = vpop.f32.mrb[0].mxu0
        %v2643 = vpop.f32.mrb[0].mxu0
        %2644 = vdwg.mxu0
        %v2649 = vcombine.low %v2598, %v2600
        %v2650 = vcombine.low %v2639, %v2641
        %v2652 = vunpack.c.l.s4 1966171168
        %v2653 = vunpack.c.0.s8 %v2652
        %v2654 = vlaneseq
        %v2655 = vshrl.u32 %v2654, 7
        %v2656 = vsub.s32 %v2653, %v2655
        %v2657 = vrot.slane %v2649, %v2656
        %v2659 = vunpack.c.l.s4 1966171168
        %v2660 = vunpack.c.0.s8 %v2659
        %v2661 = vlaneseq
        %v2662 = vshrl.u32 %v2661, 7
        %v2663 = vsub.s32 %v2660, %v2662
        %v2664 = vrot.slane %v2650, %v2663
        %v2665 = vcombine.low %v2657, %v2664
        %v2667 = vunpack.c.l.s4 1966171168
        %v2668 = vunpack.c.0.s8 %v2667
        %v2669 = vlaneseq
        %v2670 = vshrl.u32 %v2669, 7
        %v2671 = vsub.s32 %v2668, %v2670
        %v2672 = vrot.slane %v2665, %v2671
        %v2674 = vadd.f32 %v263, %v2672
        %v2675 = vxor.u32 %v2674, 2147483648
        %v2676 = vmul.f32 %v2675, 1.442695
        %v2677 = vpow.pop %v2676
        %v2678 = vadd.f32 %v2677, 1.0
        %v2679 = vrcp.pop %v2678
        %v2680 = vmul.f32 1.0, %v2679
        %v2682 = vrot.slane %v2674, 1
        %v2684 = vxor.u32 %v2682, 2147483648
        %v2685 = vmul.f32 %v2684, 1.442695
        %v2686 = vpow.pop %v2685
        %v2687 = vadd.f32 %v2686, 1.0
        %v2688 = vrcp.pop %v2687
        %v2689 = vmul.f32 1.0, %v2688
        %v2690 = vrot.slane %v2674, 2
        %v2692 = vtanh.pop %v2690
        %v2693 = vrot.slane %v2674, 3
        %v2695 = vxor.u32 %v2693, 2147483648
        %v2696 = vmul.f32 %v2695, 1.442695
        %v2697 = vpow.pop %v2696
        %v2698 = vadd.f32 %v2697, 1.0
        %v2699 = vrcp.pop %v2698
        %v2700 = vmul.f32 1.0, %v2699
        %v2701 = vmul.f32 %v2689, %v2559
        %v2702 = vmul.f32 %v2680, %v2692
        %v2703 = vadd.f32 %v2701, %v2702
        %v2704 = vtanh.pop %v2703
        %v2705 = vmul.f32 %v2700, %v2704
        %v2706 = vpack.c.bf16 %v2705, %v2705
        %2707 = vmatprep.subr.bf16.mxu0 %v467
        %2708 = vmatpush1.bf16.msra.mxu0 %v466
        %2709 = vmatprep.subr.bf16.mxu0 %v471
        %2710 = vmatpush1.bf16.msra.mxu0 %v470
        %2711 = vmatprep.subr.bf16.mxu0 %v475
        %2712 = vmatpush1.bf16.msra.mxu0 %v474
        %2713 = vmatprep.subr.bf16.mxu0 %v479
        %2714 = vmatpush1.bf16.msra.mxu0 %v478
        %2715 = vmatprep.subr.bf16.mxu0 %v483
        %2716 = vmatpush1.bf16.msra.mxu0 %v482
        %2717 = vmatprep.subr.bf16.mxu0 %v487
        %2718 = vmatpush1.bf16.msra.mxu0 %v486
        %2719 = vmatprep.subr.bf16.mxu0 %v491
        %2720 = vmatpush1.bf16.msra.mxu0 %v490
        %2721 = vmatprep.subr.bf16.mxu0 %v495
        %2722 = vmatpush1.bf16.msra.mxu0 %v494
        %2723 = vmatprep.subr.bf16.mxu0 0
        %2724 = vmatpush1.bf16.msra.mxu0 0
        %2725 = vmatprep.subr.bf16.mxu0 0
        %2726 = vmatpush1.bf16.msra.mxu0 0
        %2727 = vmatprep.subr.bf16.mxu0 0
        %2728 = vmatpush1.bf16.msra.mxu0 0
        %2729 = vmatprep.subr.bf16.mxu0 0
        %2730 = vmatpush1.bf16.msra.mxu0 0
        %2731 = vmatprep.subr.bf16.mxu0 0
        %2732 = vmatpush1.bf16.msra.mxu0 0
        %2733 = vmatprep.subr.bf16.mxu0 0
        %2734 = vmatpush1.bf16.msra.mxu0 0
        %2735 = vmatprep.subr.bf16.mxu0 0
        %2736 = vmatpush1.bf16.msra.mxu0 0
        %2737 = vmatprep.subr.bf16.mxu0 0
        %2738 = vmatpush1.bf16.msra.mxu0 0
        %2739 = vmatprep.mubr.bf16.mxu0 0
        %2740 = vmatmul.mubr.bf16.gmra.mrb[0].mxu0 %v2706
        %v2741 = vpop.f32.mrb[0].mxu0
        %v2742 = vadd.f32 0.0, %v2741
        %v2743 = vpop.f32.mrb[0].mxu0
        %v2744 = vadd.f32 0.0, %v2743
        %v2745 = vpop.f32.mrb[0].mxu0
        %v2746 = vpop.f32.mrb[0].mxu0
        %2747 = vdwg.mxu0
        %2748 = vmatprep.subr.bf16.mxu0 %v469
        %2749 = vmatpush1.bf16.msra.mxu0 %v468
        %2750 = vmatprep.subr.bf16.mxu0 %v473
        %2751 = vmatpush1.bf16.msra.mxu0 %v472
        %2752 = vmatprep.subr.bf16.mxu0 %v477
        %2753 = vmatpush1.bf16.msra.mxu0 %v476
        %2754 = vmatprep.subr.bf16.mxu0 %v481
        %2755 = vmatpush1.bf16.msra.mxu0 %v480
        %2756 = vmatprep.subr.bf16.mxu0 %v485
        %2757 = vmatpush1.bf16.msra.mxu0 %v484
        %2758 = vmatprep.subr.bf16.mxu0 %v489
        %2759 = vmatpush1.bf16.msra.mxu0 %v488
        %2760 = vmatprep.subr.bf16.mxu0 %v493
        %2761 = vmatpush1.bf16.msra.mxu0 %v492
        %2762 = vmatprep.subr.bf16.mxu0 %v497
        %2763 = vmatpush1.bf16.msra.mxu0 %v496
        %2764 = vmatprep.subr.bf16.mxu0 0
        %2765 = vmatpush1.bf16.msra.mxu0 0
        %2766 = vmatprep.subr.bf16.mxu0 0
        %2767 = vmatpush1.bf16.msra.mxu0 0
        %2768 = vmatprep.subr.bf16.mxu0 0
        %2769 = vmatpush1.bf16.msra.mxu0 0
        %2770 = vmatprep.subr.bf16.mxu0 0
        %2771 = vmatpush1.bf16.msra.mxu0 0
        %2772 = vmatprep.subr.bf16.mxu0 0
        %2773 = vmatpush1.bf16.msra.mxu0 0
        %2774 = vmatprep.subr.bf16.mxu0 0
        %2775 = vmatpush1.bf16.msra.mxu0 0
        %2776 = vmatprep.subr.bf16.mxu0 0
        %2777 = vmatpush1.bf16.msra.mxu0 0
        %2778 = vmatprep.subr.bf16.mxu0 0
        %2779 = vmatpush1.bf16.msra.mxu0 0
        %2780 = vmatprep.mubr.bf16.mxu0 0
        %2781 = vmatmul.mubr.bf16.gmra.mrb[0].mxu0 %v2706
        %v2782 = vpop.f32.mrb[0].mxu0
        %v2783 = vadd.f32 0.0, %v2782
        %v2784 = vpop.f32.mrb[0].mxu0
        %v2785 = vadd.f32 0.0, %v2784
        %v2786 = vpop.f32.mrb[0].mxu0
        %v2787 = vpop.f32.mrb[0].mxu0
        %2788 = vdwg.mxu0
        %v2793 = vcombine.low %v2742, %v2744
        %v2794 = vcombine.low %v2783, %v2785
        %v2796 = vunpack.c.l.s4 1966171168
        %v2797 = vunpack.c.0.s8 %v2796
        %v2798 = vlaneseq
        %v2799 = vshrl.u32 %v2798, 7
        %v2800 = vsub.s32 %v2797, %v2799
        %v2801 = vrot.slane %v2793, %v2800
        %v2803 = vunpack.c.l.s4 1966171168
        %v2804 = vunpack.c.0.s8 %v2803
        %v2805 = vlaneseq
        %v2806 = vshrl.u32 %v2805, 7
        %v2807 = vsub.s32 %v2804, %v2806
        %v2808 = vrot.slane %v2794, %v2807
        %v2809 = vcombine.low %v2801, %v2808
        %v2811 = vunpack.c.l.s4 1966171168
        %v2812 = vunpack.c.0.s8 %v2811
        %v2813 = vlaneseq
        %v2814 = vshrl.u32 %v2813, 7
        %v2815 = vsub.s32 %v2812, %v2814
        %v2816 = vrot.slane %v2809, %v2815
        %v2818 = vadd.f32 %v263, %v2816
        %v2819 = vxor.u32 %v2818, 2147483648
        %v2820 = vmul.f32 %v2819, 1.442695
        %v2821 = vpow.pop %v2820
        %v2822 = vadd.f32 %v2821, 1.0
        %v2823 = vrcp.pop %v2822
        %v2824 = vmul.f32 1.0, %v2823
        %v2826 = vrot.slane %v2818, 1
        %v2828 = vxor.u32 %v2826, 2147483648
        %v2829 = vmul.f32 %v2828, 1.442695
        %v2830 = vpow.pop %v2829
        %v2831 = vadd.f32 %v2830, 1.0
        %v2832 = vrcp.pop %v2831
        %v2833 = vmul.f32 1.0, %v2832
        %v2834 = vrot.slane %v2818, 2
        %v2836 = vtanh.pop %v2834
        %v2837 = vrot.slane %v2818, 3
        %v2839 = vxor.u32 %v2837, 2147483648
        %v2840 = vmul.f32 %v2839, 1.442695
        %v2841 = vpow.pop %v2840
        %v2842 = vadd.f32 %v2841, 1.0
        %v2843 = vrcp.pop %v2842
        %v2844 = vmul.f32 1.0, %v2843
        %v2845 = vmul.f32 %v2833, %v2703
        %v2846 = vmul.f32 %v2824, %v2836
        %v2847 = vadd.f32 %v2845, %v2846
        %v2848 = vtanh.pop %v2847
        %v2849 = vmul.f32 %v2844, %v2848
        %v2851 = vlaneseq
        %v2852 = vshrl.u32 %v2851, 7
        %v2853 = vsub.s32 0, %v2852
        %v2854 = vrot.slane %v833, %v2853
        %v2857 = vlaneseq
        %v2858 = vshrl.u32 %v2857, 7
        %v2859 = vsub.s32 0, %v2858
        %v2860 = vrot.slane %v977, %v2859
        %v2863 = vlaneseq
        %v2864 = vshrl.u32 %v2863, 7
        %v2865 = vsub.s32 0, %v2864
        %v2866 = vrot.slane %v1121, %v2865
        %v2869 = vlaneseq
        %v2870 = vshrl.u32 %v2869, 7
        %v2871 = vsub.s32 0, %v2870
        %v2872 = vrot.slane %v1265, %v2871
        %v2875 = vlaneseq
        %v2876 = vshrl.u32 %v2875, 7
        %v2877 = vsub.s32 0, %v2876
        %v2878 = vrot.slane %v1409, %v2877
        %v2881 = vlaneseq
        %v2882 = vshrl.u32 %v2881, 7
        %v2883 = vsub.s32 0, %v2882
        %v2884 = vrot.slane %v1553, %v2883
        %v2887 = vlaneseq
        %v2888 = vshrl.u32 %v2887, 7
        %v2889 = vsub.s32 0, %v2888
        %v2890 = vrot.slane %v1697, %v2889
        %v2893 = vlaneseq
        %v2894 = vshrl.u32 %v2893, 7
        %v2895 = vsub.s32 0, %v2894
        %v2896 = vrot.slane %v1985, %v2895
        %v2899 = vlaneseq
        %v2900 = vshrl.u32 %v2899, 7
        %v2901 = vsub.s32 0, %v2900
        %v2902 = vrot.slane %v2129, %v2901
        %v2905 = vlaneseq
        %v2906 = vshrl.u32 %v2905, 7
        %v2907 = vsub.s32 0, %v2906
        %v2908 = vrot.slane %v2273, %v2907
        %v2911 = vlaneseq
        %v2912 = vshrl.u32 %v2911, 7
        %v2913 = vsub.s32 0, %v2912
        %v2914 = vrot.slane %v2417, %v2913
        %v2917 = vlaneseq
        %v2918 = vshrl.u32 %v2917, 7
        %v2919 = vsub.s32 0, %v2918
        %v2920 = vrot.slane %v2561, %v2919
        %v2923 = vlaneseq
        %v2924 = vshrl.u32 %v2923, 7
        %v2925 = vsub.s32 0, %v2924
        %v2926 = vrot.slane %v2705, %v2925
        %v2929 = vlaneseq
        %v2930 = vshrl.u32 %v2929, 7
        %v2931 = vsub.s32 0, %v2930
        %v2932 = vrot.slane %v2849, %v2931
        %vm2934 = vcmask 1040384
        %v2935 = vsel %vm2934, %v689, %v2854
        %vm2936 = vcmask 1041408
        %v2937 = vsel %vm2936, %v2935, %v2860
        %vm2938 = vcmask 1042432
        %v2939 = vsel %vm2938, %v2937, %v2866
        %vm2940 = vcmask 1043456
        %v2941 = vsel %vm2940, %v2939, %v2872
        %vm2942 = vcmask 1044480
        %v2943 = vsel %vm2942, %v2941, %v2878
        %vm2944 = vcmask 1045504
        %v2945 = vsel %vm2944, %v2943, %v2884
        %vm2946 = vcmask 1046528
        %v2947 = vsel %vm2946, %v2945, %v2890
        %v2948 = vsel %vm2934, %v1841, %v2896
        %v2949 = vsel %vm2936, %v2948, %v2902
        %v2950 = vsel %vm2938, %v2949, %v2908
        %v2951 = vsel %vm2940, %v2950, %v2914
        %v2952 = vsel %vm2942, %v2951, %v2920
        %v2953 = vsel %vm2944, %v2952, %v2926
        %v2954 = vsel %vm2946, %v2953, %v2932
        %v2955 = vpack.c.bf16 %v2954, %v2947
        %v2988 = vunpack.c.l.b16 %v304
        %v2989 = vunpack.c.h.b16 %v304
        %v2990 = vunpack.c.l.b16 %v305
        %v2991 = vunpack.c.h.b16 %v305
        %v2992 = vunpack.c.l.b16 %v306
        %v2993 = vunpack.c.h.b16 %v306
        %v2994 = vunpack.c.l.b16 %v307
        %v2995 = vunpack.c.h.b16 %v307
        %v2996 = vunpack.c.l.b16 %v308
        %v2997 = vunpack.c.h.b16 %v308
        %v2998 = vunpack.c.l.b16 %v309
        %v2999 = vunpack.c.h.b16 %v309
        %v3000 = vunpack.c.l.b16 %v310
        %v3001 = vunpack.c.h.b16 %v310
        %v3002 = vunpack.c.l.b16 %v311
        %v3003 = vunpack.c.h.b16 %v311
        %v3004 = vunpack.c.l.b16 %v312
        %v3005 = vunpack.c.h.b16 %v312
        %v3006 = vunpack.c.l.b16 %v313
        %v3007 = vunpack.c.h.b16 %v313
        %v3008 = vunpack.c.l.b16 %v314
        %v3009 = vunpack.c.h.b16 %v314
        %v3010 = vunpack.c.l.b16 %v315
        %v3011 = vunpack.c.h.b16 %v315
        %v3012 = vunpack.c.l.b16 %v316
        %v3013 = vunpack.c.h.b16 %v316
        %v3014 = vunpack.c.l.b16 %v317
        %v3015 = vunpack.c.h.b16 %v317
        %v3016 = vunpack.c.l.b16 %v318
        %v3017 = vunpack.c.h.b16 %v318
        %v3018 = vunpack.c.l.b16 %v319
        %v3019 = vunpack.c.h.b16 %v319
        %v3020 = vunpack.c.l.b16 %v320
        %v3021 = vunpack.c.h.b16 %v320
        %v3022 = vunpack.c.l.b16 %v321
        %v3023 = vunpack.c.h.b16 %v321
        %v3024 = vunpack.c.l.b16 %v322
        %v3025 = vunpack.c.h.b16 %v322
        %v3026 = vunpack.c.l.b16 %v323
        %v3027 = vunpack.c.h.b16 %v323
        %v3028 = vunpack.c.l.b16 %v324
        %v3029 = vunpack.c.h.b16 %v324
        %v3030 = vunpack.c.l.b16 %v325
        %v3031 = vunpack.c.h.b16 %v325
        %v3032 = vunpack.c.l.b16 %v326
        %v3033 = vunpack.c.h.b16 %v326
        %v3034 = vunpack.c.l.b16 %v327
        %v3035 = vunpack.c.h.b16 %v327
        %v3036 = vunpack.c.l.b16 %v328
        %v3037 = vunpack.c.h.b16 %v328
        %v3038 = vunpack.c.l.b16 %v329
        %v3039 = vunpack.c.h.b16 %v329
        %v3040 = vunpack.c.l.b16 %v330
        %v3041 = vunpack.c.h.b16 %v330
        %v3042 = vunpack.c.l.b16 %v331
        %v3043 = vunpack.c.h.b16 %v331
        %v3044 = vunpack.c.l.b16 %v332
        %v3045 = vunpack.c.h.b16 %v332
        %v3046 = vunpack.c.l.b16 %v333
        %v3047 = vunpack.c.h.b16 %v333
        %v3048 = vunpack.c.l.b16 %v334
        %v3049 = vunpack.c.h.b16 %v334
        %v3050 = vunpack.c.l.b16 %v335
        %v3051 = vunpack.c.h.b16 %v335
        %v3052 = vpack.c.b16 %v2992, %v2988
        %v3053 = vpack.c.b16 %v2993, %v2989
        %v3054 = vpack.c.b16 %v2994, %v2990
        %v3055 = vpack.c.b16 %v2995, %v2991
        %v3056 = vpack.c.b16 %v3000, %v2996
        %v3057 = vpack.c.b16 %v3001, %v2997
        %v3058 = vpack.c.b16 %v3002, %v2998
        %v3059 = vpack.c.b16 %v3003, %v2999
        %v3060 = vpack.c.b16 %v3008, %v3004
        %v3061 = vpack.c.b16 %v3009, %v3005
        %v3062 = vpack.c.b16 %v3010, %v3006
        %v3063 = vpack.c.b16 %v3011, %v3007
        %v3064 = vpack.c.b16 %v3016, %v3012
        %v3065 = vpack.c.b16 %v3017, %v3013
        %v3066 = vpack.c.b16 %v3018, %v3014
        %v3067 = vpack.c.b16 %v3019, %v3015
        %v3068 = vpack.c.b16 %v3024, %v3020
        %v3069 = vpack.c.b16 %v3025, %v3021
        %v3070 = vpack.c.b16 %v3026, %v3022
        %v3071 = vpack.c.b16 %v3027, %v3023
        %v3072 = vpack.c.b16 %v3032, %v3028
        %v3073 = vpack.c.b16 %v3033, %v3029
        %v3074 = vpack.c.b16 %v3034, %v3030
        %v3075 = vpack.c.b16 %v3035, %v3031
        %v3076 = vpack.c.b16 %v3040, %v3036
        %v3077 = vpack.c.b16 %v3041, %v3037
        %v3078 = vpack.c.b16 %v3042, %v3038
        %v3079 = vpack.c.b16 %v3043, %v3039
        %v3080 = vpack.c.b16 %v3048, %v3044
        %v3081 = vpack.c.b16 %v3049, %v3045
        %v3082 = vpack.c.b16 %v3050, %v3046
        %v3083 = vpack.c.b16 %v3051, %v3047
        %3116 = vmatprep.subr.bf16.mxu0 %v3053
        %3117 = vmatpush1.bf16.msra.mxu0 %v3052
        %3118 = vmatprep.subr.bf16.mxu0 %v3057
        %3119 = vmatpush1.bf16.msra.mxu0 %v3056
        %3120 = vmatprep.subr.bf16.mxu0 %v3061
        %3121 = vmatpush1.bf16.msra.mxu0 %v3060
        %3122 = vmatprep.subr.bf16.mxu0 %v3065
        %3123 = vmatpush1.bf16.msra.mxu0 %v3064
        %3124 = vmatprep.subr.bf16.mxu0 %v3069
        %3125 = vmatpush1.bf16.msra.mxu0 %v3068
        %3126 = vmatprep.subr.bf16.mxu0 %v3073
        %3127 = vmatpush1.bf16.msra.mxu0 %v3072
        %3128 = vmatprep.subr.bf16.mxu0 %v3077
        %3129 = vmatpush1.bf16.msra.mxu0 %v3076
        %3130 = vmatprep.subr.bf16.mxu0 %v3081
        %3131 = vmatpush1.bf16.msra.mxu0 %v3080
        %3132 = vmatprep.subr.bf16.mxu0 0
        %3133 = vmatpush1.bf16.msra.mxu0 0
        %3134 = vmatprep.subr.bf16.mxu0 0
        %3135 = vmatpush1.bf16.msra.mxu0 0
        %3136 = vmatprep.subr.bf16.mxu0 0
        %3137 = vmatpush1.bf16.msra.mxu0 0
        %3138 = vmatprep.subr.bf16.mxu0 0
        %3139 = vmatpush1.bf16.msra.mxu0 0
        %3140 = vmatprep.subr.bf16.mxu0 0
        %3141 = vmatpush1.bf16.msra.mxu0 0
        %3142 = vmatprep.subr.bf16.mxu0 0
        %3143 = vmatpush1.bf16.msra.mxu0 0
        %3144 = vmatprep.subr.bf16.mxu0 0
        %3145 = vmatpush1.bf16.msra.mxu0 0
        %3146 = vmatprep.subr.bf16.mxu0 0
        %3147 = vmatpush1.bf16.msra.mxu0 0
        %3148 = vmatprep.mubr.bf16.mxu0 0
        %3149 = vmatmul.mubr.bf16.gmra.mrb[0].mxu0 %v2955
        %v3150 = vpop.f32.mrb[0].mxu0
        %v3151 = vadd.f32 0.0, %v3150
        %v3152 = vpop.f32.mrb[0].mxu0
        %v3153 = vadd.f32 0.0, %v3152
        %v3154 = vpop.f32.mrb[0].mxu0
        %v3155 = vadd.f32 0.0, %v3154
        %v3156 = vpop.f32.mrb[0].mxu0
        %v3157 = vadd.f32 0.0, %v3156
        %3158 = vdwg.mxu0
        %3159 = vmatprep.subr.bf16.mxu0 %v3055
        %3160 = vmatpush1.bf16.msra.mxu0 %v3054
        %3161 = vmatprep.subr.bf16.mxu0 %v3059
        %3162 = vmatpush1.bf16.msra.mxu0 %v3058
        %3163 = vmatprep.subr.bf16.mxu0 %v3063
        %3164 = vmatpush1.bf16.msra.mxu0 %v3062
        %3165 = vmatprep.subr.bf16.mxu0 %v3067
        %3166 = vmatpush1.bf16.msra.mxu0 %v3066
        %3167 = vmatprep.subr.bf16.mxu0 %v3071
        %3168 = vmatpush1.bf16.msra.mxu0 %v3070
        %3169 = vmatprep.subr.bf16.mxu0 %v3075
        %3170 = vmatpush1.bf16.msra.mxu0 %v3074
        %3171 = vmatprep.subr.bf16.mxu0 %v3079
        %3172 = vmatpush1.bf16.msra.mxu0 %v3078
        %3173 = vmatprep.subr.bf16.mxu0 %v3083
        %3174 = vmatpush1.bf16.msra.mxu0 %v3082
        %3175 = vmatprep.subr.bf16.mxu0 0
        %3176 = vmatpush1.bf16.msra.mxu0 0
        %3177 = vmatprep.subr.bf16.mxu0 0
        %3178 = vmatpush1.bf16.msra.mxu0 0
        %3179 = vmatprep.subr.bf16.mxu0 0
        %3180 = vmatpush1.bf16.msra.mxu0 0
        %3181 = vmatprep.subr.bf16.mxu0 0
        %3182 = vmatpush1.bf16.msra.mxu0 0
        %3183 = vmatprep.subr.bf16.mxu0 0
        %3184 = vmatpush1.bf16.msra.mxu0 0
        %3185 = vmatprep.subr.bf16.mxu0 0
        %3186 = vmatpush1.bf16.msra.mxu0 0
        %3187 = vmatprep.subr.bf16.mxu0 0
        %3188 = vmatpush1.bf16.msra.mxu0 0
        %3189 = vmatprep.subr.bf16.mxu0 0
        %3190 = vmatpush1.bf16.msra.mxu0 0
        %3191 = vmatprep.mubr.bf16.mxu0 0
        %3192 = vmatmul.mubr.bf16.gmra.mrb[0].mxu0 %v2955
        %v3193 = vpop.f32.mrb[0].mxu0
        %v3194 = vadd.f32 0.0, %v3193
        %v3195 = vpop.f32.mrb[0].mxu0
        %v3196 = vadd.f32 0.0, %v3195
        %v3197 = vpop.f32.mrb[0].mxu0
        %v3198 = vadd.f32 0.0, %v3197
        %v3199 = vpop.f32.mrb[0].mxu0
        %v3200 = vadd.f32 0.0, %v3199
        %3201 = vdwg.mxu0
        %v3202 = vadd.f32 %v264, %v3151
        %v3203 = vadd.f32 %v265, %v3153
        %v3204 = vadd.f32 %v266, %v3194
        %v3205 = vadd.f32 %v267, %v3196
        %v3206 = vadd.f32 %v268, %v3155
        %v3207 = vadd.f32 %v269, %v3157
        %v3208 = vadd.f32 %v270, %v3198
        %v3209 = vadd.f32 %v271, %v3200
        %v3211 = vrot.slane %v369, 1
        %v3245 = vunpack.c.l.b16 %v336
        %v3246 = vunpack.c.h.b16 %v336
        %v3247 = vunpack.c.l.b16 %v337
        %v3248 = vunpack.c.h.b16 %v337
        %v3249 = vunpack.c.l.b16 %v338
        %v3250 = vunpack.c.h.b16 %v338
        %v3251 = vunpack.c.l.b16 %v339
        %v3252 = vunpack.c.h.b16 %v339
        %v3253 = vunpack.c.l.b16 %v340
        %v3254 = vunpack.c.h.b16 %v340
        %v3255 = vunpack.c.l.b16 %v341
        %v3256 = vunpack.c.h.b16 %v341
        %v3257 = vunpack.c.l.b16 %v342
        %v3258 = vunpack.c.h.b16 %v342
        %v3259 = vunpack.c.l.b16 %v343
        %v3260 = vunpack.c.h.b16 %v343
        %v3261 = vunpack.c.l.b16 %v344
        %v3262 = vunpack.c.h.b16 %v344
        %v3263 = vunpack.c.l.b16 %v345
        %v3264 = vunpack.c.h.b16 %v345
        %v3265 = vunpack.c.l.b16 %v346
        %v3266 = vunpack.c.h.b16 %v346
        %v3267 = vunpack.c.l.b16 %v347
        %v3268 = vunpack.c.h.b16 %v347
        %v3269 = vunpack.c.l.b16 %v348
        %v3270 = vunpack.c.h.b16 %v348
        %v3271 = vunpack.c.l.b16 %v349
        %v3272 = vunpack.c.h.b16 %v349
        %v3273 = vunpack.c.l.b16 %v350
        %v3274 = vunpack.c.h.b16 %v350
        %v3275 = vunpack.c.l.b16 %v351
        %v3276 = vunpack.c.h.b16 %v351
        %v3277 = vunpack.c.l.b16 %v352
        %v3278 = vunpack.c.h.b16 %v352
        %v3279 = vunpack.c.l.b16 %v353
        %v3280 = vunpack.c.h.b16 %v353
        %v3281 = vunpack.c.l.b16 %v354
        %v3282 = vunpack.c.h.b16 %v354
        %v3283 = vunpack.c.l.b16 %v355
        %v3284 = vunpack.c.h.b16 %v355
        %v3285 = vunpack.c.l.b16 %v356
        %v3286 = vunpack.c.h.b16 %v356
        %v3287 = vunpack.c.l.b16 %v357
        %v3288 = vunpack.c.h.b16 %v357
        %v3289 = vunpack.c.l.b16 %v358
        %v3290 = vunpack.c.h.b16 %v358
        %v3291 = vunpack.c.l.b16 %v359
        %v3292 = vunpack.c.h.b16 %v359
        %v3293 = vunpack.c.l.b16 %v360
        %v3294 = vunpack.c.h.b16 %v360
        %v3295 = vunpack.c.l.b16 %v361
        %v3296 = vunpack.c.h.b16 %v361
        %v3297 = vunpack.c.l.b16 %v362
        %v3298 = vunpack.c.h.b16 %v362
        %v3299 = vunpack.c.l.b16 %v363
        %v3300 = vunpack.c.h.b16 %v363
        %v3301 = vunpack.c.l.b16 %v364
        %v3302 = vunpack.c.h.b16 %v364
        %v3303 = vunpack.c.l.b16 %v365
        %v3304 = vunpack.c.h.b16 %v365
        %v3305 = vunpack.c.l.b16 %v366
        %v3306 = vunpack.c.h.b16 %v366
        %v3307 = vunpack.c.l.b16 %v367
        %v3308 = vunpack.c.h.b16 %v367
        %v3309 = vpack.c.b16 %v3249, %v3245
        %v3310 = vpack.c.b16 %v3250, %v3246
        %v3311 = vpack.c.b16 %v3251, %v3247
        %v3312 = vpack.c.b16 %v3252, %v3248
        %v3313 = vpack.c.b16 %v3257, %v3253
        %v3314 = vpack.c.b16 %v3258, %v3254
        %v3315 = vpack.c.b16 %v3259, %v3255
        %v3316 = vpack.c.b16 %v3260, %v3256
        %v3317 = vpack.c.b16 %v3265, %v3261
        %v3318 = vpack.c.b16 %v3266, %v3262
        %v3319 = vpack.c.b16 %v3267, %v3263
        %v3320 = vpack.c.b16 %v3268, %v3264
        %v3321 = vpack.c.b16 %v3273, %v3269
        %v3322 = vpack.c.b16 %v3274, %v3270
        %v3323 = vpack.c.b16 %v3275, %v3271
        %v3324 = vpack.c.b16 %v3276, %v3272
        %v3325 = vpack.c.b16 %v3281, %v3277
        %v3326 = vpack.c.b16 %v3282, %v3278
        %v3327 = vpack.c.b16 %v3283, %v3279
        %v3328 = vpack.c.b16 %v3284, %v3280
        %v3329 = vpack.c.b16 %v3289, %v3285
        %v3330 = vpack.c.b16 %v3290, %v3286
        %v3331 = vpack.c.b16 %v3291, %v3287
        %v3332 = vpack.c.b16 %v3292, %v3288
        %v3333 = vpack.c.b16 %v3297, %v3293
        %v3334 = vpack.c.b16 %v3298, %v3294
        %v3335 = vpack.c.b16 %v3299, %v3295
        %v3336 = vpack.c.b16 %v3300, %v3296
        %v3337 = vpack.c.b16 %v3305, %v3301
        %v3338 = vpack.c.b16 %v3306, %v3302
        %v3339 = vpack.c.b16 %v3307, %v3303
        %v3340 = vpack.c.b16 %v3308, %v3304
        %3373 = vmatprep.subr.bf16.mxu0 %v3310
        %3374 = vmatpush1.bf16.msra.mxu0 %v3309
        %3375 = vmatprep.subr.bf16.mxu0 %v3314
        %3376 = vmatpush1.bf16.msra.mxu0 %v3313
        %3377 = vmatprep.subr.bf16.mxu0 %v3318
        %3378 = vmatpush1.bf16.msra.mxu0 %v3317
        %3379 = vmatprep.subr.bf16.mxu0 %v3322
        %3380 = vmatpush1.bf16.msra.mxu0 %v3321
        %3381 = vmatprep.subr.bf16.mxu0 %v3326
        %3382 = vmatpush1.bf16.msra.mxu0 %v3325
        %3383 = vmatprep.subr.bf16.mxu0 %v3330
        %3384 = vmatpush1.bf16.msra.mxu0 %v3329
        %3385 = vmatprep.subr.bf16.mxu0 %v3334
        %3386 = vmatpush1.bf16.msra.mxu0 %v3333
        %3387 = vmatprep.subr.bf16.mxu0 %v3338
        %3388 = vmatpush1.bf16.msra.mxu0 %v3337
        %3389 = vmatprep.subr.bf16.mxu0 0
        %3390 = vmatpush1.bf16.msra.mxu0 0
        %3391 = vmatprep.subr.bf16.mxu0 0
        %3392 = vmatpush1.bf16.msra.mxu0 0
        %3393 = vmatprep.subr.bf16.mxu0 0
        %3394 = vmatpush1.bf16.msra.mxu0 0
        %3395 = vmatprep.subr.bf16.mxu0 0
        %3396 = vmatpush1.bf16.msra.mxu0 0
        %3397 = vmatprep.subr.bf16.mxu0 0
        %3398 = vmatpush1.bf16.msra.mxu0 0
        %3399 = vmatprep.subr.bf16.mxu0 0
        %3400 = vmatpush1.bf16.msra.mxu0 0
        %3401 = vmatprep.subr.bf16.mxu0 0
        %3402 = vmatpush1.bf16.msra.mxu0 0
        %3403 = vmatprep.subr.bf16.mxu0 0
        %3404 = vmatpush1.bf16.msra.mxu0 0
        %3405 = vmatprep.mubr.bf16.mxu0 0
        %3406 = vmatmul.mubr.bf16.gmra.mrb[0].mxu0 %v3211
        %v3407 = vpop.f32.mrb[0].mxu0
        %v3408 = vadd.f32 0.0, %v3407
        %v3409 = vpop.f32.mrb[0].mxu0
        %v3410 = vadd.f32 0.0, %v3409
        %v3411 = vpop.f32.mrb[0].mxu0
        %v3412 = vpop.f32.mrb[0].mxu0
        %3413 = vdwg.mxu0
        %3414 = vmatprep.subr.bf16.mxu0 %v3312
        %3415 = vmatpush1.bf16.msra.mxu0 %v3311
        %3416 = vmatprep.subr.bf16.mxu0 %v3316
        %3417 = vmatpush1.bf16.msra.mxu0 %v3315
        %3418 = vmatprep.subr.bf16.mxu0 %v3320
        %3419 = vmatpush1.bf16.msra.mxu0 %v3319
        %3420 = vmatprep.subr.bf16.mxu0 %v3324
        %3421 = vmatpush1.bf16.msra.mxu0 %v3323
        %3422 = vmatprep.subr.bf16.mxu0 %v3328
        %3423 = vmatpush1.bf16.msra.mxu0 %v3327
        %3424 = vmatprep.subr.bf16.mxu0 %v3332
        %3425 = vmatpush1.bf16.msra.mxu0 %v3331
        %3426 = vmatprep.subr.bf16.mxu0 %v3336
        %3427 = vmatpush1.bf16.msra.mxu0 %v3335
        %3428 = vmatprep.subr.bf16.mxu0 %v3340
        %3429 = vmatpush1.bf16.msra.mxu0 %v3339
        %3430 = vmatprep.subr.bf16.mxu0 0
        %3431 = vmatpush1.bf16.msra.mxu0 0
        %3432 = vmatprep.subr.bf16.mxu0 0
        %3433 = vmatpush1.bf16.msra.mxu0 0
        %3434 = vmatprep.subr.bf16.mxu0 0
        %3435 = vmatpush1.bf16.msra.mxu0 0
        %3436 = vmatprep.subr.bf16.mxu0 0
        %3437 = vmatpush1.bf16.msra.mxu0 0
        %3438 = vmatprep.subr.bf16.mxu0 0
        %3439 = vmatpush1.bf16.msra.mxu0 0
        %3440 = vmatprep.subr.bf16.mxu0 0
        %3441 = vmatpush1.bf16.msra.mxu0 0
        %3442 = vmatprep.subr.bf16.mxu0 0
        %3443 = vmatpush1.bf16.msra.mxu0 0
        %3444 = vmatprep.subr.bf16.mxu0 0
        %3445 = vmatpush1.bf16.msra.mxu0 0
        %3446 = vmatprep.mubr.bf16.mxu0 0
        %3447 = vmatmul.mubr.bf16.gmra.mrb[0].mxu0 %v3211
        %v3448 = vpop.f32.mrb[0].mxu0
        %v3449 = vadd.f32 0.0, %v3448
        %v3450 = vpop.f32.mrb[0].mxu0
        %v3451 = vadd.f32 0.0, %v3450
        %v3452 = vpop.f32.mrb[0].mxu0
        %v3453 = vpop.f32.mrb[0].mxu0
        %3454 = vdwg.mxu0
        %v3455 = vadd.f32 %v3202, %v3408
        %v3456 = vadd.f32 %v3203, %v3410
        %v3457 = vadd.f32 %v3204, %v3449
        %v3458 = vadd.f32 %v3205, %v3451
        %v3459 = vxor.u32 %v3455, 2147483648
        %v3460 = vmul.f32 %v3459, 1.442695
        %v3461 = vpow.pop %v3460
        %v3462 = vadd.f32 %v3461, 1.0
        %v3463 = vrcp.pop %v3462
        %v3464 = vmul.f32 1.0, %v3463
        %v3465 = vxor.u32 %v3456, 2147483648
        %v3466 = vmul.f32 %v3465, 1.442695
        %v3467 = vpow.pop %v3466
        %v3468 = vadd.f32 %v3467, 1.0
        %v3469 = vrcp.pop %v3468
        %v3470 = vmul.f32 1.0, %v3469
        %v3471 = vtanh.pop %v3457
        %v3472 = vxor.u32 %v3458, 2147483648
        %v3473 = vmul.f32 %v3472, 1.442695
        %v3474 = vpow.pop %v3473
        %v3475 = vadd.f32 %v3474, 1.0
        %v3476 = vrcp.pop %v3475
        %v3477 = vmul.f32 1.0, %v3476
        %v3478 = vrot.slane %v368, 3
        %v3480 = vmul.f32 %v3470, %v3478
        %v3481 = vmul.f32 %v3464, %v3471
        %v3482 = vadd.f32 %v3480, %v3481
        %v3483 = vtanh.pop %v3482
        %v3484 = vmul.f32 %v3477, %v3483
        %v3485 = vpack.c.bf16 %v3484, %v3484
        %3486 = vmatprep.subr.bf16.mxu0 %v3310
        %3487 = vmatpush1.bf16.msra.mxu0 %v3309
        %3488 = vmatprep.subr.bf16.mxu0 %v3314
        %3489 = vmatpush1.bf16.msra.mxu0 %v3313
        %3490 = vmatprep.subr.bf16.mxu0 %v3318
        %3491 = vmatpush1.bf16.msra.mxu0 %v3317
        %3492 = vmatprep.subr.bf16.mxu0 %v3322
        %3493 = vmatpush1.bf16.msra.mxu0 %v3321
        %3494 = vmatprep.subr.bf16.mxu0 %v3326
        %3495 = vmatpush1.bf16.msra.mxu0 %v3325
        %3496 = vmatprep.subr.bf16.mxu0 %v3330
        %3497 = vmatpush1.bf16.msra.mxu0 %v3329
        %3498 = vmatprep.subr.bf16.mxu0 %v3334
        %3499 = vmatpush1.bf16.msra.mxu0 %v3333
        %3500 = vmatprep.subr.bf16.mxu0 %v3338
        %3501 = vmatpush1.bf16.msra.mxu0 %v3337
        %3502 = vmatprep.subr.bf16.mxu0 0
        %3503 = vmatpush1.bf16.msra.mxu0 0
        %3504 = vmatprep.subr.bf16.mxu0 0
        %3505 = vmatpush1.bf16.msra.mxu0 0
        %3506 = vmatprep.subr.bf16.mxu0 0
        %3507 = vmatpush1.bf16.msra.mxu0 0
        %3508 = vmatprep.subr.bf16.mxu0 0
        %3509 = vmatpush1.bf16.msra.mxu0 0
        %3510 = vmatprep.subr.bf16.mxu0 0
        %3511 = vmatpush1.bf16.msra.mxu0 0
        %3512 = vmatprep.subr.bf16.mxu0 0
        %3513 = vmatpush1.bf16.msra.mxu0 0
        %3514 = vmatprep.subr.bf16.mxu0 0
        %3515 = vmatpush1.bf16.msra.mxu0 0
        %3516 = vmatprep.subr.bf16.mxu0 0
        %3517 = vmatpush1.bf16.msra.mxu0 0
        %3518 = vmatprep.mubr.bf16.mxu0 0
        %3519 = vmatmul.mubr.bf16.gmra.mrb[0].mxu0 %v3485
        %v3520 = vpop.f32.mrb[0].mxu0
        %v3521 = vadd.f32 0.0, %v3520
        %v3522 = vpop.f32.mrb[0].mxu0
        %v3523 = vadd.f32 0.0, %v3522
        %v3524 = vpop.f32.mrb[0].mxu0
        %v3525 = vpop.f32.mrb[0].mxu0
        %3526 = vdwg.mxu0
        %3527 = vmatprep.subr.bf16.mxu0 %v3312
        %3528 = vmatpush1.bf16.msra.mxu0 %v3311
        %3529 = vmatprep.subr.bf16.mxu0 %v3316
        %3530 = vmatpush1.bf16.msra.mxu0 %v3315
        %3531 = vmatprep.subr.bf16.mxu0 %v3320
        %3532 = vmatpush1.bf16.msra.mxu0 %v3319
        %3533 = vmatprep.subr.bf16.mxu0 %v3324
        %3534 = vmatpush1.bf16.msra.mxu0 %v3323
        %3535 = vmatprep.subr.bf16.mxu0 %v3328
        %3536 = vmatpush1.bf16.msra.mxu0 %v3327
        %3537 = vmatprep.subr.bf16.mxu0 %v3332
        %3538 = vmatpush1.bf16.msra.mxu0 %v3331
        %3539 = vmatprep.subr.bf16.mxu0 %v3336
        %3540 = vmatpush1.bf16.msra.mxu0 %v3335
        %3541 = vmatprep.subr.bf16.mxu0 %v3340
        %3542 = vmatpush1.bf16.msra.mxu0 %v3339
        %3543 = vmatprep.subr.bf16.mxu0 0
        %3544 = vmatpush1.bf16.msra.mxu0 0
        %3545 = vmatprep.subr.bf16.mxu0 0
        %3546 = vmatpush1.bf16.msra.mxu0 0
        %3547 = vmatprep.subr.bf16.mxu0 0
        %3548 = vmatpush1.bf16.msra.mxu0 0
        %3549 = vmatprep.subr.bf16.mxu0 0
        %3550 = vmatpush1.bf16.msra.mxu0 0
        %3551 = vmatprep.subr.bf16.mxu0 0
        %3552 = vmatpush1.bf16.msra.mxu0 0
        %3553 = vmatprep.subr.bf16.mxu0 0
        %3554 = vmatpush1.bf16.msra.mxu0 0
        %3555 = vmatprep.subr.bf16.mxu0 0
        %3556 = vmatpush1.bf16.msra.mxu0 0
        %3557 = vmatprep.subr.bf16.mxu0 0
        %3558 = vmatpush1.bf16.msra.mxu0 0
        %3559 = vmatprep.mubr.bf16.mxu0 0
        %3560 = vmatmul.mubr.bf16.gmra.mrb[0].mxu0 %v3485
        %v3561 = vpop.f32.mrb[0].mxu0
        %v3562 = vadd.f32 0.0, %v3561
        %v3563 = vpop.f32.mrb[0].mxu0
        %v3564 = vadd.f32 0.0, %v3563
        %v3565 = vpop.f32.mrb[0].mxu0
        %v3566 = vpop.f32.mrb[0].mxu0
        %3567 = vdwg.mxu0
        %v3572 = vrot.slane %v3521, 7
        %v3573 = vrot.slane %v3523, 7
        %v3574 = vrot.slane %v3562, 7
        %v3575 = vrot.slane %v3564, 7
        %v3580 = vadd.f32 %v3202, %v3572
        %v3581 = vadd.f32 %v3203, %v3573
        %v3582 = vadd.f32 %v3204, %v3574
        %v3583 = vadd.f32 %v3205, %v3575
        %v3584 = vxor.u32 %v3580, 2147483648
        %v3585 = vmul.f32 %v3584, 1.442695
        %v3586 = vpow.pop %v3585
        %v3587 = vadd.f32 %v3586, 1.0
        %v3588 = vrcp.pop %v3587
        %v3589 = vmul.f32 1.0, %v3588
        %v3590 = vxor.u32 %v3581, 2147483648
        %v3591 = vmul.f32 %v3590, 1.442695
        %v3592 = vpow.pop %v3591
        %v3593 = vadd.f32 %v3592, 1.0
        %v3594 = vrcp.pop %v3593
        %v3595 = vmul.f32 1.0, %v3594
        %v3596 = vtanh.pop %v3582
        %v3597 = vxor.u32 %v3583, 2147483648
        %v3598 = vmul.f32 %v3597, 1.442695
        %v3599 = vpow.pop %v3598
        %v3600 = vadd.f32 %v3599, 1.0
        %v3601 = vrcp.pop %v3600
        %v3602 = vmul.f32 1.0, %v3601
        %v3604 = vrot.slane %v3482, 7
        %v3606 = vmul.f32 %v3595, %v3604
        %v3607 = vmul.f32 %v3589, %v3596
        %v3608 = vadd.f32 %v3606, %v3607
        %v3609 = vtanh.pop %v3608
        %v3610 = vmul.f32 %v3602, %v3609
        %v3611 = vpack.c.bf16 %v3610, %v3610
        %v3613 = vshrl.u32 %v3611, 16
        %3616 = vmatprep.subr.bf16.mxu0 %v3310
        %3617 = vmatpush1.bf16.msra.mxu0 %v3309
        %3618 = vmatprep.subr.bf16.mxu0 %v3314
        %3619 = vmatpush1.bf16.msra.mxu0 %v3313
        %3620 = vmatprep.subr.bf16.mxu0 %v3318
        %3621 = vmatpush1.bf16.msra.mxu0 %v3317
        %3622 = vmatprep.subr.bf16.mxu0 %v3322
        %3623 = vmatpush1.bf16.msra.mxu0 %v3321
        %3624 = vmatprep.subr.bf16.mxu0 %v3326
        %3625 = vmatpush1.bf16.msra.mxu0 %v3325
        %3626 = vmatprep.subr.bf16.mxu0 %v3330
        %3627 = vmatpush1.bf16.msra.mxu0 %v3329
        %3628 = vmatprep.subr.bf16.mxu0 %v3334
        %3629 = vmatpush1.bf16.msra.mxu0 %v3333
        %3630 = vmatprep.subr.bf16.mxu0 %v3338
        %3631 = vmatpush1.bf16.msra.mxu0 %v3337
        %3632 = vmatprep.subr.bf16.mxu0 0
        %3633 = vmatpush1.bf16.msra.mxu0 0
        %3634 = vmatprep.subr.bf16.mxu0 0
        %3635 = vmatpush1.bf16.msra.mxu0 0
        %3636 = vmatprep.subr.bf16.mxu0 0
        %3637 = vmatpush1.bf16.msra.mxu0 0
        %3638 = vmatprep.subr.bf16.mxu0 0
        %3639 = vmatpush1.bf16.msra.mxu0 0
        %3640 = vmatprep.subr.bf16.mxu0 0
        %3641 = vmatpush1.bf16.msra.mxu0 0
        %3642 = vmatprep.subr.bf16.mxu0 0
        %3643 = vmatpush1.bf16.msra.mxu0 0
        %3644 = vmatprep.subr.bf16.mxu0 0
        %3645 = vmatpush1.bf16.msra.mxu0 0
        %3646 = vmatprep.subr.bf16.mxu0 0
        %3647 = vmatpush1.bf16.msra.mxu0 0
        %3648 = vmatprep.mubr.bf16.mxu0 0
        %3649 = vmatmul.mubr.bf16.gmra.mrb[0].mxu0 %v3613
        %v3650 = vpop.f32.mrb[0].mxu0
        %v3651 = vadd.f32 0.0, %v3650
        %v3652 = vpop.f32.mrb[0].mxu0
        %v3653 = vadd.f32 0.0, %v3652
        %v3654 = vpop.f32.mrb[0].mxu0
        %v3655 = vpop.f32.mrb[0].mxu0
        %3656 = vdwg.mxu0
        %3657 = vmatprep.subr.bf16.mxu0 %v3312
        %3658 = vmatpush1.bf16.msra.mxu0 %v3311
        %3659 = vmatprep.subr.bf16.mxu0 %v3316
        %3660 = vmatpush1.bf16.msra.mxu0 %v3315
        %3661 = vmatprep.subr.bf16.mxu0 %v3320
        %3662 = vmatpush1.bf16.msra.mxu0 %v3319
        %3663 = vmatprep.subr.bf16.mxu0 %v3324
        %3664 = vmatpush1.bf16.msra.mxu0 %v3323
        %3665 = vmatprep.subr.bf16.mxu0 %v3328
        %3666 = vmatpush1.bf16.msra.mxu0 %v3327
        %3667 = vmatprep.subr.bf16.mxu0 %v3332
        %3668 = vmatpush1.bf16.msra.mxu0 %v3331
        %3669 = vmatprep.subr.bf16.mxu0 %v3336
        %3670 = vmatpush1.bf16.msra.mxu0 %v3335
        %3671 = vmatprep.subr.bf16.mxu0 %v3340
        %3672 = vmatpush1.bf16.msra.mxu0 %v3339
        %3673 = vmatprep.subr.bf16.mxu0 0
        %3674 = vmatpush1.bf16.msra.mxu0 0
        %3675 = vmatprep.subr.bf16.mxu0 0
        %3676 = vmatpush1.bf16.msra.mxu0 0
        %3677 = vmatprep.subr.bf16.mxu0 0
        %3678 = vmatpush1.bf16.msra.mxu0 0
        %3679 = vmatprep.subr.bf16.mxu0 0
        %3680 = vmatpush1.bf16.msra.mxu0 0
        %3681 = vmatprep.subr.bf16.mxu0 0
        %3682 = vmatpush1.bf16.msra.mxu0 0
        %3683 = vmatprep.subr.bf16.mxu0 0
        %3684 = vmatpush1.bf16.msra.mxu0 0
        %3685 = vmatprep.subr.bf16.mxu0 0
        %3686 = vmatpush1.bf16.msra.mxu0 0
        %3687 = vmatprep.subr.bf16.mxu0 0
        %3688 = vmatpush1.bf16.msra.mxu0 0
        %3689 = vmatprep.mubr.bf16.mxu0 0
        %3690 = vmatmul.mubr.bf16.gmra.mrb[0].mxu0 %v3613
        %v3691 = vpop.f32.mrb[0].mxu0
        %v3692 = vadd.f32 0.0, %v3691
        %v3693 = vpop.f32.mrb[0].mxu0
        %v3694 = vadd.f32 0.0, %v3693
        %v3695 = vpop.f32.mrb[0].mxu0
        %v3696 = vpop.f32.mrb[0].mxu0
        %3697 = vdwg.mxu0
        %v3702 = vrot.slane %v3651, 6
        %v3703 = vrot.slane %v3653, 6
        %v3704 = vrot.slane %v3692, 6
        %v3705 = vrot.slane %v3694, 6
        %v3710 = vadd.f32 %v3202, %v3702
        %v3711 = vadd.f32 %v3203, %v3703
        %v3712 = vadd.f32 %v3204, %v3704
        %v3713 = vadd.f32 %v3205, %v3705
        %v3714 = vxor.u32 %v3710, 2147483648
        %v3715 = vmul.f32 %v3714, 1.442695
        %v3716 = vpow.pop %v3715
        %v3717 = vadd.f32 %v3716, 1.0
        %v3718 = vrcp.pop %v3717
        %v3719 = vmul.f32 1.0, %v3718
        %v3720 = vxor.u32 %v3711, 2147483648
        %v3721 = vmul.f32 %v3720, 1.442695
        %v3722 = vpow.pop %v3721
        %v3723 = vadd.f32 %v3722, 1.0
        %v3724 = vrcp.pop %v3723
        %v3725 = vmul.f32 1.0, %v3724
        %v3726 = vtanh.pop %v3712
        %v3727 = vxor.u32 %v3713, 2147483648
        %v3728 = vmul.f32 %v3727, 1.442695
        %v3729 = vpow.pop %v3728
        %v3730 = vadd.f32 %v3729, 1.0
        %v3731 = vrcp.pop %v3730
        %v3732 = vmul.f32 1.0, %v3731
        %v3734 = vrot.slane %v3608, 7
        %v3736 = vmul.f32 %v3725, %v3734
        %v3737 = vmul.f32 %v3719, %v3726
        %v3738 = vadd.f32 %v3736, %v3737
        %v3739 = vtanh.pop %v3738
        %v3740 = vmul.f32 %v3732, %v3739
        %v3741 = vpack.c.bf16 %v3740, %v3740
        %v3743 = vrot.slane %v3741, 1
        %3745 = vmatprep.subr.bf16.mxu0 %v3310
        %3746 = vmatpush1.bf16.msra.mxu0 %v3309
        %3747 = vmatprep.subr.bf16.mxu0 %v3314
        %3748 = vmatpush1.bf16.msra.mxu0 %v3313
        %3749 = vmatprep.subr.bf16.mxu0 %v3318
        %3750 = vmatpush1.bf16.msra.mxu0 %v3317
        %3751 = vmatprep.subr.bf16.mxu0 %v3322
        %3752 = vmatpush1.bf16.msra.mxu0 %v3321
        %3753 = vmatprep.subr.bf16.mxu0 %v3326
        %3754 = vmatpush1.bf16.msra.mxu0 %v3325
        %3755 = vmatprep.subr.bf16.mxu0 %v3330
        %3756 = vmatpush1.bf16.msra.mxu0 %v3329
        %3757 = vmatprep.subr.bf16.mxu0 %v3334
        %3758 = vmatpush1.bf16.msra.mxu0 %v3333
        %3759 = vmatprep.subr.bf16.mxu0 %v3338
        %3760 = vmatpush1.bf16.msra.mxu0 %v3337
        %3761 = vmatprep.subr.bf16.mxu0 0
        %3762 = vmatpush1.bf16.msra.mxu0 0
        %3763 = vmatprep.subr.bf16.mxu0 0
        %3764 = vmatpush1.bf16.msra.mxu0 0
        %3765 = vmatprep.subr.bf16.mxu0 0
        %3766 = vmatpush1.bf16.msra.mxu0 0
        %3767 = vmatprep.subr.bf16.mxu0 0
        %3768 = vmatpush1.bf16.msra.mxu0 0
        %3769 = vmatprep.subr.bf16.mxu0 0
        %3770 = vmatpush1.bf16.msra.mxu0 0
        %3771 = vmatprep.subr.bf16.mxu0 0
        %3772 = vmatpush1.bf16.msra.mxu0 0
        %3773 = vmatprep.subr.bf16.mxu0 0
        %3774 = vmatpush1.bf16.msra.mxu0 0
        %3775 = vmatprep.subr.bf16.mxu0 0
        %3776 = vmatpush1.bf16.msra.mxu0 0
        %3777 = vmatprep.mubr.bf16.mxu0 0
        %3778 = vmatmul.mubr.bf16.gmra.mrb[0].mxu0 %v3743
        %v3779 = vpop.f32.mrb[0].mxu0
        %v3780 = vadd.f32 0.0, %v3779
        %v3781 = vpop.f32.mrb[0].mxu0
        %v3782 = vadd.f32 0.0, %v3781
        %v3783 = vpop.f32.mrb[0].mxu0
        %v3784 = vpop.f32.mrb[0].mxu0
        %3785 = vdwg.mxu0
        %3786 = vmatprep.subr.bf16.mxu0 %v3312
        %3787 = vmatpush1.bf16.msra.mxu0 %v3311
        %3788 = vmatprep.subr.bf16.mxu0 %v3316
        %3789 = vmatpush1.bf16.msra.mxu0 %v3315
        %3790 = vmatprep.subr.bf16.mxu0 %v3320
        %3791 = vmatpush1.bf16.msra.mxu0 %v3319
        %3792 = vmatprep.subr.bf16.mxu0 %v3324
        %3793 = vmatpush1.bf16.msra.mxu0 %v3323
        %3794 = vmatprep.subr.bf16.mxu0 %v3328
        %3795 = vmatpush1.bf16.msra.mxu0 %v3327
        %3796 = vmatprep.subr.bf16.mxu0 %v3332
        %3797 = vmatpush1.bf16.msra.mxu0 %v3331
        %3798 = vmatprep.subr.bf16.mxu0 %v3336
        %3799 = vmatpush1.bf16.msra.mxu0 %v3335
        %3800 = vmatprep.subr.bf16.mxu0 %v3340
        %3801 = vmatpush1.bf16.msra.mxu0 %v3339
        %3802 = vmatprep.subr.bf16.mxu0 0
        %3803 = vmatpush1.bf16.msra.mxu0 0
        %3804 = vmatprep.subr.bf16.mxu0 0
        %3805 = vmatpush1.bf16.msra.mxu0 0
        %3806 = vmatprep.subr.bf16.mxu0 0
        %3807 = vmatpush1.bf16.msra.mxu0 0
        %3808 = vmatprep.subr.bf16.mxu0 0
        %3809 = vmatpush1.bf16.msra.mxu0 0
        %3810 = vmatprep.subr.bf16.mxu0 0
        %3811 = vmatpush1.bf16.msra.mxu0 0
        %3812 = vmatprep.subr.bf16.mxu0 0
        %3813 = vmatpush1.bf16.msra.mxu0 0
        %3814 = vmatprep.subr.bf16.mxu0 0
        %3815 = vmatpush1.bf16.msra.mxu0 0
        %3816 = vmatprep.subr.bf16.mxu0 0
        %3817 = vmatpush1.bf16.msra.mxu0 0
        %3818 = vmatprep.mubr.bf16.mxu0 0
        %3819 = vmatmul.mubr.bf16.gmra.mrb[0].mxu0 %v3743
        %v3820 = vpop.f32.mrb[0].mxu0
        %v3821 = vadd.f32 0.0, %v3820
        %v3822 = vpop.f32.mrb[0].mxu0
        %v3823 = vadd.f32 0.0, %v3822
        %v3824 = vpop.f32.mrb[0].mxu0
        %v3825 = vpop.f32.mrb[0].mxu0
        %3826 = vdwg.mxu0
        %v3831 = vrot.slane %v3780, 5
        %v3832 = vrot.slane %v3782, 5
        %v3833 = vrot.slane %v3821, 5
        %v3834 = vrot.slane %v3823, 5
        %v3839 = vadd.f32 %v3202, %v3831
        %v3840 = vadd.f32 %v3203, %v3832
        %v3841 = vadd.f32 %v3204, %v3833
        %v3842 = vadd.f32 %v3205, %v3834
        %v3843 = vxor.u32 %v3839, 2147483648
        %v3844 = vmul.f32 %v3843, 1.442695
        %v3845 = vpow.pop %v3844
        %v3846 = vadd.f32 %v3845, 1.0
        %v3847 = vrcp.pop %v3846
        %v3848 = vmul.f32 1.0, %v3847
        %v3849 = vxor.u32 %v3840, 2147483648
        %v3850 = vmul.f32 %v3849, 1.442695
        %v3851 = vpow.pop %v3850
        %v3852 = vadd.f32 %v3851, 1.0
        %v3853 = vrcp.pop %v3852
        %v3854 = vmul.f32 1.0, %v3853
        %v3855 = vtanh.pop %v3841
        %v3856 = vxor.u32 %v3842, 2147483648
        %v3857 = vmul.f32 %v3856, 1.442695
        %v3858 = vpow.pop %v3857
        %v3859 = vadd.f32 %v3858, 1.0
        %v3860 = vrcp.pop %v3859
        %v3861 = vmul.f32 1.0, %v3860
        %v3863 = vrot.slane %v3738, 7
        %v3865 = vmul.f32 %v3854, %v3863
        %v3866 = vmul.f32 %v3848, %v3855
        %v3867 = vadd.f32 %v3865, %v3866
        %v3868 = vtanh.pop %v3867
        %v3869 = vmul.f32 %v3861, %v3868
        %v3870 = vpack.c.bf16 %v3869, %v3869
        %v3872 = vshrl.u32 %v3870, 16
        %v3874 = vrot.slane %v3872, 1
        %3876 = vmatprep.subr.bf16.mxu0 %v3310
        %3877 = vmatpush1.bf16.msra.mxu0 %v3309
        %3878 = vmatprep.subr.bf16.mxu0 %v3314
        %3879 = vmatpush1.bf16.msra.mxu0 %v3313
        %3880 = vmatprep.subr.bf16.mxu0 %v3318
        %3881 = vmatpush1.bf16.msra.mxu0 %v3317
        %3882 = vmatprep.subr.bf16.mxu0 %v3322
        %3883 = vmatpush1.bf16.msra.mxu0 %v3321
        %3884 = vmatprep.subr.bf16.mxu0 %v3326
        %3885 = vmatpush1.bf16.msra.mxu0 %v3325
        %3886 = vmatprep.subr.bf16.mxu0 %v3330
        %3887 = vmatpush1.bf16.msra.mxu0 %v3329
        %3888 = vmatprep.subr.bf16.mxu0 %v3334
        %3889 = vmatpush1.bf16.msra.mxu0 %v3333
        %3890 = vmatprep.subr.bf16.mxu0 %v3338
        %3891 = vmatpush1.bf16.msra.mxu0 %v3337
        %3892 = vmatprep.subr.bf16.mxu0 0
        %3893 = vmatpush1.bf16.msra.mxu0 0
        %3894 = vmatprep.subr.bf16.mxu0 0
        %3895 = vmatpush1.bf16.msra.mxu0 0
        %3896 = vmatprep.subr.bf16.mxu0 0
        %3897 = vmatpush1.bf16.msra.mxu0 0
        %3898 = vmatprep.subr.bf16.mxu0 0
        %3899 = vmatpush1.bf16.msra.mxu0 0
        %3900 = vmatprep.subr.bf16.mxu0 0
        %3901 = vmatpush1.bf16.msra.mxu0 0
        %3902 = vmatprep.subr.bf16.mxu0 0
        %3903 = vmatpush1.bf16.msra.mxu0 0
        %3904 = vmatprep.subr.bf16.mxu0 0
        %3905 = vmatpush1.bf16.msra.mxu0 0
        %3906 = vmatprep.subr.bf16.mxu0 0
        %3907 = vmatpush1.bf16.msra.mxu0 0
        %3908 = vmatprep.mubr.bf16.mxu0 0
        %3909 = vmatmul.mubr.bf16.gmra.mrb[0].mxu0 %v3874
        %v3910 = vpop.f32.mrb[0].mxu0
        %v3911 = vadd.f32 0.0, %v3910
        %v3912 = vpop.f32.mrb[0].mxu0
        %v3913 = vadd.f32 0.0, %v3912
        %v3914 = vpop.f32.mrb[0].mxu0
        %v3915 = vpop.f32.mrb[0].mxu0
        %3916 = vdwg.mxu0
        %3917 = vmatprep.subr.bf16.mxu0 %v3312
        %3918 = vmatpush1.bf16.msra.mxu0 %v3311
        %3919 = vmatprep.subr.bf16.mxu0 %v3316
        %3920 = vmatpush1.bf16.msra.mxu0 %v3315
        %3921 = vmatprep.subr.bf16.mxu0 %v3320
        %3922 = vmatpush1.bf16.msra.mxu0 %v3319
        %3923 = vmatprep.subr.bf16.mxu0 %v3324
        %3924 = vmatpush1.bf16.msra.mxu0 %v3323
        %3925 = vmatprep.subr.bf16.mxu0 %v3328
        %3926 = vmatpush1.bf16.msra.mxu0 %v3327
        %3927 = vmatprep.subr.bf16.mxu0 %v3332
        %3928 = vmatpush1.bf16.msra.mxu0 %v3331
        %3929 = vmatprep.subr.bf16.mxu0 %v3336
        %3930 = vmatpush1.bf16.msra.mxu0 %v3335
        %3931 = vmatprep.subr.bf16.mxu0 %v3340
        %3932 = vmatpush1.bf16.msra.mxu0 %v3339
        %3933 = vmatprep.subr.bf16.mxu0 0
        %3934 = vmatpush1.bf16.msra.mxu0 0
        %3935 = vmatprep.subr.bf16.mxu0 0
        %3936 = vmatpush1.bf16.msra.mxu0 0
        %3937 = vmatprep.subr.bf16.mxu0 0
        %3938 = vmatpush1.bf16.msra.mxu0 0
        %3939 = vmatprep.subr.bf16.mxu0 0
        %3940 = vmatpush1.bf16.msra.mxu0 0
        %3941 = vmatprep.subr.bf16.mxu0 0
        %3942 = vmatpush1.bf16.msra.mxu0 0
        %3943 = vmatprep.subr.bf16.mxu0 0
        %3944 = vmatpush1.bf16.msra.mxu0 0
        %3945 = vmatprep.subr.bf16.mxu0 0
        %3946 = vmatpush1.bf16.msra.mxu0 0
        %3947 = vmatprep.subr.bf16.mxu0 0
        %3948 = vmatpush1.bf16.msra.mxu0 0
        %3949 = vmatprep.mubr.bf16.mxu0 0
        %3950 = vmatmul.mubr.bf16.gmra.mrb[0].mxu0 %v3874
        %v3951 = vpop.f32.mrb[0].mxu0
        %v3952 = vadd.f32 0.0, %v3951
        %v3953 = vpop.f32.mrb[0].mxu0
        %v3954 = vadd.f32 0.0, %v3953
        %v3955 = vpop.f32.mrb[0].mxu0
        %v3956 = vpop.f32.mrb[0].mxu0
        %3957 = vdwg.mxu0
        %v3962 = vrot.slane %v3911, 4
        %v3963 = vrot.slane %v3913, 4
        %v3964 = vrot.slane %v3952, 4
        %v3965 = vrot.slane %v3954, 4
        %v3970 = vadd.f32 %v3202, %v3962
        %v3971 = vadd.f32 %v3203, %v3963
        %v3972 = vadd.f32 %v3204, %v3964
        %v3973 = vadd.f32 %v3205, %v3965
        %v3974 = vxor.u32 %v3970, 2147483648
        %v3975 = vmul.f32 %v3974, 1.442695
        %v3976 = vpow.pop %v3975
        %v3977 = vadd.f32 %v3976, 1.0
        %v3978 = vrcp.pop %v3977
        %v3979 = vmul.f32 1.0, %v3978
        %v3980 = vxor.u32 %v3971, 2147483648
        %v3981 = vmul.f32 %v3980, 1.442695
        %v3982 = vpow.pop %v3981
        %v3983 = vadd.f32 %v3982, 1.0
        %v3984 = vrcp.pop %v3983
        %v3985 = vmul.f32 1.0, %v3984
        %v3986 = vtanh.pop %v3972
        %v3987 = vxor.u32 %v3973, 2147483648
        %v3988 = vmul.f32 %v3987, 1.442695
        %v3989 = vpow.pop %v3988
        %v3990 = vadd.f32 %v3989, 1.0
        %v3991 = vrcp.pop %v3990
        %v3992 = vmul.f32 1.0, %v3991
        %v3994 = vrot.slane %v3867, 7
        %v3996 = vmul.f32 %v3985, %v3994
        %v3997 = vmul.f32 %v3979, %v3986
        %v3998 = vadd.f32 %v3996, %v3997
        %v3999 = vtanh.pop %v3998
        %v4000 = vmul.f32 %v3992, %v3999
        %v4001 = vpack.c.bf16 %v4000, %v4000
        %v4003 = vrot.slane %v4001, 2
        %4005 = vmatprep.subr.bf16.mxu0 %v3310
        %4006 = vmatpush1.bf16.msra.mxu0 %v3309
        %4007 = vmatprep.subr.bf16.mxu0 %v3314
        %4008 = vmatpush1.bf16.msra.mxu0 %v3313
        %4009 = vmatprep.subr.bf16.mxu0 %v3318
        %4010 = vmatpush1.bf16.msra.mxu0 %v3317
        %4011 = vmatprep.subr.bf16.mxu0 %v3322
        %4012 = vmatpush1.bf16.msra.mxu0 %v3321
        %4013 = vmatprep.subr.bf16.mxu0 %v3326
        %4014 = vmatpush1.bf16.msra.mxu0 %v3325
        %4015 = vmatprep.subr.bf16.mxu0 %v3330
        %4016 = vmatpush1.bf16.msra.mxu0 %v3329
        %4017 = vmatprep.subr.bf16.mxu0 %v3334
        %4018 = vmatpush1.bf16.msra.mxu0 %v3333
        %4019 = vmatprep.subr.bf16.mxu0 %v3338
        %4020 = vmatpush1.bf16.msra.mxu0 %v3337
        %4021 = vmatprep.subr.bf16.mxu0 0
        %4022 = vmatpush1.bf16.msra.mxu0 0
        %4023 = vmatprep.subr.bf16.mxu0 0
        %4024 = vmatpush1.bf16.msra.mxu0 0
        %4025 = vmatprep.subr.bf16.mxu0 0
        %4026 = vmatpush1.bf16.msra.mxu0 0
        %4027 = vmatprep.subr.bf16.mxu0 0
        %4028 = vmatpush1.bf16.msra.mxu0 0
        %4029 = vmatprep.subr.bf16.mxu0 0
        %4030 = vmatpush1.bf16.msra.mxu0 0
        %4031 = vmatprep.subr.bf16.mxu0 0
        %4032 = vmatpush1.bf16.msra.mxu0 0
        %4033 = vmatprep.subr.bf16.mxu0 0
        %4034 = vmatpush1.bf16.msra.mxu0 0
        %4035 = vmatprep.subr.bf16.mxu0 0
        %4036 = vmatpush1.bf16.msra.mxu0 0
        %4037 = vmatprep.mubr.bf16.mxu0 0
        %4038 = vmatmul.mubr.bf16.gmra.mrb[0].mxu0 %v4003
        %v4039 = vpop.f32.mrb[0].mxu0
        %v4040 = vadd.f32 0.0, %v4039
        %v4041 = vpop.f32.mrb[0].mxu0
        %v4042 = vadd.f32 0.0, %v4041
        %v4043 = vpop.f32.mrb[0].mxu0
        %v4044 = vpop.f32.mrb[0].mxu0
        %4045 = vdwg.mxu0
        %4046 = vmatprep.subr.bf16.mxu0 %v3312
        %4047 = vmatpush1.bf16.msra.mxu0 %v3311
        %4048 = vmatprep.subr.bf16.mxu0 %v3316
        %4049 = vmatpush1.bf16.msra.mxu0 %v3315
        %4050 = vmatprep.subr.bf16.mxu0 %v3320
        %4051 = vmatpush1.bf16.msra.mxu0 %v3319
        %4052 = vmatprep.subr.bf16.mxu0 %v3324
        %4053 = vmatpush1.bf16.msra.mxu0 %v3323
        %4054 = vmatprep.subr.bf16.mxu0 %v3328
        %4055 = vmatpush1.bf16.msra.mxu0 %v3327
        %4056 = vmatprep.subr.bf16.mxu0 %v3332
        %4057 = vmatpush1.bf16.msra.mxu0 %v3331
        %4058 = vmatprep.subr.bf16.mxu0 %v3336
        %4059 = vmatpush1.bf16.msra.mxu0 %v3335
        %4060 = vmatprep.subr.bf16.mxu0 %v3340
        %4061 = vmatpush1.bf16.msra.mxu0 %v3339
        %4062 = vmatprep.subr.bf16.mxu0 0
        %4063 = vmatpush1.bf16.msra.mxu0 0
        %4064 = vmatprep.subr.bf16.mxu0 0
        %4065 = vmatpush1.bf16.msra.mxu0 0
        %4066 = vmatprep.subr.bf16.mxu0 0
        %4067 = vmatpush1.bf16.msra.mxu0 0
        %4068 = vmatprep.subr.bf16.mxu0 0
        %4069 = vmatpush1.bf16.msra.mxu0 0
        %4070 = vmatprep.subr.bf16.mxu0 0
        %4071 = vmatpush1.bf16.msra.mxu0 0
        %4072 = vmatprep.subr.bf16.mxu0 0
        %4073 = vmatpush1.bf16.msra.mxu0 0
        %4074 = vmatprep.subr.bf16.mxu0 0
        %4075 = vmatpush1.bf16.msra.mxu0 0
        %4076 = vmatprep.subr.bf16.mxu0 0
        %4077 = vmatpush1.bf16.msra.mxu0 0
        %4078 = vmatprep.mubr.bf16.mxu0 0
        %4079 = vmatmul.mubr.bf16.gmra.mrb[0].mxu0 %v4003
        %v4080 = vpop.f32.mrb[0].mxu0
        %v4081 = vadd.f32 0.0, %v4080
        %v4082 = vpop.f32.mrb[0].mxu0
        %v4083 = vadd.f32 0.0, %v4082
        %v4084 = vpop.f32.mrb[0].mxu0
        %v4085 = vpop.f32.mrb[0].mxu0
        %4086 = vdwg.mxu0
        %v4091 = vrot.slane %v4040, 3
        %v4092 = vrot.slane %v4042, 3
        %v4093 = vrot.slane %v4081, 3
        %v4094 = vrot.slane %v4083, 3
        %v4099 = vadd.f32 %v3202, %v4091
        %v4100 = vadd.f32 %v3203, %v4092
        %v4101 = vadd.f32 %v3204, %v4093
        %v4102 = vadd.f32 %v3205, %v4094
        %v4103 = vxor.u32 %v4099, 2147483648
        %v4104 = vmul.f32 %v4103, 1.442695
        %v4105 = vpow.pop %v4104
        %v4106 = vadd.f32 %v4105, 1.0
        %v4107 = vrcp.pop %v4106
        %v4108 = vmul.f32 1.0, %v4107
        %v4109 = vxor.u32 %v4100, 2147483648
        %v4110 = vmul.f32 %v4109, 1.442695
        %v4111 = vpow.pop %v4110
        %v4112 = vadd.f32 %v4111, 1.0
        %v4113 = vrcp.pop %v4112
        %v4114 = vmul.f32 1.0, %v4113
        %v4115 = vtanh.pop %v4101
        %v4116 = vxor.u32 %v4102, 2147483648
        %v4117 = vmul.f32 %v4116, 1.442695
        %v4118 = vpow.pop %v4117
        %v4119 = vadd.f32 %v4118, 1.0
        %v4120 = vrcp.pop %v4119
        %v4121 = vmul.f32 1.0, %v4120
        %v4123 = vrot.slane %v3998, 7
        %v4125 = vmul.f32 %v4114, %v4123
        %v4126 = vmul.f32 %v4108, %v4115
        %v4127 = vadd.f32 %v4125, %v4126
        %v4128 = vtanh.pop %v4127
        %v4129 = vmul.f32 %v4121, %v4128
        %v4130 = vpack.c.bf16 %v4129, %v4129
        %v4132 = vshrl.u32 %v4130, 16
        %v4134 = vrot.slane %v4132, 2
        %4136 = vmatprep.subr.bf16.mxu0 %v3310
        %4137 = vmatpush1.bf16.msra.mxu0 %v3309
        %4138 = vmatprep.subr.bf16.mxu0 %v3314
        %4139 = vmatpush1.bf16.msra.mxu0 %v3313
        %4140 = vmatprep.subr.bf16.mxu0 %v3318
        %4141 = vmatpush1.bf16.msra.mxu0 %v3317
        %4142 = vmatprep.subr.bf16.mxu0 %v3322
        %4143 = vmatpush1.bf16.msra.mxu0 %v3321
        %4144 = vmatprep.subr.bf16.mxu0 %v3326
        %4145 = vmatpush1.bf16.msra.mxu0 %v3325
        %4146 = vmatprep.subr.bf16.mxu0 %v3330
        %4147 = vmatpush1.bf16.msra.mxu0 %v3329
        %4148 = vmatprep.subr.bf16.mxu0 %v3334
        %4149 = vmatpush1.bf16.msra.mxu0 %v3333
        %4150 = vmatprep.subr.bf16.mxu0 %v3338
        %4151 = vmatpush1.bf16.msra.mxu0 %v3337
        %4152 = vmatprep.subr.bf16.mxu0 0
        %4153 = vmatpush1.bf16.msra.mxu0 0
        %4154 = vmatprep.subr.bf16.mxu0 0
        %4155 = vmatpush1.bf16.msra.mxu0 0
        %4156 = vmatprep.subr.bf16.mxu0 0
        %4157 = vmatpush1.bf16.msra.mxu0 0
        %4158 = vmatprep.subr.bf16.mxu0 0
        %4159 = vmatpush1.bf16.msra.mxu0 0
        %4160 = vmatprep.subr.bf16.mxu0 0
        %4161 = vmatpush1.bf16.msra.mxu0 0
        %4162 = vmatprep.subr.bf16.mxu0 0
        %4163 = vmatpush1.bf16.msra.mxu0 0
        %4164 = vmatprep.subr.bf16.mxu0 0
        %4165 = vmatpush1.bf16.msra.mxu0 0
        %4166 = vmatprep.subr.bf16.mxu0 0
        %4167 = vmatpush1.bf16.msra.mxu0 0
        %4168 = vmatprep.mubr.bf16.mxu0 0
        %4169 = vmatmul.mubr.bf16.gmra.mrb[0].mxu0 %v4134
        %v4170 = vpop.f32.mrb[0].mxu0
        %v4171 = vadd.f32 0.0, %v4170
        %v4172 = vpop.f32.mrb[0].mxu0
        %v4173 = vadd.f32 0.0, %v4172
        %v4174 = vpop.f32.mrb[0].mxu0
        %v4175 = vpop.f32.mrb[0].mxu0
        %4176 = vdwg.mxu0
        %4177 = vmatprep.subr.bf16.mxu0 %v3312
        %4178 = vmatpush1.bf16.msra.mxu0 %v3311
        %4179 = vmatprep.subr.bf16.mxu0 %v3316
        %4180 = vmatpush1.bf16.msra.mxu0 %v3315
        %4181 = vmatprep.subr.bf16.mxu0 %v3320
        %4182 = vmatpush1.bf16.msra.mxu0 %v3319
        %4183 = vmatprep.subr.bf16.mxu0 %v3324
        %4184 = vmatpush1.bf16.msra.mxu0 %v3323
        %4185 = vmatprep.subr.bf16.mxu0 %v3328
        %4186 = vmatpush1.bf16.msra.mxu0 %v3327
        %4187 = vmatprep.subr.bf16.mxu0 %v3332
        %4188 = vmatpush1.bf16.msra.mxu0 %v3331
        %4189 = vmatprep.subr.bf16.mxu0 %v3336
        %4190 = vmatpush1.bf16.msra.mxu0 %v3335
        %4191 = vmatprep.subr.bf16.mxu0 %v3340
        %4192 = vmatpush1.bf16.msra.mxu0 %v3339
        %4193 = vmatprep.subr.bf16.mxu0 0
        %4194 = vmatpush1.bf16.msra.mxu0 0
        %4195 = vmatprep.subr.bf16.mxu0 0
        %4196 = vmatpush1.bf16.msra.mxu0 0
        %4197 = vmatprep.subr.bf16.mxu0 0
        %4198 = vmatpush1.bf16.msra.mxu0 0
        %4199 = vmatprep.subr.bf16.mxu0 0
        %4200 = vmatpush1.bf16.msra.mxu0 0
        %4201 = vmatprep.subr.bf16.mxu0 0
        %4202 = vmatpush1.bf16.msra.mxu0 0
        %4203 = vmatprep.subr.bf16.mxu0 0
        %4204 = vmatpush1.bf16.msra.mxu0 0
        %4205 = vmatprep.subr.bf16.mxu0 0
        %4206 = vmatpush1.bf16.msra.mxu0 0
        %4207 = vmatprep.subr.bf16.mxu0 0
        %4208 = vmatpush1.bf16.msra.mxu0 0
        %4209 = vmatprep.mubr.bf16.mxu0 0
        %4210 = vmatmul.mubr.bf16.gmra.mrb[0].mxu0 %v4134
        %v4211 = vpop.f32.mrb[0].mxu0
        %v4212 = vadd.f32 0.0, %v4211
        %v4213 = vpop.f32.mrb[0].mxu0
        %v4214 = vadd.f32 0.0, %v4213
        %v4215 = vpop.f32.mrb[0].mxu0
        %v4216 = vpop.f32.mrb[0].mxu0
        %4217 = vdwg.mxu0
        %v4222 = vrot.slane %v4171, 2
        %v4223 = vrot.slane %v4173, 2
        %v4224 = vrot.slane %v4212, 2
        %v4225 = vrot.slane %v4214, 2
        %v4230 = vadd.f32 %v3202, %v4222
        %v4231 = vadd.f32 %v3203, %v4223
        %v4232 = vadd.f32 %v3204, %v4224
        %v4233 = vadd.f32 %v3205, %v4225
        %v4234 = vxor.u32 %v4230, 2147483648
        %v4235 = vmul.f32 %v4234, 1.442695
        %v4236 = vpow.pop %v4235
        %v4237 = vadd.f32 %v4236, 1.0
        %v4238 = vrcp.pop %v4237
        %v4239 = vmul.f32 1.0, %v4238
        %v4240 = vxor.u32 %v4231, 2147483648
        %v4241 = vmul.f32 %v4240, 1.442695
        %v4242 = vpow.pop %v4241
        %v4243 = vadd.f32 %v4242, 1.0
        %v4244 = vrcp.pop %v4243
        %v4245 = vmul.f32 1.0, %v4244
        %v4246 = vtanh.pop %v4232
        %v4247 = vxor.u32 %v4233, 2147483648
        %v4248 = vmul.f32 %v4247, 1.442695
        %v4249 = vpow.pop %v4248
        %v4250 = vadd.f32 %v4249, 1.0
        %v4251 = vrcp.pop %v4250
        %v4252 = vmul.f32 1.0, %v4251
        %v4254 = vrot.slane %v4127, 7
        %v4256 = vmul.f32 %v4245, %v4254
        %v4257 = vmul.f32 %v4239, %v4246
        %v4258 = vadd.f32 %v4256, %v4257
        %v4259 = vtanh.pop %v4258
        %v4260 = vmul.f32 %v4252, %v4259
        %v4261 = vpack.c.bf16 %v4260, %v4260
        %v4263 = vrot.slane %v4261, 3
        %4265 = vmatprep.subr.bf16.mxu0 %v3310
        %4266 = vmatpush1.bf16.msra.mxu0 %v3309
        %4267 = vmatprep.subr.bf16.mxu0 %v3314
        %4268 = vmatpush1.bf16.msra.mxu0 %v3313
        %4269 = vmatprep.subr.bf16.mxu0 %v3318
        %4270 = vmatpush1.bf16.msra.mxu0 %v3317
        %4271 = vmatprep.subr.bf16.mxu0 %v3322
        %4272 = vmatpush1.bf16.msra.mxu0 %v3321
        %4273 = vmatprep.subr.bf16.mxu0 %v3326
        %4274 = vmatpush1.bf16.msra.mxu0 %v3325
        %4275 = vmatprep.subr.bf16.mxu0 %v3330
        %4276 = vmatpush1.bf16.msra.mxu0 %v3329
        %4277 = vmatprep.subr.bf16.mxu0 %v3334
        %4278 = vmatpush1.bf16.msra.mxu0 %v3333
        %4279 = vmatprep.subr.bf16.mxu0 %v3338
        %4280 = vmatpush1.bf16.msra.mxu0 %v3337
        %4281 = vmatprep.subr.bf16.mxu0 0
        %4282 = vmatpush1.bf16.msra.mxu0 0
        %4283 = vmatprep.subr.bf16.mxu0 0
        %4284 = vmatpush1.bf16.msra.mxu0 0
        %4285 = vmatprep.subr.bf16.mxu0 0
        %4286 = vmatpush1.bf16.msra.mxu0 0
        %4287 = vmatprep.subr.bf16.mxu0 0
        %4288 = vmatpush1.bf16.msra.mxu0 0
        %4289 = vmatprep.subr.bf16.mxu0 0
        %4290 = vmatpush1.bf16.msra.mxu0 0
        %4291 = vmatprep.subr.bf16.mxu0 0
        %4292 = vmatpush1.bf16.msra.mxu0 0
        %4293 = vmatprep.subr.bf16.mxu0 0
        %4294 = vmatpush1.bf16.msra.mxu0 0
        %4295 = vmatprep.subr.bf16.mxu0 0
        %4296 = vmatpush1.bf16.msra.mxu0 0
        %4297 = vmatprep.mubr.bf16.mxu0 0
        %4298 = vmatmul.mubr.bf16.gmra.mrb[0].mxu0 %v4263
        %v4299 = vpop.f32.mrb[0].mxu0
        %v4300 = vadd.f32 0.0, %v4299
        %v4301 = vpop.f32.mrb[0].mxu0
        %v4302 = vadd.f32 0.0, %v4301
        %v4303 = vpop.f32.mrb[0].mxu0
        %v4304 = vpop.f32.mrb[0].mxu0
        %4305 = vdwg.mxu0
        %4306 = vmatprep.subr.bf16.mxu0 %v3312
        %4307 = vmatpush1.bf16.msra.mxu0 %v3311
        %4308 = vmatprep.subr.bf16.mxu0 %v3316
        %4309 = vmatpush1.bf16.msra.mxu0 %v3315
        %4310 = vmatprep.subr.bf16.mxu0 %v3320
        %4311 = vmatpush1.bf16.msra.mxu0 %v3319
        %4312 = vmatprep.subr.bf16.mxu0 %v3324
        %4313 = vmatpush1.bf16.msra.mxu0 %v3323
        %4314 = vmatprep.subr.bf16.mxu0 %v3328
        %4315 = vmatpush1.bf16.msra.mxu0 %v3327
        %4316 = vmatprep.subr.bf16.mxu0 %v3332
        %4317 = vmatpush1.bf16.msra.mxu0 %v3331
        %4318 = vmatprep.subr.bf16.mxu0 %v3336
        %4319 = vmatpush1.bf16.msra.mxu0 %v3335
        %4320 = vmatprep.subr.bf16.mxu0 %v3340
        %4321 = vmatpush1.bf16.msra.mxu0 %v3339
        %4322 = vmatprep.subr.bf16.mxu0 0
        %4323 = vmatpush1.bf16.msra.mxu0 0
        %4324 = vmatprep.subr.bf16.mxu0 0
        %4325 = vmatpush1.bf16.msra.mxu0 0
        %4326 = vmatprep.subr.bf16.mxu0 0
        %4327 = vmatpush1.bf16.msra.mxu0 0
        %4328 = vmatprep.subr.bf16.mxu0 0
        %4329 = vmatpush1.bf16.msra.mxu0 0
        %4330 = vmatprep.subr.bf16.mxu0 0
        %4331 = vmatpush1.bf16.msra.mxu0 0
        %4332 = vmatprep.subr.bf16.mxu0 0
        %4333 = vmatpush1.bf16.msra.mxu0 0
        %4334 = vmatprep.subr.bf16.mxu0 0
        %4335 = vmatpush1.bf16.msra.mxu0 0
        %4336 = vmatprep.subr.bf16.mxu0 0
        %4337 = vmatpush1.bf16.msra.mxu0 0
        %4338 = vmatprep.mubr.bf16.mxu0 0
        %4339 = vmatmul.mubr.bf16.gmra.mrb[0].mxu0 %v4263
        %v4340 = vpop.f32.mrb[0].mxu0
        %v4341 = vadd.f32 0.0, %v4340
        %v4342 = vpop.f32.mrb[0].mxu0
        %v4343 = vadd.f32 0.0, %v4342
        %v4344 = vpop.f32.mrb[0].mxu0
        %v4345 = vpop.f32.mrb[0].mxu0
        %4346 = vdwg.mxu0
        %v4351 = vrot.slane %v4300, 1
        %v4352 = vrot.slane %v4302, 1
        %v4353 = vrot.slane %v4341, 1
        %v4354 = vrot.slane %v4343, 1
        %v4359 = vadd.f32 %v3202, %v4351
        %v4360 = vadd.f32 %v3203, %v4352
        %v4361 = vadd.f32 %v3204, %v4353
        %v4362 = vadd.f32 %v3205, %v4354
        %v4363 = vxor.u32 %v4359, 2147483648
        %v4364 = vmul.f32 %v4363, 1.442695
        %v4365 = vpow.pop %v4364
        %v4366 = vadd.f32 %v4365, 1.0
        %v4367 = vrcp.pop %v4366
        %v4368 = vmul.f32 1.0, %v4367
        %v4369 = vxor.u32 %v4360, 2147483648
        %v4370 = vmul.f32 %v4369, 1.442695
        %v4371 = vpow.pop %v4370
        %v4372 = vadd.f32 %v4371, 1.0
        %v4373 = vrcp.pop %v4372
        %v4374 = vmul.f32 1.0, %v4373
        %v4375 = vtanh.pop %v4361
        %v4376 = vxor.u32 %v4362, 2147483648
        %v4377 = vmul.f32 %v4376, 1.442695
        %v4378 = vpow.pop %v4377
        %v4379 = vadd.f32 %v4378, 1.0
        %v4380 = vrcp.pop %v4379
        %v4381 = vmul.f32 1.0, %v4380
        %v4383 = vrot.slane %v4258, 7
        %v4385 = vmul.f32 %v4374, %v4383
        %v4386 = vmul.f32 %v4368, %v4375
        %v4387 = vadd.f32 %v4385, %v4386
        %v4388 = vtanh.pop %v4387
        %v4389 = vmul.f32 %v4381, %v4388
        %v4390 = vpack.c.bf16 %v4389, %v4389
        %v4392 = vshrl.u32 %v4390, 16
        %v4394 = vrot.slane %v4392, 3
        %4396 = vmatprep.subr.bf16.mxu0 %v3310
        %4397 = vmatpush1.bf16.msra.mxu0 %v3309
        %4398 = vmatprep.subr.bf16.mxu0 %v3314
        %4399 = vmatpush1.bf16.msra.mxu0 %v3313
        %4400 = vmatprep.subr.bf16.mxu0 %v3318
        %4401 = vmatpush1.bf16.msra.mxu0 %v3317
        %4402 = vmatprep.subr.bf16.mxu0 %v3322
        %4403 = vmatpush1.bf16.msra.mxu0 %v3321
        %4404 = vmatprep.subr.bf16.mxu0 %v3326
        %4405 = vmatpush1.bf16.msra.mxu0 %v3325
        %4406 = vmatprep.subr.bf16.mxu0 %v3330
        %4407 = vmatpush1.bf16.msra.mxu0 %v3329
        %4408 = vmatprep.subr.bf16.mxu0 %v3334
        %4409 = vmatpush1.bf16.msra.mxu0 %v3333
        %4410 = vmatprep.subr.bf16.mxu0 %v3338
        %4411 = vmatpush1.bf16.msra.mxu0 %v3337
        %4412 = vmatprep.subr.bf16.mxu0 0
        %4413 = vmatpush1.bf16.msra.mxu0 0
        %4414 = vmatprep.subr.bf16.mxu0 0
        %4415 = vmatpush1.bf16.msra.mxu0 0
        %4416 = vmatprep.subr.bf16.mxu0 0
        %4417 = vmatpush1.bf16.msra.mxu0 0
        %4418 = vmatprep.subr.bf16.mxu0 0
        %4419 = vmatpush1.bf16.msra.mxu0 0
        %4420 = vmatprep.subr.bf16.mxu0 0
        %4421 = vmatpush1.bf16.msra.mxu0 0
        %4422 = vmatprep.subr.bf16.mxu0 0
        %4423 = vmatpush1.bf16.msra.mxu0 0
        %4424 = vmatprep.subr.bf16.mxu0 0
        %4425 = vmatpush1.bf16.msra.mxu0 0
        %4426 = vmatprep.subr.bf16.mxu0 0
        %4427 = vmatpush1.bf16.msra.mxu0 0
        %4428 = vmatprep.mubr.bf16.mxu0 0
        %4429 = vmatmul.mubr.bf16.gmra.mrb[0].mxu0 %v4394
        %v4430 = vpop.f32.mrb[0].mxu0
        %v4431 = vadd.f32 0.0, %v4430
        %v4432 = vpop.f32.mrb[0].mxu0
        %v4433 = vadd.f32 0.0, %v4432
        %v4434 = vpop.f32.mrb[0].mxu0
        %v4435 = vpop.f32.mrb[0].mxu0
        %4436 = vdwg.mxu0
        %4437 = vmatprep.subr.bf16.mxu0 %v3312
        %4438 = vmatpush1.bf16.msra.mxu0 %v3311
        %4439 = vmatprep.subr.bf16.mxu0 %v3316
        %4440 = vmatpush1.bf16.msra.mxu0 %v3315
        %4441 = vmatprep.subr.bf16.mxu0 %v3320
        %4442 = vmatpush1.bf16.msra.mxu0 %v3319
        %4443 = vmatprep.subr.bf16.mxu0 %v3324
        %4444 = vmatpush1.bf16.msra.mxu0 %v3323
        %4445 = vmatprep.subr.bf16.mxu0 %v3328
        %4446 = vmatpush1.bf16.msra.mxu0 %v3327
        %4447 = vmatprep.subr.bf16.mxu0 %v3332
        %4448 = vmatpush1.bf16.msra.mxu0 %v3331
        %4449 = vmatprep.subr.bf16.mxu0 %v3336
        %4450 = vmatpush1.bf16.msra.mxu0 %v3335
        %4451 = vmatprep.subr.bf16.mxu0 %v3340
        %4452 = vmatpush1.bf16.msra.mxu0 %v3339
        %4453 = vmatprep.subr.bf16.mxu0 0
        %4454 = vmatpush1.bf16.msra.mxu0 0
        %4455 = vmatprep.subr.bf16.mxu0 0
        %4456 = vmatpush1.bf16.msra.mxu0 0
        %4457 = vmatprep.subr.bf16.mxu0 0
        %4458 = vmatpush1.bf16.msra.mxu0 0
        %4459 = vmatprep.subr.bf16.mxu0 0
        %4460 = vmatpush1.bf16.msra.mxu0 0
        %4461 = vmatprep.subr.bf16.mxu0 0
        %4462 = vmatpush1.bf16.msra.mxu0 0
        %4463 = vmatprep.subr.bf16.mxu0 0
        %4464 = vmatpush1.bf16.msra.mxu0 0
        %4465 = vmatprep.subr.bf16.mxu0 0
        %4466 = vmatpush1.bf16.msra.mxu0 0
        %4467 = vmatprep.subr.bf16.mxu0 0
        %4468 = vmatpush1.bf16.msra.mxu0 0
        %4469 = vmatprep.mubr.bf16.mxu0 0
        %4470 = vmatmul.mubr.bf16.gmra.mrb[0].mxu0 %v4394
        %v4471 = vpop.f32.mrb[0].mxu0
        %v4472 = vadd.f32 0.0, %v4471
        %v4473 = vpop.f32.mrb[0].mxu0
        %v4474 = vadd.f32 0.0, %v4473
        %v4475 = vpop.f32.mrb[0].mxu0
        %v4476 = vpop.f32.mrb[0].mxu0
        %4477 = vdwg.mxu0
        %v4478 = vadd.f32 %v3206, %v4431
        %v4479 = vadd.f32 %v3207, %v4433
        %v4480 = vadd.f32 %v3208, %v4472
        %v4481 = vadd.f32 %v3209, %v4474
        %v4482 = vxor.u32 %v4478, 2147483648
        %v4483 = vmul.f32 %v4482, 1.442695
        %v4484 = vpow.pop %v4483
        %v4485 = vadd.f32 %v4484, 1.0
        %v4486 = vrcp.pop %v4485
        %v4487 = vmul.f32 1.0, %v4486
        %v4488 = vxor.u32 %v4479, 2147483648
        %v4489 = vmul.f32 %v4488, 1.442695
        %v4490 = vpow.pop %v4489
        %v4491 = vadd.f32 %v4490, 1.0
        %v4492 = vrcp.pop %v4491
        %v4493 = vmul.f32 1.0, %v4492
        %v4494 = vtanh.pop %v4480
        %v4495 = vxor.u32 %v4481, 2147483648
        %v4496 = vmul.f32 %v4495, 1.442695
        %v4497 = vpow.pop %v4496
        %v4498 = vadd.f32 %v4497, 1.0
        %v4499 = vrcp.pop %v4498
        %v4500 = vmul.f32 1.0, %v4499
        %v4502 = vrot.slane %v4387, 7
        %v4504 = vmul.f32 %v4493, %v4502
        %v4505 = vmul.f32 %v4487, %v4494
        %v4506 = vadd.f32 %v4504, %v4505
        %v4507 = vtanh.pop %v4506
        %v4508 = vmul.f32 %v4500, %v4507
        %v4509 = vpack.c.bf16 %v4508, %v4508
        %4510 = vmatprep.subr.bf16.mxu0 %v3310
        %4511 = vmatpush1.bf16.msra.mxu0 %v3309
        %4512 = vmatprep.subr.bf16.mxu0 %v3314
        %4513 = vmatpush1.bf16.msra.mxu0 %v3313
        %4514 = vmatprep.subr.bf16.mxu0 %v3318
        %4515 = vmatpush1.bf16.msra.mxu0 %v3317
        %4516 = vmatprep.subr.bf16.mxu0 %v3322
        %4517 = vmatpush1.bf16.msra.mxu0 %v3321
        %4518 = vmatprep.subr.bf16.mxu0 %v3326
        %4519 = vmatpush1.bf16.msra.mxu0 %v3325
        %4520 = vmatprep.subr.bf16.mxu0 %v3330
        %4521 = vmatpush1.bf16.msra.mxu0 %v3329
        %4522 = vmatprep.subr.bf16.mxu0 %v3334
        %4523 = vmatpush1.bf16.msra.mxu0 %v3333
        %4524 = vmatprep.subr.bf16.mxu0 %v3338
        %4525 = vmatpush1.bf16.msra.mxu0 %v3337
        %4526 = vmatprep.subr.bf16.mxu0 0
        %4527 = vmatpush1.bf16.msra.mxu0 0
        %4528 = vmatprep.subr.bf16.mxu0 0
        %4529 = vmatpush1.bf16.msra.mxu0 0
        %4530 = vmatprep.subr.bf16.mxu0 0
        %4531 = vmatpush1.bf16.msra.mxu0 0
        %4532 = vmatprep.subr.bf16.mxu0 0
        %4533 = vmatpush1.bf16.msra.mxu0 0
        %4534 = vmatprep.subr.bf16.mxu0 0
        %4535 = vmatpush1.bf16.msra.mxu0 0
        %4536 = vmatprep.subr.bf16.mxu0 0
        %4537 = vmatpush1.bf16.msra.mxu0 0
        %4538 = vmatprep.subr.bf16.mxu0 0
        %4539 = vmatpush1.bf16.msra.mxu0 0
        %4540 = vmatprep.subr.bf16.mxu0 0
        %4541 = vmatpush1.bf16.msra.mxu0 0
        %4542 = vmatprep.mubr.bf16.mxu0 0
        %4543 = vmatmul.mubr.bf16.gmra.mrb[0].mxu0 %v4509
        %v4544 = vpop.f32.mrb[0].mxu0
        %v4545 = vadd.f32 0.0, %v4544
        %v4546 = vpop.f32.mrb[0].mxu0
        %v4547 = vadd.f32 0.0, %v4546
        %v4548 = vpop.f32.mrb[0].mxu0
        %v4549 = vpop.f32.mrb[0].mxu0
        %4550 = vdwg.mxu0
        %4551 = vmatprep.subr.bf16.mxu0 %v3312
        %4552 = vmatpush1.bf16.msra.mxu0 %v3311
        %4553 = vmatprep.subr.bf16.mxu0 %v3316
        %4554 = vmatpush1.bf16.msra.mxu0 %v3315
        %4555 = vmatprep.subr.bf16.mxu0 %v3320
        %4556 = vmatpush1.bf16.msra.mxu0 %v3319
        %4557 = vmatprep.subr.bf16.mxu0 %v3324
        %4558 = vmatpush1.bf16.msra.mxu0 %v3323
        %4559 = vmatprep.subr.bf16.mxu0 %v3328
        %4560 = vmatpush1.bf16.msra.mxu0 %v3327
        %4561 = vmatprep.subr.bf16.mxu0 %v3332
        %4562 = vmatpush1.bf16.msra.mxu0 %v3331
        %4563 = vmatprep.subr.bf16.mxu0 %v3336
        %4564 = vmatpush1.bf16.msra.mxu0 %v3335
        %4565 = vmatprep.subr.bf16.mxu0 %v3340
        %4566 = vmatpush1.bf16.msra.mxu0 %v3339
        %4567 = vmatprep.subr.bf16.mxu0 0
        %4568 = vmatpush1.bf16.msra.mxu0 0
        %4569 = vmatprep.subr.bf16.mxu0 0
        %4570 = vmatpush1.bf16.msra.mxu0 0
        %4571 = vmatprep.subr.bf16.mxu0 0
        %4572 = vmatpush1.bf16.msra.mxu0 0
        %4573 = vmatprep.subr.bf16.mxu0 0
        %4574 = vmatpush1.bf16.msra.mxu0 0
        %4575 = vmatprep.subr.bf16.mxu0 0
        %4576 = vmatpush1.bf16.msra.mxu0 0
        %4577 = vmatprep.subr.bf16.mxu0 0
        %4578 = vmatpush1.bf16.msra.mxu0 0
        %4579 = vmatprep.subr.bf16.mxu0 0
        %4580 = vmatpush1.bf16.msra.mxu0 0
        %4581 = vmatprep.subr.bf16.mxu0 0
        %4582 = vmatpush1.bf16.msra.mxu0 0
        %4583 = vmatprep.mubr.bf16.mxu0 0
        %4584 = vmatmul.mubr.bf16.gmra.mrb[0].mxu0 %v4509
        %v4585 = vpop.f32.mrb[0].mxu0
        %v4586 = vadd.f32 0.0, %v4585
        %v4587 = vpop.f32.mrb[0].mxu0
        %v4588 = vadd.f32 0.0, %v4587
        %v4589 = vpop.f32.mrb[0].mxu0
        %v4590 = vpop.f32.mrb[0].mxu0
        %4591 = vdwg.mxu0
        %v4596 = vrot.slane %v4545, 7
        %v4597 = vrot.slane %v4547, 7
        %v4598 = vrot.slane %v4586, 7
        %v4599 = vrot.slane %v4588, 7
        %v4604 = vadd.f32 %v3206, %v4596
        %v4605 = vadd.f32 %v3207, %v4597
        %v4606 = vadd.f32 %v3208, %v4598
        %v4607 = vadd.f32 %v3209, %v4599
        %v4608 = vxor.u32 %v4604, 2147483648
        %v4609 = vmul.f32 %v4608, 1.442695
        %v4610 = vpow.pop %v4609
        %v4611 = vadd.f32 %v4610, 1.0
        %v4612 = vrcp.pop %v4611
        %v4613 = vmul.f32 1.0, %v4612
        %v4614 = vxor.u32 %v4605, 2147483648
        %v4615 = vmul.f32 %v4614, 1.442695
        %v4616 = vpow.pop %v4615
        %v4617 = vadd.f32 %v4616, 1.0
        %v4618 = vrcp.pop %v4617
        %v4619 = vmul.f32 1.0, %v4618
        %v4620 = vtanh.pop %v4606
        %v4621 = vxor.u32 %v4607, 2147483648
        %v4622 = vmul.f32 %v4621, 1.442695
        %v4623 = vpow.pop %v4622
        %v4624 = vadd.f32 %v4623, 1.0
        %v4625 = vrcp.pop %v4624
        %v4626 = vmul.f32 1.0, %v4625
        %v4628 = vrot.slane %v4506, 7
        %v4630 = vmul.f32 %v4619, %v4628
        %v4631 = vmul.f32 %v4613, %v4620
        %v4632 = vadd.f32 %v4630, %v4631
        %v4633 = vtanh.pop %v4632
        %v4634 = vmul.f32 %v4626, %v4633
        %v4635 = vpack.c.bf16 %v4634, %v4634
        %v4637 = vshrl.u32 %v4635, 16
        %4640 = vmatprep.subr.bf16.mxu0 %v3310
        %4641 = vmatpush1.bf16.msra.mxu0 %v3309
        %4642 = vmatprep.subr.bf16.mxu0 %v3314
        %4643 = vmatpush1.bf16.msra.mxu0 %v3313
        %4644 = vmatprep.subr.bf16.mxu0 %v3318
        %4645 = vmatpush1.bf16.msra.mxu0 %v3317
        %4646 = vmatprep.subr.bf16.mxu0 %v3322
        %4647 = vmatpush1.bf16.msra.mxu0 %v3321
        %4648 = vmatprep.subr.bf16.mxu0 %v3326
        %4649 = vmatpush1.bf16.msra.mxu0 %v3325
        %4650 = vmatprep.subr.bf16.mxu0 %v3330
        %4651 = vmatpush1.bf16.msra.mxu0 %v3329
        %4652 = vmatprep.subr.bf16.mxu0 %v3334
        %4653 = vmatpush1.bf16.msra.mxu0 %v3333
        %4654 = vmatprep.subr.bf16.mxu0 %v3338
        %4655 = vmatpush1.bf16.msra.mxu0 %v3337
        %4656 = vmatprep.subr.bf16.mxu0 0
        %4657 = vmatpush1.bf16.msra.mxu0 0
        %4658 = vmatprep.subr.bf16.mxu0 0
        %4659 = vmatpush1.bf16.msra.mxu0 0
        %4660 = vmatprep.subr.bf16.mxu0 0
        %4661 = vmatpush1.bf16.msra.mxu0 0
        %4662 = vmatprep.subr.bf16.mxu0 0
        %4663 = vmatpush1.bf16.msra.mxu0 0
        %4664 = vmatprep.subr.bf16.mxu0 0
        %4665 = vmatpush1.bf16.msra.mxu0 0
        %4666 = vmatprep.subr.bf16.mxu0 0
        %4667 = vmatpush1.bf16.msra.mxu0 0
        %4668 = vmatprep.subr.bf16.mxu0 0
        %4669 = vmatpush1.bf16.msra.mxu0 0
        %4670 = vmatprep.subr.bf16.mxu0 0
        %4671 = vmatpush1.bf16.msra.mxu0 0
        %4672 = vmatprep.mubr.bf16.mxu0 0
        %4673 = vmatmul.mubr.bf16.gmra.mrb[0].mxu0 %v4637
        %v4674 = vpop.f32.mrb[0].mxu0
        %v4675 = vadd.f32 0.0, %v4674
        %v4676 = vpop.f32.mrb[0].mxu0
        %v4677 = vadd.f32 0.0, %v4676
        %v4678 = vpop.f32.mrb[0].mxu0
        %v4679 = vpop.f32.mrb[0].mxu0
        %4680 = vdwg.mxu0
        %4681 = vmatprep.subr.bf16.mxu0 %v3312
        %4682 = vmatpush1.bf16.msra.mxu0 %v3311
        %4683 = vmatprep.subr.bf16.mxu0 %v3316
        %4684 = vmatpush1.bf16.msra.mxu0 %v3315
        %4685 = vmatprep.subr.bf16.mxu0 %v3320
        %4686 = vmatpush1.bf16.msra.mxu0 %v3319
        %4687 = vmatprep.subr.bf16.mxu0 %v3324
        %4688 = vmatpush1.bf16.msra.mxu0 %v3323
        %4689 = vmatprep.subr.bf16.mxu0 %v3328
        %4690 = vmatpush1.bf16.msra.mxu0 %v3327
        %4691 = vmatprep.subr.bf16.mxu0 %v3332
        %4692 = vmatpush1.bf16.msra.mxu0 %v3331
        %4693 = vmatprep.subr.bf16.mxu0 %v3336
        %4694 = vmatpush1.bf16.msra.mxu0 %v3335
        %4695 = vmatprep.subr.bf16.mxu0 %v3340
        %4696 = vmatpush1.bf16.msra.mxu0 %v3339
        %4697 = vmatprep.subr.bf16.mxu0 0
        %4698 = vmatpush1.bf16.msra.mxu0 0
        %4699 = vmatprep.subr.bf16.mxu0 0
        %4700 = vmatpush1.bf16.msra.mxu0 0
        %4701 = vmatprep.subr.bf16.mxu0 0
        %4702 = vmatpush1.bf16.msra.mxu0 0
        %4703 = vmatprep.subr.bf16.mxu0 0
        %4704 = vmatpush1.bf16.msra.mxu0 0
        %4705 = vmatprep.subr.bf16.mxu0 0
        %4706 = vmatpush1.bf16.msra.mxu0 0
        %4707 = vmatprep.subr.bf16.mxu0 0
        %4708 = vmatpush1.bf16.msra.mxu0 0
        %4709 = vmatprep.subr.bf16.mxu0 0
        %4710 = vmatpush1.bf16.msra.mxu0 0
        %4711 = vmatprep.subr.bf16.mxu0 0
        %4712 = vmatpush1.bf16.msra.mxu0 0
        %4713 = vmatprep.mubr.bf16.mxu0 0
        %4714 = vmatmul.mubr.bf16.gmra.mrb[0].mxu0 %v4637
        %v4715 = vpop.f32.mrb[0].mxu0
        %v4716 = vadd.f32 0.0, %v4715
        %v4717 = vpop.f32.mrb[0].mxu0
        %v4718 = vadd.f32 0.0, %v4717
        %v4719 = vpop.f32.mrb[0].mxu0
        %v4720 = vpop.f32.mrb[0].mxu0
        %4721 = vdwg.mxu0
        %v4726 = vrot.slane %v4675, 6
        %v4727 = vrot.slane %v4677, 6
        %v4728 = vrot.slane %v4716, 6
        %v4729 = vrot.slane %v4718, 6
        %v4734 = vadd.f32 %v3206, %v4726
        %v4735 = vadd.f32 %v3207, %v4727
        %v4736 = vadd.f32 %v3208, %v4728
        %v4737 = vadd.f32 %v3209, %v4729
        %v4738 = vxor.u32 %v4734, 2147483648
        %v4739 = vmul.f32 %v4738, 1.442695
        %v4740 = vpow.pop %v4739
        %v4741 = vadd.f32 %v4740, 1.0
        %v4742 = vrcp.pop %v4741
        %v4743 = vmul.f32 1.0, %v4742
        %v4744 = vxor.u32 %v4735, 2147483648
        %v4745 = vmul.f32 %v4744, 1.442695
        %v4746 = vpow.pop %v4745
        %v4747 = vadd.f32 %v4746, 1.0
        %v4748 = vrcp.pop %v4747
        %v4749 = vmul.f32 1.0, %v4748
        %v4750 = vtanh.pop %v4736
        %v4751 = vxor.u32 %v4737, 2147483648
        %v4752 = vmul.f32 %v4751, 1.442695
        %v4753 = vpow.pop %v4752
        %v4754 = vadd.f32 %v4753, 1.0
        %v4755 = vrcp.pop %v4754
        %v4756 = vmul.f32 1.0, %v4755
        %v4758 = vrot.slane %v4632, 7
        %v4760 = vmul.f32 %v4749, %v4758
        %v4761 = vmul.f32 %v4743, %v4750
        %v4762 = vadd.f32 %v4760, %v4761
        %v4763 = vtanh.pop %v4762
        %v4764 = vmul.f32 %v4756, %v4763
        %v4765 = vpack.c.bf16 %v4764, %v4764
        %v4767 = vrot.slane %v4765, 1
        %4769 = vmatprep.subr.bf16.mxu0 %v3310
        %4770 = vmatpush1.bf16.msra.mxu0 %v3309
        %4771 = vmatprep.subr.bf16.mxu0 %v3314
        %4772 = vmatpush1.bf16.msra.mxu0 %v3313
        %4773 = vmatprep.subr.bf16.mxu0 %v3318
        %4774 = vmatpush1.bf16.msra.mxu0 %v3317
        %4775 = vmatprep.subr.bf16.mxu0 %v3322
        %4776 = vmatpush1.bf16.msra.mxu0 %v3321
        %4777 = vmatprep.subr.bf16.mxu0 %v3326
        %4778 = vmatpush1.bf16.msra.mxu0 %v3325
        %4779 = vmatprep.subr.bf16.mxu0 %v3330
        %4780 = vmatpush1.bf16.msra.mxu0 %v3329
        %4781 = vmatprep.subr.bf16.mxu0 %v3334
        %4782 = vmatpush1.bf16.msra.mxu0 %v3333
        %4783 = vmatprep.subr.bf16.mxu0 %v3338
        %4784 = vmatpush1.bf16.msra.mxu0 %v3337
        %4785 = vmatprep.subr.bf16.mxu0 0
        %4786 = vmatpush1.bf16.msra.mxu0 0
        %4787 = vmatprep.subr.bf16.mxu0 0
        %4788 = vmatpush1.bf16.msra.mxu0 0
        %4789 = vmatprep.subr.bf16.mxu0 0
        %4790 = vmatpush1.bf16.msra.mxu0 0
        %4791 = vmatprep.subr.bf16.mxu0 0
        %4792 = vmatpush1.bf16.msra.mxu0 0
        %4793 = vmatprep.subr.bf16.mxu0 0
        %4794 = vmatpush1.bf16.msra.mxu0 0
        %4795 = vmatprep.subr.bf16.mxu0 0
        %4796 = vmatpush1.bf16.msra.mxu0 0
        %4797 = vmatprep.subr.bf16.mxu0 0
        %4798 = vmatpush1.bf16.msra.mxu0 0
        %4799 = vmatprep.subr.bf16.mxu0 0
        %4800 = vmatpush1.bf16.msra.mxu0 0
        %4801 = vmatprep.mubr.bf16.mxu0 0
        %4802 = vmatmul.mubr.bf16.gmra.mrb[0].mxu0 %v4767
        %v4803 = vpop.f32.mrb[0].mxu0
        %v4804 = vadd.f32 0.0, %v4803
        %v4805 = vpop.f32.mrb[0].mxu0
        %v4806 = vadd.f32 0.0, %v4805
        %v4807 = vpop.f32.mrb[0].mxu0
        %v4808 = vpop.f32.mrb[0].mxu0
        %4809 = vdwg.mxu0
        %4810 = vmatprep.subr.bf16.mxu0 %v3312
        %4811 = vmatpush1.bf16.msra.mxu0 %v3311
        %4812 = vmatprep.subr.bf16.mxu0 %v3316
        %4813 = vmatpush1.bf16.msra.mxu0 %v3315
        %4814 = vmatprep.subr.bf16.mxu0 %v3320
        %4815 = vmatpush1.bf16.msra.mxu0 %v3319
        %4816 = vmatprep.subr.bf16.mxu0 %v3324
        %4817 = vmatpush1.bf16.msra.mxu0 %v3323
        %4818 = vmatprep.subr.bf16.mxu0 %v3328
        %4819 = vmatpush1.bf16.msra.mxu0 %v3327
        %4820 = vmatprep.subr.bf16.mxu0 %v3332
        %4821 = vmatpush1.bf16.msra.mxu0 %v3331
        %4822 = vmatprep.subr.bf16.mxu0 %v3336
        %4823 = vmatpush1.bf16.msra.mxu0 %v3335
        %4824 = vmatprep.subr.bf16.mxu0 %v3340
        %4825 = vmatpush1.bf16.msra.mxu0 %v3339
        %4826 = vmatprep.subr.bf16.mxu0 0
        %4827 = vmatpush1.bf16.msra.mxu0 0
        %4828 = vmatprep.subr.bf16.mxu0 0
        %4829 = vmatpush1.bf16.msra.mxu0 0
        %4830 = vmatprep.subr.bf16.mxu0 0
        %4831 = vmatpush1.bf16.msra.mxu0 0
        %4832 = vmatprep.subr.bf16.mxu0 0
        %4833 = vmatpush1.bf16.msra.mxu0 0
        %4834 = vmatprep.subr.bf16.mxu0 0
        %4835 = vmatpush1.bf16.msra.mxu0 0
        %4836 = vmatprep.subr.bf16.mxu0 0
        %4837 = vmatpush1.bf16.msra.mxu0 0
        %4838 = vmatprep.subr.bf16.mxu0 0
        %4839 = vmatpush1.bf16.msra.mxu0 0
        %4840 = vmatprep.subr.bf16.mxu0 0
        %4841 = vmatpush1.bf16.msra.mxu0 0
        %4842 = vmatprep.mubr.bf16.mxu0 0
        %4843 = vmatmul.mubr.bf16.gmra.mrb[0].mxu0 %v4767
        %v4844 = vpop.f32.mrb[0].mxu0
        %v4845 = vadd.f32 0.0, %v4844
        %v4846 = vpop.f32.mrb[0].mxu0
        %v4847 = vadd.f32 0.0, %v4846
        %v4848 = vpop.f32.mrb[0].mxu0
        %v4849 = vpop.f32.mrb[0].mxu0
        %4850 = vdwg.mxu0
        %v4855 = vrot.slane %v4804, 5
        %v4856 = vrot.slane %v4806, 5
        %v4857 = vrot.slane %v4845, 5
        %v4858 = vrot.slane %v4847, 5
        %v4863 = vadd.f32 %v3206, %v4855
        %v4864 = vadd.f32 %v3207, %v4856
        %v4865 = vadd.f32 %v3208, %v4857
        %v4866 = vadd.f32 %v3209, %v4858
        %v4867 = vxor.u32 %v4863, 2147483648
        %v4868 = vmul.f32 %v4867, 1.442695
        %v4869 = vpow.pop %v4868
        %v4870 = vadd.f32 %v4869, 1.0
        %v4871 = vrcp.pop %v4870
        %v4872 = vmul.f32 1.0, %v4871
        %v4873 = vxor.u32 %v4864, 2147483648
        %v4874 = vmul.f32 %v4873, 1.442695
        %v4875 = vpow.pop %v4874
        %v4876 = vadd.f32 %v4875, 1.0
        %v4877 = vrcp.pop %v4876
        %v4878 = vmul.f32 1.0, %v4877
        %v4879 = vtanh.pop %v4865
        %v4880 = vxor.u32 %v4866, 2147483648
        %v4881 = vmul.f32 %v4880, 1.442695
        %v4882 = vpow.pop %v4881
        %v4883 = vadd.f32 %v4882, 1.0
        %v4884 = vrcp.pop %v4883
        %v4885 = vmul.f32 1.0, %v4884
        %v4887 = vrot.slane %v4762, 7
        %v4889 = vmul.f32 %v4878, %v4887
        %v4890 = vmul.f32 %v4872, %v4879
        %v4891 = vadd.f32 %v4889, %v4890
        %v4892 = vtanh.pop %v4891
        %v4893 = vmul.f32 %v4885, %v4892
        %v4894 = vpack.c.bf16 %v4893, %v4893
        %v4896 = vshrl.u32 %v4894, 16
        %v4898 = vrot.slane %v4896, 1
        %4900 = vmatprep.subr.bf16.mxu0 %v3310
        %4901 = vmatpush1.bf16.msra.mxu0 %v3309
        %4902 = vmatprep.subr.bf16.mxu0 %v3314
        %4903 = vmatpush1.bf16.msra.mxu0 %v3313
        %4904 = vmatprep.subr.bf16.mxu0 %v3318
        %4905 = vmatpush1.bf16.msra.mxu0 %v3317
        %4906 = vmatprep.subr.bf16.mxu0 %v3322
        %4907 = vmatpush1.bf16.msra.mxu0 %v3321
        %4908 = vmatprep.subr.bf16.mxu0 %v3326
        %4909 = vmatpush1.bf16.msra.mxu0 %v3325
        %4910 = vmatprep.subr.bf16.mxu0 %v3330
        %4911 = vmatpush1.bf16.msra.mxu0 %v3329
        %4912 = vmatprep.subr.bf16.mxu0 %v3334
        %4913 = vmatpush1.bf16.msra.mxu0 %v3333
        %4914 = vmatprep.subr.bf16.mxu0 %v3338
        %4915 = vmatpush1.bf16.msra.mxu0 %v3337
        %4916 = vmatprep.subr.bf16.mxu0 0
        %4917 = vmatpush1.bf16.msra.mxu0 0
        %4918 = vmatprep.subr.bf16.mxu0 0
        %4919 = vmatpush1.bf16.msra.mxu0 0
        %4920 = vmatprep.subr.bf16.mxu0 0
        %4921 = vmatpush1.bf16.msra.mxu0 0
        %4922 = vmatprep.subr.bf16.mxu0 0
        %4923 = vmatpush1.bf16.msra.mxu0 0
        %4924 = vmatprep.subr.bf16.mxu0 0
        %4925 = vmatpush1.bf16.msra.mxu0 0
        %4926 = vmatprep.subr.bf16.mxu0 0
        %4927 = vmatpush1.bf16.msra.mxu0 0
        %4928 = vmatprep.subr.bf16.mxu0 0
        %4929 = vmatpush1.bf16.msra.mxu0 0
        %4930 = vmatprep.subr.bf16.mxu0 0
        %4931 = vmatpush1.bf16.msra.mxu0 0
        %4932 = vmatprep.mubr.bf16.mxu0 0
        %4933 = vmatmul.mubr.bf16.gmra.mrb[0].mxu0 %v4898
        %v4934 = vpop.f32.mrb[0].mxu0
        %v4935 = vadd.f32 0.0, %v4934
        %v4936 = vpop.f32.mrb[0].mxu0
        %v4937 = vadd.f32 0.0, %v4936
        %v4938 = vpop.f32.mrb[0].mxu0
        %v4939 = vpop.f32.mrb[0].mxu0
        %4940 = vdwg.mxu0
        %4941 = vmatprep.subr.bf16.mxu0 %v3312
        %4942 = vmatpush1.bf16.msra.mxu0 %v3311
        %4943 = vmatprep.subr.bf16.mxu0 %v3316
        %4944 = vmatpush1.bf16.msra.mxu0 %v3315
        %4945 = vmatprep.subr.bf16.mxu0 %v3320
        %4946 = vmatpush1.bf16.msra.mxu0 %v3319
        %4947 = vmatprep.subr.bf16.mxu0 %v3324
        %4948 = vmatpush1.bf16.msra.mxu0 %v3323
        %4949 = vmatprep.subr.bf16.mxu0 %v3328
        %4950 = vmatpush1.bf16.msra.mxu0 %v3327
        %4951 = vmatprep.subr.bf16.mxu0 %v3332
        %4952 = vmatpush1.bf16.msra.mxu0 %v3331
        %4953 = vmatprep.subr.bf16.mxu0 %v3336
        %4954 = vmatpush1.bf16.msra.mxu0 %v3335
        %4955 = vmatprep.subr.bf16.mxu0 %v3340
        %4956 = vmatpush1.bf16.msra.mxu0 %v3339
        %4957 = vmatprep.subr.bf16.mxu0 0
        %4958 = vmatpush1.bf16.msra.mxu0 0
        %4959 = vmatprep.subr.bf16.mxu0 0
        %4960 = vmatpush1.bf16.msra.mxu0 0
        %4961 = vmatprep.subr.bf16.mxu0 0
        %4962 = vmatpush1.bf16.msra.mxu0 0
        %4963 = vmatprep.subr.bf16.mxu0 0
        %4964 = vmatpush1.bf16.msra.mxu0 0
        %4965 = vmatprep.subr.bf16.mxu0 0
        %4966 = vmatpush1.bf16.msra.mxu0 0
        %4967 = vmatprep.subr.bf16.mxu0 0
        %4968 = vmatpush1.bf16.msra.mxu0 0
        %4969 = vmatprep.subr.bf16.mxu0 0
        %4970 = vmatpush1.bf16.msra.mxu0 0
        %4971 = vmatprep.subr.bf16.mxu0 0
        %4972 = vmatpush1.bf16.msra.mxu0 0
        %4973 = vmatprep.mubr.bf16.mxu0 0
        %4974 = vmatmul.mubr.bf16.gmra.mrb[0].mxu0 %v4898
        %v4975 = vpop.f32.mrb[0].mxu0
        %v4976 = vadd.f32 0.0, %v4975
        %v4977 = vpop.f32.mrb[0].mxu0
        %v4978 = vadd.f32 0.0, %v4977
        %v4979 = vpop.f32.mrb[0].mxu0
        %v4980 = vpop.f32.mrb[0].mxu0
        %4981 = vdwg.mxu0
        %v4986 = vrot.slane %v4935, 4
        %v4987 = vrot.slane %v4937, 4
        %v4988 = vrot.slane %v4976, 4
        %v4989 = vrot.slane %v4978, 4
        %v4994 = vadd.f32 %v3206, %v4986
        %v4995 = vadd.f32 %v3207, %v4987
        %v4996 = vadd.f32 %v3208, %v4988
        %v4997 = vadd.f32 %v3209, %v4989
        %v4998 = vxor.u32 %v4994, 2147483648
        %v4999 = vmul.f32 %v4998, 1.442695
        %v5000 = vpow.pop %v4999
        %v5001 = vadd.f32 %v5000, 1.0
        %v5002 = vrcp.pop %v5001
        %v5003 = vmul.f32 1.0, %v5002
        %v5004 = vxor.u32 %v4995, 2147483648
        %v5005 = vmul.f32 %v5004, 1.442695
        %v5006 = vpow.pop %v5005
        %v5007 = vadd.f32 %v5006, 1.0
        %v5008 = vrcp.pop %v5007
        %v5009 = vmul.f32 1.0, %v5008
        %v5010 = vtanh.pop %v4996
        %v5011 = vxor.u32 %v4997, 2147483648
        %v5012 = vmul.f32 %v5011, 1.442695
        %v5013 = vpow.pop %v5012
        %v5014 = vadd.f32 %v5013, 1.0
        %v5015 = vrcp.pop %v5014
        %v5016 = vmul.f32 1.0, %v5015
        %v5018 = vrot.slane %v4891, 7
        %v5020 = vmul.f32 %v5009, %v5018
        %v5021 = vmul.f32 %v5003, %v5010
        %v5022 = vadd.f32 %v5020, %v5021
        %v5023 = vtanh.pop %v5022
        %v5024 = vmul.f32 %v5016, %v5023
        %v5025 = vpack.c.bf16 %v5024, %v5024
        %v5027 = vrot.slane %v5025, 2
        %5029 = vmatprep.subr.bf16.mxu0 %v3310
        %5030 = vmatpush1.bf16.msra.mxu0 %v3309
        %5031 = vmatprep.subr.bf16.mxu0 %v3314
        %5032 = vmatpush1.bf16.msra.mxu0 %v3313
        %5033 = vmatprep.subr.bf16.mxu0 %v3318
        %5034 = vmatpush1.bf16.msra.mxu0 %v3317
        %5035 = vmatprep.subr.bf16.mxu0 %v3322
        %5036 = vmatpush1.bf16.msra.mxu0 %v3321
        %5037 = vmatprep.subr.bf16.mxu0 %v3326
        %5038 = vmatpush1.bf16.msra.mxu0 %v3325
        %5039 = vmatprep.subr.bf16.mxu0 %v3330
        %5040 = vmatpush1.bf16.msra.mxu0 %v3329
        %5041 = vmatprep.subr.bf16.mxu0 %v3334
        %5042 = vmatpush1.bf16.msra.mxu0 %v3333
        %5043 = vmatprep.subr.bf16.mxu0 %v3338
        %5044 = vmatpush1.bf16.msra.mxu0 %v3337
        %5045 = vmatprep.subr.bf16.mxu0 0
        %5046 = vmatpush1.bf16.msra.mxu0 0
        %5047 = vmatprep.subr.bf16.mxu0 0
        %5048 = vmatpush1.bf16.msra.mxu0 0
        %5049 = vmatprep.subr.bf16.mxu0 0
        %5050 = vmatpush1.bf16.msra.mxu0 0
        %5051 = vmatprep.subr.bf16.mxu0 0
        %5052 = vmatpush1.bf16.msra.mxu0 0
        %5053 = vmatprep.subr.bf16.mxu0 0
        %5054 = vmatpush1.bf16.msra.mxu0 0
        %5055 = vmatprep.subr.bf16.mxu0 0
        %5056 = vmatpush1.bf16.msra.mxu0 0
        %5057 = vmatprep.subr.bf16.mxu0 0
        %5058 = vmatpush1.bf16.msra.mxu0 0
        %5059 = vmatprep.subr.bf16.mxu0 0
        %5060 = vmatpush1.bf16.msra.mxu0 0
        %5061 = vmatprep.mubr.bf16.mxu0 0
        %5062 = vmatmul.mubr.bf16.gmra.mrb[0].mxu0 %v5027
        %v5063 = vpop.f32.mrb[0].mxu0
        %v5064 = vadd.f32 0.0, %v5063
        %v5065 = vpop.f32.mrb[0].mxu0
        %v5066 = vadd.f32 0.0, %v5065
        %v5067 = vpop.f32.mrb[0].mxu0
        %v5068 = vpop.f32.mrb[0].mxu0
        %5069 = vdwg.mxu0
        %5070 = vmatprep.subr.bf16.mxu0 %v3312
        %5071 = vmatpush1.bf16.msra.mxu0 %v3311
        %5072 = vmatprep.subr.bf16.mxu0 %v3316
        %5073 = vmatpush1.bf16.msra.mxu0 %v3315
        %5074 = vmatprep.subr.bf16.mxu0 %v3320
        %5075 = vmatpush1.bf16.msra.mxu0 %v3319
        %5076 = vmatprep.subr.bf16.mxu0 %v3324
        %5077 = vmatpush1.bf16.msra.mxu0 %v3323
        %5078 = vmatprep.subr.bf16.mxu0 %v3328
        %5079 = vmatpush1.bf16.msra.mxu0 %v3327
        %5080 = vmatprep.subr.bf16.mxu0 %v3332
        %5081 = vmatpush1.bf16.msra.mxu0 %v3331
        %5082 = vmatprep.subr.bf16.mxu0 %v3336
        %5083 = vmatpush1.bf16.msra.mxu0 %v3335
        %5084 = vmatprep.subr.bf16.mxu0 %v3340
        %5085 = vmatpush1.bf16.msra.mxu0 %v3339
        %5086 = vmatprep.subr.bf16.mxu0 0
        %5087 = vmatpush1.bf16.msra.mxu0 0
        %5088 = vmatprep.subr.bf16.mxu0 0
        %5089 = vmatpush1.bf16.msra.mxu0 0
        %5090 = vmatprep.subr.bf16.mxu0 0
        %5091 = vmatpush1.bf16.msra.mxu0 0
        %5092 = vmatprep.subr.bf16.mxu0 0
        %5093 = vmatpush1.bf16.msra.mxu0 0
        %5094 = vmatprep.subr.bf16.mxu0 0
        %5095 = vmatpush1.bf16.msra.mxu0 0
        %5096 = vmatprep.subr.bf16.mxu0 0
        %5097 = vmatpush1.bf16.msra.mxu0 0
        %5098 = vmatprep.subr.bf16.mxu0 0
        %5099 = vmatpush1.bf16.msra.mxu0 0
        %5100 = vmatprep.subr.bf16.mxu0 0
        %5101 = vmatpush1.bf16.msra.mxu0 0
        %5102 = vmatprep.mubr.bf16.mxu0 0
        %5103 = vmatmul.mubr.bf16.gmra.mrb[0].mxu0 %v5027
        %v5104 = vpop.f32.mrb[0].mxu0
        %v5105 = vadd.f32 0.0, %v5104
        %v5106 = vpop.f32.mrb[0].mxu0
        %v5107 = vadd.f32 0.0, %v5106
        %v5108 = vpop.f32.mrb[0].mxu0
        %v5109 = vpop.f32.mrb[0].mxu0
        %5110 = vdwg.mxu0
        %v5115 = vrot.slane %v5064, 3
        %v5116 = vrot.slane %v5066, 3
        %v5117 = vrot.slane %v5105, 3
        %v5118 = vrot.slane %v5107, 3
        %v5123 = vadd.f32 %v3206, %v5115
        %v5124 = vadd.f32 %v3207, %v5116
        %v5125 = vadd.f32 %v3208, %v5117
        %v5126 = vadd.f32 %v3209, %v5118
        %v5127 = vxor.u32 %v5123, 2147483648
        %v5128 = vmul.f32 %v5127, 1.442695
        %v5129 = vpow.pop %v5128
        %v5130 = vadd.f32 %v5129, 1.0
        %v5131 = vrcp.pop %v5130
        %v5132 = vmul.f32 1.0, %v5131
        %v5133 = vxor.u32 %v5124, 2147483648
        %v5134 = vmul.f32 %v5133, 1.442695
        %v5135 = vpow.pop %v5134
        %v5136 = vadd.f32 %v5135, 1.0
        %v5137 = vrcp.pop %v5136
        %v5138 = vmul.f32 1.0, %v5137
        %v5139 = vtanh.pop %v5125
        %v5140 = vxor.u32 %v5126, 2147483648
        %v5141 = vmul.f32 %v5140, 1.442695
        %v5142 = vpow.pop %v5141
        %v5143 = vadd.f32 %v5142, 1.0
        %v5144 = vrcp.pop %v5143
        %v5145 = vmul.f32 1.0, %v5144
        %v5147 = vrot.slane %v5022, 7
        %v5149 = vmul.f32 %v5138, %v5147
        %v5150 = vmul.f32 %v5132, %v5139
        %v5151 = vadd.f32 %v5149, %v5150
        %v5152 = vtanh.pop %v5151
        %v5153 = vmul.f32 %v5145, %v5152
        %v5154 = vpack.c.bf16 %v5153, %v5153
        %v5156 = vshrl.u32 %v5154, 16
        %v5158 = vrot.slane %v5156, 2
        %5160 = vmatprep.subr.bf16.mxu0 %v3310
        %5161 = vmatpush1.bf16.msra.mxu0 %v3309
        %5162 = vmatprep.subr.bf16.mxu0 %v3314
        %5163 = vmatpush1.bf16.msra.mxu0 %v3313
        %5164 = vmatprep.subr.bf16.mxu0 %v3318
        %5165 = vmatpush1.bf16.msra.mxu0 %v3317
        %5166 = vmatprep.subr.bf16.mxu0 %v3322
        %5167 = vmatpush1.bf16.msra.mxu0 %v3321
        %5168 = vmatprep.subr.bf16.mxu0 %v3326
        %5169 = vmatpush1.bf16.msra.mxu0 %v3325
        %5170 = vmatprep.subr.bf16.mxu0 %v3330
        %5171 = vmatpush1.bf16.msra.mxu0 %v3329
        %5172 = vmatprep.subr.bf16.mxu0 %v3334
        %5173 = vmatpush1.bf16.msra.mxu0 %v3333
        %5174 = vmatprep.subr.bf16.mxu0 %v3338
        %5175 = vmatpush1.bf16.msra.mxu0 %v3337
        %5176 = vmatprep.subr.bf16.mxu0 0
        %5177 = vmatpush1.bf16.msra.mxu0 0
        %5178 = vmatprep.subr.bf16.mxu0 0
        %5179 = vmatpush1.bf16.msra.mxu0 0
        %5180 = vmatprep.subr.bf16.mxu0 0
        %5181 = vmatpush1.bf16.msra.mxu0 0
        %5182 = vmatprep.subr.bf16.mxu0 0
        %5183 = vmatpush1.bf16.msra.mxu0 0
        %5184 = vmatprep.subr.bf16.mxu0 0
        %5185 = vmatpush1.bf16.msra.mxu0 0
        %5186 = vmatprep.subr.bf16.mxu0 0
        %5187 = vmatpush1.bf16.msra.mxu0 0
        %5188 = vmatprep.subr.bf16.mxu0 0
        %5189 = vmatpush1.bf16.msra.mxu0 0
        %5190 = vmatprep.subr.bf16.mxu0 0
        %5191 = vmatpush1.bf16.msra.mxu0 0
        %5192 = vmatprep.mubr.bf16.mxu0 0
        %5193 = vmatmul.mubr.bf16.gmra.mrb[0].mxu0 %v5158
        %v5194 = vpop.f32.mrb[0].mxu0
        %v5195 = vadd.f32 0.0, %v5194
        %v5196 = vpop.f32.mrb[0].mxu0
        %v5197 = vadd.f32 0.0, %v5196
        %v5198 = vpop.f32.mrb[0].mxu0
        %v5199 = vpop.f32.mrb[0].mxu0
        %5200 = vdwg.mxu0
        %5201 = vmatprep.subr.bf16.mxu0 %v3312
        %5202 = vmatpush1.bf16.msra.mxu0 %v3311
        %5203 = vmatprep.subr.bf16.mxu0 %v3316
        %5204 = vmatpush1.bf16.msra.mxu0 %v3315
        %5205 = vmatprep.subr.bf16.mxu0 %v3320
        %5206 = vmatpush1.bf16.msra.mxu0 %v3319
        %5207 = vmatprep.subr.bf16.mxu0 %v3324
        %5208 = vmatpush1.bf16.msra.mxu0 %v3323
        %5209 = vmatprep.subr.bf16.mxu0 %v3328
        %5210 = vmatpush1.bf16.msra.mxu0 %v3327
        %5211 = vmatprep.subr.bf16.mxu0 %v3332
        %5212 = vmatpush1.bf16.msra.mxu0 %v3331
        %5213 = vmatprep.subr.bf16.mxu0 %v3336
        %5214 = vmatpush1.bf16.msra.mxu0 %v3335
        %5215 = vmatprep.subr.bf16.mxu0 %v3340
        %5216 = vmatpush1.bf16.msra.mxu0 %v3339
        %5217 = vmatprep.subr.bf16.mxu0 0
        %5218 = vmatpush1.bf16.msra.mxu0 0
        %5219 = vmatprep.subr.bf16.mxu0 0
        %5220 = vmatpush1.bf16.msra.mxu0 0
        %5221 = vmatprep.subr.bf16.mxu0 0
        %5222 = vmatpush1.bf16.msra.mxu0 0
        %5223 = vmatprep.subr.bf16.mxu0 0
        %5224 = vmatpush1.bf16.msra.mxu0 0
        %5225 = vmatprep.subr.bf16.mxu0 0
        %5226 = vmatpush1.bf16.msra.mxu0 0
        %5227 = vmatprep.subr.bf16.mxu0 0
        %5228 = vmatpush1.bf16.msra.mxu0 0
        %5229 = vmatprep.subr.bf16.mxu0 0
        %5230 = vmatpush1.bf16.msra.mxu0 0
        %5231 = vmatprep.subr.bf16.mxu0 0
        %5232 = vmatpush1.bf16.msra.mxu0 0
        %5233 = vmatprep.mubr.bf16.mxu0 0
        %5234 = vmatmul.mubr.bf16.gmra.mrb[0].mxu0 %v5158
        %v5235 = vpop.f32.mrb[0].mxu0
        %v5236 = vadd.f32 0.0, %v5235
        %v5237 = vpop.f32.mrb[0].mxu0
        %v5238 = vadd.f32 0.0, %v5237
        %v5239 = vpop.f32.mrb[0].mxu0
        %v5240 = vpop.f32.mrb[0].mxu0
        %5241 = vdwg.mxu0
        %v5246 = vrot.slane %v5195, 2
        %v5247 = vrot.slane %v5197, 2
        %v5248 = vrot.slane %v5236, 2
        %v5249 = vrot.slane %v5238, 2
        %v5254 = vadd.f32 %v3206, %v5246
        %v5255 = vadd.f32 %v3207, %v5247
        %v5256 = vadd.f32 %v3208, %v5248
        %v5257 = vadd.f32 %v3209, %v5249
        %v5258 = vxor.u32 %v5254, 2147483648
        %v5259 = vmul.f32 %v5258, 1.442695
        %v5260 = vpow.pop %v5259
        %v5261 = vadd.f32 %v5260, 1.0
        %v5262 = vrcp.pop %v5261
        %v5263 = vmul.f32 1.0, %v5262
        %v5264 = vxor.u32 %v5255, 2147483648
        %v5265 = vmul.f32 %v5264, 1.442695
        %v5266 = vpow.pop %v5265
        %v5267 = vadd.f32 %v5266, 1.0
        %v5268 = vrcp.pop %v5267
        %v5269 = vmul.f32 1.0, %v5268
        %v5270 = vtanh.pop %v5256
        %v5271 = vxor.u32 %v5257, 2147483648
        %v5272 = vmul.f32 %v5271, 1.442695
        %v5273 = vpow.pop %v5272
        %v5274 = vadd.f32 %v5273, 1.0
        %v5275 = vrcp.pop %v5274
        %v5276 = vmul.f32 1.0, %v5275
        %v5278 = vrot.slane %v5151, 7
        %v5280 = vmul.f32 %v5269, %v5278
        %v5281 = vmul.f32 %v5263, %v5270
        %v5282 = vadd.f32 %v5280, %v5281
        %v5283 = vtanh.pop %v5282
        %v5284 = vmul.f32 %v5276, %v5283
        %v5285 = vpack.c.bf16 %v5284, %v5284
        %v5287 = vrot.slane %v5285, 3
        %5289 = vmatprep.subr.bf16.mxu0 %v3310
        %5290 = vmatpush1.bf16.msra.mxu0 %v3309
        %5291 = vmatprep.subr.bf16.mxu0 %v3314
        %5292 = vmatpush1.bf16.msra.mxu0 %v3313
        %5293 = vmatprep.subr.bf16.mxu0 %v3318
        %5294 = vmatpush1.bf16.msra.mxu0 %v3317
        %5295 = vmatprep.subr.bf16.mxu0 %v3322
        %5296 = vmatpush1.bf16.msra.mxu0 %v3321
        %5297 = vmatprep.subr.bf16.mxu0 %v3326
        %5298 = vmatpush1.bf16.msra.mxu0 %v3325
        %5299 = vmatprep.subr.bf16.mxu0 %v3330
        %5300 = vmatpush1.bf16.msra.mxu0 %v3329
        %5301 = vmatprep.subr.bf16.mxu0 %v3334
        %5302 = vmatpush1.bf16.msra.mxu0 %v3333
        %5303 = vmatprep.subr.bf16.mxu0 %v3338
        %5304 = vmatpush1.bf16.msra.mxu0 %v3337
        %5305 = vmatprep.subr.bf16.mxu0 0
        %5306 = vmatpush1.bf16.msra.mxu0 0
        %5307 = vmatprep.subr.bf16.mxu0 0
        %5308 = vmatpush1.bf16.msra.mxu0 0
        %5309 = vmatprep.subr.bf16.mxu0 0
        %5310 = vmatpush1.bf16.msra.mxu0 0
        %5311 = vmatprep.subr.bf16.mxu0 0
        %5312 = vmatpush1.bf16.msra.mxu0 0
        %5313 = vmatprep.subr.bf16.mxu0 0
        %5314 = vmatpush1.bf16.msra.mxu0 0
        %5315 = vmatprep.subr.bf16.mxu0 0
        %5316 = vmatpush1.bf16.msra.mxu0 0
        %5317 = vmatprep.subr.bf16.mxu0 0
        %5318 = vmatpush1.bf16.msra.mxu0 0
        %5319 = vmatprep.subr.bf16.mxu0 0
        %5320 = vmatpush1.bf16.msra.mxu0 0
        %5321 = vmatprep.mubr.bf16.mxu0 0
        %5322 = vmatmul.mubr.bf16.gmra.mrb[0].mxu0 %v5287
        %v5323 = vpop.f32.mrb[0].mxu0
        %v5324 = vadd.f32 0.0, %v5323
        %v5325 = vpop.f32.mrb[0].mxu0
        %v5326 = vadd.f32 0.0, %v5325
        %v5327 = vpop.f32.mrb[0].mxu0
        %v5328 = vpop.f32.mrb[0].mxu0
        %5329 = vdwg.mxu0
        %5330 = vmatprep.subr.bf16.mxu0 %v3312
        %5331 = vmatpush1.bf16.msra.mxu0 %v3311
        %5332 = vmatprep.subr.bf16.mxu0 %v3316
        %5333 = vmatpush1.bf16.msra.mxu0 %v3315
        %5334 = vmatprep.subr.bf16.mxu0 %v3320
        %5335 = vmatpush1.bf16.msra.mxu0 %v3319
        %5336 = vmatprep.subr.bf16.mxu0 %v3324
        %5337 = vmatpush1.bf16.msra.mxu0 %v3323
        %5338 = vmatprep.subr.bf16.mxu0 %v3328
        %5339 = vmatpush1.bf16.msra.mxu0 %v3327
        %5340 = vmatprep.subr.bf16.mxu0 %v3332
        %5341 = vmatpush1.bf16.msra.mxu0 %v3331
        %5342 = vmatprep.subr.bf16.mxu0 %v3336
        %5343 = vmatpush1.bf16.msra.mxu0 %v3335
        %5344 = vmatprep.subr.bf16.mxu0 %v3340
        %5345 = vmatpush1.bf16.msra.mxu0 %v3339
        %5346 = vmatprep.subr.bf16.mxu0 0
        %5347 = vmatpush1.bf16.msra.mxu0 0
        %5348 = vmatprep.subr.bf16.mxu0 0
        %5349 = vmatpush1.bf16.msra.mxu0 0
        %5350 = vmatprep.subr.bf16.mxu0 0
        %5351 = vmatpush1.bf16.msra.mxu0 0
        %5352 = vmatprep.subr.bf16.mxu0 0
        %5353 = vmatpush1.bf16.msra.mxu0 0
        %5354 = vmatprep.subr.bf16.mxu0 0
        %5355 = vmatpush1.bf16.msra.mxu0 0
        %5356 = vmatprep.subr.bf16.mxu0 0
        %5357 = vmatpush1.bf16.msra.mxu0 0
        %5358 = vmatprep.subr.bf16.mxu0 0
        %5359 = vmatpush1.bf16.msra.mxu0 0
        %5360 = vmatprep.subr.bf16.mxu0 0
        %5361 = vmatpush1.bf16.msra.mxu0 0
        %5362 = vmatprep.mubr.bf16.mxu0 0
        %5363 = vmatmul.mubr.bf16.gmra.mrb[0].mxu0 %v5287
        %v5364 = vpop.f32.mrb[0].mxu0
        %v5365 = vadd.f32 0.0, %v5364
        %v5366 = vpop.f32.mrb[0].mxu0
        %v5367 = vadd.f32 0.0, %v5366
        %v5368 = vpop.f32.mrb[0].mxu0
        %v5369 = vpop.f32.mrb[0].mxu0
        %5370 = vdwg.mxu0
        %v5375 = vrot.slane %v5324, 1
        %v5376 = vrot.slane %v5326, 1
        %v5377 = vrot.slane %v5365, 1
        %v5378 = vrot.slane %v5367, 1
        %v5383 = vadd.f32 %v3206, %v5375
        %v5384 = vadd.f32 %v3207, %v5376
        %v5385 = vadd.f32 %v3208, %v5377
        %v5386 = vadd.f32 %v3209, %v5378
        %v5387 = vxor.u32 %v5383, 2147483648
        %v5388 = vmul.f32 %v5387, 1.442695
        %v5389 = vpow.pop %v5388
        %v5390 = vadd.f32 %v5389, 1.0
        %v5391 = vrcp.pop %v5390
        %v5392 = vmul.f32 1.0, %v5391
        %v5393 = vxor.u32 %v5384, 2147483648
        %v5394 = vmul.f32 %v5393, 1.442695
        %v5395 = vpow.pop %v5394
        %v5396 = vadd.f32 %v5395, 1.0
        %v5397 = vrcp.pop %v5396
        %v5398 = vmul.f32 1.0, %v5397
        %v5399 = vtanh.pop %v5385
        %v5400 = vxor.u32 %v5386, 2147483648
        %v5401 = vmul.f32 %v5400, 1.442695
        %v5402 = vpow.pop %v5401
        %v5403 = vadd.f32 %v5402, 1.0
        %v5404 = vrcp.pop %v5403
        %v5405 = vmul.f32 1.0, %v5404
        %v5407 = vrot.slane %v5282, 7
        %v5409 = vmul.f32 %v5398, %v5407
        %v5410 = vmul.f32 %v5392, %v5399
        %v5411 = vadd.f32 %v5409, %v5410
        %v5412 = vtanh.pop %v5411
        %v5413 = vmul.f32 %v5405, %v5412
        %v5414 = vsel %vm2934, %v3484, %v3610
        %v5415 = vsel %vm2936, %v5414, %v3740
        %v5416 = vsel %vm2938, %v5415, %v3869
        %v5417 = vsel %vm2940, %v5416, %v4000
        %v5418 = vsel %vm2942, %v5417, %v4129
        %v5419 = vsel %vm2944, %v5418, %v4260
        %v5420 = vsel %vm2946, %v5419, %v4389
        %v5421 = vsel %vm2934, %v4508, %v4634
        %v5422 = vsel %vm2936, %v5421, %v4764
        %v5423 = vsel %vm2938, %v5422, %v4893
        %v5424 = vsel %vm2940, %v5423, %v5024
        %v5425 = vsel %vm2942, %v5424, %v5153
        %v5426 = vsel %vm2944, %v5425, %v5284
        %v5427 = vsel %vm2946, %v5426, %v5413
        %5428 = vst [vmem:[%s247] sm:$0xff] %v5420
        %5429 = vst [vmem:[%s247 + $0x8] sm:$0xff] %v5427
        %v5431 = vlaneseq
        %v5432 = vshrl.u32 %v5431, 7
        %v5433 = vsub.s32 0, %v5432
        %v5434 = vrot.slane %v2847, %v5433
        %v5437 = vrot.slane %v5413, 5
        %v5440 = vrot.slane %v5411, 4
        %v5442 = vsel %vm2934, %v2849, %v5434
        %v5443 = vsel %vm2936, %v5442, %v5437
        %v5444 = vsel %vm2938, %v5443, %v5440
        %5445 = vst [vmem:[#allocation2] sm:$0xf] %v5444
        %s5446 = sand.u32 %s159, 1
        %s5447 = scalar_lea.sflag [#allocation4], %s5446
        %s5448 = sand.u32 %s159, 1
        %s5449 = smul.addr %s5448, 16
        %s5450 = scalar_lea.vmem [#allocation3], %s5449
        // Predicated region
        $region49: #{decoder_forward.1} parent=43 // pred_check
          %p5451 = pneg %p169
        $region50: #{decoder_forward.1} parent=43 // pred_check_branch
          %5453 = sbr.rel (%p5451) target = $region52
        $region51: #{decoder_forward.1} parent=43 // pred_region
          %s5454 = smul.u32 2, %s20
          %s5456 = ssub.s32 256, 256
          %5457 = vsyncadd %s5447, %s5456
          %s5458 = smul.addr %s5454, 128
          %s5459 = scalar_lea.hbm %s6, %s5458
          %s5460 = sshll.u32 %s5450, 4
          %s5461 = int_to_ptr.vmem [resolvable:$true] %s5460
          %5466 = dma.vmem_to_hbm [thread:$0]  %s5461, 256, %s5459, %s5447, 128, 128, 8
        $region52: #{decoder_forward.1} parent=43 // pred_fallthru
          _
      $region44: #{decoder_forward.1} parent=5 // pred_fallthru
        _
      %p5467 = scmp.le.s32.totalorder 2, %s15
      // Predicated region
      $region53: #{decoder_forward.1} parent=5 // pred_check
        %p5468 = pneg %p5467
      $region54: #{decoder_forward.1} parent=5 // pred_check_branch
        %5470 = sbr.rel (%p5468) target = $region56
      $region55: #{decoder_forward.1} parent=5 // pred_region
        %s5471 = ssub.s32 %s15, 2
        // Predicated region
        $region57: #{decoder_forward.1} parent=55 // pred_check
          %p5472 = pneg %p175
        $region58: #{decoder_forward.1} parent=55 // pred_check_branch
          %5474 = sbr.rel (%p5472) target = $region60
        $region59: #{decoder_forward.1} parent=55 // pred_region
          %s5475 = sand.u32 %s160, 1
          %s5476 = scalar_lea.sflag [#allocation4], %s5475
          %s5477 = sand.u32 %s160, 1
          %s5478 = smul.addr %s5477, 16
          %s5479 = scalar_lea.vmem [#allocation3], %s5478
          %5480 = dma.done %s5476, 256
        $region60: #{decoder_forward.1} parent=55 // pred_fallthru
          _
      $region56: #{decoder_forward.1} parent=5 // pred_fallthru
        _
    $region6: #{decoder_forward.1} parent=1 // loop_footer
      %s19 = sadd.s32 1, %s15
    $region7: #{decoder_forward.1} parent=1 // loop_footer_branch
      %14 = sbr.rel target = $region3
    $region8: #{decoder_forward.1} parent=1 // loop_exit
      _
    %5481 = vsyncpa [#allocation4], 1
    %s5482 = scalar_lea.sflag [#allocation4], 1
    %5483 = vsyncpa %s5482, 1

</llo_original>
